<compile_context>
chip_gen: v5e
topology: v5e:2x2
jax: 0.10.0
libtpu: 0.0.40
codegen_flags: <defaults>
</compile_context>

<pallas_src>
import functools

import jax
import jax.numpy as jnp
from jax.experimental import pallas as pl
from jax.experimental.pallas import tpu as pltpu


def _round_up(x, m):
    return ((x + m - 1) // m) * m


def _residual_block_kernel(x_ref, w1_ref, b1_ref, w2_ref, b2_ref, o_ref,
                           pad_ref, acc_ref, *, H, W, C, CP):
    """Per-sample body.

    x_ref:   (1, H, W, C)         unpadded NHWC input block (true channels)
    w*_ref:  (9, CP, CP)          per-tap weights, tap = kh*3+kw, (c_in, c_out)
    b*_ref:  (1, CP)              conv bias (f32, channel-padded)
    o_ref:   (1, H, W, C)         output block (true channels)
    pad_ref: VMEM (H+2, Wpad, CP) reflection-pad scratch (8-aligned row stride)
    acc_ref: VMEM (H*W, CP) f32   conv accumulator (shared by both convs)
    """
    eps = 1e-5
    inv_n = 1.0 / float(H * W)

    # Keep lane-padded channels [C:CP] of the pad scratch at zero so the
    # channel-padded matmul is exact.  Static no-op when CP == C.
    if CP != C:
        pad_ref[...] = jnp.zeros(pad_ref.shape, pad_ref.dtype)

    def reflect_edges():
        # Edge rows/cols are read back from the already-written interior so
        # corners come out as reflect-of-reflect (matches nn.ReflectionPad2d).
        pad_ref[0:1, 1:W + 1, :] = pad_ref[2:3, 1:W + 1, :]                # top
        pad_ref[H + 1:H + 2, 1:W + 1, :] = pad_ref[H - 1:H, 1:W + 1, :]    # bottom
        pad_ref[:, 0:1, :] = pad_ref[:, 2:3, :]                            # left
        pad_ref[:, W + 1:W + 2, :] = pad_ref[:, W - 1:W, :]                # right

    def conv3x3(w_ref, b_ref):
        # 9 accumulating shallow-K matmuls reading the padded image directly:
        # no (H*W, 9*CP) im2col scratch.  Bias is folded into the init store.
        acc_ref[...] = jnp.broadcast_to(b_ref[...], (H * W, CP))
        for kh in range(3):
            for kw in range(3):
                lhs = pad_ref[kh:kh + H, kw:kw + W, :].reshape(H * W, CP)
                acc_ref[...] += jnp.dot(
                    lhs.astype(w_ref.dtype), w_ref[kh * 3 + kw],
                    preferred_element_type=jnp.float32)
        return acc_ref[...]

    def instance_norm(y):
        # Two-pass stats (biased variance, eps=1e-5); matches
        # nn.InstanceNorm2d(C) defaults (affine=False, no running stats).
        m = jnp.sum(y, axis=0, keepdims=True) * inv_n
        d = y - m
        v = jnp.sum(d * d, axis=0, keepdims=True) * inv_n
        return d * jax.lax.rsqrt(v + eps)

    # conv1 -> instance norm -> relu
    pad_ref[1:H + 1, 1:W + 1, :C] = x_ref[0]
    reflect_edges()
    h = jnp.maximum(instance_norm(conv3x3(w1_ref, b1_ref)), 0.0)    # (H*W, CP)

    # conv2 -> instance norm -> residual add
    pad_ref[1:H + 1, 1:W + 1, :] = h.reshape(H, W, CP)
    reflect_edges()
    z = instance_norm(conv3x3(w2_ref, b2_ref))                      # (H*W, CP)
    o_ref[0] = (x_ref[0] + z[:, :C].reshape(H, W, C)).astype(o_ref.dtype)


def residual_block(x_nchw, w1, b1, w2, b2, *, matmul_dtype=jnp.float32):
    """x_nchw: (N, C, H, W); w*: (C, C, 3, 3); b*: (C,).  Returns NCHW."""
    N, C, H, W = x_nchw.shape
    assert H >= 2 and W >= 2, "ReflectionPad2d(1) requires H, W >= 2"

    CP = _round_up(C, 128)      # lane-dense compute channel count
    WP = _round_up(W + 2, 8)    # 8-aligned row stride for the pad scratch

    # Activations stay at the TRUE channel count in HBM (NHWC).
    x = jnp.transpose(x_nchw, (0, 2, 3, 1))

    def prep_w(w):
        # (C_out, C_in, 3, 3) -> (kh, kw, C_in, C_out) -> pad -> (9, CP, CP)
        wk = jnp.transpose(w, (2, 3, 1, 0))
        if CP != C:
            wk = jnp.pad(wk, ((0, 0), (0, 0), (0, CP - C), (0, CP - C)))
        return wk.reshape(9, CP, CP).astype(matmul_dtype)

    def prep_b(b):
        if CP != C:
            b = jnp.pad(b, (0, CP - C))
        return b.reshape(1, CP).astype(jnp.float32)

    w1k, w2k = prep_w(w1), prep_w(w2)
    b1k, b2k = prep_b(b1), prep_b(b2)

    # VMEM budget (generation-aware).
    bpe = 4
    wpe = jnp.dtype(matmul_dtype).itemsize
    est = (2 * 2 * H * W * C * bpe                  # x + out blocks, 2x buffered
           + 2 * (9 * CP * CP * wpe + CP * bpe)     # weights + bias, 1x buffered
           + (H + 2) * WP * CP * bpe                # reflection-pad scratch
           + H * W * CP * bpe                       # conv accumulator scratch
           + 6 * H * W * CP * bpe)                  # f32 intermediates headroom
    try:
        cap = getattr(pltpu.get_tpu_info(), "vmem_capacity_bytes", 64 * 2 ** 20)
    except Exception:
        cap = 64 * 2 ** 20
    # Leave ~1/8 of physical VMEM for compiler-internal / relayout scratch.
    vmem_limit = int(min(cap * 7 // 8, max(32 * 2 ** 20, 2 * est)))

    out = pl.pallas_call(
        functools.partial(_residual_block_kernel, H=H, W=W, C=C, CP=CP),
        out_shape=jax.ShapeDtypeStruct((N, H, W, C), x.dtype),
        grid=(N,),
        in_specs=[
            pl.BlockSpec((1, H, W, C), lambda n: (n, 0, 0, 0)),
            pl.BlockSpec((9, CP, CP), lambda n: (0, 0, 0),
                         pipeline_mode=pl.Buffered(1)),
            pl.BlockSpec((1, CP), lambda n: (0, 0),
                         pipeline_mode=pl.Buffered(1)),
            pl.BlockSpec((9, CP, CP), lambda n: (0, 0, 0),
                         pipeline_mode=pl.Buffered(1)),
            pl.BlockSpec((1, CP), lambda n: (0, 0),
                         pipeline_mode=pl.Buffered(1)),
        ],
        out_specs=pl.BlockSpec((1, H, W, C), lambda n: (n, 0, 0, 0)),
        scratch_shapes=[
            pltpu.VMEM((H + 2, WP, CP), jnp.float32),   # reflection-pad buffer
            pltpu.VMEM((H * W, CP), jnp.float32),       # conv accumulator
        ],
        compiler_params=pltpu.CompilerParams(
            dimension_semantics=("parallel",),
            vmem_limit_bytes=vmem_limit),
    )(x, w1k, b1k, w2k, b2k)

    return jnp.transpose(out, (0, 3, 1, 2))             # back to NCHW


def reference_forward(x_nchw, w1, b1, w2, b2):
    """Pure-JAX reference mirroring the PyTorch module (for verification)."""
    def conv(x, w, b):
        xp = jnp.pad(x, ((0, 0), (0, 0), (1, 1), (1, 1)), mode="reflect")
        y = jax.lax.conv_general_dilated(
            xp, w, window_strides=(1, 1), padding="VALID",
            dimension_numbers=("NCHW", "OIHW", "NCHW"))
        return y + b[None, :, None, None]

    def inorm(y):
        m = jnp.mean(y, axis=(2, 3), keepdims=True)
        v = jnp.mean((y - m) ** 2, axis=(2, 3), keepdims=True)
        return (y - m) * jax.lax.rsqrt(v + 1e-5)

    h = jnp.maximum(inorm(conv(x_nchw, w1, b1)), 0.0)
    h = inorm(conv(h, w2, b2))
    return x_nchw + h


if __name__ == "__main__":
    N, C, H, W = 2, 4, 16, 16
    key = jax.random.PRNGKey(0)
    kx, kw1, kb1, kw2, kb2 = jax.random.split(key, 5)

    x = jax.random.normal(kx, (N, C, H, W), dtype=jnp.float32)
    # Deterministic synthetic parameters (shapes match nn.Conv2d(C, C, 3)).
    w1 = 0.1 * jax.random.normal(kw1, (C, C, 3, 3), dtype=jnp.float32)
    b1 = 0.1 * jax.random.normal(kb1, (C,), dtype=jnp.float32)
    w2 = 0.1 * jax.random.normal(kw2, (C, C, 3, 3), dtype=jnp.float32)
    b2 = 0.1 * jax.random.normal(kb2, (C,), dtype=jnp.float32)

    ref = jax.block_until_ready(reference_forward(x, w1, b1, w2, b2))

    # f32 matmul path: tight tolerance against the reference.
    out = jax.block_until_ready(residual_block(x, w1, b1, w2, b2))
    assert out.shape == (N, C, H, W)
    assert jnp.allclose(out, ref, atol=1e-4, rtol=1e-4), (
        float(jnp.max(jnp.abs(out - ref))))

    # bf16 matmul-operand path (f32 accumulation): looser tolerance.
    out_bf16 = jax.block_until_ready(
        residual_block(x, w1, b1, w2, b2, matmul_dtype=jnp.bfloat16))
    assert float(jnp.max(jnp.abs(out_bf16 - ref))) < 0.25

    print("KERNEL_OK")
</pallas_src>

<mosaic_0001>
module attributes {stable_mosaic.version = 11 : i64} {
  func.func @_residual_block_kernel(%arg0: i32, %arg1: memref<1x16x16x4xf32, #tpu.memory_space<vmem>>, %arg2: memref<9x128x128xf32, #tpu.memory_space<vmem>>, %arg3: memref<1x128xf32, #tpu.memory_space<vmem>>, %arg4: memref<9x128x128xf32, #tpu.memory_space<vmem>>, %arg5: memref<1x128xf32, #tpu.memory_space<vmem>>, %arg6: memref<1x16x16x4xf32, #tpu.memory_space<vmem>>, %arg7: memref<18x24x128xf32, #tpu.memory_space<vmem>>, %arg8: memref<256x128xf32, #tpu.memory_space<vmem>>) attributes {dimension_semantics = [#tpu.dimension_semantics<parallel>], iteration_bounds = array<i64: 2>, scalar_prefetch = 0 : i64, scratch_operands = 2 : i64, tpu.core_type = #tpu.core_type<tc>, window_params = [{transform_indices = @transform_0, window_bounds = array<i64: 1, 16, 16, 4>}, {pipeline_mode = #tpu.pipeline_mode<synchronous>, transform_indices = @transform_1, window_bounds = array<i64: 9, 128, 128>}, {pipeline_mode = #tpu.pipeline_mode<synchronous>, transform_indices = @transform_2, window_bounds = array<i64: 1, 128>}, {pipeline_mode = #tpu.pipeline_mode<synchronous>, transform_indices = @transform_3, window_bounds = array<i64: 9, 128, 128>}, {pipeline_mode = #tpu.pipeline_mode<synchronous>, transform_indices = @transform_4, window_bounds = array<i64: 1, 128>}, {transform_indices = @transform_5, window_bounds = array<i64: 1, 16, 16, 4>}]} {
    %cst = arith.constant 0.000000e+00 : f32
    %0 = vector.broadcast %cst : f32 to vector<18x24x128xf32>
    %c0 = arith.constant 0 : index
    %c0_0 = arith.constant 0 : index
    %c0_1 = arith.constant 0 : index
    %1 = vector.load %arg7[%c0, %c0_0, %c0_1] : memref<18x24x128xf32, #tpu.memory_space<vmem>>, vector<18x24x128xf32>
    tpu.vector_store %arg7[%c0, %c0_0, %c0_1], %0 {strides = array<i32>} : memref<18x24x128xf32, #tpu.memory_space<vmem>>, vector<18x24x128xf32>,
    %c0_2 = arith.constant 0 : index
    %c0_3 = arith.constant 0 : index
    %c0_4 = arith.constant 0 : index
    %c0_5 = arith.constant 0 : index
    %2 = vector.load %arg1[%c0_2, %c0_3, %c0_4, %c0_5] : memref<1x16x16x4xf32, #tpu.memory_space<vmem>>, vector<1x16x16x4xf32>
    %3 = vector.shape_cast %2 : vector<1x16x16x4xf32> to vector<16x16x4xf32>
    %c1 = arith.constant 1 : index
    %c1_6 = arith.constant 1 : index
    %c0_7 = arith.constant 0 : index
    %4 = vector.load %arg7[%c1, %c1_6, %c0_7] : memref<18x24x128xf32, #tpu.memory_space<vmem>>, vector<16x16x4xf32>
    tpu.vector_store %arg7[%c1, %c1_6, %c0_7], %3 {strides = array<i32>} : memref<18x24x128xf32, #tpu.memory_space<vmem>>, vector<16x16x4xf32>,
    %c2 = arith.constant 2 : index
    %c1_8 = arith.constant 1 : index
    %c0_9 = arith.constant 0 : index
    %5 = vector.load %arg7[%c2, %c1_8, %c0_9] : memref<18x24x128xf32, #tpu.memory_space<vmem>>, vector<1x16x128xf32>
    %c0_10 = arith.constant 0 : index
    %c1_11 = arith.constant 1 : index
    %c0_12 = arith.constant 0 : index
    %6 = vector.load %arg7[%c0_10, %c1_11, %c0_12] : memref<18x24x128xf32, #tpu.memory_space<vmem>>, vector<1x16x128xf32>
    tpu.vector_store %arg7[%c0_10, %c1_11, %c0_12], %5 {strides = array<i32>} : memref<18x24x128xf32, #tpu.memory_space<vmem>>, vector<1x16x128xf32>,
    %c15 = arith.constant 15 : index
    %c1_13 = arith.constant 1 : index
    %c0_14 = arith.constant 0 : index
    %7 = vector.load %arg7[%c15, %c1_13, %c0_14] : memref<18x24x128xf32, #tpu.memory_space<vmem>>, vector<1x16x128xf32>
    %c17 = arith.constant 17 : index
    %c1_15 = arith.constant 1 : index
    %c0_16 = arith.constant 0 : index
    %8 = vector.load %arg7[%c17, %c1_15, %c0_16] : memref<18x24x128xf32, #tpu.memory_space<vmem>>, vector<1x16x128xf32>
    tpu.vector_store %arg7[%c17, %c1_15, %c0_16], %7 {strides = array<i32>} : memref<18x24x128xf32, #tpu.memory_space<vmem>>, vector<1x16x128xf32>,
    %c0_17 = arith.constant 0 : index
    %c2_18 = arith.constant 2 : index
    %c0_19 = arith.constant 0 : index
    %9 = vector.load %arg7[%c0_17, %c2_18, %c0_19] : memref<18x24x128xf32, #tpu.memory_space<vmem>>, vector<18x1x128xf32>
    %c0_20 = arith.constant 0 : index
    %c0_21 = arith.constant 0 : index
    %c0_22 = arith.constant 0 : index
    %10 = vector.load %arg7[%c0_20, %c0_21, %c0_22] : memref<18x24x128xf32, #tpu.memory_space<vmem>>, vector<18x1x128xf32>
    tpu.vector_store %arg7[%c0_20, %c0_21, %c0_22], %9 {strides = array<i32>} : memref<18x24x128xf32, #tpu.memory_space<vmem>>, vector<18x1x128xf32>,
    %c0_23 = arith.constant 0 : index
    %c15_24 = arith.constant 15 : index
    %c0_25 = arith.constant 0 : index
    %11 = vector.load %arg7[%c0_23, %c15_24, %c0_25] : memref<18x24x128xf32, #tpu.memory_space<vmem>>, vector<18x1x128xf32>
    %c0_26 = arith.constant 0 : index
    %c17_27 = arith.constant 17 : index
    %c0_28 = arith.constant 0 : index
    %12 = vector.load %arg7[%c0_26, %c17_27, %c0_28] : memref<18x24x128xf32, #tpu.memory_space<vmem>>, vector<18x1x128xf32>
    tpu.vector_store %arg7[%c0_26, %c17_27, %c0_28], %11 {strides = array<i32>} : memref<18x24x128xf32, #tpu.memory_space<vmem>>, vector<18x1x128xf32>,
    %c0_29 = arith.constant 0 : index
    %c0_30 = arith.constant 0 : index
    %13 = vector.load %arg3[%c0_29, %c0_30] : memref<1x128xf32, #tpu.memory_space<vmem>>, vector<1x128xf32>
    %14 = vector.shape_cast %13 : vector<1x128xf32> to vector<1x128xf32>
    %15 = vector.broadcast %14 : vector<1x128xf32> to vector<256x128xf32>
    %c0_31 = arith.constant 0 : index
    %c0_32 = arith.constant 0 : index
    %16 = vector.load %arg8[%c0_31, %c0_32] : memref<256x128xf32, #tpu.memory_space<vmem>>, vector<256x128xf32>
    tpu.vector_store %arg8[%c0_31, %c0_32], %15 {strides = array<i32>} : memref<256x128xf32, #tpu.memory_space<vmem>>, vector<256x128xf32>,
    %c0_33 = arith.constant 0 : index
    %c0_34 = arith.constant 0 : index
    %c0_35 = arith.constant 0 : index
    %17 = vector.load %arg7[%c0_33, %c0_34, %c0_35] : memref<18x24x128xf32, #tpu.memory_space<vmem>>, vector<16x16x128xf32>
    %18 = vector.shape_cast %17 : vector<16x16x128xf32> to vector<256x128xf32>
    %c0_36 = arith.constant 0 : index
    %c0_37 = arith.constant 0 : index
    %19 = vector.load %arg8[%c0_36, %c0_37] : memref<256x128xf32, #tpu.memory_space<vmem>>, vector<256x128xf32>
    %c0_38 = arith.constant 0 : index
    %c0_39 = arith.constant 0 : index
    %c0_40 = arith.constant 0 : index
    %20 = vector.load %arg2[%c0_38, %c0_39, %c0_40] : memref<9x128x128xf32, #tpu.memory_space<vmem>>, vector<1x128x128xf32>
    %21 = vector.shape_cast %20 : vector<1x128x128xf32> to vector<128x128xf32>
    %cst_41 = arith.constant dense<0.000000e+00> : vector<256x128xf32>
    %22 = tpu.matmul %18, %21, %cst_41 {dimension_numbers = #tpu.dot_dimension_numbers<[1], [0], [0], [1], [0, 0, 1, 1], [], []>} : vector<256x128xf32>, vector<128x128xf32>, vector<256x128xf32> -> vector<256x128xf32>
    %23 = arith.addf %19, %22 : vector<256x128xf32>
    %c0_42 = arith.constant 0 : index
    %c0_43 = arith.constant 0 : index
    %24 = vector.load %arg8[%c0_42, %c0_43] : memref<256x128xf32, #tpu.memory_space<vmem>>, vector<256x128xf32>
    tpu.vector_store %arg8[%c0_42, %c0_43], %23 {strides = array<i32>} : memref<256x128xf32, #tpu.memory_space<vmem>>, vector<256x128xf32>,
    %c0_44 = arith.constant 0 : index
    %c1_45 = arith.constant 1 : index
    %c0_46 = arith.constant 0 : index
    %25 = vector.load %arg7[%c0_44, %c1_45, %c0_46] : memref<18x24x128xf32, #tpu.memory_space<vmem>>, vector<16x16x128xf32>
    %26 = vector.shape_cast %25 : vector<16x16x128xf32> to vector<256x128xf32>
    %c0_47 = arith.constant 0 : index
    %c0_48 = arith.constant 0 : index
    %27 = vector.load %arg8[%c0_47, %c0_48] : memref<256x128xf32, #tpu.memory_space<vmem>>, vector<256x128xf32>
    %c1_49 = arith.constant 1 : index
    %c0_50 = arith.constant 0 : index
    %c0_51 = arith.constant 0 : index
    %28 = vector.load %arg2[%c1_49, %c0_50, %c0_51] : memref<9x128x128xf32, #tpu.memory_space<vmem>>, vector<1x128x128xf32>
    %29 = vector.shape_cast %28 : vector<1x128x128xf32> to vector<128x128xf32>
    %cst_52 = arith.constant dense<0.000000e+00> : vector<256x128xf32>
    %30 = tpu.matmul %26, %29, %cst_52 {dimension_numbers = #tpu.dot_dimension_numbers<[1], [0], [0], [1], [0, 0, 1, 1], [], []>} : vector<256x128xf32>, vector<128x128xf32>, vector<256x128xf32> -> vector<256x128xf32>
    %31 = arith.addf %27, %30 : vector<256x128xf32>
    %c0_53 = arith.constant 0 : index
    %c0_54 = arith.constant 0 : index
    %32 = vector.load %arg8[%c0_53, %c0_54] : memref<256x128xf32, #tpu.memory_space<vmem>>, vector<256x128xf32>
    tpu.vector_store %arg8[%c0_53, %c0_54], %31 {strides = array<i32>} : memref<256x128xf32, #tpu.memory_space<vmem>>, vector<256x128xf32>,
    %c0_55 = arith.constant 0 : index
    %c2_56 = arith.constant 2 : index
    %c0_57 = arith.constant 0 : index
    %33 = vector.load %arg7[%c0_55, %c2_56, %c0_57] : memref<18x24x128xf32, #tpu.memory_space<vmem>>, vector<16x16x128xf32>
    %34 = vector.shape_cast %33 : vector<16x16x128xf32> to vector<256x128xf32>
    %c0_58 = arith.constant 0 : index
    %c0_59 = arith.constant 0 : index
    %35 = vector.load %arg8[%c0_58, %c0_59] : memref<256x128xf32, #tpu.memory_space<vmem>>, vector<256x128xf32>
    %c2_60 = arith.constant 2 : index
    %c0_61 = arith.constant 0 : index
    %c0_62 = arith.constant 0 : index
    %36 = vector.load %arg2[%c2_60, %c0_61, %c0_62] : memref<9x128x128xf32, #tpu.memory_space<vmem>>, vector<1x128x128xf32>
    %37 = vector.shape_cast %36 : vector<1x128x128xf32> to vector<128x128xf32>
    %cst_63 = arith.constant dense<0.000000e+00> : vector<256x128xf32>
    %38 = tpu.matmul %34, %37, %cst_63 {dimension_numbers = #tpu.dot_dimension_numbers<[1], [0], [0], [1], [0, 0, 1, 1], [], []>} : vector<256x128xf32>, vector<128x128xf32>, vector<256x128xf32> -> vector<256x128xf32>
    %39 = arith.addf %35, %38 : vector<256x128xf32>
    %c0_64 = arith.constant 0 : index
    %c0_65 = arith.constant 0 : index
    %40 = vector.load %arg8[%c0_64, %c0_65] : memref<256x128xf32, #tpu.memory_space<vmem>>, vector<256x128xf32>
    tpu.vector_store %arg8[%c0_64, %c0_65], %39 {strides = array<i32>} : memref<256x128xf32, #tpu.memory_space<vmem>>, vector<256x128xf32>,
    %c1_66 = arith.constant 1 : index
    %c0_67 = arith.constant 0 : index
    %c0_68 = arith.constant 0 : index
    %41 = vector.load %arg7[%c1_66, %c0_67, %c0_68] : memref<18x24x128xf32, #tpu.memory_space<vmem>>, vector<16x16x128xf32>
    %42 = vector.shape_cast %41 : vector<16x16x128xf32> to vector<256x128xf32>
    %c0_69 = arith.constant 0 : index
    %c0_70 = arith.constant 0 : index
    %43 = vector.load %arg8[%c0_69, %c0_70] : memref<256x128xf32, #tpu.memory_space<vmem>>, vector<256x128xf32>
    %c3 = arith.constant 3 : index
    %c0_71 = arith.constant 0 : index
    %c0_72 = arith.constant 0 : index
    %44 = vector.load %arg2[%c3, %c0_71, %c0_72] : memref<9x128x128xf32, #tpu.memory_space<vmem>>, vector<1x128x128xf32>
    %45 = vector.shape_cast %44 : vector<1x128x128xf32> to vector<128x128xf32>
    %cst_73 = arith.constant dense<0.000000e+00> : vector<256x128xf32>
    %46 = tpu.matmul %42, %45, %cst_73 {dimension_numbers = #tpu.dot_dimension_numbers<[1], [0], [0], [1], [0, 0, 1, 1], [], []>} : vector<256x128xf32>, vector<128x128xf32>, vector<256x128xf32> -> vector<256x128xf32>
    %47 = arith.addf %43, %46 : vector<256x128xf32>
    %c0_74 = arith.constant 0 : index
    %c0_75 = arith.constant 0 : index
    %48 = vector.load %arg8[%c0_74, %c0_75] : memref<256x128xf32, #tpu.memory_space<vmem>>, vector<256x128xf32>
    tpu.vector_store %arg8[%c0_74, %c0_75], %47 {strides = array<i32>} : memref<256x128xf32, #tpu.memory_space<vmem>>, vector<256x128xf32>,
    %c1_76 = arith.constant 1 : index
    %c1_77 = arith.constant 1 : index
    %c0_78 = arith.constant 0 : index
    %49 = vector.load %arg7[%c1_76, %c1_77, %c0_78] : memref<18x24x128xf32, #tpu.memory_space<vmem>>, vector<16x16x128xf32>
    %50 = vector.shape_cast %49 : vector<16x16x128xf32> to vector<256x128xf32>
    %c0_79 = arith.constant 0 : index
    %c0_80 = arith.constant 0 : index
    %51 = vector.load %arg8[%c0_79, %c0_80] : memref<256x128xf32, #tpu.memory_space<vmem>>, vector<256x128xf32>
    %c4 = arith.constant 4 : index
    %c0_81 = arith.constant 0 : index
    %c0_82 = arith.constant 0 : index
    %52 = vector.load %arg2[%c4, %c0_81, %c0_82] : memref<9x128x128xf32, #tpu.memory_space<vmem>>, vector<1x128x128xf32>
    %53 = vector.shape_cast %52 : vector<1x128x128xf32> to vector<128x128xf32>
    %cst_83 = arith.constant dense<0.000000e+00> : vector<256x128xf32>
    %54 = tpu.matmul %50, %53, %cst_83 {dimension_numbers = #tpu.dot_dimension_numbers<[1], [0], [0], [1], [0, 0, 1, 1], [], []>} : vector<256x128xf32>, vector<128x128xf32>, vector<256x128xf32> -> vector<256x128xf32>
    %55 = arith.addf %51, %54 : vector<256x128xf32>
    %c0_84 = arith.constant 0 : index
    %c0_85 = arith.constant 0 : index
    %56 = vector.load %arg8[%c0_84, %c0_85] : memref<256x128xf32, #tpu.memory_space<vmem>>, vector<256x128xf32>
    tpu.vector_store %arg8[%c0_84, %c0_85], %55 {strides = array<i32>} : memref<256x128xf32, #tpu.memory_space<vmem>>, vector<256x128xf32>,
    %c1_86 = arith.constant 1 : index
    %c2_87 = arith.constant 2 : index
    %c0_88 = arith.constant 0 : index
    %57 = vector.load %arg7[%c1_86, %c2_87, %c0_88] : memref<18x24x128xf32, #tpu.memory_space<vmem>>, vector<16x16x128xf32>
    %58 = vector.shape_cast %57 : vector<16x16x128xf32> to vector<256x128xf32>
    %c0_89 = arith.constant 0 : index
    %c0_90 = arith.constant 0 : index
    %59 = vector.load %arg8[%c0_89, %c0_90] : memref<256x128xf32, #tpu.memory_space<vmem>>, vector<256x128xf32>
    %c5 = arith.constant 5 : index
    %c0_91 = arith.constant 0 : index
    %c0_92 = arith.constant 0 : index
    %60 = vector.load %arg2[%c5, %c0_91, %c0_92] : memref<9x128x128xf32, #tpu.memory_space<vmem>>, vector<1x128x128xf32>
    %61 = vector.shape_cast %60 : vector<1x128x128xf32> to vector<128x128xf32>
    %cst_93 = arith.constant dense<0.000000e+00> : vector<256x128xf32>
    %62 = tpu.matmul %58, %61, %cst_93 {dimension_numbers = #tpu.dot_dimension_numbers<[1], [0], [0], [1], [0, 0, 1, 1], [], []>} : vector<256x128xf32>, vector<128x128xf32>, vector<256x128xf32> -> vector<256x128xf32>
    %63 = arith.addf %59, %62 : vector<256x128xf32>
    %c0_94 = arith.constant 0 : index
    %c0_95 = arith.constant 0 : index
    %64 = vector.load %arg8[%c0_94, %c0_95] : memref<256x128xf32, #tpu.memory_space<vmem>>, vector<256x128xf32>
    tpu.vector_store %arg8[%c0_94, %c0_95], %63 {strides = array<i32>} : memref<256x128xf32, #tpu.memory_space<vmem>>, vector<256x128xf32>,
    %c2_96 = arith.constant 2 : index
    %c0_97 = arith.constant 0 : index
    %c0_98 = arith.constant 0 : index
    %65 = vector.load %arg7[%c2_96, %c0_97, %c0_98] : memref<18x24x128xf32, #tpu.memory_space<vmem>>, vector<16x16x128xf32>
    %66 = vector.shape_cast %65 : vector<16x16x128xf32> to vector<256x128xf32>
    %c0_99 = arith.constant 0 : index
    %c0_100 = arith.constant 0 : index
    %67 = vector.load %arg8[%c0_99, %c0_100] : memref<256x128xf32, #tpu.memory_space<vmem>>, vector<256x128xf32>
    %c6 = arith.constant 6 : index
    %c0_101 = arith.constant 0 : index
    %c0_102 = arith.constant 0 : index
    %68 = vector.load %arg2[%c6, %c0_101, %c0_102] : memref<9x128x128xf32, #tpu.memory_space<vmem>>, vector<1x128x128xf32>
    %69 = vector.shape_cast %68 : vector<1x128x128xf32> to vector<128x128xf32>
    %cst_103 = arith.constant dense<0.000000e+00> : vector<256x128xf32>
    %70 = tpu.matmul %66, %69, %cst_103 {dimension_numbers = #tpu.dot_dimension_numbers<[1], [0], [0], [1], [0, 0, 1, 1], [], []>} : vector<256x128xf32>, vector<128x128xf32>, vector<256x128xf32> -> vector<256x128xf32>
    %71 = arith.addf %67, %70 : vector<256x128xf32>
    %c0_104 = arith.constant 0 : index
    %c0_105 = arith.constant 0 : index
    %72 = vector.load %arg8[%c0_104, %c0_105] : memref<256x128xf32, #tpu.memory_space<vmem>>, vector<256x128xf32>
    tpu.vector_store %arg8[%c0_104, %c0_105], %71 {strides = array<i32>} : memref<256x128xf32, #tpu.memory_space<vmem>>, vector<256x128xf32>,
    %c2_106 = arith.constant 2 : index
    %c1_107 = arith.constant 1 : index
    %c0_108 = arith.constant 0 : index
    %73 = vector.load %arg7[%c2_106, %c1_107, %c0_108] : memref<18x24x128xf32, #tpu.memory_space<vmem>>, vector<16x16x128xf32>
    %74 = vector.shape_cast %73 : vector<16x16x128xf32> to vector<256x128xf32>
    %c0_109 = arith.constant 0 : index
    %c0_110 = arith.constant 0 : index
    %75 = vector.load %arg8[%c0_109, %c0_110] : memref<256x128xf32, #tpu.memory_space<vmem>>, vector<256x128xf32>
    %c7 = arith.constant 7 : index
    %c0_111 = arith.constant 0 : index
    %c0_112 = arith.constant 0 : index
    %76 = vector.load %arg2[%c7, %c0_111, %c0_112] : memref<9x128x128xf32, #tpu.memory_space<vmem>>, vector<1x128x128xf32>
    %77 = vector.shape_cast %76 : vector<1x128x128xf32> to vector<128x128xf32>
    %cst_113 = arith.constant dense<0.000000e+00> : vector<256x128xf32>
    %78 = tpu.matmul %74, %77, %cst_113 {dimension_numbers = #tpu.dot_dimension_numbers<[1], [0], [0], [1], [0, 0, 1, 1], [], []>} : vector<256x128xf32>, vector<128x128xf32>, vector<256x128xf32> -> vector<256x128xf32>
    %79 = arith.addf %75, %78 : vector<256x128xf32>
    %c0_114 = arith.constant 0 : index
    %c0_115 = arith.constant 0 : index
    %80 = vector.load %arg8[%c0_114, %c0_115] : memref<256x128xf32, #tpu.memory_space<vmem>>, vector<256x128xf32>
    tpu.vector_store %arg8[%c0_114, %c0_115], %79 {strides = array<i32>} : memref<256x128xf32, #tpu.memory_space<vmem>>, vector<256x128xf32>,
    %c2_116 = arith.constant 2 : index
    %c2_117 = arith.constant 2 : index
    %c0_118 = arith.constant 0 : index
    %81 = vector.load %arg7[%c2_116, %c2_117, %c0_118] : memref<18x24x128xf32, #tpu.memory_space<vmem>>, vector<16x16x128xf32>
    %82 = vector.shape_cast %81 : vector<16x16x128xf32> to vector<256x128xf32>
    %c0_119 = arith.constant 0 : index
    %c0_120 = arith.constant 0 : index
    %83 = vector.load %arg8[%c0_119, %c0_120] : memref<256x128xf32, #tpu.memory_space<vmem>>, vector<256x128xf32>
    %c8 = arith.constant 8 : index
    %c0_121 = arith.constant 0 : index
    %c0_122 = arith.constant 0 : index
    %84 = vector.load %arg2[%c8, %c0_121, %c0_122] : memref<9x128x128xf32, #tpu.memory_space<vmem>>, vector<1x128x128xf32>
    %85 = vector.shape_cast %84 : vector<1x128x128xf32> to vector<128x128xf32>
    %cst_123 = arith.constant dense<0.000000e+00> : vector<256x128xf32>
    %86 = tpu.matmul %82, %85, %cst_123 {dimension_numbers = #tpu.dot_dimension_numbers<[1], [0], [0], [1], [0, 0, 1, 1], [], []>} : vector<256x128xf32>, vector<128x128xf32>, vector<256x128xf32> -> vector<256x128xf32>
    %87 = arith.addf %83, %86 : vector<256x128xf32>
    %c0_124 = arith.constant 0 : index
    %c0_125 = arith.constant 0 : index
    %88 = vector.load %arg8[%c0_124, %c0_125] : memref<256x128xf32, #tpu.memory_space<vmem>>, vector<256x128xf32>
    tpu.vector_store %arg8[%c0_124, %c0_125], %87 {strides = array<i32>} : memref<256x128xf32, #tpu.memory_space<vmem>>, vector<256x128xf32>,
    %c0_126 = arith.constant 0 : index
    %c0_127 = arith.constant 0 : index
    %89 = vector.load %arg8[%c0_126, %c0_127] : memref<256x128xf32, #tpu.memory_space<vmem>>, vector<256x128xf32>
    %cst_128 = arith.constant dense<0.000000e+00> : vector<128xf32>
    %90 = vector.multi_reduction <add>, %89, %cst_128 [0] : vector<256x128xf32> to vector<128xf32>
    %91 = vector.shape_cast %90 : vector<128xf32> to vector<1x128xf32>
    %cst_129 = arith.constant 3.906250e-03 : f32
    %92 = vector.broadcast %cst_129 : f32 to vector<1x128xf32>
    %93 = arith.mulf %91, %92 : vector<1x128xf32>
    %94 = vector.broadcast %93 : vector<1x128xf32> to vector<256x128xf32>
    %95 = arith.subf %89, %94 : vector<256x128xf32>
    %96 = arith.mulf %95, %95 : vector<256x128xf32>
    %cst_130 = arith.constant dense<0.000000e+00> : vector<128xf32>
    %97 = vector.multi_reduction <add>, %96, %cst_130 [0] : vector<256x128xf32> to vector<128xf32>
    %98 = vector.shape_cast %97 : vector<128xf32> to vector<1x128xf32>
    %cst_131 = arith.constant 3.906250e-03 : f32
    %99 = vector.broadcast %cst_131 : f32 to vector<1x128xf32>
    %100 = arith.mulf %98, %99 : vector<1x128xf32>
    %cst_132 = arith.constant 9.99999974E-6 : f32
    %101 = vector.broadcast %cst_132 : f32 to vector<1x128xf32>
    %102 = arith.addf %100, %101 : vector<1x128xf32>
    %103 = math.rsqrt %102 : vector<1x128xf32>
    %104 = vector.broadcast %103 : vector<1x128xf32> to vector<256x128xf32>
    %105 = arith.mulf %95, %104 : vector<256x128xf32>
    %cst_133 = arith.constant 0.000000e+00 : f32
    %106 = vector.broadcast %cst_133 : f32 to vector<256x128xf32>
    %107 = arith.maximumf %105, %106 : vector<256x128xf32>
    %108 = vector.shape_cast %107 : vector<256x128xf32> to vector<16x16x128xf32>
    %c1_134 = arith.constant 1 : index
    %c1_135 = arith.constant 1 : index
    %c0_136 = arith.constant 0 : index
    %109 = vector.load %arg7[%c1_134, %c1_135, %c0_136] : memref<18x24x128xf32, #tpu.memory_space<vmem>>, vector<16x16x128xf32>
    tpu.vector_store %arg7[%c1_134, %c1_135, %c0_136], %108 {strides = array<i32>} : memref<18x24x128xf32, #tpu.memory_space<vmem>>, vector<16x16x128xf32>,
    %c2_137 = arith.constant 2 : index
    %c1_138 = arith.constant 1 : index
    %c0_139 = arith.constant 0 : index
    %110 = vector.load %arg7[%c2_137, %c1_138, %c0_139] : memref<18x24x128xf32, #tpu.memory_space<vmem>>, vector<1x16x128xf32>
    %c0_140 = arith.constant 0 : index
    %c1_141 = arith.constant 1 : index
    %c0_142 = arith.constant 0 : index
    %111 = vector.load %arg7[%c0_140, %c1_141, %c0_142] : memref<18x24x128xf32, #tpu.memory_space<vmem>>, vector<1x16x128xf32>
    tpu.vector_store %arg7[%c0_140, %c1_141, %c0_142], %110 {strides = array<i32>} : memref<18x24x128xf32, #tpu.memory_space<vmem>>, vector<1x16x128xf32>,
    %c15_143 = arith.constant 15 : index
    %c1_144 = arith.constant 1 : index
    %c0_145 = arith.constant 0 : index
    %112 = vector.load %arg7[%c15_143, %c1_144, %c0_145] : memref<18x24x128xf32, #tpu.memory_space<vmem>>, vector<1x16x128xf32>
    %c17_146 = arith.constant 17 : index
    %c1_147 = arith.constant 1 : index
    %c0_148 = arith.constant 0 : index
    %113 = vector.load %arg7[%c17_146, %c1_147, %c0_148] : memref<18x24x128xf32, #tpu.memory_space<vmem>>, vector<1x16x128xf32>
    tpu.vector_store %arg7[%c17_146, %c1_147, %c0_148], %112 {strides = array<i32>} : memref<18x24x128xf32, #tpu.memory_space<vmem>>, vector<1x16x128xf32>,
    %c0_149 = arith.constant 0 : index
    %c2_150 = arith.constant 2 : index
    %c0_151 = arith.constant 0 : index
    %114 = vector.load %arg7[%c0_149, %c2_150, %c0_151] : memref<18x24x128xf32, #tpu.memory_space<vmem>>, vector<18x1x128xf32>
    %c0_152 = arith.constant 0 : index
    %c0_153 = arith.constant 0 : index
    %c0_154 = arith.constant 0 : index
    %115 = vector.load %arg7[%c0_152, %c0_153, %c0_154] : memref<18x24x128xf32, #tpu.memory_space<vmem>>, vector<18x1x128xf32>
    tpu.vector_store %arg7[%c0_152, %c0_153, %c0_154], %114 {strides = array<i32>} : memref<18x24x128xf32, #tpu.memory_space<vmem>>, vector<18x1x128xf32>,
    %c0_155 = arith.constant 0 : index
    %c15_156 = arith.constant 15 : index
    %c0_157 = arith.constant 0 : index
    %116 = vector.load %arg7[%c0_155, %c15_156, %c0_157] : memref<18x24x128xf32, #tpu.memory_space<vmem>>, vector<18x1x128xf32>
    %c0_158 = arith.constant 0 : index
    %c17_159 = arith.constant 17 : index
    %c0_160 = arith.constant 0 : index
    %117 = vector.load %arg7[%c0_158, %c17_159, %c0_160] : memref<18x24x128xf32, #tpu.memory_space<vmem>>, vector<18x1x128xf32>
    tpu.vector_store %arg7[%c0_158, %c17_159, %c0_160], %116 {strides = array<i32>} : memref<18x24x128xf32, #tpu.memory_space<vmem>>, vector<18x1x128xf32>,
    %c0_161 = arith.constant 0 : index
    %c0_162 = arith.constant 0 : index
    %118 = vector.load %arg5[%c0_161, %c0_162] : memref<1x128xf32, #tpu.memory_space<vmem>>, vector<1x128xf32>
    %119 = vector.shape_cast %118 : vector<1x128xf32> to vector<1x128xf32>
    %120 = vector.broadcast %119 : vector<1x128xf32> to vector<256x128xf32>
    %c0_163 = arith.constant 0 : index
    %c0_164 = arith.constant 0 : index
    %121 = vector.load %arg8[%c0_163, %c0_164] : memref<256x128xf32, #tpu.memory_space<vmem>>, vector<256x128xf32>
    tpu.vector_store %arg8[%c0_163, %c0_164], %120 {strides = array<i32>} : memref<256x128xf32, #tpu.memory_space<vmem>>, vector<256x128xf32>,
    %c0_165 = arith.constant 0 : index
    %c0_166 = arith.constant 0 : index
    %c0_167 = arith.constant 0 : index
    %122 = vector.load %arg7[%c0_165, %c0_166, %c0_167] : memref<18x24x128xf32, #tpu.memory_space<vmem>>, vector<16x16x128xf32>
    %123 = vector.shape_cast %122 : vector<16x16x128xf32> to vector<256x128xf32>
    %c0_168 = arith.constant 0 : index
    %c0_169 = arith.constant 0 : index
    %124 = vector.load %arg8[%c0_168, %c0_169] : memref<256x128xf32, #tpu.memory_space<vmem>>, vector<256x128xf32>
    %c0_170 = arith.constant 0 : index
    %c0_171 = arith.constant 0 : index
    %c0_172 = arith.constant 0 : index
    %125 = vector.load %arg4[%c0_170, %c0_171, %c0_172] : memref<9x128x128xf32, #tpu.memory_space<vmem>>, vector<1x128x128xf32>
    %126 = vector.shape_cast %125 : vector<1x128x128xf32> to vector<128x128xf32>
    %cst_173 = arith.constant dense<0.000000e+00> : vector<256x128xf32>
    %127 = tpu.matmul %123, %126, %cst_173 {dimension_numbers = #tpu.dot_dimension_numbers<[1], [0], [0], [1], [0, 0, 1, 1], [], []>} : vector<256x128xf32>, vector<128x128xf32>, vector<256x128xf32> -> vector<256x128xf32>
    %128 = arith.addf %124, %127 : vector<256x128xf32>
    %c0_174 = arith.constant 0 : index
    %c0_175 = arith.constant 0 : index
    %129 = vector.load %arg8[%c0_174, %c0_175] : memref<256x128xf32, #tpu.memory_space<vmem>>, vector<256x128xf32>
    tpu.vector_store %arg8[%c0_174, %c0_175], %128 {strides = array<i32>} : memref<256x128xf32, #tpu.memory_space<vmem>>, vector<256x128xf32>,
    %c0_176 = arith.constant 0 : index
    %c1_177 = arith.constant 1 : index
    %c0_178 = arith.constant 0 : index
    %130 = vector.load %arg7[%c0_176, %c1_177, %c0_178] : memref<18x24x128xf32, #tpu.memory_space<vmem>>, vector<16x16x128xf32>
    %131 = vector.shape_cast %130 : vector<16x16x128xf32> to vector<256x128xf32>
    %c0_179 = arith.constant 0 : index
    %c0_180 = arith.constant 0 : index
    %132 = vector.load %arg8[%c0_179, %c0_180] : memref<256x128xf32, #tpu.memory_space<vmem>>, vector<256x128xf32>
    %c1_181 = arith.constant 1 : index
    %c0_182 = arith.constant 0 : index
    %c0_183 = arith.constant 0 : index
    %133 = vector.load %arg4[%c1_181, %c0_182, %c0_183] : memref<9x128x128xf32, #tpu.memory_space<vmem>>, vector<1x128x128xf32>
    %134 = vector.shape_cast %133 : vector<1x128x128xf32> to vector<128x128xf32>
    %cst_184 = arith.constant dense<0.000000e+00> : vector<256x128xf32>
    %135 = tpu.matmul %131, %134, %cst_184 {dimension_numbers = #tpu.dot_dimension_numbers<[1], [0], [0], [1], [0, 0, 1, 1], [], []>} : vector<256x128xf32>, vector<128x128xf32>, vector<256x128xf32> -> vector<256x128xf32>
    %136 = arith.addf %132, %135 : vector<256x128xf32>
    %c0_185 = arith.constant 0 : index
    %c0_186 = arith.constant 0 : index
    %137 = vector.load %arg8[%c0_185, %c0_186] : memref<256x128xf32, #tpu.memory_space<vmem>>, vector<256x128xf32>
    tpu.vector_store %arg8[%c0_185, %c0_186], %136 {strides = array<i32>} : memref<256x128xf32, #tpu.memory_space<vmem>>, vector<256x128xf32>,
    %c0_187 = arith.constant 0 : index
    %c2_188 = arith.constant 2 : index
    %c0_189 = arith.constant 0 : index
    %138 = vector.load %arg7[%c0_187, %c2_188, %c0_189] : memref<18x24x128xf32, #tpu.memory_space<vmem>>, vector<16x16x128xf32>
    %139 = vector.shape_cast %138 : vector<16x16x128xf32> to vector<256x128xf32>
    %c0_190 = arith.constant 0 : index
    %c0_191 = arith.constant 0 : index
    %140 = vector.load %arg8[%c0_190, %c0_191] : memref<256x128xf32, #tpu.memory_space<vmem>>, vector<256x128xf32>
    %c2_192 = arith.constant 2 : index
    %c0_193 = arith.constant 0 : index
    %c0_194 = arith.constant 0 : index
    %141 = vector.load %arg4[%c2_192, %c0_193, %c0_194] : memref<9x128x128xf32, #tpu.memory_space<vmem>>, vector<1x128x128xf32>
    %142 = vector.shape_cast %141 : vector<1x128x128xf32> to vector<128x128xf32>
    %cst_195 = arith.constant dense<0.000000e+00> : vector<256x128xf32>
    %143 = tpu.matmul %139, %142, %cst_195 {dimension_numbers = #tpu.dot_dimension_numbers<[1], [0], [0], [1], [0, 0, 1, 1], [], []>} : vector<256x128xf32>, vector<128x128xf32>, vector<256x128xf32> -> vector<256x128xf32>
    %144 = arith.addf %140, %143 : vector<256x128xf32>
    %c0_196 = arith.constant 0 : index
    %c0_197 = arith.constant 0 : index
    %145 = vector.load %arg8[%c0_196, %c0_197] : memref<256x128xf32, #tpu.memory_space<vmem>>, vector<256x128xf32>
    tpu.vector_store %arg8[%c0_196, %c0_197], %144 {strides = array<i32>} : memref<256x128xf32, #tpu.memory_space<vmem>>, vector<256x128xf32>,
    %c1_198 = arith.constant 1 : index
    %c0_199 = arith.constant 0 : index
    %c0_200 = arith.constant 0 : index
    %146 = vector.load %arg7[%c1_198, %c0_199, %c0_200] : memref<18x24x128xf32, #tpu.memory_space<vmem>>, vector<16x16x128xf32>
    %147 = vector.shape_cast %146 : vector<16x16x128xf32> to vector<256x128xf32>
    %c0_201 = arith.constant 0 : index
    %c0_202 = arith.constant 0 : index
    %148 = vector.load %arg8[%c0_201, %c0_202] : memref<256x128xf32, #tpu.memory_space<vmem>>, vector<256x128xf32>
    %c3_203 = arith.constant 3 : index
    %c0_204 = arith.constant 0 : index
    %c0_205 = arith.constant 0 : index
    %149 = vector.load %arg4[%c3_203, %c0_204, %c0_205] : memref<9x128x128xf32, #tpu.memory_space<vmem>>, vector<1x128x128xf32>
    %150 = vector.shape_cast %149 : vector<1x128x128xf32> to vector<128x128xf32>
    %cst_206 = arith.constant dense<0.000000e+00> : vector<256x128xf32>
    %151 = tpu.matmul %147, %150, %cst_206 {dimension_numbers = #tpu.dot_dimension_numbers<[1], [0], [0], [1], [0, 0, 1, 1], [], []>} : vector<256x128xf32>, vector<128x128xf32>, vector<256x128xf32> -> vector<256x128xf32>
    %152 = arith.addf %148, %151 : vector<256x128xf32>
    %c0_207 = arith.constant 0 : index
    %c0_208 = arith.constant 0 : index
    %153 = vector.load %arg8[%c0_207, %c0_208] : memref<256x128xf32, #tpu.memory_space<vmem>>, vector<256x128xf32>
    tpu.vector_store %arg8[%c0_207, %c0_208], %152 {strides = array<i32>} : memref<256x128xf32, #tpu.memory_space<vmem>>, vector<256x128xf32>,
    %c1_209 = arith.constant 1 : index
    %c1_210 = arith.constant 1 : index
    %c0_211 = arith.constant 0 : index
    %154 = vector.load %arg7[%c1_209, %c1_210, %c0_211] : memref<18x24x128xf32, #tpu.memory_space<vmem>>, vector<16x16x128xf32>
    %155 = vector.shape_cast %154 : vector<16x16x128xf32> to vector<256x128xf32>
    %c0_212 = arith.constant 0 : index
    %c0_213 = arith.constant 0 : index
    %156 = vector.load %arg8[%c0_212, %c0_213] : memref<256x128xf32, #tpu.memory_space<vmem>>, vector<256x128xf32>
    %c4_214 = arith.constant 4 : index
    %c0_215 = arith.constant 0 : index
    %c0_216 = arith.constant 0 : index
    %157 = vector.load %arg4[%c4_214, %c0_215, %c0_216] : memref<9x128x128xf32, #tpu.memory_space<vmem>>, vector<1x128x128xf32>
    %158 = vector.shape_cast %157 : vector<1x128x128xf32> to vector<128x128xf32>
    %cst_217 = arith.constant dense<0.000000e+00> : vector<256x128xf32>
    %159 = tpu.matmul %155, %158, %cst_217 {dimension_numbers = #tpu.dot_dimension_numbers<[1], [0], [0], [1], [0, 0, 1, 1], [], []>} : vector<256x128xf32>, vector<128x128xf32>, vector<256x128xf32> -> vector<256x128xf32>
    %160 = arith.addf %156, %159 : vector<256x128xf32>
    %c0_218 = arith.constant 0 : index
    %c0_219 = arith.constant 0 : index
    %161 = vector.load %arg8[%c0_218, %c0_219] : memref<256x128xf32, #tpu.memory_space<vmem>>, vector<256x128xf32>
    tpu.vector_store %arg8[%c0_218, %c0_219], %160 {strides = array<i32>} : memref<256x128xf32, #tpu.memory_space<vmem>>, vector<256x128xf32>,
    %c1_220 = arith.constant 1 : index
    %c2_221 = arith.constant 2 : index
    %c0_222 = arith.constant 0 : index
    %162 = vector.load %arg7[%c1_220, %c2_221, %c0_222] : memref<18x24x128xf32, #tpu.memory_space<vmem>>, vector<16x16x128xf32>
    %163 = vector.shape_cast %162 : vector<16x16x128xf32> to vector<256x128xf32>
    %c0_223 = arith.constant 0 : index
    %c0_224 = arith.constant 0 : index
    %164 = vector.load %arg8[%c0_223, %c0_224] : memref<256x128xf32, #tpu.memory_space<vmem>>, vector<256x128xf32>
    %c5_225 = arith.constant 5 : index
    %c0_226 = arith.constant 0 : index
    %c0_227 = arith.constant 0 : index
    %165 = vector.load %arg4[%c5_225, %c0_226, %c0_227] : memref<9x128x128xf32, #tpu.memory_space<vmem>>, vector<1x128x128xf32>
    %166 = vector.shape_cast %165 : vector<1x128x128xf32> to vector<128x128xf32>
    %cst_228 = arith.constant dense<0.000000e+00> : vector<256x128xf32>
    %167 = tpu.matmul %163, %166, %cst_228 {dimension_numbers = #tpu.dot_dimension_numbers<[1], [0], [0], [1], [0, 0, 1, 1], [], []>} : vector<256x128xf32>, vector<128x128xf32>, vector<256x128xf32> -> vector<256x128xf32>
    %168 = arith.addf %164, %167 : vector<256x128xf32>
    %c0_229 = arith.constant 0 : index
    %c0_230 = arith.constant 0 : index
    %169 = vector.load %arg8[%c0_229, %c0_230] : memref<256x128xf32, #tpu.memory_space<vmem>>, vector<256x128xf32>
    tpu.vector_store %arg8[%c0_229, %c0_230], %168 {strides = array<i32>} : memref<256x128xf32, #tpu.memory_space<vmem>>, vector<256x128xf32>,
    %c2_231 = arith.constant 2 : index
    %c0_232 = arith.constant 0 : index
    %c0_233 = arith.constant 0 : index
    %170 = vector.load %arg7[%c2_231, %c0_232, %c0_233] : memref<18x24x128xf32, #tpu.memory_space<vmem>>, vector<16x16x128xf32>
    %171 = vector.shape_cast %170 : vector<16x16x128xf32> to vector<256x128xf32>
    %c0_234 = arith.constant 0 : index
    %c0_235 = arith.constant 0 : index
    %172 = vector.load %arg8[%c0_234, %c0_235] : memref<256x128xf32, #tpu.memory_space<vmem>>, vector<256x128xf32>
    %c6_236 = arith.constant 6 : index
    %c0_237 = arith.constant 0 : index
    %c0_238 = arith.constant 0 : index
    %173 = vector.load %arg4[%c6_236, %c0_237, %c0_238] : memref<9x128x128xf32, #tpu.memory_space<vmem>>, vector<1x128x128xf32>
    %174 = vector.shape_cast %173 : vector<1x128x128xf32> to vector<128x128xf32>
    %cst_239 = arith.constant dense<0.000000e+00> : vector<256x128xf32>
    %175 = tpu.matmul %171, %174, %cst_239 {dimension_numbers = #tpu.dot_dimension_numbers<[1], [0], [0], [1], [0, 0, 1, 1], [], []>} : vector<256x128xf32>, vector<128x128xf32>, vector<256x128xf32> -> vector<256x128xf32>
    %176 = arith.addf %172, %175 : vector<256x128xf32>
    %c0_240 = arith.constant 0 : index
    %c0_241 = arith.constant 0 : index
    %177 = vector.load %arg8[%c0_240, %c0_241] : memref<256x128xf32, #tpu.memory_space<vmem>>, vector<256x128xf32>
    tpu.vector_store %arg8[%c0_240, %c0_241], %176 {strides = array<i32>} : memref<256x128xf32, #tpu.memory_space<vmem>>, vector<256x128xf32>,
    %c2_242 = arith.constant 2 : index
    %c1_243 = arith.constant 1 : index
    %c0_244 = arith.constant 0 : index
    %178 = vector.load %arg7[%c2_242, %c1_243, %c0_244] : memref<18x24x128xf32, #tpu.memory_space<vmem>>, vector<16x16x128xf32>
    %179 = vector.shape_cast %178 : vector<16x16x128xf32> to vector<256x128xf32>
    %c0_245 = arith.constant 0 : index
    %c0_246 = arith.constant 0 : index
    %180 = vector.load %arg8[%c0_245, %c0_246] : memref<256x128xf32, #tpu.memory_space<vmem>>, vector<256x128xf32>
    %c7_247 = arith.constant 7 : index
    %c0_248 = arith.constant 0 : index
    %c0_249 = arith.constant 0 : index
    %181 = vector.load %arg4[%c7_247, %c0_248, %c0_249] : memref<9x128x128xf32, #tpu.memory_space<vmem>>, vector<1x128x128xf32>
    %182 = vector.shape_cast %181 : vector<1x128x128xf32> to vector<128x128xf32>
    %cst_250 = arith.constant dense<0.000000e+00> : vector<256x128xf32>
    %183 = tpu.matmul %179, %182, %cst_250 {dimension_numbers = #tpu.dot_dimension_numbers<[1], [0], [0], [1], [0, 0, 1, 1], [], []>} : vector<256x128xf32>, vector<128x128xf32>, vector<256x128xf32> -> vector<256x128xf32>
    %184 = arith.addf %180, %183 : vector<256x128xf32>
    %c0_251 = arith.constant 0 : index
    %c0_252 = arith.constant 0 : index
    %185 = vector.load %arg8[%c0_251, %c0_252] : memref<256x128xf32, #tpu.memory_space<vmem>>, vector<256x128xf32>
    tpu.vector_store %arg8[%c0_251, %c0_252], %184 {strides = array<i32>} : memref<256x128xf32, #tpu.memory_space<vmem>>, vector<256x128xf32>,
    %c2_253 = arith.constant 2 : index
    %c2_254 = arith.constant 2 : index
    %c0_255 = arith.constant 0 : index
    %186 = vector.load %arg7[%c2_253, %c2_254, %c0_255] : memref<18x24x128xf32, #tpu.memory_space<vmem>>, vector<16x16x128xf32>
    %187 = vector.shape_cast %186 : vector<16x16x128xf32> to vector<256x128xf32>
    %c0_256 = arith.constant 0 : index
    %c0_257 = arith.constant 0 : index
    %188 = vector.load %arg8[%c0_256, %c0_257] : memref<256x128xf32, #tpu.memory_space<vmem>>, vector<256x128xf32>
    %c8_258 = arith.constant 8 : index
    %c0_259 = arith.constant 0 : index
    %c0_260 = arith.constant 0 : index
    %189 = vector.load %arg4[%c8_258, %c0_259, %c0_260] : memref<9x128x128xf32, #tpu.memory_space<vmem>>, vector<1x128x128xf32>
    %190 = vector.shape_cast %189 : vector<1x128x128xf32> to vector<128x128xf32>
    %cst_261 = arith.constant dense<0.000000e+00> : vector<256x128xf32>
    %191 = tpu.matmul %187, %190, %cst_261 {dimension_numbers = #tpu.dot_dimension_numbers<[1], [0], [0], [1], [0, 0, 1, 1], [], []>} : vector<256x128xf32>, vector<128x128xf32>, vector<256x128xf32> -> vector<256x128xf32>
    %192 = arith.addf %188, %191 : vector<256x128xf32>
    %c0_262 = arith.constant 0 : index
    %c0_263 = arith.constant 0 : index
    %193 = vector.load %arg8[%c0_262, %c0_263] : memref<256x128xf32, #tpu.memory_space<vmem>>, vector<256x128xf32>
    tpu.vector_store %arg8[%c0_262, %c0_263], %192 {strides = array<i32>} : memref<256x128xf32, #tpu.memory_space<vmem>>, vector<256x128xf32>,
    %c0_264 = arith.constant 0 : index
    %c0_265 = arith.constant 0 : index
    %194 = vector.load %arg8[%c0_264, %c0_265] : memref<256x128xf32, #tpu.memory_space<vmem>>, vector<256x128xf32>
    %cst_266 = arith.constant dense<0.000000e+00> : vector<128xf32>
    %195 = vector.multi_reduction <add>, %194, %cst_266 [0] : vector<256x128xf32> to vector<128xf32>
    %196 = vector.shape_cast %195 : vector<128xf32> to vector<1x128xf32>
    %cst_267 = arith.constant 3.906250e-03 : f32
    %197 = vector.broadcast %cst_267 : f32 to vector<1x128xf32>
    %198 = arith.mulf %196, %197 : vector<1x128xf32>
    %199 = vector.broadcast %198 : vector<1x128xf32> to vector<256x128xf32>
    %200 = arith.subf %194, %199 : vector<256x128xf32>
    %201 = arith.mulf %200, %200 : vector<256x128xf32>
    %cst_268 = arith.constant dense<0.000000e+00> : vector<128xf32>
    %202 = vector.multi_reduction <add>, %201, %cst_268 [0] : vector<256x128xf32> to vector<128xf32>
    %203 = vector.shape_cast %202 : vector<128xf32> to vector<1x128xf32>
    %cst_269 = arith.constant 3.906250e-03 : f32
    %204 = vector.broadcast %cst_269 : f32 to vector<1x128xf32>
    %205 = arith.mulf %203, %204 : vector<1x128xf32>
    %cst_270 = arith.constant 9.99999974E-6 : f32
    %206 = vector.broadcast %cst_270 : f32 to vector<1x128xf32>
    %207 = arith.addf %205, %206 : vector<1x128xf32>
    %208 = math.rsqrt %207 : vector<1x128xf32>
    %209 = vector.broadcast %208 : vector<1x128xf32> to vector<256x128xf32>
    %210 = arith.mulf %200, %209 : vector<256x128xf32>
    %c0_271 = arith.constant 0 : index
    %c0_272 = arith.constant 0 : index
    %c0_273 = arith.constant 0 : index
    %c0_274 = arith.constant 0 : index
    %211 = vector.load %arg1[%c0_271, %c0_272, %c0_273, %c0_274] : memref<1x16x16x4xf32, #tpu.memory_space<vmem>>, vector<1x16x16x4xf32>
    %212 = vector.shape_cast %211 : vector<1x16x16x4xf32> to vector<16x16x4xf32>
    %213 = vector.extract_strided_slice %210 {offsets = [0, 0], sizes = [256, 4], strides = [1, 1]} : vector<256x128xf32> to vector<256x4xf32>
    %214 = vector.shape_cast %213 : vector<256x4xf32> to vector<16x16x4xf32>
    %215 = arith.addf %212, %214 : vector<16x16x4xf32>
    %c0_275 = arith.constant 0 : index
    %c0_276 = arith.constant 0 : index
    %c0_277 = arith.constant 0 : index
    %c0_278 = arith.constant 0 : index
    %216 = vector.load %arg6[%c0_275, %c0_276, %c0_277, %c0_278] : memref<1x16x16x4xf32, #tpu.memory_space<vmem>>, vector<1x16x16x4xf32>
    %217 = vector.shape_cast %216 : vector<1x16x16x4xf32> to vector<16x16x4xf32>
    %218 = vector.shape_cast %215 : vector<16x16x4xf32> to vector<1x16x16x4xf32>
    tpu.vector_store %arg6[%c0_275, %c0_276, %c0_277, %c0_278], %218 {strides = array<i32>} : memref<1x16x16x4xf32, #tpu.memory_space<vmem>>, vector<1x16x16x4xf32>,
    return
  }
  func.func @transform_0(%arg0: i32) -> (i32, i32, i32, i32) {
    %c0_i32 = arith.constant 0 : i32
    %c0_i32_0 = arith.constant 0 : i32
    %c0_i32_1 = arith.constant 0 : i32
    %c0_i32_2 = arith.constant 0 : i32
    return %arg0, %c0_i32, %c0_i32_0, %c0_i32_1 : i32, i32, i32, i32
  }
  func.func @transform_1(%arg0: i32) -> (i32, i32, i32) {
    %c0_i32 = arith.constant 0 : i32
    %c0_i32_0 = arith.constant 0 : i32
    %c0_i32_1 = arith.constant 0 : i32
    %c0_i32_2 = arith.constant 0 : i32
    return %c0_i32, %c0_i32_0, %c0_i32_1 : i32, i32, i32
  }
  func.func @transform_2(%arg0: i32) -> (i32, i32) {
    %c0_i32 = arith.constant 0 : i32
    %c0_i32_0 = arith.constant 0 : i32
    %c0_i32_1 = arith.constant 0 : i32
    return %c0_i32, %c0_i32_0 : i32, i32
  }
  func.func @transform_3(%arg0: i32) -> (i32, i32, i32) {
    %c0_i32 = arith.constant 0 : i32
    %c0_i32_0 = arith.constant 0 : i32
    %c0_i32_1 = arith.constant 0 : i32
    %c0_i32_2 = arith.constant 0 : i32
    return %c0_i32, %c0_i32_0, %c0_i32_1 : i32, i32, i32
  }
  func.func @transform_4(%arg0: i32) -> (i32, i32) {
    %c0_i32 = arith.constant 0 : i32
    %c0_i32_0 = arith.constant 0 : i32
    %c0_i32_1 = arith.constant 0 : i32
    return %c0_i32, %c0_i32_0 : i32, i32
  }
  func.func @transform_5(%arg0: i32) -> (i32, i32, i32, i32) {
    %c0_i32 = arith.constant 0 : i32
    %c0_i32_0 = arith.constant 0 : i32
    %c0_i32_1 = arith.constant 0 : i32
    %c0_i32_2 = arith.constant 0 : i32
    return %arg0, %c0_i32, %c0_i32_0, %c0_i32_1 : i32, i32, i32, i32
  }
}

</mosaic_0001>

<llo_original>
// kernel: tpu_custom_call.1
$region0: #{tpu_custom_call.1}
  #allocation0 [shape = 'u32[]', space=smem, size = 0x4, offset = 0x4, fixed_abs, tag = 'smem constant byte address 0x4 - core index']
  #allocation1 [shape = 'u32[72,128]{1,0:T(1,128)}', space=vmem, size = 0x9000, scoped, tag = 'internal scratch']
  #allocation2 [shape = 'f32[18,24,128]{2,1,0:T(8,128)}', space=vmem, size = 0x36000, scoped, tag = 'scratch operand']
  #allocation3 [shape = 'f32[256,128]{1,0:T(8,128)}', space=vmem, size = 0x20000, scoped, tag = 'scratch operand']
  %s0 = inlined_call_operand.vmem [shape: f32[2,16,16,4], index: 0, kind: input, shape index: {}]
  %s1 = inlined_call_operand.hbm [shape: f32[9,128,128], index: 1, kind: input, shape index: {}]
  %s2 = inlined_call_operand.vmem [shape: f32[1,128], index: 2, kind: input, shape index: {}]
  %s3 = inlined_call_operand.hbm [shape: f32[9,128,128], index: 3, kind: input, shape index: {}]
  %s4 = inlined_call_operand.vmem [shape: f32[1,128], index: 4, kind: input, shape index: {}]
  %s5 = inlined_call_operand.vmem [shape: f32[2,16,16,4], index: 5, kind: output, shape index: {}]
  %s6 = sld [smem:[#allocation0]]
  $region61: #{tpu_custom_call.1} parent=0
    _
  %s8 = ssub.s32 1, %s6
  %s9 = scalar_select 0, %s8, %s6
  $region1: #{tpu_custom_call.1} parent=0
    #allocation4 [shape = 'u8[589824]{0}', space=vmem, size = 0x90000, scoped, tag = 'input window, operand 1, single buffered']
    #allocation5 [shape = 's32[2]{0}', space=sflag, size = 0x8, scoped, tag = 'scoped memory for tpu_custom_call.1']
    #allocation6 [shape = 'u8[589824]{0}', space=vmem, size = 0x90000, scoped, tag = 'input window, operand 3, single buffered']
    #allocation7 [shape = 's32[1]{0}', space=sflag, size = 0x4, scoped, tag = 'scoped memory for tpu_custom_call.1']
    %10 = vsyncpa [#allocation5], 0
    %11 = vsyncpa [#allocation7], 0
    loop: start=0, step=1, limit=4
    $region2: #{tpu_custom_call.1} parent=1 // loop_pre_header
      _
    $region3: #{tpu_custom_call.1} parent=1 // loop_header
      %s13 = sphi 0, %s17
      %p14 = scmp.ge.s32.totalorder %s13, 4
      %s23 = sphi 0, %s25
      %s26 = sphi 0, %s23
      %s27 = sphi 0, %s26
      %s43 = sphi 0, %s27
      %s47 = sphi 0, %s47
      %s49 = sphi 0, %s47
      %s50 = sphi 0, %s49
      %s64 = sphi 0, %s50
      %s68 = sphi 0, %s68
      %s70 = sphi 0, %s68
      %s71 = sphi 0, %s70
      %s85 = sphi 0, %s71
      %s89 = sphi 0, %s89
      %s91 = sphi 0, %s89
      %s92 = sphi 0, %s91
      %s106 = sphi 0, %s92
      %s110 = sphi 0, %s110
      %s112 = sphi 0, %s110
      %s113 = sphi 0, %s112
      %s127 = sphi 0, %s113
      %s133 = sphi 0, %s135
      %s136 = sphi 0, %s133
      %s137 = sphi 0, %s136
      %s153 = sphi 0, %s137
    $region4: #{tpu_custom_call.1} parent=1 // loop_header_branch
      %16 = sbr.rel (%p14) target = $region8
    $region5: #{tpu_custom_call.1} parent=1 // loop_body
      %s18 = ssub.s32 %s13, 1
      %s19 = ssub.s32 %s13, 2
      %s20 = sadd.s32 %s13, 1
      %s21 = ssub.s32 %s13, %s20
      %p22 = scmp.eq.s32.totalorder %s21, 0
      %s24 = sadd.s32 %s23, 1
      %s25 = scalar_select %p22, %s23, %s24
      %p28 = pneg %p22
      %p29 = scmp.eq.s32.totalorder %s13, 1
      %p30 = por %p28, %p29
      %p31 = scmp.ne.s32.totalorder %s23, %s26
      %p32 = scmp.eq.s32.totalorder %s13, 0
      %p33 = por %p31, %p32
      %p34 = scmp.ne.s32.totalorder %s23, %s26
      %p35 = scmp.eq.s32.totalorder %s18, 1
      %p36 = por %p34, %p35
      %p37 = scmp.ne.s32.totalorder %s26, %s27
      %p38 = scmp.eq.s32.totalorder %s18, 0
      %p39 = por %p37, %p38
      %p40 = scmp.ne.s32.totalorder %s26, %s27
      %p41 = scmp.eq.s32.totalorder %s19, 1
      %p42 = por %p40, %p41
      %p44 = scmp.ne.s32.totalorder %s27, %s43
      %p45 = scmp.eq.s32.totalorder %s19, 0
      %p46 = por %p44, %p45
      %s48 = sadd.s32 %s47, 1
      %p51 = scmp.eq.s32.totalorder %s13, 1
      %p52 = scmp.ne.s32.totalorder %s47, %s49
      %p53 = scmp.eq.s32.totalorder %s13, 0
      %p54 = por %p52, %p53
      %p55 = scmp.ne.s32.totalorder %s47, %s49
      %p56 = scmp.eq.s32.totalorder %s18, 1
      %p57 = por %p55, %p56
      %p58 = scmp.ne.s32.totalorder %s49, %s50
      %p59 = scmp.eq.s32.totalorder %s18, 0
      %p60 = por %p58, %p59
      %p61 = scmp.ne.s32.totalorder %s49, %s50
      %p62 = scmp.eq.s32.totalorder %s19, 1
      %p63 = por %p61, %p62
      %p65 = scmp.ne.s32.totalorder %s50, %s64
      %p66 = scmp.eq.s32.totalorder %s19, 0
      %p67 = por %p65, %p66
      %s69 = sadd.s32 %s68, 1
      %p72 = scmp.eq.s32.totalorder %s13, 1
      %p73 = scmp.ne.s32.totalorder %s68, %s70
      %p74 = scmp.eq.s32.totalorder %s13, 0
      %p75 = por %p73, %p74
      %p76 = scmp.ne.s32.totalorder %s68, %s70
      %p77 = scmp.eq.s32.totalorder %s18, 1
      %p78 = por %p76, %p77
      %p79 = scmp.ne.s32.totalorder %s70, %s71
      %p80 = scmp.eq.s32.totalorder %s18, 0
      %p81 = por %p79, %p80
      %p82 = scmp.ne.s32.totalorder %s70, %s71
      %p83 = scmp.eq.s32.totalorder %s19, 1
      %p84 = por %p82, %p83
      %p86 = scmp.ne.s32.totalorder %s71, %s85
      %p87 = scmp.eq.s32.totalorder %s19, 0
      %p88 = por %p86, %p87
      %s90 = sadd.s32 %s89, 1
      %p93 = scmp.eq.s32.totalorder %s13, 1
      %p94 = scmp.ne.s32.totalorder %s89, %s91
      %p95 = scmp.eq.s32.totalorder %s13, 0
      %p96 = por %p94, %p95
      %p97 = scmp.ne.s32.totalorder %s89, %s91
      %p98 = scmp.eq.s32.totalorder %s18, 1
      %p99 = por %p97, %p98
      %p100 = scmp.ne.s32.totalorder %s91, %s92
      %p101 = scmp.eq.s32.totalorder %s18, 0
      %p102 = por %p100, %p101
      %p103 = scmp.ne.s32.totalorder %s91, %s92
      %p104 = scmp.eq.s32.totalorder %s19, 1
      %p105 = por %p103, %p104
      %p107 = scmp.ne.s32.totalorder %s92, %s106
      %p108 = scmp.eq.s32.totalorder %s19, 0
      %p109 = por %p107, %p108
      %s111 = sadd.s32 %s110, 1
      %p114 = scmp.eq.s32.totalorder %s13, 1
      %p115 = scmp.ne.s32.totalorder %s110, %s112
      %p116 = scmp.eq.s32.totalorder %s13, 0
      %p117 = por %p115, %p116
      %p118 = scmp.ne.s32.totalorder %s110, %s112
      %p119 = scmp.eq.s32.totalorder %s18, 1
      %p120 = por %p118, %p119
      %p121 = scmp.ne.s32.totalorder %s112, %s113
      %p122 = scmp.eq.s32.totalorder %s18, 0
      %p123 = por %p121, %p122
      %p124 = scmp.ne.s32.totalorder %s112, %s113
      %p125 = scmp.eq.s32.totalorder %s19, 1
      %p126 = por %p124, %p125
      %p128 = scmp.ne.s32.totalorder %s113, %s127
      %p129 = scmp.eq.s32.totalorder %s19, 0
      %p130 = por %p128, %p129
      %s131 = ssub.s32 %s13, %s20
      %p132 = scmp.eq.s32.totalorder %s131, 0
      %s134 = sadd.s32 %s133, 1
      %s135 = scalar_select %p132, %s133, %s134
      %p138 = pneg %p132
      %p139 = scmp.eq.s32.totalorder %s13, 1
      %p140 = por %p138, %p139
      %p141 = scmp.ne.s32.totalorder %s133, %s136
      %p142 = scmp.eq.s32.totalorder %s13, 0
      %p143 = por %p141, %p142
      %p144 = scmp.ne.s32.totalorder %s133, %s136
      %p145 = scmp.eq.s32.totalorder %s18, 1
      %p146 = por %p144, %p145
      %p147 = scmp.ne.s32.totalorder %s136, %s137
      %p148 = scmp.eq.s32.totalorder %s18, 0
      %p149 = por %p147, %p148
      %p150 = scmp.ne.s32.totalorder %s136, %s137
      %p151 = scmp.eq.s32.totalorder %s19, 1
      %p152 = por %p150, %p151
      %p154 = scmp.ne.s32.totalorder %s137, %s153
      %p155 = scmp.eq.s32.totalorder %s19, 0
      %p156 = por %p154, %p155
      %p157 = scmp.le.s32.totalorder 1, %s13
      %p158 = scmp.lt.s32.totalorder %s13, 3
      %p159 = pnand %p157, %p158
      %p160 = pneg %p159
      // Predicated region
      $region9: #{tpu_custom_call.1} parent=5 // pred_check
        _
      $region10: #{tpu_custom_call.1} parent=5 // pred_check_branch
        %162 = sbr.rel (%p159) target = $region12
      $region11: #{tpu_custom_call.1} parent=5 // pred_region
        %s163 = ssub.s32 %s13, 1
        // Predicated region
        $region13: #{tpu_custom_call.1} parent=11 // pred_check
          %p164 = pneg %p60
        $region14: #{tpu_custom_call.1} parent=11 // pred_check_branch
          %166 = sbr.rel (%p164) target = $region16
        $region15: #{tpu_custom_call.1} parent=11 // pred_region
          %168 = vsyncadd [#allocation5], 0
          %s169 = sshll.u32 %s1, 4
          %s170 = int_to_ptr.hbm [resolvable:$true] %s169
          %s171 = sshll.u32 [#allocation4], 4
          %s172 = int_to_ptr.vmem [resolvable:$true] %s171
          %177 = dma.hbm_to_vmem [thread:$0]  %s170, 18432, %s172, [#allocation5], 128, 128, 8
        $region16: #{tpu_custom_call.1} parent=11 // pred_fallthru
          _
        // Predicated region
        $region17: #{tpu_custom_call.1} parent=11 // pred_check
          %p178 = pneg %p81
        $region18: #{tpu_custom_call.1} parent=11 // pred_check_branch
          %180 = sbr.rel (%p178) target = $region20
        $region19: #{tpu_custom_call.1} parent=11 // pred_region
          _
        $region20: #{tpu_custom_call.1} parent=11 // pred_fallthru
          _
        // Predicated region
        $region21: #{tpu_custom_call.1} parent=11 // pred_check
          %p181 = pneg %p102
        $region22: #{tpu_custom_call.1} parent=11 // pred_check_branch
          %183 = sbr.rel (%p181) target = $region24
        $region23: #{tpu_custom_call.1} parent=11 // pred_region
          %185 = vsyncadd [#allocation7], 0
          %s186 = sshll.u32 %s3, 4
          %s187 = int_to_ptr.hbm [resolvable:$true] %s186
          %s188 = sshll.u32 [#allocation6], 4
          %s189 = int_to_ptr.vmem [resolvable:$true] %s188
          %194 = dma.hbm_to_vmem [thread:$0]  %s187, 18432, %s189, [#allocation7], 128, 128, 8
        $region24: #{tpu_custom_call.1} parent=11 // pred_fallthru
          _
        // Predicated region
        $region25: #{tpu_custom_call.1} parent=11 // pred_check
          %p195 = pneg %p123
        $region26: #{tpu_custom_call.1} parent=11 // pred_check_branch
          %197 = sbr.rel (%p195) target = $region28
        $region27: #{tpu_custom_call.1} parent=11 // pred_region
          _
        $region28: #{tpu_custom_call.1} parent=11 // pred_fallthru
          _
      $region12: #{tpu_custom_call.1} parent=5 // pred_fallthru
        _
      %p198 = scmp.lt.s32.totalorder %s13, 2
      // Predicated region
      $region29: #{tpu_custom_call.1} parent=5 // pred_check
        %p199 = pneg %p198
      $region30: #{tpu_custom_call.1} parent=5 // pred_check_branch
        %201 = sbr.rel (%p199) target = $region32
      $region31: #{tpu_custom_call.1} parent=5 // pred_region
        // Predicated region
        $region33: #{tpu_custom_call.1} parent=31 // pred_check
          %p202 = pneg %p33
        $region34: #{tpu_custom_call.1} parent=31 // pred_check_branch
          %204 = sbr.rel (%p202) target = $region36
        $region35: #{tpu_custom_call.1} parent=31 // pred_region
          %p205 = scmp.lt.s32.totalorder %s13, 1
          %s206 = scalar_select %p205, %s13, 1
          %s207 = smul.addr %s206, 32
          %s208 = smul.addr %s207, 8
          %s209 = scalar_lea.vmem %s0, %s208
        $region36: #{tpu_custom_call.1} parent=31 // pred_fallthru
          _
      $region32: #{tpu_custom_call.1} parent=5 // pred_fallthru
        _
      %p210 = scmp.le.s32.totalorder 1, %s13
      %p211 = scmp.lt.s32.totalorder %s13, 3
      %p212 = pnand %p210, %p211
      %p213 = pneg %p212
      // Predicated region
      $region37: #{tpu_custom_call.1} parent=5 // pred_check
        _
      $region38: #{tpu_custom_call.1} parent=5 // pred_check_branch
        %215 = sbr.rel (%p212) target = $region40
      $region39: #{tpu_custom_call.1} parent=5 // pred_region
        %s216 = ssub.s32 %s13, 1
        // Predicated region
        $region41: #{tpu_custom_call.1} parent=39 // pred_check
          %p217 = pneg %p60
        $region42: #{tpu_custom_call.1} parent=39 // pred_check_branch
          %219 = sbr.rel (%p217) target = $region44
        $region43: #{tpu_custom_call.1} parent=39 // pred_region
          %221 = dma.done [#allocation5], 18432
        $region44: #{tpu_custom_call.1} parent=39 // pred_fallthru
          _
        // Predicated region
        $region45: #{tpu_custom_call.1} parent=39 // pred_check
          %p222 = pneg %p102
        $region46: #{tpu_custom_call.1} parent=39 // pred_check_branch
          %224 = sbr.rel (%p222) target = $region48
        $region47: #{tpu_custom_call.1} parent=39 // pred_region
          %226 = dma.done [#allocation7], 18432
        $region48: #{tpu_custom_call.1} parent=39 // pred_fallthru
          _
        %p227 = scmp.lt.s32.totalorder %s18, 1
        %s228 = scalar_select %p227, %s18, 1
        %s229 = smul.addr %s228, 32
        %s230 = smul.addr %s229, 8
        %s231 = scalar_lea.vmem %s0, %s230
        %p232 = pneg %p39
        %p233 = pneg %p36
        %p234 = pneg %p60
        %p235 = pneg %p57
        %p236 = pneg %p81
        %p237 = pneg %p78
        %p238 = pneg %p102
        %p239 = pneg %p99
        %p240 = pneg %p123
        %p241 = pneg %p120
        %p242 = pneg %p149
        %p243 = pneg %p146
        %p244 = scmp.lt.s32.totalorder %s18, 1
        %s245 = scalar_select %p244, %s18, 1
        %s246 = smul.addr %s245, 32
        %s247 = smul.addr %s246, 8
        %s248 = scalar_lea.vmem %s5, %s247
        %p249 = scmp.lt.s32.totalorder %s18, 1
        %s250 = scalar_select %p249, %s18, 1
        %s251 = smul.addr %s250, 32
        %s252 = smul.addr %s251, 8
        %s253 = scalar_lea.vmem %s0, %s252
        %p254 = scmp.lt.s32.totalorder %s18, 1
        %s255 = scalar_select %p254, %s18, 1
        %s256 = smul.addr %s255, 32
        %s257 = smul.addr %s256, 8
        %s258 = scalar_lea.vmem %s5, %s257
        %259 = vst [vmem:[#allocation2] sm:$0xff] 0.0
        %260 = vst [vmem:[#allocation2 + $0x8] sm:$0xff] 0.0
        %261 = vst [vmem:[#allocation2 + $0x10] sm:$0xff] 0.0
        %262 = vst [vmem:[#allocation2 + $0x18] sm:$0xff] 0.0
        %263 = vst [vmem:[#allocation2 + $0x20] sm:$0xff] 0.0
        %264 = vst [vmem:[#allocation2 + $0x28] sm:$0xff] 0.0
        %265 = vst [vmem:[#allocation2 + $0x30] sm:$0xff] 0.0
        %266 = vst [vmem:[#allocation2 + $0x38] sm:$0xff] 0.0
        %267 = vst [vmem:[#allocation2 + $0x40] sm:$0xff] 0.0
        %268 = vst [vmem:[#allocation2 + $0x48] sm:$0xff] 0.0
        %269 = vst [vmem:[#allocation2 + $0x50] sm:$0xff] 0.0
        %270 = vst [vmem:[#allocation2 + $0x58] sm:$0xff] 0.0
        %271 = vst [vmem:[#allocation2 + $0x60] sm:$0xff] 0.0
        %272 = vst [vmem:[#allocation2 + $0x68] sm:$0xff] 0.0
        %273 = vst [vmem:[#allocation2 + $0x70] sm:$0xff] 0.0
        %274 = vst [vmem:[#allocation2 + $0x78] sm:$0xff] 0.0
        %275 = vst [vmem:[#allocation2 + $0x80] sm:$0xff] 0.0
        %276 = vst [vmem:[#allocation2 + $0x88] sm:$0xff] 0.0
        %277 = vst [vmem:[#allocation2 + $0x90] sm:$0xff] 0.0
        %278 = vst [vmem:[#allocation2 + $0x98] sm:$0xff] 0.0
        %279 = vst [vmem:[#allocation2 + $0xa0] sm:$0xff] 0.0
        %280 = vst [vmem:[#allocation2 + $0xa8] sm:$0xff] 0.0
        %281 = vst [vmem:[#allocation2 + $0xb0] sm:$0xff] 0.0
        %282 = vst [vmem:[#allocation2 + $0xb8] sm:$0xff] 0.0
        %283 = vst [vmem:[#allocation2 + $0xc0] sm:$0xff] 0.0
        %284 = vst [vmem:[#allocation2 + $0xc8] sm:$0xff] 0.0
        %285 = vst [vmem:[#allocation2 + $0xd0] sm:$0xff] 0.0
        %286 = vst [vmem:[#allocation2 + $0xd8] sm:$0xff] 0.0
        %287 = vst [vmem:[#allocation2 + $0xe0] sm:$0xff] 0.0
        %288 = vst [vmem:[#allocation2 + $0xe8] sm:$0xff] 0.0
        %289 = vst [vmem:[#allocation2 + $0xf0] sm:$0xff] 0.0
        %290 = vst [vmem:[#allocation2 + $0xf8] sm:$0xff] 0.0
        %291 = vst [vmem:[#allocation2 + $0x100] sm:$0xff] 0.0
        %292 = vst [vmem:[#allocation2 + $0x108] sm:$0xff] 0.0
        %293 = vst [vmem:[#allocation2 + $0x110] sm:$0xff] 0.0
        %294 = vst [vmem:[#allocation2 + $0x118] sm:$0xff] 0.0
        %295 = vst [vmem:[#allocation2 + $0x120] sm:$0xff] 0.0
        %296 = vst [vmem:[#allocation2 + $0x128] sm:$0xff] 0.0
        %297 = vst [vmem:[#allocation2 + $0x130] sm:$0xff] 0.0
        %298 = vst [vmem:[#allocation2 + $0x138] sm:$0xff] 0.0
        %299 = vst [vmem:[#allocation2 + $0x140] sm:$0xff] 0.0
        %300 = vst [vmem:[#allocation2 + $0x148] sm:$0xff] 0.0
        %301 = vst [vmem:[#allocation2 + $0x150] sm:$0xff] 0.0
        %302 = vst [vmem:[#allocation2 + $0x158] sm:$0xff] 0.0
        %303 = vst [vmem:[#allocation2 + $0x160] sm:$0xff] 0.0
        %304 = vst [vmem:[#allocation2 + $0x168] sm:$0xff] 0.0
        %305 = vst [vmem:[#allocation2 + $0x170] sm:$0xff] 0.0
        %306 = vst [vmem:[#allocation2 + $0x178] sm:$0xff] 0.0
        %307 = vst [vmem:[#allocation2 + $0x180] sm:$0xff] 0.0
        %308 = vst [vmem:[#allocation2 + $0x188] sm:$0xff] 0.0
        %309 = vst [vmem:[#allocation2 + $0x190] sm:$0xff] 0.0
        %310 = vst [vmem:[#allocation2 + $0x198] sm:$0xff] 0.0
        %311 = vst [vmem:[#allocation2 + $0x1a0] sm:$0xff] 0.0
        %312 = vst [vmem:[#allocation2 + $0x1a8] sm:$0xff] 0.0
        %v313 = vld [vmem:[%s253] sm:$0xff]
        %v314 = vld [vmem:[%s253 + $0x8] sm:$0xff]
        %v315 = vld [vmem:[%s253 + $0x10] sm:$0xff]
        %v316 = vld [vmem:[%s253 + $0x18] sm:$0xff]
        %v317 = vld [vmem:[%s253 + $0x20] sm:$0xff]
        %v318 = vld [vmem:[%s253 + $0x28] sm:$0xff]
        %v319 = vld [vmem:[%s253 + $0x30] sm:$0xff]
        %v320 = vld [vmem:[%s253 + $0x38] sm:$0xff]
        %v321 = vld [vmem:[%s253 + $0x40] sm:$0xff]
        %v322 = vld [vmem:[%s253 + $0x48] sm:$0xff]
        %v323 = vld [vmem:[%s253 + $0x50] sm:$0xff]
        %v324 = vld [vmem:[%s253 + $0x58] sm:$0xff]
        %v325 = vld [vmem:[%s253 + $0x60] sm:$0xff]
        %v326 = vld [vmem:[%s253 + $0x68] sm:$0xff]
        %v327 = vld [vmem:[%s253 + $0x70] sm:$0xff]
        %v328 = vld [vmem:[%s253 + $0x78] sm:$0xff]
        %v329 = vld [vmem:[%s253 + $0x80] sm:$0xff]
        %v330 = vld [vmem:[%s253 + $0x88] sm:$0xff]
        %v331 = vld [vmem:[%s253 + $0x90] sm:$0xff]
        %v332 = vld [vmem:[%s253 + $0x98] sm:$0xff]
        %v333 = vld [vmem:[%s253 + $0xa0] sm:$0xff]
        %v334 = vld [vmem:[%s253 + $0xa8] sm:$0xff]
        %v335 = vld [vmem:[%s253 + $0xb0] sm:$0xff]
        %v336 = vld [vmem:[%s253 + $0xb8] sm:$0xff]
        %v337 = vld [vmem:[%s253 + $0xc0] sm:$0xff]
        %v338 = vld [vmem:[%s253 + $0xc8] sm:$0xff]
        %v339 = vld [vmem:[%s253 + $0xd0] sm:$0xff]
        %v340 = vld [vmem:[%s253 + $0xd8] sm:$0xff]
        %v341 = vld [vmem:[%s253 + $0xe0] sm:$0xff]
        %v342 = vld [vmem:[%s253 + $0xe8] sm:$0xff]
        %v343 = vld [vmem:[%s253 + $0xf0] sm:$0xff]
        %v344 = vld [vmem:[%s253 + $0xf8] sm:$0xff]
        %s345 = scalar_lea.vmem [#allocation2], 24
        %vm346 = vcmask 31744
        %347 = vst.msk [vmem:[%s345 + $0x1] sm:$0xff] %vm346, %v313
        %348 = vst.msk [vmem:[%s345 + $0x9] sm:$0xff] %vm346, %v314
        %349 = vst.msk [vmem:[%s345 + $0x19] sm:$0xff] %vm346, %v315
        %350 = vst.msk [vmem:[%s345 + $0x21] sm:$0xff] %vm346, %v316
        %351 = vst.msk [vmem:[%s345 + $0x31] sm:$0xff] %vm346, %v317
        %352 = vst.msk [vmem:[%s345 + $0x39] sm:$0xff] %vm346, %v318
        %353 = vst.msk [vmem:[%s345 + $0x49] sm:$0xff] %vm346, %v319
        %354 = vst.msk [vmem:[%s345 + $0x51] sm:$0xff] %vm346, %v320
        %355 = vst.msk [vmem:[%s345 + $0x61] sm:$0xff] %vm346, %v321
        %356 = vst.msk [vmem:[%s345 + $0x69] sm:$0xff] %vm346, %v322
        %357 = vst.msk [vmem:[%s345 + $0x79] sm:$0xff] %vm346, %v323
        %358 = vst.msk [vmem:[%s345 + $0x81] sm:$0xff] %vm346, %v324
        %359 = vst.msk [vmem:[%s345 + $0x91] sm:$0xff] %vm346, %v325
        %360 = vst.msk [vmem:[%s345 + $0x99] sm:$0xff] %vm346, %v326
        %361 = vst.msk [vmem:[%s345 + $0xa9] sm:$0xff] %vm346, %v327
        %362 = vst.msk [vmem:[%s345 + $0xb1] sm:$0xff] %vm346, %v328
        %363 = vst.msk [vmem:[%s345 + $0xc1] sm:$0xff] %vm346, %v329
        %364 = vst.msk [vmem:[%s345 + $0xc9] sm:$0xff] %vm346, %v330
        %365 = vst.msk [vmem:[%s345 + $0xd9] sm:$0xff] %vm346, %v331
        %366 = vst.msk [vmem:[%s345 + $0xe1] sm:$0xff] %vm346, %v332
        %367 = vst.msk [vmem:[%s345 + $0xf1] sm:$0xff] %vm346, %v333
        %368 = vst.msk [vmem:[%s345 + $0xf9] sm:$0xff] %vm346, %v334
        %369 = vst.msk [vmem:[%s345 + $0x109] sm:$0xff] %vm346, %v335
        %370 = vst.msk [vmem:[%s345 + $0x111] sm:$0xff] %vm346, %v336
        %371 = vst.msk [vmem:[%s345 + $0x121] sm:$0xff] %vm346, %v337
        %372 = vst.msk [vmem:[%s345 + $0x129] sm:$0xff] %vm346, %v338
        %373 = vst.msk [vmem:[%s345 + $0x139] sm:$0xff] %vm346, %v339
        %374 = vst.msk [vmem:[%s345 + $0x141] sm:$0xff] %vm346, %v340
        %375 = vst.msk [vmem:[%s345 + $0x151] sm:$0xff] %vm346, %v341
        %376 = vst.msk [vmem:[%s345 + $0x159] sm:$0xff] %vm346, %v342
        %377 = vst.msk [vmem:[%s345 + $0x169] sm:$0xff] %vm346, %v343
        %378 = vst.msk [vmem:[%s345 + $0x171] sm:$0xff] %vm346, %v344
        %s379 = scalar_lea.vmem [#allocation2], 48
        %v380 = vld [vmem:[%s379 + $0x1] sm:$0xff]
        %v381 = vld [vmem:[%s379 + $0x9] sm:$0xff]
        %382 = vst [vmem:[#allocation2 + $0x1] sm:$0xff] %v380
        %383 = vst [vmem:[#allocation2 + $0x9] sm:$0xff] %v381
        %s384 = scalar_lea.vmem [#allocation2], 360
        %v385 = vld [vmem:[%s384 + $0x1] sm:$0xff]
        %v386 = vld [vmem:[%s384 + $0x9] sm:$0xff]
        %s387 = scalar_lea.vmem [#allocation2], 408
        %388 = vst [vmem:[%s387 + $0x1] sm:$0xff] %v385
        %389 = vst [vmem:[%s387 + $0x9] sm:$0xff] %v386
        %v390 = vld [vmem:[#allocation2 + $0x2] sm:$0x1]
        %v391 = vld [vmem:[#allocation2 + $0x1a] sm:$0x1]
        %v392 = vld [vmem:[#allocation2 + $0x32] sm:$0x1]
        %v393 = vld [vmem:[#allocation2 + $0x4a] sm:$0x1]
        %v394 = vld [vmem:[#allocation2 + $0x62] sm:$0x1]
        %v395 = vld [vmem:[#allocation2 + $0x7a] sm:$0x1]
        %v396 = vld [vmem:[#allocation2 + $0x92] sm:$0x1]
        %v397 = vld [vmem:[#allocation2 + $0xaa] sm:$0x1]
        %v398 = vld [vmem:[#allocation2 + $0xc2] sm:$0x1]
        %v399 = vld [vmem:[#allocation2 + $0xda] sm:$0x1]
        %v400 = vld [vmem:[#allocation2 + $0xf2] sm:$0x1]
        %v401 = vld [vmem:[#allocation2 + $0x10a] sm:$0x1]
        %v402 = vld [vmem:[#allocation2 + $0x122] sm:$0x1]
        %v403 = vld [vmem:[#allocation2 + $0x13a] sm:$0x1]
        %v404 = vld [vmem:[#allocation2 + $0x152] sm:$0x1]
        %v405 = vld [vmem:[#allocation2 + $0x16a] sm:$0x1]
        %v406 = vld [vmem:[#allocation2 + $0x182] sm:$0x1]
        %v407 = vld [vmem:[#allocation2 + $0x19a] sm:$0x1]
        %408 = vst [vmem:[#allocation2] sm:$0x1] %v390
        %409 = vst [vmem:[#allocation2 + $0x18] sm:$0x1] %v391
        %410 = vst [vmem:[#allocation2 + $0x30] sm:$0x1] %v392
        %411 = vst [vmem:[#allocation2 + $0x48] sm:$0x1] %v393
        %412 = vst [vmem:[#allocation2 + $0x60] sm:$0x1] %v394
        %413 = vst [vmem:[#allocation2 + $0x78] sm:$0x1] %v395
        %414 = vst [vmem:[#allocation2 + $0x90] sm:$0x1] %v396
        %415 = vst [vmem:[#allocation2 + $0xa8] sm:$0x1] %v397
        %416 = vst [vmem:[#allocation2 + $0xc0] sm:$0x1] %v398
        %417 = vst [vmem:[#allocation2 + $0xd8] sm:$0x1] %v399
        %418 = vst [vmem:[#allocation2 + $0xf0] sm:$0x1] %v400
        %419 = vst [vmem:[#allocation2 + $0x108] sm:$0x1] %v401
        %420 = vst [vmem:[#allocation2 + $0x120] sm:$0x1] %v402
        %421 = vst [vmem:[#allocation2 + $0x138] sm:$0x1] %v403
        %422 = vst [vmem:[#allocation2 + $0x150] sm:$0x1] %v404
        %423 = vst [vmem:[#allocation2 + $0x168] sm:$0x1] %v405
        %424 = vst [vmem:[#allocation2 + $0x180] sm:$0x1] %v406
        %425 = vst [vmem:[#allocation2 + $0x198] sm:$0x1] %v407
        %v426 = vld [vmem:[#allocation2 + $0xf] sm:$0x1]
        %v427 = vld [vmem:[#allocation2 + $0x27] sm:$0x1]
        %v428 = vld [vmem:[#allocation2 + $0x3f] sm:$0x1]
        %v429 = vld [vmem:[#allocation2 + $0x57] sm:$0x1]
        %v430 = vld [vmem:[#allocation2 + $0x6f] sm:$0x1]
        %v431 = vld [vmem:[#allocation2 + $0x87] sm:$0x1]
        %v432 = vld [vmem:[#allocation2 + $0x9f] sm:$0x1]
        %v433 = vld [vmem:[#allocation2 + $0xb7] sm:$0x1]
        %v434 = vld [vmem:[#allocation2 + $0xcf] sm:$0x1]
        %v435 = vld [vmem:[#allocation2 + $0xe7] sm:$0x1]
        %v436 = vld [vmem:[#allocation2 + $0xff] sm:$0x1]
        %v437 = vld [vmem:[#allocation2 + $0x117] sm:$0x1]
        %v438 = vld [vmem:[#allocation2 + $0x12f] sm:$0x1]
        %v439 = vld [vmem:[#allocation2 + $0x147] sm:$0x1]
        %v440 = vld [vmem:[#allocation2 + $0x15f] sm:$0x1]
        %v441 = vld [vmem:[#allocation2 + $0x177] sm:$0x1]
        %v442 = vld [vmem:[#allocation2 + $0x18f] sm:$0x1]
        %v443 = vld [vmem:[#allocation2 + $0x1a7] sm:$0x1]
        %444 = vst [vmem:[#allocation2 + $0x11] sm:$0x1] %v426
        %445 = vst [vmem:[#allocation2 + $0x29] sm:$0x1] %v427
        %446 = vst [vmem:[#allocation2 + $0x41] sm:$0x1] %v428
        %447 = vst [vmem:[#allocation2 + $0x59] sm:$0x1] %v429
        %448 = vst [vmem:[#allocation2 + $0x71] sm:$0x1] %v430
        %449 = vst [vmem:[#allocation2 + $0x89] sm:$0x1] %v431
        %450 = vst [vmem:[#allocation2 + $0xa1] sm:$0x1] %v432
        %451 = vst [vmem:[#allocation2 + $0xb9] sm:$0x1] %v433
        %452 = vst [vmem:[#allocation2 + $0xd1] sm:$0x1] %v434
        %453 = vst [vmem:[#allocation2 + $0xe9] sm:$0x1] %v435
        %454 = vst [vmem:[#allocation2 + $0x101] sm:$0x1] %v436
        %455 = vst [vmem:[#allocation2 + $0x119] sm:$0x1] %v437
        %456 = vst [vmem:[#allocation2 + $0x131] sm:$0x1] %v438
        %457 = vst [vmem:[#allocation2 + $0x149] sm:$0x1] %v439
        %458 = vst [vmem:[#allocation2 + $0x161] sm:$0x1] %v440
        %459 = vst [vmem:[#allocation2 + $0x179] sm:$0x1] %v441
        %460 = vst [vmem:[#allocation2 + $0x191] sm:$0x1] %v442
        %461 = vst [vmem:[#allocation2 + $0x1a9] sm:$0x1] %v443
        %v462 = vld [vmem:[%s2] sm:$0x1]
        %v464 = vperm.slane %v462, 0
        %466 = vst [vmem:[#allocation3] sm:$0xff] %v464
        %467 = vst [vmem:[#allocation3 + $0x8] sm:$0xff] %v464
        %468 = vst [vmem:[#allocation3 + $0x10] sm:$0xff] %v464
        %469 = vst [vmem:[#allocation3 + $0x18] sm:$0xff] %v464
        %470 = vst [vmem:[#allocation3 + $0x20] sm:$0xff] %v464
        %471 = vst [vmem:[#allocation3 + $0x28] sm:$0xff] %v464
        %472 = vst [vmem:[#allocation3 + $0x30] sm:$0xff] %v464
        %473 = vst [vmem:[#allocation3 + $0x38] sm:$0xff] %v464
        %474 = vst [vmem:[#allocation3 + $0x40] sm:$0xff] %v464
        %475 = vst [vmem:[#allocation3 + $0x48] sm:$0xff] %v464
        %476 = vst [vmem:[#allocation3 + $0x50] sm:$0xff] %v464
        %477 = vst [vmem:[#allocation3 + $0x58] sm:$0xff] %v464
        %478 = vst [vmem:[#allocation3 + $0x60] sm:$0xff] %v464
        %479 = vst [vmem:[#allocation3 + $0x68] sm:$0xff] %v464
        %480 = vst [vmem:[#allocation3 + $0x70] sm:$0xff] %v464
        %481 = vst [vmem:[#allocation3 + $0x78] sm:$0xff] %v464
        %482 = vst [vmem:[#allocation3 + $0x80] sm:$0xff] %v464
        %483 = vst [vmem:[#allocation3 + $0x88] sm:$0xff] %v464
        %484 = vst [vmem:[#allocation3 + $0x90] sm:$0xff] %v464
        %485 = vst [vmem:[#allocation3 + $0x98] sm:$0xff] %v464
        %486 = vst [vmem:[#allocation3 + $0xa0] sm:$0xff] %v464
        %487 = vst [vmem:[#allocation3 + $0xa8] sm:$0xff] %v464
        %488 = vst [vmem:[#allocation3 + $0xb0] sm:$0xff] %v464
        %489 = vst [vmem:[#allocation3 + $0xb8] sm:$0xff] %v464
        %490 = vst [vmem:[#allocation3 + $0xc0] sm:$0xff] %v464
        %491 = vst [vmem:[#allocation3 + $0xc8] sm:$0xff] %v464
        %492 = vst [vmem:[#allocation3 + $0xd0] sm:$0xff] %v464
        %493 = vst [vmem:[#allocation3 + $0xd8] sm:$0xff] %v464
        %494 = vst [vmem:[#allocation3 + $0xe0] sm:$0xff] %v464
        %495 = vst [vmem:[#allocation3 + $0xe8] sm:$0xff] %v464
        %496 = vst [vmem:[#allocation3 + $0xf0] sm:$0xff] %v464
        %497 = vst [vmem:[#allocation3 + $0xf8] sm:$0xff] %v464
        %v498 = vld [vmem:[#allocation2] sm:$0xff]
        %v499 = vld [vmem:[#allocation2 + $0x8] sm:$0xff]
        %v500 = vld [vmem:[#allocation2 + $0x18] sm:$0xff]
        %v501 = vld [vmem:[#allocation2 + $0x20] sm:$0xff]
        %v502 = vld [vmem:[#allocation2 + $0x30] sm:$0xff]
        %v503 = vld [vmem:[#allocation2 + $0x38] sm:$0xff]
        %v504 = vld [vmem:[#allocation2 + $0x48] sm:$0xff]
        %v505 = vld [vmem:[#allocation2 + $0x50] sm:$0xff]
        %v506 = vld [vmem:[#allocation2 + $0x60] sm:$0xff]
        %v507 = vld [vmem:[#allocation2 + $0x68] sm:$0xff]
        %v508 = vld [vmem:[#allocation2 + $0x78] sm:$0xff]
        %v509 = vld [vmem:[#allocation2 + $0x80] sm:$0xff]
        %v510 = vld [vmem:[#allocation2 + $0x90] sm:$0xff]
        %v511 = vld [vmem:[#allocation2 + $0x98] sm:$0xff]
        %v512 = vld [vmem:[#allocation2 + $0xa8] sm:$0xff]
        %v513 = vld [vmem:[#allocation2 + $0xb0] sm:$0xff]
        %v514 = vld [vmem:[#allocation2 + $0xc0] sm:$0xff]
        %v515 = vld [vmem:[#allocation2 + $0xc8] sm:$0xff]
        %v516 = vld [vmem:[#allocation2 + $0xd8] sm:$0xff]
        %v517 = vld [vmem:[#allocation2 + $0xe0] sm:$0xff]
        %v518 = vld [vmem:[#allocation2 + $0xf0] sm:$0xff]
        %v519 = vld [vmem:[#allocation2 + $0xf8] sm:$0xff]
        %v520 = vld [vmem:[#allocation2 + $0x108] sm:$0xff]
        %v521 = vld [vmem:[#allocation2 + $0x110] sm:$0xff]
        %v522 = vld [vmem:[#allocation2 + $0x120] sm:$0xff]
        %v523 = vld [vmem:[#allocation2 + $0x128] sm:$0xff]
        %v524 = vld [vmem:[#allocation2 + $0x138] sm:$0xff]
        %v525 = vld [vmem:[#allocation2 + $0x140] sm:$0xff]
        %v526 = vld [vmem:[#allocation2 + $0x150] sm:$0xff]
        %v527 = vld [vmem:[#allocation2 + $0x158] sm:$0xff]
        %v528 = vld [vmem:[#allocation2 + $0x168] sm:$0xff]
        %v529 = vld [vmem:[#allocation2 + $0x170] sm:$0xff]
        %v530 = vld [vmem:[#allocation3] sm:$0xff]
        %v531 = vld [vmem:[#allocation3 + $0x8] sm:$0xff]
        %v532 = vld [vmem:[#allocation3 + $0x10] sm:$0xff]
        %v533 = vld [vmem:[#allocation3 + $0x18] sm:$0xff]
        %v534 = vld [vmem:[#allocation3 + $0x20] sm:$0xff]
        %v535 = vld [vmem:[#allocation3 + $0x28] sm:$0xff]
        %v536 = vld [vmem:[#allocation3 + $0x30] sm:$0xff]
        %v537 = vld [vmem:[#allocation3 + $0x38] sm:$0xff]
        %v538 = vld [vmem:[#allocation3 + $0x40] sm:$0xff]
        %v539 = vld [vmem:[#allocation3 + $0x48] sm:$0xff]
        %v540 = vld [vmem:[#allocation3 + $0x50] sm:$0xff]
        %v541 = vld [vmem:[#allocation3 + $0x58] sm:$0xff]
        %v542 = vld [vmem:[#allocation3 + $0x60] sm:$0xff]
        %v543 = vld [vmem:[#allocation3 + $0x68] sm:$0xff]
        %v544 = vld [vmem:[#allocation3 + $0x70] sm:$0xff]
        %v545 = vld [vmem:[#allocation3 + $0x78] sm:$0xff]
        %v546 = vld [vmem:[#allocation3 + $0x80] sm:$0xff]
        %v547 = vld [vmem:[#allocation3 + $0x88] sm:$0xff]
        %v548 = vld [vmem:[#allocation3 + $0x90] sm:$0xff]
        %v549 = vld [vmem:[#allocation3 + $0x98] sm:$0xff]
        %v550 = vld [vmem:[#allocation3 + $0xa0] sm:$0xff]
        %v551 = vld [vmem:[#allocation3 + $0xa8] sm:$0xff]
        %v552 = vld [vmem:[#allocation3 + $0xb0] sm:$0xff]
        %v553 = vld [vmem:[#allocation3 + $0xb8] sm:$0xff]
        %v554 = vld [vmem:[#allocation3 + $0xc0] sm:$0xff]
        %v555 = vld [vmem:[#allocation3 + $0xc8] sm:$0xff]
        %v556 = vld [vmem:[#allocation3 + $0xd0] sm:$0xff]
        %v557 = vld [vmem:[#allocation3 + $0xd8] sm:$0xff]
        %v558 = vld [vmem:[#allocation3 + $0xe0] sm:$0xff]
        %v559 = vld [vmem:[#allocation3 + $0xe8] sm:$0xff]
        %v560 = vld [vmem:[#allocation3 + $0xf0] sm:$0xff]
        %v561 = vld [vmem:[#allocation3 + $0xf8] sm:$0xff]
        %v562 = vld [vmem:[#allocation4] sm:$0xff]
        %v563 = vld [vmem:[#allocation4 + $0x8] sm:$0xff]
        %v564 = vld [vmem:[#allocation4 + $0x10] sm:$0xff]
        %v565 = vld [vmem:[#allocation4 + $0x18] sm:$0xff]
        %v566 = vld [vmem:[#allocation4 + $0x20] sm:$0xff]
        %v567 = vld [vmem:[#allocation4 + $0x28] sm:$0xff]
        %v568 = vld [vmem:[#allocation4 + $0x30] sm:$0xff]
        %v569 = vld [vmem:[#allocation4 + $0x38] sm:$0xff]
        %v570 = vld [vmem:[#allocation4 + $0x40] sm:$0xff]
        %v571 = vld [vmem:[#allocation4 + $0x48] sm:$0xff]
        %v572 = vld [vmem:[#allocation4 + $0x50] sm:$0xff]
        %v573 = vld [vmem:[#allocation4 + $0x58] sm:$0xff]
        %v574 = vld [vmem:[#allocation4 + $0x60] sm:$0xff]
        %v575 = vld [vmem:[#allocation4 + $0x68] sm:$0xff]
        %v576 = vld [vmem:[#allocation4 + $0x70] sm:$0xff]
        %v577 = vld [vmem:[#allocation4 + $0x78] sm:$0xff]
        %578 = vmatpush.msra.mxu0 %v577
        %579 = vmatpush.msra.mxu0 %v576
        %580 = vmatpush.msra.mxu0 %v575
        %581 = vmatpush.msra.mxu0 %v574
        %582 = vmatpush.msra.mxu0 %v573
        %583 = vmatpush.msra.mxu0 %v572
        %584 = vmatpush.msra.mxu0 %v571
        %585 = vmatpush.msra.mxu0 %v570
        %586 = vmatpush.msra.mxu0 %v569
        %587 = vmatpush.msra.mxu0 %v568
        %588 = vmatpush.msra.mxu0 %v567
        %589 = vmatpush.msra.mxu0 %v566
        %590 = vmatpush.msra.mxu0 %v565
        %591 = vmatpush.msra.mxu0 %v564
        %592 = vmatpush.msra.mxu0 %v563
        %593 = vmatpush.msra.mxu0 %v562
        %594 = vmatmul.f32.gmra.mxu0 %v498
        %v595 = vpop.f32.mrf.mxu0
        %v596 = vadd.f32 0.0, %v595
        %597 = vmatmul.f32.gmra.mxu0 %v499
        %v598 = vpop.f32.mrf.mxu0
        %v599 = vadd.f32 0.0, %v598
        %600 = vmatmul.f32.gmra.mxu0 %v500
        %v601 = vpop.f32.mrf.mxu0
        %v602 = vadd.f32 0.0, %v601
        %603 = vmatmul.f32.gmra.mxu0 %v501
        %v604 = vpop.f32.mrf.mxu0
        %v605 = vadd.f32 0.0, %v604
        %606 = vmatmul.f32.gmra.mxu0 %v502
        %v607 = vpop.f32.mrf.mxu0
        %v608 = vadd.f32 0.0, %v607
        %609 = vmatmul.f32.gmra.mxu0 %v503
        %v610 = vpop.f32.mrf.mxu0
        %v611 = vadd.f32 0.0, %v610
        %612 = vmatmul.f32.gmra.mxu0 %v504
        %v613 = vpop.f32.mrf.mxu0
        %v614 = vadd.f32 0.0, %v613
        %615 = vmatmul.f32.gmra.mxu0 %v505
        %v616 = vpop.f32.mrf.mxu0
        %v617 = vadd.f32 0.0, %v616
        %618 = vmatmul.f32.gmra.mxu0 %v506
        %v619 = vpop.f32.mrf.mxu0
        %v620 = vadd.f32 0.0, %v619
        %621 = vmatmul.f32.gmra.mxu0 %v507
        %v622 = vpop.f32.mrf.mxu0
        %v623 = vadd.f32 0.0, %v622
        %624 = vmatmul.f32.gmra.mxu0 %v508
        %v625 = vpop.f32.mrf.mxu0
        %v626 = vadd.f32 0.0, %v625
        %627 = vmatmul.f32.gmra.mxu0 %v509
        %v628 = vpop.f32.mrf.mxu0
        %v629 = vadd.f32 0.0, %v628
        %630 = vmatmul.f32.gmra.mxu0 %v510
        %v631 = vpop.f32.mrf.mxu0
        %v632 = vadd.f32 0.0, %v631
        %633 = vmatmul.f32.gmra.mxu0 %v511
        %v634 = vpop.f32.mrf.mxu0
        %v635 = vadd.f32 0.0, %v634
        %636 = vmatmul.f32.gmra.mxu0 %v512
        %v637 = vpop.f32.mrf.mxu0
        %v638 = vadd.f32 0.0, %v637
        %639 = vmatmul.f32.gmra.mxu0 %v513
        %v640 = vpop.f32.mrf.mxu0
        %v641 = vadd.f32 0.0, %v640
        %642 = vmatmul.f32.gmra.mxu0 %v514
        %v643 = vpop.f32.mrf.mxu0
        %v644 = vadd.f32 0.0, %v643
        %645 = vmatmul.f32.gmra.mxu0 %v515
        %v646 = vpop.f32.mrf.mxu0
        %v647 = vadd.f32 0.0, %v646
        %648 = vmatmul.f32.gmra.mxu0 %v516
        %v649 = vpop.f32.mrf.mxu0
        %v650 = vadd.f32 0.0, %v649
        %651 = vmatmul.f32.gmra.mxu0 %v517
        %v652 = vpop.f32.mrf.mxu0
        %v653 = vadd.f32 0.0, %v652
        %654 = vmatmul.f32.gmra.mxu0 %v518
        %v655 = vpop.f32.mrf.mxu0
        %v656 = vadd.f32 0.0, %v655
        %657 = vmatmul.f32.gmra.mxu0 %v519
        %v658 = vpop.f32.mrf.mxu0
        %v659 = vadd.f32 0.0, %v658
        %660 = vmatmul.f32.gmra.mxu0 %v520
        %v661 = vpop.f32.mrf.mxu0
        %v662 = vadd.f32 0.0, %v661
        %663 = vmatmul.f32.gmra.mxu0 %v521
        %v664 = vpop.f32.mrf.mxu0
        %v665 = vadd.f32 0.0, %v664
        %666 = vmatmul.f32.gmra.mxu0 %v522
        %v667 = vpop.f32.mrf.mxu0
        %v668 = vadd.f32 0.0, %v667
        %669 = vmatmul.f32.gmra.mxu0 %v523
        %v670 = vpop.f32.mrf.mxu0
        %v671 = vadd.f32 0.0, %v670
        %672 = vmatmul.f32.gmra.mxu0 %v524
        %v673 = vpop.f32.mrf.mxu0
        %v674 = vadd.f32 0.0, %v673
        %675 = vmatmul.f32.gmra.mxu0 %v525
        %v676 = vpop.f32.mrf.mxu0
        %v677 = vadd.f32 0.0, %v676
        %678 = vmatmul.f32.gmra.mxu0 %v526
        %v679 = vpop.f32.mrf.mxu0
        %v680 = vadd.f32 0.0, %v679
        %681 = vmatmul.f32.gmra.mxu0 %v527
        %v682 = vpop.f32.mrf.mxu0
        %v683 = vadd.f32 0.0, %v682
        %684 = vmatmul.f32.gmra.mxu0 %v528
        %v685 = vpop.f32.mrf.mxu0
        %v686 = vadd.f32 0.0, %v685
        %687 = vmatmul.f32.gmra.mxu0 %v529
        %v688 = vpop.f32.mrf.mxu0
        %v689 = vadd.f32 0.0, %v688
        %690 = vdwg.mxu0
        %v691 = vadd.f32 %v530, %v596
        %v692 = vadd.f32 %v531, %v599
        %v693 = vadd.f32 %v532, %v602
        %v694 = vadd.f32 %v533, %v605
        %v695 = vadd.f32 %v534, %v608
        %v696 = vadd.f32 %v535, %v611
        %v697 = vadd.f32 %v536, %v614
        %v698 = vadd.f32 %v537, %v617
        %v699 = vadd.f32 %v538, %v620
        %v700 = vadd.f32 %v539, %v623
        %v701 = vadd.f32 %v540, %v626
        %v702 = vadd.f32 %v541, %v629
        %v703 = vadd.f32 %v542, %v632
        %v704 = vadd.f32 %v543, %v635
        %v705 = vadd.f32 %v544, %v638
        %v706 = vadd.f32 %v545, %v641
        %v707 = vadd.f32 %v546, %v644
        %v708 = vadd.f32 %v547, %v647
        %v709 = vadd.f32 %v548, %v650
        %v710 = vadd.f32 %v549, %v653
        %v711 = vadd.f32 %v550, %v656
        %v712 = vadd.f32 %v551, %v659
        %v713 = vadd.f32 %v552, %v662
        %v714 = vadd.f32 %v553, %v665
        %v715 = vadd.f32 %v554, %v668
        %v716 = vadd.f32 %v555, %v671
        %v717 = vadd.f32 %v556, %v674
        %v718 = vadd.f32 %v557, %v677
        %v719 = vadd.f32 %v558, %v680
        %v720 = vadd.f32 %v559, %v683
        %v721 = vadd.f32 %v560, %v686
        %v722 = vadd.f32 %v561, %v689
        %723 = vst [vmem:[#allocation3] sm:$0xff] %v691
        %724 = vst [vmem:[#allocation3 + $0x8] sm:$0xff] %v692
        %725 = vst [vmem:[#allocation3 + $0x10] sm:$0xff] %v693
        %726 = vst [vmem:[#allocation3 + $0x18] sm:$0xff] %v694
        %727 = vst [vmem:[#allocation3 + $0x20] sm:$0xff] %v695
        %728 = vst [vmem:[#allocation3 + $0x28] sm:$0xff] %v696
        %729 = vst [vmem:[#allocation3 + $0x30] sm:$0xff] %v697
        %730 = vst [vmem:[#allocation3 + $0x38] sm:$0xff] %v698
        %731 = vst [vmem:[#allocation3 + $0x40] sm:$0xff] %v699
        %732 = vst [vmem:[#allocation3 + $0x48] sm:$0xff] %v700
        %733 = vst [vmem:[#allocation3 + $0x50] sm:$0xff] %v701
        %734 = vst [vmem:[#allocation3 + $0x58] sm:$0xff] %v702
        %735 = vst [vmem:[#allocation3 + $0x60] sm:$0xff] %v703
        %736 = vst [vmem:[#allocation3 + $0x68] sm:$0xff] %v704
        %737 = vst [vmem:[#allocation3 + $0x70] sm:$0xff] %v705
        %738 = vst [vmem:[#allocation3 + $0x78] sm:$0xff] %v706
        %739 = vst [vmem:[#allocation3 + $0x80] sm:$0xff] %v707
        %740 = vst [vmem:[#allocation3 + $0x88] sm:$0xff] %v708
        %741 = vst [vmem:[#allocation3 + $0x90] sm:$0xff] %v709
        %742 = vst [vmem:[#allocation3 + $0x98] sm:$0xff] %v710
        %743 = vst [vmem:[#allocation3 + $0xa0] sm:$0xff] %v711
        %744 = vst [vmem:[#allocation3 + $0xa8] sm:$0xff] %v712
        %745 = vst [vmem:[#allocation3 + $0xb0] sm:$0xff] %v713
        %746 = vst [vmem:[#allocation3 + $0xb8] sm:$0xff] %v714
        %747 = vst [vmem:[#allocation3 + $0xc0] sm:$0xff] %v715
        %748 = vst [vmem:[#allocation3 + $0xc8] sm:$0xff] %v716
        %749 = vst [vmem:[#allocation3 + $0xd0] sm:$0xff] %v717
        %750 = vst [vmem:[#allocation3 + $0xd8] sm:$0xff] %v718
        %751 = vst [vmem:[#allocation3 + $0xe0] sm:$0xff] %v719
        %752 = vst [vmem:[#allocation3 + $0xe8] sm:$0xff] %v720
        %753 = vst [vmem:[#allocation3 + $0xf0] sm:$0xff] %v721
        %754 = vst [vmem:[#allocation3 + $0xf8] sm:$0xff] %v722
        %v755 = vld [vmem:[#allocation2 + $0x1] sm:$0xff]
        %v756 = vld [vmem:[#allocation2 + $0x9] sm:$0xff]
        %v757 = vld [vmem:[#allocation2 + $0x19] sm:$0xff]
        %v758 = vld [vmem:[#allocation2 + $0x21] sm:$0xff]
        %v759 = vld [vmem:[#allocation2 + $0x31] sm:$0xff]
        %v760 = vld [vmem:[#allocation2 + $0x39] sm:$0xff]
        %v761 = vld [vmem:[#allocation2 + $0x49] sm:$0xff]
        %v762 = vld [vmem:[#allocation2 + $0x51] sm:$0xff]
        %v763 = vld [vmem:[#allocation2 + $0x61] sm:$0xff]
        %v764 = vld [vmem:[#allocation2 + $0x69] sm:$0xff]
        %v765 = vld [vmem:[#allocation2 + $0x79] sm:$0xff]
        %v766 = vld [vmem:[#allocation2 + $0x81] sm:$0xff]
        %v767 = vld [vmem:[#allocation2 + $0x91] sm:$0xff]
        %v768 = vld [vmem:[#allocation2 + $0x99] sm:$0xff]
        %v769 = vld [vmem:[#allocation2 + $0xa9] sm:$0xff]
        %v770 = vld [vmem:[#allocation2 + $0xb1] sm:$0xff]
        %v771 = vld [vmem:[#allocation2 + $0xc1] sm:$0xff]
        %v772 = vld [vmem:[#allocation2 + $0xc9] sm:$0xff]
        %v773 = vld [vmem:[#allocation2 + $0xd9] sm:$0xff]
        %v774 = vld [vmem:[#allocation2 + $0xe1] sm:$0xff]
        %v775 = vld [vmem:[#allocation2 + $0xf1] sm:$0xff]
        %v776 = vld [vmem:[#allocation2 + $0xf9] sm:$0xff]
        %v777 = vld [vmem:[#allocation2 + $0x109] sm:$0xff]
        %v778 = vld [vmem:[#allocation2 + $0x111] sm:$0xff]
        %v779 = vld [vmem:[#allocation2 + $0x121] sm:$0xff]
        %v780 = vld [vmem:[#allocation2 + $0x129] sm:$0xff]
        %v781 = vld [vmem:[#allocation2 + $0x139] sm:$0xff]
        %v782 = vld [vmem:[#allocation2 + $0x141] sm:$0xff]
        %v783 = vld [vmem:[#allocation2 + $0x151] sm:$0xff]
        %v784 = vld [vmem:[#allocation2 + $0x159] sm:$0xff]
        %v785 = vld [vmem:[#allocation2 + $0x169] sm:$0xff]
        %v786 = vld [vmem:[#allocation2 + $0x171] sm:$0xff]
        %v787 = vld [vmem:[#allocation3] sm:$0xff]
        %v788 = vld [vmem:[#allocation3 + $0x8] sm:$0xff]
        %v789 = vld [vmem:[#allocation3 + $0x10] sm:$0xff]
        %v790 = vld [vmem:[#allocation3 + $0x18] sm:$0xff]
        %v791 = vld [vmem:[#allocation3 + $0x20] sm:$0xff]
        %v792 = vld [vmem:[#allocation3 + $0x28] sm:$0xff]
        %v793 = vld [vmem:[#allocation3 + $0x30] sm:$0xff]
        %v794 = vld [vmem:[#allocation3 + $0x38] sm:$0xff]
        %v795 = vld [vmem:[#allocation3 + $0x40] sm:$0xff]
        %v796 = vld [vmem:[#allocation3 + $0x48] sm:$0xff]
        %v797 = vld [vmem:[#allocation3 + $0x50] sm:$0xff]
        %v798 = vld [vmem:[#allocation3 + $0x58] sm:$0xff]
        %v799 = vld [vmem:[#allocation3 + $0x60] sm:$0xff]
        %v800 = vld [vmem:[#allocation3 + $0x68] sm:$0xff]
        %v801 = vld [vmem:[#allocation3 + $0x70] sm:$0xff]
        %v802 = vld [vmem:[#allocation3 + $0x78] sm:$0xff]
        %v803 = vld [vmem:[#allocation3 + $0x80] sm:$0xff]
        %v804 = vld [vmem:[#allocation3 + $0x88] sm:$0xff]
        %v805 = vld [vmem:[#allocation3 + $0x90] sm:$0xff]
        %v806 = vld [vmem:[#allocation3 + $0x98] sm:$0xff]
        %v807 = vld [vmem:[#allocation3 + $0xa0] sm:$0xff]
        %v808 = vld [vmem:[#allocation3 + $0xa8] sm:$0xff]
        %v809 = vld [vmem:[#allocation3 + $0xb0] sm:$0xff]
        %v810 = vld [vmem:[#allocation3 + $0xb8] sm:$0xff]
        %v811 = vld [vmem:[#allocation3 + $0xc0] sm:$0xff]
        %v812 = vld [vmem:[#allocation3 + $0xc8] sm:$0xff]
        %v813 = vld [vmem:[#allocation3 + $0xd0] sm:$0xff]
        %v814 = vld [vmem:[#allocation3 + $0xd8] sm:$0xff]
        %v815 = vld [vmem:[#allocation3 + $0xe0] sm:$0xff]
        %v816 = vld [vmem:[#allocation3 + $0xe8] sm:$0xff]
        %v817 = vld [vmem:[#allocation3 + $0xf0] sm:$0xff]
        %v818 = vld [vmem:[#allocation3 + $0xf8] sm:$0xff]
        %s819 = scalar_lea.vmem [#allocation4], 128
        %v820 = vld [vmem:[%s819] sm:$0xff]
        %v821 = vld [vmem:[%s819 + $0x8] sm:$0xff]
        %v822 = vld [vmem:[%s819 + $0x10] sm:$0xff]
        %v823 = vld [vmem:[%s819 + $0x18] sm:$0xff]
        %v824 = vld [vmem:[%s819 + $0x20] sm:$0xff]
        %v825 = vld [vmem:[%s819 + $0x28] sm:$0xff]
        %v826 = vld [vmem:[%s819 + $0x30] sm:$0xff]
        %v827 = vld [vmem:[%s819 + $0x38] sm:$0xff]
        %v828 = vld [vmem:[%s819 + $0x40] sm:$0xff]
        %v829 = vld [vmem:[%s819 + $0x48] sm:$0xff]
        %v830 = vld [vmem:[%s819 + $0x50] sm:$0xff]
        %v831 = vld [vmem:[%s819 + $0x58] sm:$0xff]
        %v832 = vld [vmem:[%s819 + $0x60] sm:$0xff]
        %v833 = vld [vmem:[%s819 + $0x68] sm:$0xff]
        %v834 = vld [vmem:[%s819 + $0x70] sm:$0xff]
        %v835 = vld [vmem:[%s819 + $0x78] sm:$0xff]
        %836 = vmatpush.msra.mxu0 %v835
        %837 = vmatpush.msra.mxu0 %v834
        %838 = vmatpush.msra.mxu0 %v833
        %839 = vmatpush.msra.mxu0 %v832
        %840 = vmatpush.msra.mxu0 %v831
        %841 = vmatpush.msra.mxu0 %v830
        %842 = vmatpush.msra.mxu0 %v829
        %843 = vmatpush.msra.mxu0 %v828
        %844 = vmatpush.msra.mxu0 %v827
        %845 = vmatpush.msra.mxu0 %v826
        %846 = vmatpush.msra.mxu0 %v825
        %847 = vmatpush.msra.mxu0 %v824
        %848 = vmatpush.msra.mxu0 %v823
        %849 = vmatpush.msra.mxu0 %v822
        %850 = vmatpush.msra.mxu0 %v821
        %851 = vmatpush.msra.mxu0 %v820
        %852 = vmatmul.f32.gmra.mxu0 %v755
        %v853 = vpop.f32.mrf.mxu0
        %v854 = vadd.f32 0.0, %v853
        %855 = vmatmul.f32.gmra.mxu0 %v756
        %v856 = vpop.f32.mrf.mxu0
        %v857 = vadd.f32 0.0, %v856
        %858 = vmatmul.f32.gmra.mxu0 %v757
        %v859 = vpop.f32.mrf.mxu0
        %v860 = vadd.f32 0.0, %v859
        %861 = vmatmul.f32.gmra.mxu0 %v758
        %v862 = vpop.f32.mrf.mxu0
        %v863 = vadd.f32 0.0, %v862
        %864 = vmatmul.f32.gmra.mxu0 %v759
        %v865 = vpop.f32.mrf.mxu0
        %v866 = vadd.f32 0.0, %v865
        %867 = vmatmul.f32.gmra.mxu0 %v760
        %v868 = vpop.f32.mrf.mxu0
        %v869 = vadd.f32 0.0, %v868
        %870 = vmatmul.f32.gmra.mxu0 %v761
        %v871 = vpop.f32.mrf.mxu0
        %v872 = vadd.f32 0.0, %v871
        %873 = vmatmul.f32.gmra.mxu0 %v762
        %v874 = vpop.f32.mrf.mxu0
        %v875 = vadd.f32 0.0, %v874
        %876 = vmatmul.f32.gmra.mxu0 %v763
        %v877 = vpop.f32.mrf.mxu0
        %v878 = vadd.f32 0.0, %v877
        %879 = vmatmul.f32.gmra.mxu0 %v764
        %v880 = vpop.f32.mrf.mxu0
        %v881 = vadd.f32 0.0, %v880
        %882 = vmatmul.f32.gmra.mxu0 %v765
        %v883 = vpop.f32.mrf.mxu0
        %v884 = vadd.f32 0.0, %v883
        %885 = vmatmul.f32.gmra.mxu0 %v766
        %v886 = vpop.f32.mrf.mxu0
        %v887 = vadd.f32 0.0, %v886
        %888 = vmatmul.f32.gmra.mxu0 %v767
        %v889 = vpop.f32.mrf.mxu0
        %v890 = vadd.f32 0.0, %v889
        %891 = vmatmul.f32.gmra.mxu0 %v768
        %v892 = vpop.f32.mrf.mxu0
        %v893 = vadd.f32 0.0, %v892
        %894 = vmatmul.f32.gmra.mxu0 %v769
        %v895 = vpop.f32.mrf.mxu0
        %v896 = vadd.f32 0.0, %v895
        %897 = vmatmul.f32.gmra.mxu0 %v770
        %v898 = vpop.f32.mrf.mxu0
        %v899 = vadd.f32 0.0, %v898
        %900 = vmatmul.f32.gmra.mxu0 %v771
        %v901 = vpop.f32.mrf.mxu0
        %v902 = vadd.f32 0.0, %v901
        %903 = vmatmul.f32.gmra.mxu0 %v772
        %v904 = vpop.f32.mrf.mxu0
        %v905 = vadd.f32 0.0, %v904
        %906 = vmatmul.f32.gmra.mxu0 %v773
        %v907 = vpop.f32.mrf.mxu0
        %v908 = vadd.f32 0.0, %v907
        %909 = vmatmul.f32.gmra.mxu0 %v774
        %v910 = vpop.f32.mrf.mxu0
        %v911 = vadd.f32 0.0, %v910
        %912 = vmatmul.f32.gmra.mxu0 %v775
        %v913 = vpop.f32.mrf.mxu0
        %v914 = vadd.f32 0.0, %v913
        %915 = vmatmul.f32.gmra.mxu0 %v776
        %v916 = vpop.f32.mrf.mxu0
        %v917 = vadd.f32 0.0, %v916
        %918 = vmatmul.f32.gmra.mxu0 %v777
        %v919 = vpop.f32.mrf.mxu0
        %v920 = vadd.f32 0.0, %v919
        %921 = vmatmul.f32.gmra.mxu0 %v778
        %v922 = vpop.f32.mrf.mxu0
        %v923 = vadd.f32 0.0, %v922
        %924 = vmatmul.f32.gmra.mxu0 %v779
        %v925 = vpop.f32.mrf.mxu0
        %v926 = vadd.f32 0.0, %v925
        %927 = vmatmul.f32.gmra.mxu0 %v780
        %v928 = vpop.f32.mrf.mxu0
        %v929 = vadd.f32 0.0, %v928
        %930 = vmatmul.f32.gmra.mxu0 %v781
        %v931 = vpop.f32.mrf.mxu0
        %v932 = vadd.f32 0.0, %v931
        %933 = vmatmul.f32.gmra.mxu0 %v782
        %v934 = vpop.f32.mrf.mxu0
        %v935 = vadd.f32 0.0, %v934
        %936 = vmatmul.f32.gmra.mxu0 %v783
        %v937 = vpop.f32.mrf.mxu0
        %v938 = vadd.f32 0.0, %v937
        %939 = vmatmul.f32.gmra.mxu0 %v784
        %v940 = vpop.f32.mrf.mxu0
        %v941 = vadd.f32 0.0, %v940
        %942 = vmatmul.f32.gmra.mxu0 %v785
        %v943 = vpop.f32.mrf.mxu0
        %v944 = vadd.f32 0.0, %v943
        %945 = vmatmul.f32.gmra.mxu0 %v786
        %v946 = vpop.f32.mrf.mxu0
        %v947 = vadd.f32 0.0, %v946
        %948 = vdwg.mxu0
        %v949 = vadd.f32 %v787, %v854
        %v950 = vadd.f32 %v788, %v857
        %v951 = vadd.f32 %v789, %v860
        %v952 = vadd.f32 %v790, %v863
        %v953 = vadd.f32 %v791, %v866
        %v954 = vadd.f32 %v792, %v869
        %v955 = vadd.f32 %v793, %v872
        %v956 = vadd.f32 %v794, %v875
        %v957 = vadd.f32 %v795, %v878
        %v958 = vadd.f32 %v796, %v881
        %v959 = vadd.f32 %v797, %v884
        %v960 = vadd.f32 %v798, %v887
        %v961 = vadd.f32 %v799, %v890
        %v962 = vadd.f32 %v800, %v893
        %v963 = vadd.f32 %v801, %v896
        %v964 = vadd.f32 %v802, %v899
        %v965 = vadd.f32 %v803, %v902
        %v966 = vadd.f32 %v804, %v905
        %v967 = vadd.f32 %v805, %v908
        %v968 = vadd.f32 %v806, %v911
        %v969 = vadd.f32 %v807, %v914
        %v970 = vadd.f32 %v808, %v917
        %v971 = vadd.f32 %v809, %v920
        %v972 = vadd.f32 %v810, %v923
        %v973 = vadd.f32 %v811, %v926
        %v974 = vadd.f32 %v812, %v929
        %v975 = vadd.f32 %v813, %v932
        %v976 = vadd.f32 %v814, %v935
        %v977 = vadd.f32 %v815, %v938
        %v978 = vadd.f32 %v816, %v941
        %v979 = vadd.f32 %v817, %v944
        %v980 = vadd.f32 %v818, %v947
        %981 = vst [vmem:[#allocation3] sm:$0xff] %v949
        %982 = vst [vmem:[#allocation3 + $0x8] sm:$0xff] %v950
        %983 = vst [vmem:[#allocation3 + $0x10] sm:$0xff] %v951
        %984 = vst [vmem:[#allocation3 + $0x18] sm:$0xff] %v952
        %985 = vst [vmem:[#allocation3 + $0x20] sm:$0xff] %v953
        %986 = vst [vmem:[#allocation3 + $0x28] sm:$0xff] %v954
        %987 = vst [vmem:[#allocation3 + $0x30] sm:$0xff] %v955
        %988 = vst [vmem:[#allocation3 + $0x38] sm:$0xff] %v956
        %989 = vst [vmem:[#allocation3 + $0x40] sm:$0xff] %v957
        %990 = vst [vmem:[#allocation3 + $0x48] sm:$0xff] %v958
        %991 = vst [vmem:[#allocation3 + $0x50] sm:$0xff] %v959
        %992 = vst [vmem:[#allocation3 + $0x58] sm:$0xff] %v960
        %993 = vst [vmem:[#allocation3 + $0x60] sm:$0xff] %v961
        %994 = vst [vmem:[#allocation3 + $0x68] sm:$0xff] %v962
        %995 = vst [vmem:[#allocation3 + $0x70] sm:$0xff] %v963
        %996 = vst [vmem:[#allocation3 + $0x78] sm:$0xff] %v964
        %997 = vst [vmem:[#allocation3 + $0x80] sm:$0xff] %v965
        %998 = vst [vmem:[#allocation3 + $0x88] sm:$0xff] %v966
        %999 = vst [vmem:[#allocation3 + $0x90] sm:$0xff] %v967
        %1000 = vst [vmem:[#allocation3 + $0x98] sm:$0xff] %v968
        %1001 = vst [vmem:[#allocation3 + $0xa0] sm:$0xff] %v969
        %1002 = vst [vmem:[#allocation3 + $0xa8] sm:$0xff] %v970
        %1003 = vst [vmem:[#allocation3 + $0xb0] sm:$0xff] %v971
        %1004 = vst [vmem:[#allocation3 + $0xb8] sm:$0xff] %v972
        %1005 = vst [vmem:[#allocation3 + $0xc0] sm:$0xff] %v973
        %1006 = vst [vmem:[#allocation3 + $0xc8] sm:$0xff] %v974
        %1007 = vst [vmem:[#allocation3 + $0xd0] sm:$0xff] %v975
        %1008 = vst [vmem:[#allocation3 + $0xd8] sm:$0xff] %v976
        %1009 = vst [vmem:[#allocation3 + $0xe0] sm:$0xff] %v977
        %1010 = vst [vmem:[#allocation3 + $0xe8] sm:$0xff] %v978
        %1011 = vst [vmem:[#allocation3 + $0xf0] sm:$0xff] %v979
        %1012 = vst [vmem:[#allocation3 + $0xf8] sm:$0xff] %v980
        %v1013 = vld [vmem:[#allocation2 + $0x2] sm:$0xff]
        %v1014 = vld [vmem:[#allocation2 + $0xa] sm:$0xff]
        %v1015 = vld [vmem:[#allocation2 + $0x1a] sm:$0xff]
        %v1016 = vld [vmem:[#allocation2 + $0x22] sm:$0xff]
        %v1017 = vld [vmem:[#allocation2 + $0x32] sm:$0xff]
        %v1018 = vld [vmem:[#allocation2 + $0x3a] sm:$0xff]
        %v1019 = vld [vmem:[#allocation2 + $0x4a] sm:$0xff]
        %v1020 = vld [vmem:[#allocation2 + $0x52] sm:$0xff]
        %v1021 = vld [vmem:[#allocation2 + $0x62] sm:$0xff]
        %v1022 = vld [vmem:[#allocation2 + $0x6a] sm:$0xff]
        %v1023 = vld [vmem:[#allocation2 + $0x7a] sm:$0xff]
        %v1024 = vld [vmem:[#allocation2 + $0x82] sm:$0xff]
        %v1025 = vld [vmem:[#allocation2 + $0x92] sm:$0xff]
        %v1026 = vld [vmem:[#allocation2 + $0x9a] sm:$0xff]
        %v1027 = vld [vmem:[#allocation2 + $0xaa] sm:$0xff]
        %v1028 = vld [vmem:[#allocation2 + $0xb2] sm:$0xff]
        %v1029 = vld [vmem:[#allocation2 + $0xc2] sm:$0xff]
        %v1030 = vld [vmem:[#allocation2 + $0xca] sm:$0xff]
        %v1031 = vld [vmem:[#allocation2 + $0xda] sm:$0xff]
        %v1032 = vld [vmem:[#allocation2 + $0xe2] sm:$0xff]
        %v1033 = vld [vmem:[#allocation2 + $0xf2] sm:$0xff]
        %v1034 = vld [vmem:[#allocation2 + $0xfa] sm:$0xff]
        %v1035 = vld [vmem:[#allocation2 + $0x10a] sm:$0xff]
        %v1036 = vld [vmem:[#allocation2 + $0x112] sm:$0xff]
        %v1037 = vld [vmem:[#allocation2 + $0x122] sm:$0xff]
        %v1038 = vld [vmem:[#allocation2 + $0x12a] sm:$0xff]
        %v1039 = vld [vmem:[#allocation2 + $0x13a] sm:$0xff]
        %v1040 = vld [vmem:[#allocation2 + $0x142] sm:$0xff]
        %v1041 = vld [vmem:[#allocation2 + $0x152] sm:$0xff]
        %v1042 = vld [vmem:[#allocation2 + $0x15a] sm:$0xff]
        %v1043 = vld [vmem:[#allocation2 + $0x16a] sm:$0xff]
        %v1044 = vld [vmem:[#allocation2 + $0x172] sm:$0xff]
        %v1045 = vld [vmem:[#allocation3] sm:$0xff]
        %v1046 = vld [vmem:[#allocation3 + $0x8] sm:$0xff]
        %v1047 = vld [vmem:[#allocation3 + $0x10] sm:$0xff]
        %v1048 = vld [vmem:[#allocation3 + $0x18] sm:$0xff]
        %v1049 = vld [vmem:[#allocation3 + $0x20] sm:$0xff]
        %v1050 = vld [vmem:[#allocation3 + $0x28] sm:$0xff]
        %v1051 = vld [vmem:[#allocation3 + $0x30] sm:$0xff]
        %v1052 = vld [vmem:[#allocation3 + $0x38] sm:$0xff]
        %v1053 = vld [vmem:[#allocation3 + $0x40] sm:$0xff]
        %v1054 = vld [vmem:[#allocation3 + $0x48] sm:$0xff]
        %v1055 = vld [vmem:[#allocation3 + $0x50] sm:$0xff]
        %v1056 = vld [vmem:[#allocation3 + $0x58] sm:$0xff]
        %v1057 = vld [vmem:[#allocation3 + $0x60] sm:$0xff]
        %v1058 = vld [vmem:[#allocation3 + $0x68] sm:$0xff]
        %v1059 = vld [vmem:[#allocation3 + $0x70] sm:$0xff]
        %v1060 = vld [vmem:[#allocation3 + $0x78] sm:$0xff]
        %v1061 = vld [vmem:[#allocation3 + $0x80] sm:$0xff]
        %v1062 = vld [vmem:[#allocation3 + $0x88] sm:$0xff]
        %v1063 = vld [vmem:[#allocation3 + $0x90] sm:$0xff]
        %v1064 = vld [vmem:[#allocation3 + $0x98] sm:$0xff]
        %v1065 = vld [vmem:[#allocation3 + $0xa0] sm:$0xff]
        %v1066 = vld [vmem:[#allocation3 + $0xa8] sm:$0xff]
        %v1067 = vld [vmem:[#allocation3 + $0xb0] sm:$0xff]
        %v1068 = vld [vmem:[#allocation3 + $0xb8] sm:$0xff]
        %v1069 = vld [vmem:[#allocation3 + $0xc0] sm:$0xff]
        %v1070 = vld [vmem:[#allocation3 + $0xc8] sm:$0xff]
        %v1071 = vld [vmem:[#allocation3 + $0xd0] sm:$0xff]
        %v1072 = vld [vmem:[#allocation3 + $0xd8] sm:$0xff]
        %v1073 = vld [vmem:[#allocation3 + $0xe0] sm:$0xff]
        %v1074 = vld [vmem:[#allocation3 + $0xe8] sm:$0xff]
        %v1075 = vld [vmem:[#allocation3 + $0xf0] sm:$0xff]
        %v1076 = vld [vmem:[#allocation3 + $0xf8] sm:$0xff]
        %s1077 = scalar_lea.vmem [#allocation4], 256
        %v1078 = vld [vmem:[%s1077] sm:$0xff]
        %v1079 = vld [vmem:[%s1077 + $0x8] sm:$0xff]
        %v1080 = vld [vmem:[%s1077 + $0x10] sm:$0xff]
        %v1081 = vld [vmem:[%s1077 + $0x18] sm:$0xff]
        %v1082 = vld [vmem:[%s1077 + $0x20] sm:$0xff]
        %v1083 = vld [vmem:[%s1077 + $0x28] sm:$0xff]
        %v1084 = vld [vmem:[%s1077 + $0x30] sm:$0xff]
        %v1085 = vld [vmem:[%s1077 + $0x38] sm:$0xff]
        %v1086 = vld [vmem:[%s1077 + $0x40] sm:$0xff]
        %v1087 = vld [vmem:[%s1077 + $0x48] sm:$0xff]
        %v1088 = vld [vmem:[%s1077 + $0x50] sm:$0xff]
        %v1089 = vld [vmem:[%s1077 + $0x58] sm:$0xff]
        %v1090 = vld [vmem:[%s1077 + $0x60] sm:$0xff]
        %v1091 = vld [vmem:[%s1077 + $0x68] sm:$0xff]
        %v1092 = vld [vmem:[%s1077 + $0x70] sm:$0xff]
        %v1093 = vld [vmem:[%s1077 + $0x78] sm:$0xff]
        %1094 = vmatpush.msra.mxu0 %v1093
        %1095 = vmatpush.msra.mxu0 %v1092
        %1096 = vmatpush.msra.mxu0 %v1091
        %1097 = vmatpush.msra.mxu0 %v1090
        %1098 = vmatpush.msra.mxu0 %v1089
        %1099 = vmatpush.msra.mxu0 %v1088
        %1100 = vmatpush.msra.mxu0 %v1087
        %1101 = vmatpush.msra.mxu0 %v1086
        %1102 = vmatpush.msra.mxu0 %v1085
        %1103 = vmatpush.msra.mxu0 %v1084
        %1104 = vmatpush.msra.mxu0 %v1083
        %1105 = vmatpush.msra.mxu0 %v1082
        %1106 = vmatpush.msra.mxu0 %v1081
        %1107 = vmatpush.msra.mxu0 %v1080
        %1108 = vmatpush.msra.mxu0 %v1079
        %1109 = vmatpush.msra.mxu0 %v1078
        %1110 = vmatmul.f32.gmra.mxu0 %v1013
        %v1111 = vpop.f32.mrf.mxu0
        %v1112 = vadd.f32 0.0, %v1111
        %1113 = vmatmul.f32.gmra.mxu0 %v1014
        %v1114 = vpop.f32.mrf.mxu0
        %v1115 = vadd.f32 0.0, %v1114
        %1116 = vmatmul.f32.gmra.mxu0 %v1015
        %v1117 = vpop.f32.mrf.mxu0
        %v1118 = vadd.f32 0.0, %v1117
        %1119 = vmatmul.f32.gmra.mxu0 %v1016
        %v1120 = vpop.f32.mrf.mxu0
        %v1121 = vadd.f32 0.0, %v1120
        %1122 = vmatmul.f32.gmra.mxu0 %v1017
        %v1123 = vpop.f32.mrf.mxu0
        %v1124 = vadd.f32 0.0, %v1123
        %1125 = vmatmul.f32.gmra.mxu0 %v1018
        %v1126 = vpop.f32.mrf.mxu0
        %v1127 = vadd.f32 0.0, %v1126
        %1128 = vmatmul.f32.gmra.mxu0 %v1019
        %v1129 = vpop.f32.mrf.mxu0
        %v1130 = vadd.f32 0.0, %v1129
        %1131 = vmatmul.f32.gmra.mxu0 %v1020
        %v1132 = vpop.f32.mrf.mxu0
        %v1133 = vadd.f32 0.0, %v1132
        %1134 = vmatmul.f32.gmra.mxu0 %v1021
        %v1135 = vpop.f32.mrf.mxu0
        %v1136 = vadd.f32 0.0, %v1135
        %1137 = vmatmul.f32.gmra.mxu0 %v1022
        %v1138 = vpop.f32.mrf.mxu0
        %v1139 = vadd.f32 0.0, %v1138
        %1140 = vmatmul.f32.gmra.mxu0 %v1023
        %v1141 = vpop.f32.mrf.mxu0
        %v1142 = vadd.f32 0.0, %v1141
        %1143 = vmatmul.f32.gmra.mxu0 %v1024
        %v1144 = vpop.f32.mrf.mxu0
        %v1145 = vadd.f32 0.0, %v1144
        %1146 = vmatmul.f32.gmra.mxu0 %v1025
        %v1147 = vpop.f32.mrf.mxu0
        %v1148 = vadd.f32 0.0, %v1147
        %1149 = vmatmul.f32.gmra.mxu0 %v1026
        %v1150 = vpop.f32.mrf.mxu0
        %v1151 = vadd.f32 0.0, %v1150
        %1152 = vmatmul.f32.gmra.mxu0 %v1027
        %v1153 = vpop.f32.mrf.mxu0
        %v1154 = vadd.f32 0.0, %v1153
        %1155 = vmatmul.f32.gmra.mxu0 %v1028
        %v1156 = vpop.f32.mrf.mxu0
        %v1157 = vadd.f32 0.0, %v1156
        %1158 = vmatmul.f32.gmra.mxu0 %v1029
        %v1159 = vpop.f32.mrf.mxu0
        %v1160 = vadd.f32 0.0, %v1159
        %1161 = vmatmul.f32.gmra.mxu0 %v1030
        %v1162 = vpop.f32.mrf.mxu0
        %v1163 = vadd.f32 0.0, %v1162
        %1164 = vmatmul.f32.gmra.mxu0 %v1031
        %v1165 = vpop.f32.mrf.mxu0
        %v1166 = vadd.f32 0.0, %v1165
        %1167 = vmatmul.f32.gmra.mxu0 %v1032
        %v1168 = vpop.f32.mrf.mxu0
        %v1169 = vadd.f32 0.0, %v1168
        %1170 = vmatmul.f32.gmra.mxu0 %v1033
        %v1171 = vpop.f32.mrf.mxu0
        %v1172 = vadd.f32 0.0, %v1171
        %1173 = vmatmul.f32.gmra.mxu0 %v1034
        %v1174 = vpop.f32.mrf.mxu0
        %v1175 = vadd.f32 0.0, %v1174
        %1176 = vmatmul.f32.gmra.mxu0 %v1035
        %v1177 = vpop.f32.mrf.mxu0
        %v1178 = vadd.f32 0.0, %v1177
        %1179 = vmatmul.f32.gmra.mxu0 %v1036
        %v1180 = vpop.f32.mrf.mxu0
        %v1181 = vadd.f32 0.0, %v1180
        %1182 = vmatmul.f32.gmra.mxu0 %v1037
        %v1183 = vpop.f32.mrf.mxu0
        %v1184 = vadd.f32 0.0, %v1183
        %1185 = vmatmul.f32.gmra.mxu0 %v1038
        %v1186 = vpop.f32.mrf.mxu0
        %v1187 = vadd.f32 0.0, %v1186
        %1188 = vmatmul.f32.gmra.mxu0 %v1039
        %v1189 = vpop.f32.mrf.mxu0
        %v1190 = vadd.f32 0.0, %v1189
        %1191 = vmatmul.f32.gmra.mxu0 %v1040
        %v1192 = vpop.f32.mrf.mxu0
        %v1193 = vadd.f32 0.0, %v1192
        %1194 = vmatmul.f32.gmra.mxu0 %v1041
        %v1195 = vpop.f32.mrf.mxu0
        %v1196 = vadd.f32 0.0, %v1195
        %1197 = vmatmul.f32.gmra.mxu0 %v1042
        %v1198 = vpop.f32.mrf.mxu0
        %v1199 = vadd.f32 0.0, %v1198
        %1200 = vmatmul.f32.gmra.mxu0 %v1043
        %v1201 = vpop.f32.mrf.mxu0
        %v1202 = vadd.f32 0.0, %v1201
        %1203 = vmatmul.f32.gmra.mxu0 %v1044
        %v1204 = vpop.f32.mrf.mxu0
        %v1205 = vadd.f32 0.0, %v1204
        %1206 = vdwg.mxu0
        %v1207 = vadd.f32 %v1045, %v1112
        %v1208 = vadd.f32 %v1046, %v1115
        %v1209 = vadd.f32 %v1047, %v1118
        %v1210 = vadd.f32 %v1048, %v1121
        %v1211 = vadd.f32 %v1049, %v1124
        %v1212 = vadd.f32 %v1050, %v1127
        %v1213 = vadd.f32 %v1051, %v1130
        %v1214 = vadd.f32 %v1052, %v1133
        %v1215 = vadd.f32 %v1053, %v1136
        %v1216 = vadd.f32 %v1054, %v1139
        %v1217 = vadd.f32 %v1055, %v1142
        %v1218 = vadd.f32 %v1056, %v1145
        %v1219 = vadd.f32 %v1057, %v1148
        %v1220 = vadd.f32 %v1058, %v1151
        %v1221 = vadd.f32 %v1059, %v1154
        %v1222 = vadd.f32 %v1060, %v1157
        %v1223 = vadd.f32 %v1061, %v1160
        %v1224 = vadd.f32 %v1062, %v1163
        %v1225 = vadd.f32 %v1063, %v1166
        %v1226 = vadd.f32 %v1064, %v1169
        %v1227 = vadd.f32 %v1065, %v1172
        %v1228 = vadd.f32 %v1066, %v1175
        %v1229 = vadd.f32 %v1067, %v1178
        %v1230 = vadd.f32 %v1068, %v1181
        %v1231 = vadd.f32 %v1069, %v1184
        %v1232 = vadd.f32 %v1070, %v1187
        %v1233 = vadd.f32 %v1071, %v1190
        %v1234 = vadd.f32 %v1072, %v1193
        %v1235 = vadd.f32 %v1073, %v1196
        %v1236 = vadd.f32 %v1074, %v1199
        %v1237 = vadd.f32 %v1075, %v1202
        %v1238 = vadd.f32 %v1076, %v1205
        %1239 = vst [vmem:[#allocation3] sm:$0xff] %v1207
        %1240 = vst [vmem:[#allocation3 + $0x8] sm:$0xff] %v1208
        %1241 = vst [vmem:[#allocation3 + $0x10] sm:$0xff] %v1209
        %1242 = vst [vmem:[#allocation3 + $0x18] sm:$0xff] %v1210
        %1243 = vst [vmem:[#allocation3 + $0x20] sm:$0xff] %v1211
        %1244 = vst [vmem:[#allocation3 + $0x28] sm:$0xff] %v1212
        %1245 = vst [vmem:[#allocation3 + $0x30] sm:$0xff] %v1213
        %1246 = vst [vmem:[#allocation3 + $0x38] sm:$0xff] %v1214
        %1247 = vst [vmem:[#allocation3 + $0x40] sm:$0xff] %v1215
        %1248 = vst [vmem:[#allocation3 + $0x48] sm:$0xff] %v1216
        %1249 = vst [vmem:[#allocation3 + $0x50] sm:$0xff] %v1217
        %1250 = vst [vmem:[#allocation3 + $0x58] sm:$0xff] %v1218
        %1251 = vst [vmem:[#allocation3 + $0x60] sm:$0xff] %v1219
        %1252 = vst [vmem:[#allocation3 + $0x68] sm:$0xff] %v1220
        %1253 = vst [vmem:[#allocation3 + $0x70] sm:$0xff] %v1221
        %1254 = vst [vmem:[#allocation3 + $0x78] sm:$0xff] %v1222
        %1255 = vst [vmem:[#allocation3 + $0x80] sm:$0xff] %v1223
        %1256 = vst [vmem:[#allocation3 + $0x88] sm:$0xff] %v1224
        %1257 = vst [vmem:[#allocation3 + $0x90] sm:$0xff] %v1225
        %1258 = vst [vmem:[#allocation3 + $0x98] sm:$0xff] %v1226
        %1259 = vst [vmem:[#allocation3 + $0xa0] sm:$0xff] %v1227
        %1260 = vst [vmem:[#allocation3 + $0xa8] sm:$0xff] %v1228
        %1261 = vst [vmem:[#allocation3 + $0xb0] sm:$0xff] %v1229
        %1262 = vst [vmem:[#allocation3 + $0xb8] sm:$0xff] %v1230
        %1263 = vst [vmem:[#allocation3 + $0xc0] sm:$0xff] %v1231
        %1264 = vst [vmem:[#allocation3 + $0xc8] sm:$0xff] %v1232
        %1265 = vst [vmem:[#allocation3 + $0xd0] sm:$0xff] %v1233
        %1266 = vst [vmem:[#allocation3 + $0xd8] sm:$0xff] %v1234
        %1267 = vst [vmem:[#allocation3 + $0xe0] sm:$0xff] %v1235
        %1268 = vst [vmem:[#allocation3 + $0xe8] sm:$0xff] %v1236
        %1269 = vst [vmem:[#allocation3 + $0xf0] sm:$0xff] %v1237
        %1270 = vst [vmem:[#allocation3 + $0xf8] sm:$0xff] %v1238
        %v1271 = vld [vmem:[%s345] sm:$0xff]
        %v1272 = vld [vmem:[%s345 + $0x8] sm:$0xff]
        %v1273 = vld [vmem:[%s345 + $0x18] sm:$0xff]
        %v1274 = vld [vmem:[%s345 + $0x20] sm:$0xff]
        %v1275 = vld [vmem:[%s345 + $0x30] sm:$0xff]
        %v1276 = vld [vmem:[%s345 + $0x38] sm:$0xff]
        %v1277 = vld [vmem:[%s345 + $0x48] sm:$0xff]
        %v1278 = vld [vmem:[%s345 + $0x50] sm:$0xff]
        %v1279 = vld [vmem:[%s345 + $0x60] sm:$0xff]
        %v1280 = vld [vmem:[%s345 + $0x68] sm:$0xff]
        %v1281 = vld [vmem:[%s345 + $0x78] sm:$0xff]
        %v1282 = vld [vmem:[%s345 + $0x80] sm:$0xff]
        %v1283 = vld [vmem:[%s345 + $0x90] sm:$0xff]
        %v1284 = vld [vmem:[%s345 + $0x98] sm:$0xff]
        %v1285 = vld [vmem:[%s345 + $0xa8] sm:$0xff]
        %v1286 = vld [vmem:[%s345 + $0xb0] sm:$0xff]
        %v1287 = vld [vmem:[%s345 + $0xc0] sm:$0xff]
        %v1288 = vld [vmem:[%s345 + $0xc8] sm:$0xff]
        %v1289 = vld [vmem:[%s345 + $0xd8] sm:$0xff]
        %v1290 = vld [vmem:[%s345 + $0xe0] sm:$0xff]
        %v1291 = vld [vmem:[%s345 + $0xf0] sm:$0xff]
        %v1292 = vld [vmem:[%s345 + $0xf8] sm:$0xff]
        %v1293 = vld [vmem:[%s345 + $0x108] sm:$0xff]
        %v1294 = vld [vmem:[%s345 + $0x110] sm:$0xff]
        %v1295 = vld [vmem:[%s345 + $0x120] sm:$0xff]
        %v1296 = vld [vmem:[%s345 + $0x128] sm:$0xff]
        %v1297 = vld [vmem:[%s345 + $0x138] sm:$0xff]
        %v1298 = vld [vmem:[%s345 + $0x140] sm:$0xff]
        %v1299 = vld [vmem:[%s345 + $0x150] sm:$0xff]
        %v1300 = vld [vmem:[%s345 + $0x158] sm:$0xff]
        %v1301 = vld [vmem:[%s345 + $0x168] sm:$0xff]
        %v1302 = vld [vmem:[%s345 + $0x170] sm:$0xff]
        %v1303 = vld [vmem:[#allocation3] sm:$0xff]
        %v1304 = vld [vmem:[#allocation3 + $0x8] sm:$0xff]
        %v1305 = vld [vmem:[#allocation3 + $0x10] sm:$0xff]
        %v1306 = vld [vmem:[#allocation3 + $0x18] sm:$0xff]
        %v1307 = vld [vmem:[#allocation3 + $0x20] sm:$0xff]
        %v1308 = vld [vmem:[#allocation3 + $0x28] sm:$0xff]
        %v1309 = vld [vmem:[#allocation3 + $0x30] sm:$0xff]
        %v1310 = vld [vmem:[#allocation3 + $0x38] sm:$0xff]
        %v1311 = vld [vmem:[#allocation3 + $0x40] sm:$0xff]
        %v1312 = vld [vmem:[#allocation3 + $0x48] sm:$0xff]
        %v1313 = vld [vmem:[#allocation3 + $0x50] sm:$0xff]
        %v1314 = vld [vmem:[#allocation3 + $0x58] sm:$0xff]
        %v1315 = vld [vmem:[#allocation3 + $0x60] sm:$0xff]
        %v1316 = vld [vmem:[#allocation3 + $0x68] sm:$0xff]
        %v1317 = vld [vmem:[#allocation3 + $0x70] sm:$0xff]
        %v1318 = vld [vmem:[#allocation3 + $0x78] sm:$0xff]
        %v1319 = vld [vmem:[#allocation3 + $0x80] sm:$0xff]
        %v1320 = vld [vmem:[#allocation3 + $0x88] sm:$0xff]
        %v1321 = vld [vmem:[#allocation3 + $0x90] sm:$0xff]
        %v1322 = vld [vmem:[#allocation3 + $0x98] sm:$0xff]
        %v1323 = vld [vmem:[#allocation3 + $0xa0] sm:$0xff]
        %v1324 = vld [vmem:[#allocation3 + $0xa8] sm:$0xff]
        %v1325 = vld [vmem:[#allocation3 + $0xb0] sm:$0xff]
        %v1326 = vld [vmem:[#allocation3 + $0xb8] sm:$0xff]
        %v1327 = vld [vmem:[#allocation3 + $0xc0] sm:$0xff]
        %v1328 = vld [vmem:[#allocation3 + $0xc8] sm:$0xff]
        %v1329 = vld [vmem:[#allocation3 + $0xd0] sm:$0xff]
        %v1330 = vld [vmem:[#allocation3 + $0xd8] sm:$0xff]
        %v1331 = vld [vmem:[#allocation3 + $0xe0] sm:$0xff]
        %v1332 = vld [vmem:[#allocation3 + $0xe8] sm:$0xff]
        %v1333 = vld [vmem:[#allocation3 + $0xf0] sm:$0xff]
        %v1334 = vld [vmem:[#allocation3 + $0xf8] sm:$0xff]
        %s1335 = scalar_lea.vmem [#allocation4], 384
        %v1336 = vld [vmem:[%s1335] sm:$0xff]
        %v1337 = vld [vmem:[%s1335 + $0x8] sm:$0xff]
        %v1338 = vld [vmem:[%s1335 + $0x10] sm:$0xff]
        %v1339 = vld [vmem:[%s1335 + $0x18] sm:$0xff]
        %v1340 = vld [vmem:[%s1335 + $0x20] sm:$0xff]
        %v1341 = vld [vmem:[%s1335 + $0x28] sm:$0xff]
        %v1342 = vld [vmem:[%s1335 + $0x30] sm:$0xff]
        %v1343 = vld [vmem:[%s1335 + $0x38] sm:$0xff]
        %v1344 = vld [vmem:[%s1335 + $0x40] sm:$0xff]
        %v1345 = vld [vmem:[%s1335 + $0x48] sm:$0xff]
        %v1346 = vld [vmem:[%s1335 + $0x50] sm:$0xff]
        %v1347 = vld [vmem:[%s1335 + $0x58] sm:$0xff]
        %v1348 = vld [vmem:[%s1335 + $0x60] sm:$0xff]
        %v1349 = vld [vmem:[%s1335 + $0x68] sm:$0xff]
        %v1350 = vld [vmem:[%s1335 + $0x70] sm:$0xff]
        %v1351 = vld [vmem:[%s1335 + $0x78] sm:$0xff]
        %1352 = vmatpush.msra.mxu0 %v1351
        %1353 = vmatpush.msra.mxu0 %v1350
        %1354 = vmatpush.msra.mxu0 %v1349
        %1355 = vmatpush.msra.mxu0 %v1348
        %1356 = vmatpush.msra.mxu0 %v1347
        %1357 = vmatpush.msra.mxu0 %v1346
        %1358 = vmatpush.msra.mxu0 %v1345
        %1359 = vmatpush.msra.mxu0 %v1344
        %1360 = vmatpush.msra.mxu0 %v1343
        %1361 = vmatpush.msra.mxu0 %v1342
        %1362 = vmatpush.msra.mxu0 %v1341
        %1363 = vmatpush.msra.mxu0 %v1340
        %1364 = vmatpush.msra.mxu0 %v1339
        %1365 = vmatpush.msra.mxu0 %v1338
        %1366 = vmatpush.msra.mxu0 %v1337
        %1367 = vmatpush.msra.mxu0 %v1336
        %1368 = vmatmul.f32.gmra.mxu0 %v1271
        %v1369 = vpop.f32.mrf.mxu0
        %v1370 = vadd.f32 0.0, %v1369
        %1371 = vmatmul.f32.gmra.mxu0 %v1272
        %v1372 = vpop.f32.mrf.mxu0
        %v1373 = vadd.f32 0.0, %v1372
        %1374 = vmatmul.f32.gmra.mxu0 %v1273
        %v1375 = vpop.f32.mrf.mxu0
        %v1376 = vadd.f32 0.0, %v1375
        %1377 = vmatmul.f32.gmra.mxu0 %v1274
        %v1378 = vpop.f32.mrf.mxu0
        %v1379 = vadd.f32 0.0, %v1378
        %1380 = vmatmul.f32.gmra.mxu0 %v1275
        %v1381 = vpop.f32.mrf.mxu0
        %v1382 = vadd.f32 0.0, %v1381
        %1383 = vmatmul.f32.gmra.mxu0 %v1276
        %v1384 = vpop.f32.mrf.mxu0
        %v1385 = vadd.f32 0.0, %v1384
        %1386 = vmatmul.f32.gmra.mxu0 %v1277
        %v1387 = vpop.f32.mrf.mxu0
        %v1388 = vadd.f32 0.0, %v1387
        %1389 = vmatmul.f32.gmra.mxu0 %v1278
        %v1390 = vpop.f32.mrf.mxu0
        %v1391 = vadd.f32 0.0, %v1390
        %1392 = vmatmul.f32.gmra.mxu0 %v1279
        %v1393 = vpop.f32.mrf.mxu0
        %v1394 = vadd.f32 0.0, %v1393
        %1395 = vmatmul.f32.gmra.mxu0 %v1280
        %v1396 = vpop.f32.mrf.mxu0
        %v1397 = vadd.f32 0.0, %v1396
        %1398 = vmatmul.f32.gmra.mxu0 %v1281
        %v1399 = vpop.f32.mrf.mxu0
        %v1400 = vadd.f32 0.0, %v1399
        %1401 = vmatmul.f32.gmra.mxu0 %v1282
        %v1402 = vpop.f32.mrf.mxu0
        %v1403 = vadd.f32 0.0, %v1402
        %1404 = vmatmul.f32.gmra.mxu0 %v1283
        %v1405 = vpop.f32.mrf.mxu0
        %v1406 = vadd.f32 0.0, %v1405
        %1407 = vmatmul.f32.gmra.mxu0 %v1284
        %v1408 = vpop.f32.mrf.mxu0
        %v1409 = vadd.f32 0.0, %v1408
        %1410 = vmatmul.f32.gmra.mxu0 %v1285
        %v1411 = vpop.f32.mrf.mxu0
        %v1412 = vadd.f32 0.0, %v1411
        %1413 = vmatmul.f32.gmra.mxu0 %v1286
        %v1414 = vpop.f32.mrf.mxu0
        %v1415 = vadd.f32 0.0, %v1414
        %1416 = vmatmul.f32.gmra.mxu0 %v1287
        %v1417 = vpop.f32.mrf.mxu0
        %v1418 = vadd.f32 0.0, %v1417
        %1419 = vmatmul.f32.gmra.mxu0 %v1288
        %v1420 = vpop.f32.mrf.mxu0
        %v1421 = vadd.f32 0.0, %v1420
        %1422 = vmatmul.f32.gmra.mxu0 %v1289
        %v1423 = vpop.f32.mrf.mxu0
        %v1424 = vadd.f32 0.0, %v1423
        %1425 = vmatmul.f32.gmra.mxu0 %v1290
        %v1426 = vpop.f32.mrf.mxu0
        %v1427 = vadd.f32 0.0, %v1426
        %1428 = vmatmul.f32.gmra.mxu0 %v1291
        %v1429 = vpop.f32.mrf.mxu0
        %v1430 = vadd.f32 0.0, %v1429
        %1431 = vmatmul.f32.gmra.mxu0 %v1292
        %v1432 = vpop.f32.mrf.mxu0
        %v1433 = vadd.f32 0.0, %v1432
        %1434 = vmatmul.f32.gmra.mxu0 %v1293
        %v1435 = vpop.f32.mrf.mxu0
        %v1436 = vadd.f32 0.0, %v1435
        %1437 = vmatmul.f32.gmra.mxu0 %v1294
        %v1438 = vpop.f32.mrf.mxu0
        %v1439 = vadd.f32 0.0, %v1438
        %1440 = vmatmul.f32.gmra.mxu0 %v1295
        %v1441 = vpop.f32.mrf.mxu0
        %v1442 = vadd.f32 0.0, %v1441
        %1443 = vmatmul.f32.gmra.mxu0 %v1296
        %v1444 = vpop.f32.mrf.mxu0
        %v1445 = vadd.f32 0.0, %v1444
        %1446 = vmatmul.f32.gmra.mxu0 %v1297
        %v1447 = vpop.f32.mrf.mxu0
        %v1448 = vadd.f32 0.0, %v1447
        %1449 = vmatmul.f32.gmra.mxu0 %v1298
        %v1450 = vpop.f32.mrf.mxu0
        %v1451 = vadd.f32 0.0, %v1450
        %1452 = vmatmul.f32.gmra.mxu0 %v1299
        %v1453 = vpop.f32.mrf.mxu0
        %v1454 = vadd.f32 0.0, %v1453
        %1455 = vmatmul.f32.gmra.mxu0 %v1300
        %v1456 = vpop.f32.mrf.mxu0
        %v1457 = vadd.f32 0.0, %v1456
        %1458 = vmatmul.f32.gmra.mxu0 %v1301
        %v1459 = vpop.f32.mrf.mxu0
        %v1460 = vadd.f32 0.0, %v1459
        %1461 = vmatmul.f32.gmra.mxu0 %v1302
        %v1462 = vpop.f32.mrf.mxu0
        %v1463 = vadd.f32 0.0, %v1462
        %1464 = vdwg.mxu0
        %v1465 = vadd.f32 %v1303, %v1370
        %v1466 = vadd.f32 %v1304, %v1373
        %v1467 = vadd.f32 %v1305, %v1376
        %v1468 = vadd.f32 %v1306, %v1379
        %v1469 = vadd.f32 %v1307, %v1382
        %v1470 = vadd.f32 %v1308, %v1385
        %v1471 = vadd.f32 %v1309, %v1388
        %v1472 = vadd.f32 %v1310, %v1391
        %v1473 = vadd.f32 %v1311, %v1394
        %v1474 = vadd.f32 %v1312, %v1397
        %v1475 = vadd.f32 %v1313, %v1400
        %v1476 = vadd.f32 %v1314, %v1403
        %v1477 = vadd.f32 %v1315, %v1406
        %v1478 = vadd.f32 %v1316, %v1409
        %v1479 = vadd.f32 %v1317, %v1412
        %v1480 = vadd.f32 %v1318, %v1415
        %v1481 = vadd.f32 %v1319, %v1418
        %v1482 = vadd.f32 %v1320, %v1421
        %v1483 = vadd.f32 %v1321, %v1424
        %v1484 = vadd.f32 %v1322, %v1427
        %v1485 = vadd.f32 %v1323, %v1430
        %v1486 = vadd.f32 %v1324, %v1433
        %v1487 = vadd.f32 %v1325, %v1436
        %v1488 = vadd.f32 %v1326, %v1439
        %v1489 = vadd.f32 %v1327, %v1442
        %v1490 = vadd.f32 %v1328, %v1445
        %v1491 = vadd.f32 %v1329, %v1448
        %v1492 = vadd.f32 %v1330, %v1451
        %v1493 = vadd.f32 %v1331, %v1454
        %v1494 = vadd.f32 %v1332, %v1457
        %v1495 = vadd.f32 %v1333, %v1460
        %v1496 = vadd.f32 %v1334, %v1463
        %1497 = vst [vmem:[#allocation3] sm:$0xff] %v1465
        %1498 = vst [vmem:[#allocation3 + $0x8] sm:$0xff] %v1466
        %1499 = vst [vmem:[#allocation3 + $0x10] sm:$0xff] %v1467
        %1500 = vst [vmem:[#allocation3 + $0x18] sm:$0xff] %v1468
        %1501 = vst [vmem:[#allocation3 + $0x20] sm:$0xff] %v1469
        %1502 = vst [vmem:[#allocation3 + $0x28] sm:$0xff] %v1470
        %1503 = vst [vmem:[#allocation3 + $0x30] sm:$0xff] %v1471
        %1504 = vst [vmem:[#allocation3 + $0x38] sm:$0xff] %v1472
        %1505 = vst [vmem:[#allocation3 + $0x40] sm:$0xff] %v1473
        %1506 = vst [vmem:[#allocation3 + $0x48] sm:$0xff] %v1474
        %1507 = vst [vmem:[#allocation3 + $0x50] sm:$0xff] %v1475
        %1508 = vst [vmem:[#allocation3 + $0x58] sm:$0xff] %v1476
        %1509 = vst [vmem:[#allocation3 + $0x60] sm:$0xff] %v1477
        %1510 = vst [vmem:[#allocation3 + $0x68] sm:$0xff] %v1478
        %1511 = vst [vmem:[#allocation3 + $0x70] sm:$0xff] %v1479
        %1512 = vst [vmem:[#allocation3 + $0x78] sm:$0xff] %v1480
        %1513 = vst [vmem:[#allocation3 + $0x80] sm:$0xff] %v1481
        %1514 = vst [vmem:[#allocation3 + $0x88] sm:$0xff] %v1482
        %1515 = vst [vmem:[#allocation3 + $0x90] sm:$0xff] %v1483
        %1516 = vst [vmem:[#allocation3 + $0x98] sm:$0xff] %v1484
        %1517 = vst [vmem:[#allocation3 + $0xa0] sm:$0xff] %v1485
        %1518 = vst [vmem:[#allocation3 + $0xa8] sm:$0xff] %v1486
        %1519 = vst [vmem:[#allocation3 + $0xb0] sm:$0xff] %v1487
        %1520 = vst [vmem:[#allocation3 + $0xb8] sm:$0xff] %v1488
        %1521 = vst [vmem:[#allocation3 + $0xc0] sm:$0xff] %v1489
        %1522 = vst [vmem:[#allocation3 + $0xc8] sm:$0xff] %v1490
        %1523 = vst [vmem:[#allocation3 + $0xd0] sm:$0xff] %v1491
        %1524 = vst [vmem:[#allocation3 + $0xd8] sm:$0xff] %v1492
        %1525 = vst [vmem:[#allocation3 + $0xe0] sm:$0xff] %v1493
        %1526 = vst [vmem:[#allocation3 + $0xe8] sm:$0xff] %v1494
        %1527 = vst [vmem:[#allocation3 + $0xf0] sm:$0xff] %v1495
        %1528 = vst [vmem:[#allocation3 + $0xf8] sm:$0xff] %v1496
        %v1529 = vld [vmem:[%s345 + $0x1] sm:$0xff]
        %v1530 = vld [vmem:[%s345 + $0x9] sm:$0xff]
        %v1531 = vld [vmem:[%s345 + $0x19] sm:$0xff]
        %v1532 = vld [vmem:[%s345 + $0x21] sm:$0xff]
        %v1533 = vld [vmem:[%s345 + $0x31] sm:$0xff]
        %v1534 = vld [vmem:[%s345 + $0x39] sm:$0xff]
        %v1535 = vld [vmem:[%s345 + $0x49] sm:$0xff]
        %v1536 = vld [vmem:[%s345 + $0x51] sm:$0xff]
        %v1537 = vld [vmem:[%s345 + $0x61] sm:$0xff]
        %v1538 = vld [vmem:[%s345 + $0x69] sm:$0xff]
        %v1539 = vld [vmem:[%s345 + $0x79] sm:$0xff]
        %v1540 = vld [vmem:[%s345 + $0x81] sm:$0xff]
        %v1541 = vld [vmem:[%s345 + $0x91] sm:$0xff]
        %v1542 = vld [vmem:[%s345 + $0x99] sm:$0xff]
        %v1543 = vld [vmem:[%s345 + $0xa9] sm:$0xff]
        %v1544 = vld [vmem:[%s345 + $0xb1] sm:$0xff]
        %v1545 = vld [vmem:[%s345 + $0xc1] sm:$0xff]
        %v1546 = vld [vmem:[%s345 + $0xc9] sm:$0xff]
        %v1547 = vld [vmem:[%s345 + $0xd9] sm:$0xff]
        %v1548 = vld [vmem:[%s345 + $0xe1] sm:$0xff]
        %v1549 = vld [vmem:[%s345 + $0xf1] sm:$0xff]
        %v1550 = vld [vmem:[%s345 + $0xf9] sm:$0xff]
        %v1551 = vld [vmem:[%s345 + $0x109] sm:$0xff]
        %v1552 = vld [vmem:[%s345 + $0x111] sm:$0xff]
        %v1553 = vld [vmem:[%s345 + $0x121] sm:$0xff]
        %v1554 = vld [vmem:[%s345 + $0x129] sm:$0xff]
        %v1555 = vld [vmem:[%s345 + $0x139] sm:$0xff]
        %v1556 = vld [vmem:[%s345 + $0x141] sm:$0xff]
        %v1557 = vld [vmem:[%s345 + $0x151] sm:$0xff]
        %v1558 = vld [vmem:[%s345 + $0x159] sm:$0xff]
        %v1559 = vld [vmem:[%s345 + $0x169] sm:$0xff]
        %v1560 = vld [vmem:[%s345 + $0x171] sm:$0xff]
        %v1561 = vld [vmem:[#allocation3] sm:$0xff]
        %v1562 = vld [vmem:[#allocation3 + $0x8] sm:$0xff]
        %v1563 = vld [vmem:[#allocation3 + $0x10] sm:$0xff]
        %v1564 = vld [vmem:[#allocation3 + $0x18] sm:$0xff]
        %v1565 = vld [vmem:[#allocation3 + $0x20] sm:$0xff]
        %v1566 = vld [vmem:[#allocation3 + $0x28] sm:$0xff]
        %v1567 = vld [vmem:[#allocation3 + $0x30] sm:$0xff]
        %v1568 = vld [vmem:[#allocation3 + $0x38] sm:$0xff]
        %v1569 = vld [vmem:[#allocation3 + $0x40] sm:$0xff]
        %v1570 = vld [vmem:[#allocation3 + $0x48] sm:$0xff]
        %v1571 = vld [vmem:[#allocation3 + $0x50] sm:$0xff]
        %v1572 = vld [vmem:[#allocation3 + $0x58] sm:$0xff]
        %v1573 = vld [vmem:[#allocation3 + $0x60] sm:$0xff]
        %v1574 = vld [vmem:[#allocation3 + $0x68] sm:$0xff]
        %v1575 = vld [vmem:[#allocation3 + $0x70] sm:$0xff]
        %v1576 = vld [vmem:[#allocation3 + $0x78] sm:$0xff]
        %v1577 = vld [vmem:[#allocation3 + $0x80] sm:$0xff]
        %v1578 = vld [vmem:[#allocation3 + $0x88] sm:$0xff]
        %v1579 = vld [vmem:[#allocation3 + $0x90] sm:$0xff]
        %v1580 = vld [vmem:[#allocation3 + $0x98] sm:$0xff]
        %v1581 = vld [vmem:[#allocation3 + $0xa0] sm:$0xff]
        %v1582 = vld [vmem:[#allocation3 + $0xa8] sm:$0xff]
        %v1583 = vld [vmem:[#allocation3 + $0xb0] sm:$0xff]
        %v1584 = vld [vmem:[#allocation3 + $0xb8] sm:$0xff]
        %v1585 = vld [vmem:[#allocation3 + $0xc0] sm:$0xff]
        %v1586 = vld [vmem:[#allocation3 + $0xc8] sm:$0xff]
        %v1587 = vld [vmem:[#allocation3 + $0xd0] sm:$0xff]
        %v1588 = vld [vmem:[#allocation3 + $0xd8] sm:$0xff]
        %v1589 = vld [vmem:[#allocation3 + $0xe0] sm:$0xff]
        %v1590 = vld [vmem:[#allocation3 + $0xe8] sm:$0xff]
        %v1591 = vld [vmem:[#allocation3 + $0xf0] sm:$0xff]
        %v1592 = vld [vmem:[#allocation3 + $0xf8] sm:$0xff]
        %s1593 = scalar_lea.vmem [#allocation4], 512
        %v1594 = vld [vmem:[%s1593] sm:$0xff]
        %v1595 = vld [vmem:[%s1593 + $0x8] sm:$0xff]
        %v1596 = vld [vmem:[%s1593 + $0x10] sm:$0xff]
        %v1597 = vld [vmem:[%s1593 + $0x18] sm:$0xff]
        %v1598 = vld [vmem:[%s1593 + $0x20] sm:$0xff]
        %v1599 = vld [vmem:[%s1593 + $0x28] sm:$0xff]
        %v1600 = vld [vmem:[%s1593 + $0x30] sm:$0xff]
        %v1601 = vld [vmem:[%s1593 + $0x38] sm:$0xff]
        %v1602 = vld [vmem:[%s1593 + $0x40] sm:$0xff]
        %v1603 = vld [vmem:[%s1593 + $0x48] sm:$0xff]
        %v1604 = vld [vmem:[%s1593 + $0x50] sm:$0xff]
        %v1605 = vld [vmem:[%s1593 + $0x58] sm:$0xff]
        %v1606 = vld [vmem:[%s1593 + $0x60] sm:$0xff]
        %v1607 = vld [vmem:[%s1593 + $0x68] sm:$0xff]
        %v1608 = vld [vmem:[%s1593 + $0x70] sm:$0xff]
        %v1609 = vld [vmem:[%s1593 + $0x78] sm:$0xff]
        %1610 = vmatpush.msra.mxu0 %v1609
        %1611 = vmatpush.msra.mxu0 %v1608
        %1612 = vmatpush.msra.mxu0 %v1607
        %1613 = vmatpush.msra.mxu0 %v1606
        %1614 = vmatpush.msra.mxu0 %v1605
        %1615 = vmatpush.msra.mxu0 %v1604
        %1616 = vmatpush.msra.mxu0 %v1603
        %1617 = vmatpush.msra.mxu0 %v1602
        %1618 = vmatpush.msra.mxu0 %v1601
        %1619 = vmatpush.msra.mxu0 %v1600
        %1620 = vmatpush.msra.mxu0 %v1599
        %1621 = vmatpush.msra.mxu0 %v1598
        %1622 = vmatpush.msra.mxu0 %v1597
        %1623 = vmatpush.msra.mxu0 %v1596
        %1624 = vmatpush.msra.mxu0 %v1595
        %1625 = vmatpush.msra.mxu0 %v1594
        %1626 = vmatmul.f32.gmra.mxu0 %v1529
        %v1627 = vpop.f32.mrf.mxu0
        %v1628 = vadd.f32 0.0, %v1627
        %1629 = vmatmul.f32.gmra.mxu0 %v1530
        %v1630 = vpop.f32.mrf.mxu0
        %v1631 = vadd.f32 0.0, %v1630
        %1632 = vmatmul.f32.gmra.mxu0 %v1531
        %v1633 = vpop.f32.mrf.mxu0
        %v1634 = vadd.f32 0.0, %v1633
        %1635 = vmatmul.f32.gmra.mxu0 %v1532
        %v1636 = vpop.f32.mrf.mxu0
        %v1637 = vadd.f32 0.0, %v1636
        %1638 = vmatmul.f32.gmra.mxu0 %v1533
        %v1639 = vpop.f32.mrf.mxu0
        %v1640 = vadd.f32 0.0, %v1639
        %1641 = vmatmul.f32.gmra.mxu0 %v1534
        %v1642 = vpop.f32.mrf.mxu0
        %v1643 = vadd.f32 0.0, %v1642
        %1644 = vmatmul.f32.gmra.mxu0 %v1535
        %v1645 = vpop.f32.mrf.mxu0
        %v1646 = vadd.f32 0.0, %v1645
        %1647 = vmatmul.f32.gmra.mxu0 %v1536
        %v1648 = vpop.f32.mrf.mxu0
        %v1649 = vadd.f32 0.0, %v1648
        %1650 = vmatmul.f32.gmra.mxu0 %v1537
        %v1651 = vpop.f32.mrf.mxu0
        %v1652 = vadd.f32 0.0, %v1651
        %1653 = vmatmul.f32.gmra.mxu0 %v1538
        %v1654 = vpop.f32.mrf.mxu0
        %v1655 = vadd.f32 0.0, %v1654
        %1656 = vmatmul.f32.gmra.mxu0 %v1539
        %v1657 = vpop.f32.mrf.mxu0
        %v1658 = vadd.f32 0.0, %v1657
        %1659 = vmatmul.f32.gmra.mxu0 %v1540
        %v1660 = vpop.f32.mrf.mxu0
        %v1661 = vadd.f32 0.0, %v1660
        %1662 = vmatmul.f32.gmra.mxu0 %v1541
        %v1663 = vpop.f32.mrf.mxu0
        %v1664 = vadd.f32 0.0, %v1663
        %1665 = vmatmul.f32.gmra.mxu0 %v1542
        %v1666 = vpop.f32.mrf.mxu0
        %v1667 = vadd.f32 0.0, %v1666
        %1668 = vmatmul.f32.gmra.mxu0 %v1543
        %v1669 = vpop.f32.mrf.mxu0
        %v1670 = vadd.f32 0.0, %v1669
        %1671 = vmatmul.f32.gmra.mxu0 %v1544
        %v1672 = vpop.f32.mrf.mxu0
        %v1673 = vadd.f32 0.0, %v1672
        %1674 = vmatmul.f32.gmra.mxu0 %v1545
        %v1675 = vpop.f32.mrf.mxu0
        %v1676 = vadd.f32 0.0, %v1675
        %1677 = vmatmul.f32.gmra.mxu0 %v1546
        %v1678 = vpop.f32.mrf.mxu0
        %v1679 = vadd.f32 0.0, %v1678
        %1680 = vmatmul.f32.gmra.mxu0 %v1547
        %v1681 = vpop.f32.mrf.mxu0
        %v1682 = vadd.f32 0.0, %v1681
        %1683 = vmatmul.f32.gmra.mxu0 %v1548
        %v1684 = vpop.f32.mrf.mxu0
        %v1685 = vadd.f32 0.0, %v1684
        %1686 = vmatmul.f32.gmra.mxu0 %v1549
        %v1687 = vpop.f32.mrf.mxu0
        %v1688 = vadd.f32 0.0, %v1687
        %1689 = vmatmul.f32.gmra.mxu0 %v1550
        %v1690 = vpop.f32.mrf.mxu0
        %v1691 = vadd.f32 0.0, %v1690
        %1692 = vmatmul.f32.gmra.mxu0 %v1551
        %v1693 = vpop.f32.mrf.mxu0
        %v1694 = vadd.f32 0.0, %v1693
        %1695 = vmatmul.f32.gmra.mxu0 %v1552
        %v1696 = vpop.f32.mrf.mxu0
        %v1697 = vadd.f32 0.0, %v1696
        %1698 = vmatmul.f32.gmra.mxu0 %v1553
        %v1699 = vpop.f32.mrf.mxu0
        %v1700 = vadd.f32 0.0, %v1699
        %1701 = vmatmul.f32.gmra.mxu0 %v1554
        %v1702 = vpop.f32.mrf.mxu0
        %v1703 = vadd.f32 0.0, %v1702
        %1704 = vmatmul.f32.gmra.mxu0 %v1555
        %v1705 = vpop.f32.mrf.mxu0
        %v1706 = vadd.f32 0.0, %v1705
        %1707 = vmatmul.f32.gmra.mxu0 %v1556
        %v1708 = vpop.f32.mrf.mxu0
        %v1709 = vadd.f32 0.0, %v1708
        %1710 = vmatmul.f32.gmra.mxu0 %v1557
        %v1711 = vpop.f32.mrf.mxu0
        %v1712 = vadd.f32 0.0, %v1711
        %1713 = vmatmul.f32.gmra.mxu0 %v1558
        %v1714 = vpop.f32.mrf.mxu0
        %v1715 = vadd.f32 0.0, %v1714
        %1716 = vmatmul.f32.gmra.mxu0 %v1559
        %v1717 = vpop.f32.mrf.mxu0
        %v1718 = vadd.f32 0.0, %v1717
        %1719 = vmatmul.f32.gmra.mxu0 %v1560
        %v1720 = vpop.f32.mrf.mxu0
        %v1721 = vadd.f32 0.0, %v1720
        %1722 = vdwg.mxu0
        %v1723 = vadd.f32 %v1561, %v1628
        %v1724 = vadd.f32 %v1562, %v1631
        %v1725 = vadd.f32 %v1563, %v1634
        %v1726 = vadd.f32 %v1564, %v1637
        %v1727 = vadd.f32 %v1565, %v1640
        %v1728 = vadd.f32 %v1566, %v1643
        %v1729 = vadd.f32 %v1567, %v1646
        %v1730 = vadd.f32 %v1568, %v1649
        %v1731 = vadd.f32 %v1569, %v1652
        %v1732 = vadd.f32 %v1570, %v1655
        %v1733 = vadd.f32 %v1571, %v1658
        %v1734 = vadd.f32 %v1572, %v1661
        %v1735 = vadd.f32 %v1573, %v1664
        %v1736 = vadd.f32 %v1574, %v1667
        %v1737 = vadd.f32 %v1575, %v1670
        %v1738 = vadd.f32 %v1576, %v1673
        %v1739 = vadd.f32 %v1577, %v1676
        %v1740 = vadd.f32 %v1578, %v1679
        %v1741 = vadd.f32 %v1579, %v1682
        %v1742 = vadd.f32 %v1580, %v1685
        %v1743 = vadd.f32 %v1581, %v1688
        %v1744 = vadd.f32 %v1582, %v1691
        %v1745 = vadd.f32 %v1583, %v1694
        %v1746 = vadd.f32 %v1584, %v1697
        %v1747 = vadd.f32 %v1585, %v1700
        %v1748 = vadd.f32 %v1586, %v1703
        %v1749 = vadd.f32 %v1587, %v1706
        %v1750 = vadd.f32 %v1588, %v1709
        %v1751 = vadd.f32 %v1589, %v1712
        %v1752 = vadd.f32 %v1590, %v1715
        %v1753 = vadd.f32 %v1591, %v1718
        %v1754 = vadd.f32 %v1592, %v1721
        %1755 = vst [vmem:[#allocation3] sm:$0xff] %v1723
        %1756 = vst [vmem:[#allocation3 + $0x8] sm:$0xff] %v1724
        %1757 = vst [vmem:[#allocation3 + $0x10] sm:$0xff] %v1725
        %1758 = vst [vmem:[#allocation3 + $0x18] sm:$0xff] %v1726
        %1759 = vst [vmem:[#allocation3 + $0x20] sm:$0xff] %v1727
        %1760 = vst [vmem:[#allocation3 + $0x28] sm:$0xff] %v1728
        %1761 = vst [vmem:[#allocation3 + $0x30] sm:$0xff] %v1729
        %1762 = vst [vmem:[#allocation3 + $0x38] sm:$0xff] %v1730
        %1763 = vst [vmem:[#allocation3 + $0x40] sm:$0xff] %v1731
        %1764 = vst [vmem:[#allocation3 + $0x48] sm:$0xff] %v1732
        %1765 = vst [vmem:[#allocation3 + $0x50] sm:$0xff] %v1733
        %1766 = vst [vmem:[#allocation3 + $0x58] sm:$0xff] %v1734
        %1767 = vst [vmem:[#allocation3 + $0x60] sm:$0xff] %v1735
        %1768 = vst [vmem:[#allocation3 + $0x68] sm:$0xff] %v1736
        %1769 = vst [vmem:[#allocation3 + $0x70] sm:$0xff] %v1737
        %1770 = vst [vmem:[#allocation3 + $0x78] sm:$0xff] %v1738
        %1771 = vst [vmem:[#allocation3 + $0x80] sm:$0xff] %v1739
        %1772 = vst [vmem:[#allocation3 + $0x88] sm:$0xff] %v1740
        %1773 = vst [vmem:[#allocation3 + $0x90] sm:$0xff] %v1741
        %1774 = vst [vmem:[#allocation3 + $0x98] sm:$0xff] %v1742
        %1775 = vst [vmem:[#allocation3 + $0xa0] sm:$0xff] %v1743
        %1776 = vst [vmem:[#allocation3 + $0xa8] sm:$0xff] %v1744
        %1777 = vst [vmem:[#allocation3 + $0xb0] sm:$0xff] %v1745
        %1778 = vst [vmem:[#allocation3 + $0xb8] sm:$0xff] %v1746
        %1779 = vst [vmem:[#allocation3 + $0xc0] sm:$0xff] %v1747
        %1780 = vst [vmem:[#allocation3 + $0xc8] sm:$0xff] %v1748
        %1781 = vst [vmem:[#allocation3 + $0xd0] sm:$0xff] %v1749
        %1782 = vst [vmem:[#allocation3 + $0xd8] sm:$0xff] %v1750
        %1783 = vst [vmem:[#allocation3 + $0xe0] sm:$0xff] %v1751
        %1784 = vst [vmem:[#allocation3 + $0xe8] sm:$0xff] %v1752
        %1785 = vst [vmem:[#allocation3 + $0xf0] sm:$0xff] %v1753
        %1786 = vst [vmem:[#allocation3 + $0xf8] sm:$0xff] %v1754
        %v1787 = vld [vmem:[%s345 + $0x2] sm:$0xff]
        %v1788 = vld [vmem:[%s345 + $0xa] sm:$0xff]
        %v1789 = vld [vmem:[%s345 + $0x1a] sm:$0xff]
        %v1790 = vld [vmem:[%s345 + $0x22] sm:$0xff]
        %v1791 = vld [vmem:[%s345 + $0x32] sm:$0xff]
        %v1792 = vld [vmem:[%s345 + $0x3a] sm:$0xff]
        %v1793 = vld [vmem:[%s345 + $0x4a] sm:$0xff]
        %v1794 = vld [vmem:[%s345 + $0x52] sm:$0xff]
        %v1795 = vld [vmem:[%s345 + $0x62] sm:$0xff]
        %v1796 = vld [vmem:[%s345 + $0x6a] sm:$0xff]
        %v1797 = vld [vmem:[%s345 + $0x7a] sm:$0xff]
        %v1798 = vld [vmem:[%s345 + $0x82] sm:$0xff]
        %v1799 = vld [vmem:[%s345 + $0x92] sm:$0xff]
        %v1800 = vld [vmem:[%s345 + $0x9a] sm:$0xff]
        %v1801 = vld [vmem:[%s345 + $0xaa] sm:$0xff]
        %v1802 = vld [vmem:[%s345 + $0xb2] sm:$0xff]
        %v1803 = vld [vmem:[%s345 + $0xc2] sm:$0xff]
        %v1804 = vld [vmem:[%s345 + $0xca] sm:$0xff]
        %v1805 = vld [vmem:[%s345 + $0xda] sm:$0xff]
        %v1806 = vld [vmem:[%s345 + $0xe2] sm:$0xff]
        %v1807 = vld [vmem:[%s345 + $0xf2] sm:$0xff]
        %v1808 = vld [vmem:[%s345 + $0xfa] sm:$0xff]
        %v1809 = vld [vmem:[%s345 + $0x10a] sm:$0xff]
        %v1810 = vld [vmem:[%s345 + $0x112] sm:$0xff]
        %v1811 = vld [vmem:[%s345 + $0x122] sm:$0xff]
        %v1812 = vld [vmem:[%s345 + $0x12a] sm:$0xff]
        %v1813 = vld [vmem:[%s345 + $0x13a] sm:$0xff]
        %v1814 = vld [vmem:[%s345 + $0x142] sm:$0xff]
        %v1815 = vld [vmem:[%s345 + $0x152] sm:$0xff]
        %v1816 = vld [vmem:[%s345 + $0x15a] sm:$0xff]
        %v1817 = vld [vmem:[%s345 + $0x16a] sm:$0xff]
        %v1818 = vld [vmem:[%s345 + $0x172] sm:$0xff]
        %v1819 = vld [vmem:[#allocation3] sm:$0xff]
        %v1820 = vld [vmem:[#allocation3 + $0x8] sm:$0xff]
        %v1821 = vld [vmem:[#allocation3 + $0x10] sm:$0xff]
        %v1822 = vld [vmem:[#allocation3 + $0x18] sm:$0xff]
        %v1823 = vld [vmem:[#allocation3 + $0x20] sm:$0xff]
        %v1824 = vld [vmem:[#allocation3 + $0x28] sm:$0xff]
        %v1825 = vld [vmem:[#allocation3 + $0x30] sm:$0xff]
        %v1826 = vld [vmem:[#allocation3 + $0x38] sm:$0xff]
        %v1827 = vld [vmem:[#allocation3 + $0x40] sm:$0xff]
        %v1828 = vld [vmem:[#allocation3 + $0x48] sm:$0xff]
        %v1829 = vld [vmem:[#allocation3 + $0x50] sm:$0xff]
        %v1830 = vld [vmem:[#allocation3 + $0x58] sm:$0xff]
        %v1831 = vld [vmem:[#allocation3 + $0x60] sm:$0xff]
        %v1832 = vld [vmem:[#allocation3 + $0x68] sm:$0xff]
        %v1833 = vld [vmem:[#allocation3 + $0x70] sm:$0xff]
        %v1834 = vld [vmem:[#allocation3 + $0x78] sm:$0xff]
        %v1835 = vld [vmem:[#allocation3 + $0x80] sm:$0xff]
        %v1836 = vld [vmem:[#allocation3 + $0x88] sm:$0xff]
        %v1837 = vld [vmem:[#allocation3 + $0x90] sm:$0xff]
        %v1838 = vld [vmem:[#allocation3 + $0x98] sm:$0xff]
        %v1839 = vld [vmem:[#allocation3 + $0xa0] sm:$0xff]
        %v1840 = vld [vmem:[#allocation3 + $0xa8] sm:$0xff]
        %v1841 = vld [vmem:[#allocation3 + $0xb0] sm:$0xff]
        %v1842 = vld [vmem:[#allocation3 + $0xb8] sm:$0xff]
        %v1843 = vld [vmem:[#allocation3 + $0xc0] sm:$0xff]
        %v1844 = vld [vmem:[#allocation3 + $0xc8] sm:$0xff]
        %v1845 = vld [vmem:[#allocation3 + $0xd0] sm:$0xff]
        %v1846 = vld [vmem:[#allocation3 + $0xd8] sm:$0xff]
        %v1847 = vld [vmem:[#allocation3 + $0xe0] sm:$0xff]
        %v1848 = vld [vmem:[#allocation3 + $0xe8] sm:$0xff]
        %v1849 = vld [vmem:[#allocation3 + $0xf0] sm:$0xff]
        %v1850 = vld [vmem:[#allocation3 + $0xf8] sm:$0xff]
        %s1851 = scalar_lea.vmem [#allocation4], 640
        %v1852 = vld [vmem:[%s1851] sm:$0xff]
        %v1853 = vld [vmem:[%s1851 + $0x8] sm:$0xff]
        %v1854 = vld [vmem:[%s1851 + $0x10] sm:$0xff]
        %v1855 = vld [vmem:[%s1851 + $0x18] sm:$0xff]
        %v1856 = vld [vmem:[%s1851 + $0x20] sm:$0xff]
        %v1857 = vld [vmem:[%s1851 + $0x28] sm:$0xff]
        %v1858 = vld [vmem:[%s1851 + $0x30] sm:$0xff]
        %v1859 = vld [vmem:[%s1851 + $0x38] sm:$0xff]
        %v1860 = vld [vmem:[%s1851 + $0x40] sm:$0xff]
        %v1861 = vld [vmem:[%s1851 + $0x48] sm:$0xff]
        %v1862 = vld [vmem:[%s1851 + $0x50] sm:$0xff]
        %v1863 = vld [vmem:[%s1851 + $0x58] sm:$0xff]
        %v1864 = vld [vmem:[%s1851 + $0x60] sm:$0xff]
        %v1865 = vld [vmem:[%s1851 + $0x68] sm:$0xff]
        %v1866 = vld [vmem:[%s1851 + $0x70] sm:$0xff]
        %v1867 = vld [vmem:[%s1851 + $0x78] sm:$0xff]
        %1868 = vmatpush.msra.mxu0 %v1867
        %1869 = vmatpush.msra.mxu0 %v1866
        %1870 = vmatpush.msra.mxu0 %v1865
        %1871 = vmatpush.msra.mxu0 %v1864
        %1872 = vmatpush.msra.mxu0 %v1863
        %1873 = vmatpush.msra.mxu0 %v1862
        %1874 = vmatpush.msra.mxu0 %v1861
        %1875 = vmatpush.msra.mxu0 %v1860
        %1876 = vmatpush.msra.mxu0 %v1859
        %1877 = vmatpush.msra.mxu0 %v1858
        %1878 = vmatpush.msra.mxu0 %v1857
        %1879 = vmatpush.msra.mxu0 %v1856
        %1880 = vmatpush.msra.mxu0 %v1855
        %1881 = vmatpush.msra.mxu0 %v1854
        %1882 = vmatpush.msra.mxu0 %v1853
        %1883 = vmatpush.msra.mxu0 %v1852
        %1884 = vmatmul.f32.gmra.mxu0 %v1787
        %v1885 = vpop.f32.mrf.mxu0
        %v1886 = vadd.f32 0.0, %v1885
        %1887 = vmatmul.f32.gmra.mxu0 %v1788
        %v1888 = vpop.f32.mrf.mxu0
        %v1889 = vadd.f32 0.0, %v1888
        %1890 = vmatmul.f32.gmra.mxu0 %v1789
        %v1891 = vpop.f32.mrf.mxu0
        %v1892 = vadd.f32 0.0, %v1891
        %1893 = vmatmul.f32.gmra.mxu0 %v1790
        %v1894 = vpop.f32.mrf.mxu0
        %v1895 = vadd.f32 0.0, %v1894
        %1896 = vmatmul.f32.gmra.mxu0 %v1791
        %v1897 = vpop.f32.mrf.mxu0
        %v1898 = vadd.f32 0.0, %v1897
        %1899 = vmatmul.f32.gmra.mxu0 %v1792
        %v1900 = vpop.f32.mrf.mxu0
        %v1901 = vadd.f32 0.0, %v1900
        %1902 = vmatmul.f32.gmra.mxu0 %v1793
        %v1903 = vpop.f32.mrf.mxu0
        %v1904 = vadd.f32 0.0, %v1903
        %1905 = vmatmul.f32.gmra.mxu0 %v1794
        %v1906 = vpop.f32.mrf.mxu0
        %v1907 = vadd.f32 0.0, %v1906
        %1908 = vmatmul.f32.gmra.mxu0 %v1795
        %v1909 = vpop.f32.mrf.mxu0
        %v1910 = vadd.f32 0.0, %v1909
        %1911 = vmatmul.f32.gmra.mxu0 %v1796
        %v1912 = vpop.f32.mrf.mxu0
        %v1913 = vadd.f32 0.0, %v1912
        %1914 = vmatmul.f32.gmra.mxu0 %v1797
        %v1915 = vpop.f32.mrf.mxu0
        %v1916 = vadd.f32 0.0, %v1915
        %1917 = vmatmul.f32.gmra.mxu0 %v1798
        %v1918 = vpop.f32.mrf.mxu0
        %v1919 = vadd.f32 0.0, %v1918
        %1920 = vmatmul.f32.gmra.mxu0 %v1799
        %v1921 = vpop.f32.mrf.mxu0
        %v1922 = vadd.f32 0.0, %v1921
        %1923 = vmatmul.f32.gmra.mxu0 %v1800
        %v1924 = vpop.f32.mrf.mxu0
        %v1925 = vadd.f32 0.0, %v1924
        %1926 = vmatmul.f32.gmra.mxu0 %v1801
        %v1927 = vpop.f32.mrf.mxu0
        %v1928 = vadd.f32 0.0, %v1927
        %1929 = vmatmul.f32.gmra.mxu0 %v1802
        %v1930 = vpop.f32.mrf.mxu0
        %v1931 = vadd.f32 0.0, %v1930
        %1932 = vmatmul.f32.gmra.mxu0 %v1803
        %v1933 = vpop.f32.mrf.mxu0
        %v1934 = vadd.f32 0.0, %v1933
        %1935 = vmatmul.f32.gmra.mxu0 %v1804
        %v1936 = vpop.f32.mrf.mxu0
        %v1937 = vadd.f32 0.0, %v1936
        %1938 = vmatmul.f32.gmra.mxu0 %v1805
        %v1939 = vpop.f32.mrf.mxu0
        %v1940 = vadd.f32 0.0, %v1939
        %1941 = vmatmul.f32.gmra.mxu0 %v1806
        %v1942 = vpop.f32.mrf.mxu0
        %v1943 = vadd.f32 0.0, %v1942
        %1944 = vmatmul.f32.gmra.mxu0 %v1807
        %v1945 = vpop.f32.mrf.mxu0
        %v1946 = vadd.f32 0.0, %v1945
        %1947 = vmatmul.f32.gmra.mxu0 %v1808
        %v1948 = vpop.f32.mrf.mxu0
        %v1949 = vadd.f32 0.0, %v1948
        %1950 = vmatmul.f32.gmra.mxu0 %v1809
        %v1951 = vpop.f32.mrf.mxu0
        %v1952 = vadd.f32 0.0, %v1951
        %1953 = vmatmul.f32.gmra.mxu0 %v1810
        %v1954 = vpop.f32.mrf.mxu0
        %v1955 = vadd.f32 0.0, %v1954
        %1956 = vmatmul.f32.gmra.mxu0 %v1811
        %v1957 = vpop.f32.mrf.mxu0
        %v1958 = vadd.f32 0.0, %v1957
        %1959 = vmatmul.f32.gmra.mxu0 %v1812
        %v1960 = vpop.f32.mrf.mxu0
        %v1961 = vadd.f32 0.0, %v1960
        %1962 = vmatmul.f32.gmra.mxu0 %v1813
        %v1963 = vpop.f32.mrf.mxu0
        %v1964 = vadd.f32 0.0, %v1963
        %1965 = vmatmul.f32.gmra.mxu0 %v1814
        %v1966 = vpop.f32.mrf.mxu0
        %v1967 = vadd.f32 0.0, %v1966
        %1968 = vmatmul.f32.gmra.mxu0 %v1815
        %v1969 = vpop.f32.mrf.mxu0
        %v1970 = vadd.f32 0.0, %v1969
        %1971 = vmatmul.f32.gmra.mxu0 %v1816
        %v1972 = vpop.f32.mrf.mxu0
        %v1973 = vadd.f32 0.0, %v1972
        %1974 = vmatmul.f32.gmra.mxu0 %v1817
        %v1975 = vpop.f32.mrf.mxu0
        %v1976 = vadd.f32 0.0, %v1975
        %1977 = vmatmul.f32.gmra.mxu0 %v1818
        %v1978 = vpop.f32.mrf.mxu0
        %v1979 = vadd.f32 0.0, %v1978
        %1980 = vdwg.mxu0
        %v1981 = vadd.f32 %v1819, %v1886
        %v1982 = vadd.f32 %v1820, %v1889
        %v1983 = vadd.f32 %v1821, %v1892
        %v1984 = vadd.f32 %v1822, %v1895
        %v1985 = vadd.f32 %v1823, %v1898
        %v1986 = vadd.f32 %v1824, %v1901
        %v1987 = vadd.f32 %v1825, %v1904
        %v1988 = vadd.f32 %v1826, %v1907
        %v1989 = vadd.f32 %v1827, %v1910
        %v1990 = vadd.f32 %v1828, %v1913
        %v1991 = vadd.f32 %v1829, %v1916
        %v1992 = vadd.f32 %v1830, %v1919
        %v1993 = vadd.f32 %v1831, %v1922
        %v1994 = vadd.f32 %v1832, %v1925
        %v1995 = vadd.f32 %v1833, %v1928
        %v1996 = vadd.f32 %v1834, %v1931
        %v1997 = vadd.f32 %v1835, %v1934
        %v1998 = vadd.f32 %v1836, %v1937
        %v1999 = vadd.f32 %v1837, %v1940
        %v2000 = vadd.f32 %v1838, %v1943
        %v2001 = vadd.f32 %v1839, %v1946
        %v2002 = vadd.f32 %v1840, %v1949
        %v2003 = vadd.f32 %v1841, %v1952
        %v2004 = vadd.f32 %v1842, %v1955
        %v2005 = vadd.f32 %v1843, %v1958
        %v2006 = vadd.f32 %v1844, %v1961
        %v2007 = vadd.f32 %v1845, %v1964
        %v2008 = vadd.f32 %v1846, %v1967
        %v2009 = vadd.f32 %v1847, %v1970
        %v2010 = vadd.f32 %v1848, %v1973
        %v2011 = vadd.f32 %v1849, %v1976
        %v2012 = vadd.f32 %v1850, %v1979
        %2013 = vst [vmem:[#allocation3] sm:$0xff] %v1981
        %2014 = vst [vmem:[#allocation3 + $0x8] sm:$0xff] %v1982
        %2015 = vst [vmem:[#allocation3 + $0x10] sm:$0xff] %v1983
        %2016 = vst [vmem:[#allocation3 + $0x18] sm:$0xff] %v1984
        %2017 = vst [vmem:[#allocation3 + $0x20] sm:$0xff] %v1985
        %2018 = vst [vmem:[#allocation3 + $0x28] sm:$0xff] %v1986
        %2019 = vst [vmem:[#allocation3 + $0x30] sm:$0xff] %v1987
        %2020 = vst [vmem:[#allocation3 + $0x38] sm:$0xff] %v1988
        %2021 = vst [vmem:[#allocation3 + $0x40] sm:$0xff] %v1989
        %2022 = vst [vmem:[#allocation3 + $0x48] sm:$0xff] %v1990
        %2023 = vst [vmem:[#allocation3 + $0x50] sm:$0xff] %v1991
        %2024 = vst [vmem:[#allocation3 + $0x58] sm:$0xff] %v1992
        %2025 = vst [vmem:[#allocation3 + $0x60] sm:$0xff] %v1993
        %2026 = vst [vmem:[#allocation3 + $0x68] sm:$0xff] %v1994
        %2027 = vst [vmem:[#allocation3 + $0x70] sm:$0xff] %v1995
        %2028 = vst [vmem:[#allocation3 + $0x78] sm:$0xff] %v1996
        %2029 = vst [vmem:[#allocation3 + $0x80] sm:$0xff] %v1997
        %2030 = vst [vmem:[#allocation3 + $0x88] sm:$0xff] %v1998
        %2031 = vst [vmem:[#allocation3 + $0x90] sm:$0xff] %v1999
        %2032 = vst [vmem:[#allocation3 + $0x98] sm:$0xff] %v2000
        %2033 = vst [vmem:[#allocation3 + $0xa0] sm:$0xff] %v2001
        %2034 = vst [vmem:[#allocation3 + $0xa8] sm:$0xff] %v2002
        %2035 = vst [vmem:[#allocation3 + $0xb0] sm:$0xff] %v2003
        %2036 = vst [vmem:[#allocation3 + $0xb8] sm:$0xff] %v2004
        %2037 = vst [vmem:[#allocation3 + $0xc0] sm:$0xff] %v2005
        %2038 = vst [vmem:[#allocation3 + $0xc8] sm:$0xff] %v2006
        %2039 = vst [vmem:[#allocation3 + $0xd0] sm:$0xff] %v2007
        %2040 = vst [vmem:[#allocation3 + $0xd8] sm:$0xff] %v2008
        %2041 = vst [vmem:[#allocation3 + $0xe0] sm:$0xff] %v2009
        %2042 = vst [vmem:[#allocation3 + $0xe8] sm:$0xff] %v2010
        %2043 = vst [vmem:[#allocation3 + $0xf0] sm:$0xff] %v2011
        %2044 = vst [vmem:[#allocation3 + $0xf8] sm:$0xff] %v2012
        %v2045 = vld [vmem:[%s379] sm:$0xff]
        %v2046 = vld [vmem:[%s379 + $0x8] sm:$0xff]
        %v2047 = vld [vmem:[%s379 + $0x18] sm:$0xff]
        %v2048 = vld [vmem:[%s379 + $0x20] sm:$0xff]
        %v2049 = vld [vmem:[%s379 + $0x30] sm:$0xff]
        %v2050 = vld [vmem:[%s379 + $0x38] sm:$0xff]
        %v2051 = vld [vmem:[%s379 + $0x48] sm:$0xff]
        %v2052 = vld [vmem:[%s379 + $0x50] sm:$0xff]
        %v2053 = vld [vmem:[%s379 + $0x60] sm:$0xff]
        %v2054 = vld [vmem:[%s379 + $0x68] sm:$0xff]
        %v2055 = vld [vmem:[%s379 + $0x78] sm:$0xff]
        %v2056 = vld [vmem:[%s379 + $0x80] sm:$0xff]
        %v2057 = vld [vmem:[%s379 + $0x90] sm:$0xff]
        %v2058 = vld [vmem:[%s379 + $0x98] sm:$0xff]
        %v2059 = vld [vmem:[%s379 + $0xa8] sm:$0xff]
        %v2060 = vld [vmem:[%s379 + $0xb0] sm:$0xff]
        %v2061 = vld [vmem:[%s379 + $0xc0] sm:$0xff]
        %v2062 = vld [vmem:[%s379 + $0xc8] sm:$0xff]
        %v2063 = vld [vmem:[%s379 + $0xd8] sm:$0xff]
        %v2064 = vld [vmem:[%s379 + $0xe0] sm:$0xff]
        %v2065 = vld [vmem:[%s379 + $0xf0] sm:$0xff]
        %v2066 = vld [vmem:[%s379 + $0xf8] sm:$0xff]
        %v2067 = vld [vmem:[%s379 + $0x108] sm:$0xff]
        %v2068 = vld [vmem:[%s379 + $0x110] sm:$0xff]
        %v2069 = vld [vmem:[%s379 + $0x120] sm:$0xff]
        %v2070 = vld [vmem:[%s379 + $0x128] sm:$0xff]
        %v2071 = vld [vmem:[%s379 + $0x138] sm:$0xff]
        %v2072 = vld [vmem:[%s379 + $0x140] sm:$0xff]
        %v2073 = vld [vmem:[%s379 + $0x150] sm:$0xff]
        %v2074 = vld [vmem:[%s379 + $0x158] sm:$0xff]
        %v2075 = vld [vmem:[%s379 + $0x168] sm:$0xff]
        %v2076 = vld [vmem:[%s379 + $0x170] sm:$0xff]
        %v2077 = vld [vmem:[#allocation3] sm:$0xff]
        %v2078 = vld [vmem:[#allocation3 + $0x8] sm:$0xff]
        %v2079 = vld [vmem:[#allocation3 + $0x10] sm:$0xff]
        %v2080 = vld [vmem:[#allocation3 + $0x18] sm:$0xff]
        %v2081 = vld [vmem:[#allocation3 + $0x20] sm:$0xff]
        %v2082 = vld [vmem:[#allocation3 + $0x28] sm:$0xff]
        %v2083 = vld [vmem:[#allocation3 + $0x30] sm:$0xff]
        %v2084 = vld [vmem:[#allocation3 + $0x38] sm:$0xff]
        %v2085 = vld [vmem:[#allocation3 + $0x40] sm:$0xff]
        %v2086 = vld [vmem:[#allocation3 + $0x48] sm:$0xff]
        %v2087 = vld [vmem:[#allocation3 + $0x50] sm:$0xff]
        %v2088 = vld [vmem:[#allocation3 + $0x58] sm:$0xff]
        %v2089 = vld [vmem:[#allocation3 + $0x60] sm:$0xff]
        %v2090 = vld [vmem:[#allocation3 + $0x68] sm:$0xff]
        %v2091 = vld [vmem:[#allocation3 + $0x70] sm:$0xff]
        %v2092 = vld [vmem:[#allocation3 + $0x78] sm:$0xff]
        %v2093 = vld [vmem:[#allocation3 + $0x80] sm:$0xff]
        %v2094 = vld [vmem:[#allocation3 + $0x88] sm:$0xff]
        %v2095 = vld [vmem:[#allocation3 + $0x90] sm:$0xff]
        %v2096 = vld [vmem:[#allocation3 + $0x98] sm:$0xff]
        %v2097 = vld [vmem:[#allocation3 + $0xa0] sm:$0xff]
        %v2098 = vld [vmem:[#allocation3 + $0xa8] sm:$0xff]
        %v2099 = vld [vmem:[#allocation3 + $0xb0] sm:$0xff]
        %v2100 = vld [vmem:[#allocation3 + $0xb8] sm:$0xff]
        %v2101 = vld [vmem:[#allocation3 + $0xc0] sm:$0xff]
        %v2102 = vld [vmem:[#allocation3 + $0xc8] sm:$0xff]
        %v2103 = vld [vmem:[#allocation3 + $0xd0] sm:$0xff]
        %v2104 = vld [vmem:[#allocation3 + $0xd8] sm:$0xff]
        %v2105 = vld [vmem:[#allocation3 + $0xe0] sm:$0xff]
        %v2106 = vld [vmem:[#allocation3 + $0xe8] sm:$0xff]
        %v2107 = vld [vmem:[#allocation3 + $0xf0] sm:$0xff]
        %v2108 = vld [vmem:[#allocation3 + $0xf8] sm:$0xff]
        %s2109 = scalar_lea.vmem [#allocation4], 768
        %v2110 = vld [vmem:[%s2109] sm:$0xff]
        %v2111 = vld [vmem:[%s2109 + $0x8] sm:$0xff]
        %v2112 = vld [vmem:[%s2109 + $0x10] sm:$0xff]
        %v2113 = vld [vmem:[%s2109 + $0x18] sm:$0xff]
        %v2114 = vld [vmem:[%s2109 + $0x20] sm:$0xff]
        %v2115 = vld [vmem:[%s2109 + $0x28] sm:$0xff]
        %v2116 = vld [vmem:[%s2109 + $0x30] sm:$0xff]
        %v2117 = vld [vmem:[%s2109 + $0x38] sm:$0xff]
        %v2118 = vld [vmem:[%s2109 + $0x40] sm:$0xff]
        %v2119 = vld [vmem:[%s2109 + $0x48] sm:$0xff]
        %v2120 = vld [vmem:[%s2109 + $0x50] sm:$0xff]
        %v2121 = vld [vmem:[%s2109 + $0x58] sm:$0xff]
        %v2122 = vld [vmem:[%s2109 + $0x60] sm:$0xff]
        %v2123 = vld [vmem:[%s2109 + $0x68] sm:$0xff]
        %v2124 = vld [vmem:[%s2109 + $0x70] sm:$0xff]
        %v2125 = vld [vmem:[%s2109 + $0x78] sm:$0xff]
        %2126 = vmatpush.msra.mxu0 %v2125
        %2127 = vmatpush.msra.mxu0 %v2124
        %2128 = vmatpush.msra.mxu0 %v2123
        %2129 = vmatpush.msra.mxu0 %v2122
        %2130 = vmatpush.msra.mxu0 %v2121
        %2131 = vmatpush.msra.mxu0 %v2120
        %2132 = vmatpush.msra.mxu0 %v2119
        %2133 = vmatpush.msra.mxu0 %v2118
        %2134 = vmatpush.msra.mxu0 %v2117
        %2135 = vmatpush.msra.mxu0 %v2116
        %2136 = vmatpush.msra.mxu0 %v2115
        %2137 = vmatpush.msra.mxu0 %v2114
        %2138 = vmatpush.msra.mxu0 %v2113
        %2139 = vmatpush.msra.mxu0 %v2112
        %2140 = vmatpush.msra.mxu0 %v2111
        %2141 = vmatpush.msra.mxu0 %v2110
        %2142 = vmatmul.f32.gmra.mxu0 %v2045
        %v2143 = vpop.f32.mrf.mxu0
        %v2144 = vadd.f32 0.0, %v2143
        %2145 = vmatmul.f32.gmra.mxu0 %v2046
        %v2146 = vpop.f32.mrf.mxu0
        %v2147 = vadd.f32 0.0, %v2146
        %2148 = vmatmul.f32.gmra.mxu0 %v2047
        %v2149 = vpop.f32.mrf.mxu0
        %v2150 = vadd.f32 0.0, %v2149
        %2151 = vmatmul.f32.gmra.mxu0 %v2048
        %v2152 = vpop.f32.mrf.mxu0
        %v2153 = vadd.f32 0.0, %v2152
        %2154 = vmatmul.f32.gmra.mxu0 %v2049
        %v2155 = vpop.f32.mrf.mxu0
        %v2156 = vadd.f32 0.0, %v2155
        %2157 = vmatmul.f32.gmra.mxu0 %v2050
        %v2158 = vpop.f32.mrf.mxu0
        %v2159 = vadd.f32 0.0, %v2158
        %2160 = vmatmul.f32.gmra.mxu0 %v2051
        %v2161 = vpop.f32.mrf.mxu0
        %v2162 = vadd.f32 0.0, %v2161
        %2163 = vmatmul.f32.gmra.mxu0 %v2052
        %v2164 = vpop.f32.mrf.mxu0
        %v2165 = vadd.f32 0.0, %v2164
        %2166 = vmatmul.f32.gmra.mxu0 %v2053
        %v2167 = vpop.f32.mrf.mxu0
        %v2168 = vadd.f32 0.0, %v2167
        %2169 = vmatmul.f32.gmra.mxu0 %v2054
        %v2170 = vpop.f32.mrf.mxu0
        %v2171 = vadd.f32 0.0, %v2170
        %2172 = vmatmul.f32.gmra.mxu0 %v2055
        %v2173 = vpop.f32.mrf.mxu0
        %v2174 = vadd.f32 0.0, %v2173
        %2175 = vmatmul.f32.gmra.mxu0 %v2056
        %v2176 = vpop.f32.mrf.mxu0
        %v2177 = vadd.f32 0.0, %v2176
        %2178 = vmatmul.f32.gmra.mxu0 %v2057
        %v2179 = vpop.f32.mrf.mxu0
        %v2180 = vadd.f32 0.0, %v2179
        %2181 = vmatmul.f32.gmra.mxu0 %v2058
        %v2182 = vpop.f32.mrf.mxu0
        %v2183 = vadd.f32 0.0, %v2182
        %2184 = vmatmul.f32.gmra.mxu0 %v2059
        %v2185 = vpop.f32.mrf.mxu0
        %v2186 = vadd.f32 0.0, %v2185
        %2187 = vmatmul.f32.gmra.mxu0 %v2060
        %v2188 = vpop.f32.mrf.mxu0
        %v2189 = vadd.f32 0.0, %v2188
        %2190 = vmatmul.f32.gmra.mxu0 %v2061
        %v2191 = vpop.f32.mrf.mxu0
        %v2192 = vadd.f32 0.0, %v2191
        %2193 = vmatmul.f32.gmra.mxu0 %v2062
        %v2194 = vpop.f32.mrf.mxu0
        %v2195 = vadd.f32 0.0, %v2194
        %2196 = vmatmul.f32.gmra.mxu0 %v2063
        %v2197 = vpop.f32.mrf.mxu0
        %v2198 = vadd.f32 0.0, %v2197
        %2199 = vmatmul.f32.gmra.mxu0 %v2064
        %v2200 = vpop.f32.mrf.mxu0
        %v2201 = vadd.f32 0.0, %v2200
        %2202 = vmatmul.f32.gmra.mxu0 %v2065
        %v2203 = vpop.f32.mrf.mxu0
        %v2204 = vadd.f32 0.0, %v2203
        %2205 = vmatmul.f32.gmra.mxu0 %v2066
        %v2206 = vpop.f32.mrf.mxu0
        %v2207 = vadd.f32 0.0, %v2206
        %2208 = vmatmul.f32.gmra.mxu0 %v2067
        %v2209 = vpop.f32.mrf.mxu0
        %v2210 = vadd.f32 0.0, %v2209
        %2211 = vmatmul.f32.gmra.mxu0 %v2068
        %v2212 = vpop.f32.mrf.mxu0
        %v2213 = vadd.f32 0.0, %v2212
        %2214 = vmatmul.f32.gmra.mxu0 %v2069
        %v2215 = vpop.f32.mrf.mxu0
        %v2216 = vadd.f32 0.0, %v2215
        %2217 = vmatmul.f32.gmra.mxu0 %v2070
        %v2218 = vpop.f32.mrf.mxu0
        %v2219 = vadd.f32 0.0, %v2218
        %2220 = vmatmul.f32.gmra.mxu0 %v2071
        %v2221 = vpop.f32.mrf.mxu0
        %v2222 = vadd.f32 0.0, %v2221
        %2223 = vmatmul.f32.gmra.mxu0 %v2072
        %v2224 = vpop.f32.mrf.mxu0
        %v2225 = vadd.f32 0.0, %v2224
        %2226 = vmatmul.f32.gmra.mxu0 %v2073
        %v2227 = vpop.f32.mrf.mxu0
        %v2228 = vadd.f32 0.0, %v2227
        %2229 = vmatmul.f32.gmra.mxu0 %v2074
        %v2230 = vpop.f32.mrf.mxu0
        %v2231 = vadd.f32 0.0, %v2230
        %2232 = vmatmul.f32.gmra.mxu0 %v2075
        %v2233 = vpop.f32.mrf.mxu0
        %v2234 = vadd.f32 0.0, %v2233
        %2235 = vmatmul.f32.gmra.mxu0 %v2076
        %v2236 = vpop.f32.mrf.mxu0
        %v2237 = vadd.f32 0.0, %v2236
        %2238 = vdwg.mxu0
        %v2239 = vadd.f32 %v2077, %v2144
        %v2240 = vadd.f32 %v2078, %v2147
        %v2241 = vadd.f32 %v2079, %v2150
        %v2242 = vadd.f32 %v2080, %v2153
        %v2243 = vadd.f32 %v2081, %v2156
        %v2244 = vadd.f32 %v2082, %v2159
        %v2245 = vadd.f32 %v2083, %v2162
        %v2246 = vadd.f32 %v2084, %v2165
        %v2247 = vadd.f32 %v2085, %v2168
        %v2248 = vadd.f32 %v2086, %v2171
        %v2249 = vadd.f32 %v2087, %v2174
        %v2250 = vadd.f32 %v2088, %v2177
        %v2251 = vadd.f32 %v2089, %v2180
        %v2252 = vadd.f32 %v2090, %v2183
        %v2253 = vadd.f32 %v2091, %v2186
        %v2254 = vadd.f32 %v2092, %v2189
        %v2255 = vadd.f32 %v2093, %v2192
        %v2256 = vadd.f32 %v2094, %v2195
        %v2257 = vadd.f32 %v2095, %v2198
        %v2258 = vadd.f32 %v2096, %v2201
        %v2259 = vadd.f32 %v2097, %v2204
        %v2260 = vadd.f32 %v2098, %v2207
        %v2261 = vadd.f32 %v2099, %v2210
        %v2262 = vadd.f32 %v2100, %v2213
        %v2263 = vadd.f32 %v2101, %v2216
        %v2264 = vadd.f32 %v2102, %v2219
        %v2265 = vadd.f32 %v2103, %v2222
        %v2266 = vadd.f32 %v2104, %v2225
        %v2267 = vadd.f32 %v2105, %v2228
        %v2268 = vadd.f32 %v2106, %v2231
        %v2269 = vadd.f32 %v2107, %v2234
        %v2270 = vadd.f32 %v2108, %v2237
        %2271 = vst [vmem:[#allocation3] sm:$0xff] %v2239
        %2272 = vst [vmem:[#allocation3 + $0x8] sm:$0xff] %v2240
        %2273 = vst [vmem:[#allocation3 + $0x10] sm:$0xff] %v2241
        %2274 = vst [vmem:[#allocation3 + $0x18] sm:$0xff] %v2242
        %2275 = vst [vmem:[#allocation3 + $0x20] sm:$0xff] %v2243
        %2276 = vst [vmem:[#allocation3 + $0x28] sm:$0xff] %v2244
        %2277 = vst [vmem:[#allocation3 + $0x30] sm:$0xff] %v2245
        %2278 = vst [vmem:[#allocation3 + $0x38] sm:$0xff] %v2246
        %2279 = vst [vmem:[#allocation3 + $0x40] sm:$0xff] %v2247
        %2280 = vst [vmem:[#allocation3 + $0x48] sm:$0xff] %v2248
        %2281 = vst [vmem:[#allocation3 + $0x50] sm:$0xff] %v2249
        %2282 = vst [vmem:[#allocation3 + $0x58] sm:$0xff] %v2250
        %2283 = vst [vmem:[#allocation3 + $0x60] sm:$0xff] %v2251
        %2284 = vst [vmem:[#allocation3 + $0x68] sm:$0xff] %v2252
        %2285 = vst [vmem:[#allocation3 + $0x70] sm:$0xff] %v2253
        %2286 = vst [vmem:[#allocation3 + $0x78] sm:$0xff] %v2254
        %2287 = vst [vmem:[#allocation3 + $0x80] sm:$0xff] %v2255
        %2288 = vst [vmem:[#allocation3 + $0x88] sm:$0xff] %v2256
        %2289 = vst [vmem:[#allocation3 + $0x90] sm:$0xff] %v2257
        %2290 = vst [vmem:[#allocation3 + $0x98] sm:$0xff] %v2258
        %2291 = vst [vmem:[#allocation3 + $0xa0] sm:$0xff] %v2259
        %2292 = vst [vmem:[#allocation3 + $0xa8] sm:$0xff] %v2260
        %2293 = vst [vmem:[#allocation3 + $0xb0] sm:$0xff] %v2261
        %2294 = vst [vmem:[#allocation3 + $0xb8] sm:$0xff] %v2262
        %2295 = vst [vmem:[#allocation3 + $0xc0] sm:$0xff] %v2263
        %2296 = vst [vmem:[#allocation3 + $0xc8] sm:$0xff] %v2264
        %2297 = vst [vmem:[#allocation3 + $0xd0] sm:$0xff] %v2265
        %2298 = vst [vmem:[#allocation3 + $0xd8] sm:$0xff] %v2266
        %2299 = vst [vmem:[#allocation3 + $0xe0] sm:$0xff] %v2267
        %2300 = vst [vmem:[#allocation3 + $0xe8] sm:$0xff] %v2268
        %2301 = vst [vmem:[#allocation3 + $0xf0] sm:$0xff] %v2269
        %2302 = vst [vmem:[#allocation3 + $0xf8] sm:$0xff] %v2270
        %v2303 = vld [vmem:[%s379 + $0x1] sm:$0xff]
        %v2304 = vld [vmem:[%s379 + $0x9] sm:$0xff]
        %v2305 = vld [vmem:[%s379 + $0x19] sm:$0xff]
        %v2306 = vld [vmem:[%s379 + $0x21] sm:$0xff]
        %v2307 = vld [vmem:[%s379 + $0x31] sm:$0xff]
        %v2308 = vld [vmem:[%s379 + $0x39] sm:$0xff]
        %v2309 = vld [vmem:[%s379 + $0x49] sm:$0xff]
        %v2310 = vld [vmem:[%s379 + $0x51] sm:$0xff]
        %v2311 = vld [vmem:[%s379 + $0x61] sm:$0xff]
        %v2312 = vld [vmem:[%s379 + $0x69] sm:$0xff]
        %v2313 = vld [vmem:[%s379 + $0x79] sm:$0xff]
        %v2314 = vld [vmem:[%s379 + $0x81] sm:$0xff]
        %v2315 = vld [vmem:[%s379 + $0x91] sm:$0xff]
        %v2316 = vld [vmem:[%s379 + $0x99] sm:$0xff]
        %v2317 = vld [vmem:[%s379 + $0xa9] sm:$0xff]
        %v2318 = vld [vmem:[%s379 + $0xb1] sm:$0xff]
        %v2319 = vld [vmem:[%s379 + $0xc1] sm:$0xff]
        %v2320 = vld [vmem:[%s379 + $0xc9] sm:$0xff]
        %v2321 = vld [vmem:[%s379 + $0xd9] sm:$0xff]
        %v2322 = vld [vmem:[%s379 + $0xe1] sm:$0xff]
        %v2323 = vld [vmem:[%s379 + $0xf1] sm:$0xff]
        %v2324 = vld [vmem:[%s379 + $0xf9] sm:$0xff]
        %v2325 = vld [vmem:[%s379 + $0x109] sm:$0xff]
        %v2326 = vld [vmem:[%s379 + $0x111] sm:$0xff]
        %v2327 = vld [vmem:[%s379 + $0x121] sm:$0xff]
        %v2328 = vld [vmem:[%s379 + $0x129] sm:$0xff]
        %v2329 = vld [vmem:[%s379 + $0x139] sm:$0xff]
        %v2330 = vld [vmem:[%s379 + $0x141] sm:$0xff]
        %v2331 = vld [vmem:[%s379 + $0x151] sm:$0xff]
        %v2332 = vld [vmem:[%s379 + $0x159] sm:$0xff]
        %v2333 = vld [vmem:[%s379 + $0x169] sm:$0xff]
        %v2334 = vld [vmem:[%s379 + $0x171] sm:$0xff]
        %v2335 = vld [vmem:[#allocation3] sm:$0xff]
        %v2336 = vld [vmem:[#allocation3 + $0x8] sm:$0xff]
        %v2337 = vld [vmem:[#allocation3 + $0x10] sm:$0xff]
        %v2338 = vld [vmem:[#allocation3 + $0x18] sm:$0xff]
        %v2339 = vld [vmem:[#allocation3 + $0x20] sm:$0xff]
        %v2340 = vld [vmem:[#allocation3 + $0x28] sm:$0xff]
        %v2341 = vld [vmem:[#allocation3 + $0x30] sm:$0xff]
        %v2342 = vld [vmem:[#allocation3 + $0x38] sm:$0xff]
        %v2343 = vld [vmem:[#allocation3 + $0x40] sm:$0xff]
        %v2344 = vld [vmem:[#allocation3 + $0x48] sm:$0xff]
        %v2345 = vld [vmem:[#allocation3 + $0x50] sm:$0xff]
        %v2346 = vld [vmem:[#allocation3 + $0x58] sm:$0xff]
        %v2347 = vld [vmem:[#allocation3 + $0x60] sm:$0xff]
        %v2348 = vld [vmem:[#allocation3 + $0x68] sm:$0xff]
        %v2349 = vld [vmem:[#allocation3 + $0x70] sm:$0xff]
        %v2350 = vld [vmem:[#allocation3 + $0x78] sm:$0xff]
        %v2351 = vld [vmem:[#allocation3 + $0x80] sm:$0xff]
        %v2352 = vld [vmem:[#allocation3 + $0x88] sm:$0xff]
        %v2353 = vld [vmem:[#allocation3 + $0x90] sm:$0xff]
        %v2354 = vld [vmem:[#allocation3 + $0x98] sm:$0xff]
        %v2355 = vld [vmem:[#allocation3 + $0xa0] sm:$0xff]
        %v2356 = vld [vmem:[#allocation3 + $0xa8] sm:$0xff]
        %v2357 = vld [vmem:[#allocation3 + $0xb0] sm:$0xff]
        %v2358 = vld [vmem:[#allocation3 + $0xb8] sm:$0xff]
        %v2359 = vld [vmem:[#allocation3 + $0xc0] sm:$0xff]
        %v2360 = vld [vmem:[#allocation3 + $0xc8] sm:$0xff]
        %v2361 = vld [vmem:[#allocation3 + $0xd0] sm:$0xff]
        %v2362 = vld [vmem:[#allocation3 + $0xd8] sm:$0xff]
        %v2363 = vld [vmem:[#allocation3 + $0xe0] sm:$0xff]
        %v2364 = vld [vmem:[#allocation3 + $0xe8] sm:$0xff]
        %v2365 = vld [vmem:[#allocation3 + $0xf0] sm:$0xff]
        %v2366 = vld [vmem:[#allocation3 + $0xf8] sm:$0xff]
        %s2367 = scalar_lea.vmem [#allocation4], 896
        %v2368 = vld [vmem:[%s2367] sm:$0xff]
        %v2369 = vld [vmem:[%s2367 + $0x8] sm:$0xff]
        %v2370 = vld [vmem:[%s2367 + $0x10] sm:$0xff]
        %v2371 = vld [vmem:[%s2367 + $0x18] sm:$0xff]
        %v2372 = vld [vmem:[%s2367 + $0x20] sm:$0xff]
        %v2373 = vld [vmem:[%s2367 + $0x28] sm:$0xff]
        %v2374 = vld [vmem:[%s2367 + $0x30] sm:$0xff]
        %v2375 = vld [vmem:[%s2367 + $0x38] sm:$0xff]
        %v2376 = vld [vmem:[%s2367 + $0x40] sm:$0xff]
        %v2377 = vld [vmem:[%s2367 + $0x48] sm:$0xff]
        %v2378 = vld [vmem:[%s2367 + $0x50] sm:$0xff]
        %v2379 = vld [vmem:[%s2367 + $0x58] sm:$0xff]
        %v2380 = vld [vmem:[%s2367 + $0x60] sm:$0xff]
        %v2381 = vld [vmem:[%s2367 + $0x68] sm:$0xff]
        %v2382 = vld [vmem:[%s2367 + $0x70] sm:$0xff]
        %v2383 = vld [vmem:[%s2367 + $0x78] sm:$0xff]
        %2384 = vmatpush.msra.mxu0 %v2383
        %2385 = vmatpush.msra.mxu0 %v2382
        %2386 = vmatpush.msra.mxu0 %v2381
        %2387 = vmatpush.msra.mxu0 %v2380
        %2388 = vmatpush.msra.mxu0 %v2379
        %2389 = vmatpush.msra.mxu0 %v2378
        %2390 = vmatpush.msra.mxu0 %v2377
        %2391 = vmatpush.msra.mxu0 %v2376
        %2392 = vmatpush.msra.mxu0 %v2375
        %2393 = vmatpush.msra.mxu0 %v2374
        %2394 = vmatpush.msra.mxu0 %v2373
        %2395 = vmatpush.msra.mxu0 %v2372
        %2396 = vmatpush.msra.mxu0 %v2371
        %2397 = vmatpush.msra.mxu0 %v2370
        %2398 = vmatpush.msra.mxu0 %v2369
        %2399 = vmatpush.msra.mxu0 %v2368
        %2400 = vmatmul.f32.gmra.mxu0 %v2303
        %v2401 = vpop.f32.mrf.mxu0
        %v2402 = vadd.f32 0.0, %v2401
        %2403 = vmatmul.f32.gmra.mxu0 %v2304
        %v2404 = vpop.f32.mrf.mxu0
        %v2405 = vadd.f32 0.0, %v2404
        %2406 = vmatmul.f32.gmra.mxu0 %v2305
        %v2407 = vpop.f32.mrf.mxu0
        %v2408 = vadd.f32 0.0, %v2407
        %2409 = vmatmul.f32.gmra.mxu0 %v2306
        %v2410 = vpop.f32.mrf.mxu0
        %v2411 = vadd.f32 0.0, %v2410
        %2412 = vmatmul.f32.gmra.mxu0 %v2307
        %v2413 = vpop.f32.mrf.mxu0
        %v2414 = vadd.f32 0.0, %v2413
        %2415 = vmatmul.f32.gmra.mxu0 %v2308
        %v2416 = vpop.f32.mrf.mxu0
        %v2417 = vadd.f32 0.0, %v2416
        %2418 = vmatmul.f32.gmra.mxu0 %v2309
        %v2419 = vpop.f32.mrf.mxu0
        %v2420 = vadd.f32 0.0, %v2419
        %2421 = vmatmul.f32.gmra.mxu0 %v2310
        %v2422 = vpop.f32.mrf.mxu0
        %v2423 = vadd.f32 0.0, %v2422
        %2424 = vmatmul.f32.gmra.mxu0 %v2311
        %v2425 = vpop.f32.mrf.mxu0
        %v2426 = vadd.f32 0.0, %v2425
        %2427 = vmatmul.f32.gmra.mxu0 %v2312
        %v2428 = vpop.f32.mrf.mxu0
        %v2429 = vadd.f32 0.0, %v2428
        %2430 = vmatmul.f32.gmra.mxu0 %v2313
        %v2431 = vpop.f32.mrf.mxu0
        %v2432 = vadd.f32 0.0, %v2431
        %2433 = vmatmul.f32.gmra.mxu0 %v2314
        %v2434 = vpop.f32.mrf.mxu0
        %v2435 = vadd.f32 0.0, %v2434
        %2436 = vmatmul.f32.gmra.mxu0 %v2315
        %v2437 = vpop.f32.mrf.mxu0
        %v2438 = vadd.f32 0.0, %v2437
        %2439 = vmatmul.f32.gmra.mxu0 %v2316
        %v2440 = vpop.f32.mrf.mxu0
        %v2441 = vadd.f32 0.0, %v2440
        %2442 = vmatmul.f32.gmra.mxu0 %v2317
        %v2443 = vpop.f32.mrf.mxu0
        %v2444 = vadd.f32 0.0, %v2443
        %2445 = vmatmul.f32.gmra.mxu0 %v2318
        %v2446 = vpop.f32.mrf.mxu0
        %v2447 = vadd.f32 0.0, %v2446
        %2448 = vmatmul.f32.gmra.mxu0 %v2319
        %v2449 = vpop.f32.mrf.mxu0
        %v2450 = vadd.f32 0.0, %v2449
        %2451 = vmatmul.f32.gmra.mxu0 %v2320
        %v2452 = vpop.f32.mrf.mxu0
        %v2453 = vadd.f32 0.0, %v2452
        %2454 = vmatmul.f32.gmra.mxu0 %v2321
        %v2455 = vpop.f32.mrf.mxu0
        %v2456 = vadd.f32 0.0, %v2455
        %2457 = vmatmul.f32.gmra.mxu0 %v2322
        %v2458 = vpop.f32.mrf.mxu0
        %v2459 = vadd.f32 0.0, %v2458
        %2460 = vmatmul.f32.gmra.mxu0 %v2323
        %v2461 = vpop.f32.mrf.mxu0
        %v2462 = vadd.f32 0.0, %v2461
        %2463 = vmatmul.f32.gmra.mxu0 %v2324
        %v2464 = vpop.f32.mrf.mxu0
        %v2465 = vadd.f32 0.0, %v2464
        %2466 = vmatmul.f32.gmra.mxu0 %v2325
        %v2467 = vpop.f32.mrf.mxu0
        %v2468 = vadd.f32 0.0, %v2467
        %2469 = vmatmul.f32.gmra.mxu0 %v2326
        %v2470 = vpop.f32.mrf.mxu0
        %v2471 = vadd.f32 0.0, %v2470
        %2472 = vmatmul.f32.gmra.mxu0 %v2327
        %v2473 = vpop.f32.mrf.mxu0
        %v2474 = vadd.f32 0.0, %v2473
        %2475 = vmatmul.f32.gmra.mxu0 %v2328
        %v2476 = vpop.f32.mrf.mxu0
        %v2477 = vadd.f32 0.0, %v2476
        %2478 = vmatmul.f32.gmra.mxu0 %v2329
        %v2479 = vpop.f32.mrf.mxu0
        %v2480 = vadd.f32 0.0, %v2479
        %2481 = vmatmul.f32.gmra.mxu0 %v2330
        %v2482 = vpop.f32.mrf.mxu0
        %v2483 = vadd.f32 0.0, %v2482
        %2484 = vmatmul.f32.gmra.mxu0 %v2331
        %v2485 = vpop.f32.mrf.mxu0
        %v2486 = vadd.f32 0.0, %v2485
        %2487 = vmatmul.f32.gmra.mxu0 %v2332
        %v2488 = vpop.f32.mrf.mxu0
        %v2489 = vadd.f32 0.0, %v2488
        %2490 = vmatmul.f32.gmra.mxu0 %v2333
        %v2491 = vpop.f32.mrf.mxu0
        %v2492 = vadd.f32 0.0, %v2491
        %2493 = vmatmul.f32.gmra.mxu0 %v2334
        %v2494 = vpop.f32.mrf.mxu0
        %v2495 = vadd.f32 0.0, %v2494
        %2496 = vdwg.mxu0
        %v2497 = vadd.f32 %v2335, %v2402
        %v2498 = vadd.f32 %v2336, %v2405
        %v2499 = vadd.f32 %v2337, %v2408
        %v2500 = vadd.f32 %v2338, %v2411
        %v2501 = vadd.f32 %v2339, %v2414
        %v2502 = vadd.f32 %v2340, %v2417
        %v2503 = vadd.f32 %v2341, %v2420
        %v2504 = vadd.f32 %v2342, %v2423
        %v2505 = vadd.f32 %v2343, %v2426
        %v2506 = vadd.f32 %v2344, %v2429
        %v2507 = vadd.f32 %v2345, %v2432
        %v2508 = vadd.f32 %v2346, %v2435
        %v2509 = vadd.f32 %v2347, %v2438
        %v2510 = vadd.f32 %v2348, %v2441
        %v2511 = vadd.f32 %v2349, %v2444
        %v2512 = vadd.f32 %v2350, %v2447
        %v2513 = vadd.f32 %v2351, %v2450
        %v2514 = vadd.f32 %v2352, %v2453
        %v2515 = vadd.f32 %v2353, %v2456
        %v2516 = vadd.f32 %v2354, %v2459
        %v2517 = vadd.f32 %v2355, %v2462
        %v2518 = vadd.f32 %v2356, %v2465
        %v2519 = vadd.f32 %v2357, %v2468
        %v2520 = vadd.f32 %v2358, %v2471
        %v2521 = vadd.f32 %v2359, %v2474
        %v2522 = vadd.f32 %v2360, %v2477
        %v2523 = vadd.f32 %v2361, %v2480
        %v2524 = vadd.f32 %v2362, %v2483
        %v2525 = vadd.f32 %v2363, %v2486
        %v2526 = vadd.f32 %v2364, %v2489
        %v2527 = vadd.f32 %v2365, %v2492
        %v2528 = vadd.f32 %v2366, %v2495
        %2529 = vst [vmem:[#allocation3] sm:$0xff] %v2497
        %2530 = vst [vmem:[#allocation3 + $0x8] sm:$0xff] %v2498
        %2531 = vst [vmem:[#allocation3 + $0x10] sm:$0xff] %v2499
        %2532 = vst [vmem:[#allocation3 + $0x18] sm:$0xff] %v2500
        %2533 = vst [vmem:[#allocation3 + $0x20] sm:$0xff] %v2501
        %2534 = vst [vmem:[#allocation3 + $0x28] sm:$0xff] %v2502
        %2535 = vst [vmem:[#allocation3 + $0x30] sm:$0xff] %v2503
        %2536 = vst [vmem:[#allocation3 + $0x38] sm:$0xff] %v2504
        %2537 = vst [vmem:[#allocation3 + $0x40] sm:$0xff] %v2505
        %2538 = vst [vmem:[#allocation3 + $0x48] sm:$0xff] %v2506
        %2539 = vst [vmem:[#allocation3 + $0x50] sm:$0xff] %v2507
        %2540 = vst [vmem:[#allocation3 + $0x58] sm:$0xff] %v2508
        %2541 = vst [vmem:[#allocation3 + $0x60] sm:$0xff] %v2509
        %2542 = vst [vmem:[#allocation3 + $0x68] sm:$0xff] %v2510
        %2543 = vst [vmem:[#allocation3 + $0x70] sm:$0xff] %v2511
        %2544 = vst [vmem:[#allocation3 + $0x78] sm:$0xff] %v2512
        %2545 = vst [vmem:[#allocation3 + $0x80] sm:$0xff] %v2513
        %2546 = vst [vmem:[#allocation3 + $0x88] sm:$0xff] %v2514
        %2547 = vst [vmem:[#allocation3 + $0x90] sm:$0xff] %v2515
        %2548 = vst [vmem:[#allocation3 + $0x98] sm:$0xff] %v2516
        %2549 = vst [vmem:[#allocation3 + $0xa0] sm:$0xff] %v2517
        %2550 = vst [vmem:[#allocation3 + $0xa8] sm:$0xff] %v2518
        %2551 = vst [vmem:[#allocation3 + $0xb0] sm:$0xff] %v2519
        %2552 = vst [vmem:[#allocation3 + $0xb8] sm:$0xff] %v2520
        %2553 = vst [vmem:[#allocation3 + $0xc0] sm:$0xff] %v2521
        %2554 = vst [vmem:[#allocation3 + $0xc8] sm:$0xff] %v2522
        %2555 = vst [vmem:[#allocation3 + $0xd0] sm:$0xff] %v2523
        %2556 = vst [vmem:[#allocation3 + $0xd8] sm:$0xff] %v2524
        %2557 = vst [vmem:[#allocation3 + $0xe0] sm:$0xff] %v2525
        %2558 = vst [vmem:[#allocation3 + $0xe8] sm:$0xff] %v2526
        %2559 = vst [vmem:[#allocation3 + $0xf0] sm:$0xff] %v2527
        %2560 = vst [vmem:[#allocation3 + $0xf8] sm:$0xff] %v2528
        %v2561 = vld [vmem:[%s379 + $0x2] sm:$0xff]
        %v2562 = vld [vmem:[%s379 + $0xa] sm:$0xff]
        %v2563 = vld [vmem:[%s379 + $0x1a] sm:$0xff]
        %v2564 = vld [vmem:[%s379 + $0x22] sm:$0xff]
        %v2565 = vld [vmem:[%s379 + $0x32] sm:$0xff]
        %v2566 = vld [vmem:[%s379 + $0x3a] sm:$0xff]
        %v2567 = vld [vmem:[%s379 + $0x4a] sm:$0xff]
        %v2568 = vld [vmem:[%s379 + $0x52] sm:$0xff]
        %v2569 = vld [vmem:[%s379 + $0x62] sm:$0xff]
        %v2570 = vld [vmem:[%s379 + $0x6a] sm:$0xff]
        %v2571 = vld [vmem:[%s379 + $0x7a] sm:$0xff]
        %v2572 = vld [vmem:[%s379 + $0x82] sm:$0xff]
        %v2573 = vld [vmem:[%s379 + $0x92] sm:$0xff]
        %v2574 = vld [vmem:[%s379 + $0x9a] sm:$0xff]
        %v2575 = vld [vmem:[%s379 + $0xaa] sm:$0xff]
        %v2576 = vld [vmem:[%s379 + $0xb2] sm:$0xff]
        %v2577 = vld [vmem:[%s379 + $0xc2] sm:$0xff]
        %v2578 = vld [vmem:[%s379 + $0xca] sm:$0xff]
        %v2579 = vld [vmem:[%s379 + $0xda] sm:$0xff]
        %v2580 = vld [vmem:[%s379 + $0xe2] sm:$0xff]
        %v2581 = vld [vmem:[%s379 + $0xf2] sm:$0xff]
        %v2582 = vld [vmem:[%s379 + $0xfa] sm:$0xff]
        %v2583 = vld [vmem:[%s379 + $0x10a] sm:$0xff]
        %v2584 = vld [vmem:[%s379 + $0x112] sm:$0xff]
        %v2585 = vld [vmem:[%s379 + $0x122] sm:$0xff]
        %v2586 = vld [vmem:[%s379 + $0x12a] sm:$0xff]
        %v2587 = vld [vmem:[%s379 + $0x13a] sm:$0xff]
        %v2588 = vld [vmem:[%s379 + $0x142] sm:$0xff]
        %v2589 = vld [vmem:[%s379 + $0x152] sm:$0xff]
        %v2590 = vld [vmem:[%s379 + $0x15a] sm:$0xff]
        %v2591 = vld [vmem:[%s379 + $0x16a] sm:$0xff]
        %v2592 = vld [vmem:[%s379 + $0x172] sm:$0xff]
        %v2593 = vld [vmem:[#allocation3] sm:$0xff]
        %v2594 = vld [vmem:[#allocation3 + $0x8] sm:$0xff]
        %v2595 = vld [vmem:[#allocation3 + $0x10] sm:$0xff]
        %v2596 = vld [vmem:[#allocation3 + $0x18] sm:$0xff]
        %v2597 = vld [vmem:[#allocation3 + $0x20] sm:$0xff]
        %v2598 = vld [vmem:[#allocation3 + $0x28] sm:$0xff]
        %v2599 = vld [vmem:[#allocation3 + $0x30] sm:$0xff]
        %v2600 = vld [vmem:[#allocation3 + $0x38] sm:$0xff]
        %v2601 = vld [vmem:[#allocation3 + $0x40] sm:$0xff]
        %v2602 = vld [vmem:[#allocation3 + $0x48] sm:$0xff]
        %v2603 = vld [vmem:[#allocation3 + $0x50] sm:$0xff]
        %v2604 = vld [vmem:[#allocation3 + $0x58] sm:$0xff]
        %v2605 = vld [vmem:[#allocation3 + $0x60] sm:$0xff]
        %v2606 = vld [vmem:[#allocation3 + $0x68] sm:$0xff]
        %v2607 = vld [vmem:[#allocation3 + $0x70] sm:$0xff]
        %v2608 = vld [vmem:[#allocation3 + $0x78] sm:$0xff]
        %v2609 = vld [vmem:[#allocation3 + $0x80] sm:$0xff]
        %v2610 = vld [vmem:[#allocation3 + $0x88] sm:$0xff]
        %v2611 = vld [vmem:[#allocation3 + $0x90] sm:$0xff]
        %v2612 = vld [vmem:[#allocation3 + $0x98] sm:$0xff]
        %v2613 = vld [vmem:[#allocation3 + $0xa0] sm:$0xff]
        %v2614 = vld [vmem:[#allocation3 + $0xa8] sm:$0xff]
        %v2615 = vld [vmem:[#allocation3 + $0xb0] sm:$0xff]
        %v2616 = vld [vmem:[#allocation3 + $0xb8] sm:$0xff]
        %v2617 = vld [vmem:[#allocation3 + $0xc0] sm:$0xff]
        %v2618 = vld [vmem:[#allocation3 + $0xc8] sm:$0xff]
        %v2619 = vld [vmem:[#allocation3 + $0xd0] sm:$0xff]
        %v2620 = vld [vmem:[#allocation3 + $0xd8] sm:$0xff]
        %v2621 = vld [vmem:[#allocation3 + $0xe0] sm:$0xff]
        %v2622 = vld [vmem:[#allocation3 + $0xe8] sm:$0xff]
        %v2623 = vld [vmem:[#allocation3 + $0xf0] sm:$0xff]
        %v2624 = vld [vmem:[#allocation3 + $0xf8] sm:$0xff]
        %s2625 = scalar_lea.vmem [#allocation4], 1024
        %v2626 = vld [vmem:[%s2625] sm:$0xff]
        %v2627 = vld [vmem:[%s2625 + $0x8] sm:$0xff]
        %v2628 = vld [vmem:[%s2625 + $0x10] sm:$0xff]
        %v2629 = vld [vmem:[%s2625 + $0x18] sm:$0xff]
        %v2630 = vld [vmem:[%s2625 + $0x20] sm:$0xff]
        %v2631 = vld [vmem:[%s2625 + $0x28] sm:$0xff]
        %v2632 = vld [vmem:[%s2625 + $0x30] sm:$0xff]
        %v2633 = vld [vmem:[%s2625 + $0x38] sm:$0xff]
        %v2634 = vld [vmem:[%s2625 + $0x40] sm:$0xff]
        %v2635 = vld [vmem:[%s2625 + $0x48] sm:$0xff]
        %v2636 = vld [vmem:[%s2625 + $0x50] sm:$0xff]
        %v2637 = vld [vmem:[%s2625 + $0x58] sm:$0xff]
        %v2638 = vld [vmem:[%s2625 + $0x60] sm:$0xff]
        %v2639 = vld [vmem:[%s2625 + $0x68] sm:$0xff]
        %v2640 = vld [vmem:[%s2625 + $0x70] sm:$0xff]
        %v2641 = vld [vmem:[%s2625 + $0x78] sm:$0xff]
        %2642 = vmatpush.msra.mxu0 %v2641
        %2643 = vmatpush.msra.mxu0 %v2640
        %2644 = vmatpush.msra.mxu0 %v2639
        %2645 = vmatpush.msra.mxu0 %v2638
        %2646 = vmatpush.msra.mxu0 %v2637
        %2647 = vmatpush.msra.mxu0 %v2636
        %2648 = vmatpush.msra.mxu0 %v2635
        %2649 = vmatpush.msra.mxu0 %v2634
        %2650 = vmatpush.msra.mxu0 %v2633
        %2651 = vmatpush.msra.mxu0 %v2632
        %2652 = vmatpush.msra.mxu0 %v2631
        %2653 = vmatpush.msra.mxu0 %v2630
        %2654 = vmatpush.msra.mxu0 %v2629
        %2655 = vmatpush.msra.mxu0 %v2628
        %2656 = vmatpush.msra.mxu0 %v2627
        %2657 = vmatpush.msra.mxu0 %v2626
        %2658 = vmatmul.f32.gmra.mxu0 %v2561
        %v2659 = vpop.f32.mrf.mxu0
        %v2660 = vadd.f32 0.0, %v2659
        %2661 = vmatmul.f32.gmra.mxu0 %v2562
        %v2662 = vpop.f32.mrf.mxu0
        %v2663 = vadd.f32 0.0, %v2662
        %2664 = vmatmul.f32.gmra.mxu0 %v2563
        %v2665 = vpop.f32.mrf.mxu0
        %v2666 = vadd.f32 0.0, %v2665
        %2667 = vmatmul.f32.gmra.mxu0 %v2564
        %v2668 = vpop.f32.mrf.mxu0
        %v2669 = vadd.f32 0.0, %v2668
        %2670 = vmatmul.f32.gmra.mxu0 %v2565
        %v2671 = vpop.f32.mrf.mxu0
        %v2672 = vadd.f32 0.0, %v2671
        %2673 = vmatmul.f32.gmra.mxu0 %v2566
        %v2674 = vpop.f32.mrf.mxu0
        %v2675 = vadd.f32 0.0, %v2674
        %2676 = vmatmul.f32.gmra.mxu0 %v2567
        %v2677 = vpop.f32.mrf.mxu0
        %v2678 = vadd.f32 0.0, %v2677
        %2679 = vmatmul.f32.gmra.mxu0 %v2568
        %v2680 = vpop.f32.mrf.mxu0
        %v2681 = vadd.f32 0.0, %v2680
        %2682 = vmatmul.f32.gmra.mxu0 %v2569
        %v2683 = vpop.f32.mrf.mxu0
        %v2684 = vadd.f32 0.0, %v2683
        %2685 = vmatmul.f32.gmra.mxu0 %v2570
        %v2686 = vpop.f32.mrf.mxu0
        %v2687 = vadd.f32 0.0, %v2686
        %2688 = vmatmul.f32.gmra.mxu0 %v2571
        %v2689 = vpop.f32.mrf.mxu0
        %v2690 = vadd.f32 0.0, %v2689
        %2691 = vmatmul.f32.gmra.mxu0 %v2572
        %v2692 = vpop.f32.mrf.mxu0
        %v2693 = vadd.f32 0.0, %v2692
        %2694 = vmatmul.f32.gmra.mxu0 %v2573
        %v2695 = vpop.f32.mrf.mxu0
        %v2696 = vadd.f32 0.0, %v2695
        %2697 = vmatmul.f32.gmra.mxu0 %v2574
        %v2698 = vpop.f32.mrf.mxu0
        %v2699 = vadd.f32 0.0, %v2698
        %2700 = vmatmul.f32.gmra.mxu0 %v2575
        %v2701 = vpop.f32.mrf.mxu0
        %v2702 = vadd.f32 0.0, %v2701
        %2703 = vmatmul.f32.gmra.mxu0 %v2576
        %v2704 = vpop.f32.mrf.mxu0
        %v2705 = vadd.f32 0.0, %v2704
        %2706 = vmatmul.f32.gmra.mxu0 %v2577
        %v2707 = vpop.f32.mrf.mxu0
        %v2708 = vadd.f32 0.0, %v2707
        %2709 = vmatmul.f32.gmra.mxu0 %v2578
        %v2710 = vpop.f32.mrf.mxu0
        %v2711 = vadd.f32 0.0, %v2710
        %2712 = vmatmul.f32.gmra.mxu0 %v2579
        %v2713 = vpop.f32.mrf.mxu0
        %v2714 = vadd.f32 0.0, %v2713
        %2715 = vmatmul.f32.gmra.mxu0 %v2580
        %v2716 = vpop.f32.mrf.mxu0
        %v2717 = vadd.f32 0.0, %v2716
        %2718 = vmatmul.f32.gmra.mxu0 %v2581
        %v2719 = vpop.f32.mrf.mxu0
        %v2720 = vadd.f32 0.0, %v2719
        %2721 = vmatmul.f32.gmra.mxu0 %v2582
        %v2722 = vpop.f32.mrf.mxu0
        %v2723 = vadd.f32 0.0, %v2722
        %2724 = vmatmul.f32.gmra.mxu0 %v2583
        %v2725 = vpop.f32.mrf.mxu0
        %v2726 = vadd.f32 0.0, %v2725
        %2727 = vmatmul.f32.gmra.mxu0 %v2584
        %v2728 = vpop.f32.mrf.mxu0
        %v2729 = vadd.f32 0.0, %v2728
        %2730 = vmatmul.f32.gmra.mxu0 %v2585
        %v2731 = vpop.f32.mrf.mxu0
        %v2732 = vadd.f32 0.0, %v2731
        %2733 = vmatmul.f32.gmra.mxu0 %v2586
        %v2734 = vpop.f32.mrf.mxu0
        %v2735 = vadd.f32 0.0, %v2734
        %2736 = vmatmul.f32.gmra.mxu0 %v2587
        %v2737 = vpop.f32.mrf.mxu0
        %v2738 = vadd.f32 0.0, %v2737
        %2739 = vmatmul.f32.gmra.mxu0 %v2588
        %v2740 = vpop.f32.mrf.mxu0
        %v2741 = vadd.f32 0.0, %v2740
        %2742 = vmatmul.f32.gmra.mxu0 %v2589
        %v2743 = vpop.f32.mrf.mxu0
        %v2744 = vadd.f32 0.0, %v2743
        %2745 = vmatmul.f32.gmra.mxu0 %v2590
        %v2746 = vpop.f32.mrf.mxu0
        %v2747 = vadd.f32 0.0, %v2746
        %2748 = vmatmul.f32.gmra.mxu0 %v2591
        %v2749 = vpop.f32.mrf.mxu0
        %v2750 = vadd.f32 0.0, %v2749
        %2751 = vmatmul.f32.gmra.mxu0 %v2592
        %v2752 = vpop.f32.mrf.mxu0
        %v2753 = vadd.f32 0.0, %v2752
        %2754 = vdwg.mxu0
        %v2755 = vadd.f32 %v2593, %v2660
        %v2756 = vadd.f32 %v2594, %v2663
        %v2757 = vadd.f32 %v2595, %v2666
        %v2758 = vadd.f32 %v2596, %v2669
        %v2759 = vadd.f32 %v2597, %v2672
        %v2760 = vadd.f32 %v2598, %v2675
        %v2761 = vadd.f32 %v2599, %v2678
        %v2762 = vadd.f32 %v2600, %v2681
        %v2763 = vadd.f32 %v2601, %v2684
        %v2764 = vadd.f32 %v2602, %v2687
        %v2765 = vadd.f32 %v2603, %v2690
        %v2766 = vadd.f32 %v2604, %v2693
        %v2767 = vadd.f32 %v2605, %v2696
        %v2768 = vadd.f32 %v2606, %v2699
        %v2769 = vadd.f32 %v2607, %v2702
        %v2770 = vadd.f32 %v2608, %v2705
        %v2771 = vadd.f32 %v2609, %v2708
        %v2772 = vadd.f32 %v2610, %v2711
        %v2773 = vadd.f32 %v2611, %v2714
        %v2774 = vadd.f32 %v2612, %v2717
        %v2775 = vadd.f32 %v2613, %v2720
        %v2776 = vadd.f32 %v2614, %v2723
        %v2777 = vadd.f32 %v2615, %v2726
        %v2778 = vadd.f32 %v2616, %v2729
        %v2779 = vadd.f32 %v2617, %v2732
        %v2780 = vadd.f32 %v2618, %v2735
        %v2781 = vadd.f32 %v2619, %v2738
        %v2782 = vadd.f32 %v2620, %v2741
        %v2783 = vadd.f32 %v2621, %v2744
        %v2784 = vadd.f32 %v2622, %v2747
        %v2785 = vadd.f32 %v2623, %v2750
        %v2786 = vadd.f32 %v2624, %v2753
        %2787 = vst [vmem:[#allocation3] sm:$0xff] %v2755
        %2788 = vst [vmem:[#allocation3 + $0x8] sm:$0xff] %v2756
        %2789 = vst [vmem:[#allocation3 + $0x10] sm:$0xff] %v2757
        %2790 = vst [vmem:[#allocation3 + $0x18] sm:$0xff] %v2758
        %2791 = vst [vmem:[#allocation3 + $0x20] sm:$0xff] %v2759
        %2792 = vst [vmem:[#allocation3 + $0x28] sm:$0xff] %v2760
        %2793 = vst [vmem:[#allocation3 + $0x30] sm:$0xff] %v2761
        %2794 = vst [vmem:[#allocation3 + $0x38] sm:$0xff] %v2762
        %2795 = vst [vmem:[#allocation3 + $0x40] sm:$0xff] %v2763
        %2796 = vst [vmem:[#allocation3 + $0x48] sm:$0xff] %v2764
        %2797 = vst [vmem:[#allocation3 + $0x50] sm:$0xff] %v2765
        %2798 = vst [vmem:[#allocation3 + $0x58] sm:$0xff] %v2766
        %2799 = vst [vmem:[#allocation3 + $0x60] sm:$0xff] %v2767
        %2800 = vst [vmem:[#allocation3 + $0x68] sm:$0xff] %v2768
        %2801 = vst [vmem:[#allocation3 + $0x70] sm:$0xff] %v2769
        %2802 = vst [vmem:[#allocation3 + $0x78] sm:$0xff] %v2770
        %2803 = vst [vmem:[#allocation3 + $0x80] sm:$0xff] %v2771
        %2804 = vst [vmem:[#allocation3 + $0x88] sm:$0xff] %v2772
        %2805 = vst [vmem:[#allocation3 + $0x90] sm:$0xff] %v2773
        %2806 = vst [vmem:[#allocation3 + $0x98] sm:$0xff] %v2774
        %2807 = vst [vmem:[#allocation3 + $0xa0] sm:$0xff] %v2775
        %2808 = vst [vmem:[#allocation3 + $0xa8] sm:$0xff] %v2776
        %2809 = vst [vmem:[#allocation3 + $0xb0] sm:$0xff] %v2777
        %2810 = vst [vmem:[#allocation3 + $0xb8] sm:$0xff] %v2778
        %2811 = vst [vmem:[#allocation3 + $0xc0] sm:$0xff] %v2779
        %2812 = vst [vmem:[#allocation3 + $0xc8] sm:$0xff] %v2780
        %2813 = vst [vmem:[#allocation3 + $0xd0] sm:$0xff] %v2781
        %2814 = vst [vmem:[#allocation3 + $0xd8] sm:$0xff] %v2782
        %2815 = vst [vmem:[#allocation3 + $0xe0] sm:$0xff] %v2783
        %2816 = vst [vmem:[#allocation3 + $0xe8] sm:$0xff] %v2784
        %2817 = vst [vmem:[#allocation3 + $0xf0] sm:$0xff] %v2785
        %2818 = vst [vmem:[#allocation3 + $0xf8] sm:$0xff] %v2786
        %v2819 = vld [vmem:[#allocation3] sm:$0xff]
        %v2820 = vld [vmem:[#allocation3 + $0x8] sm:$0xff]
        %v2821 = vld [vmem:[#allocation3 + $0x10] sm:$0xff]
        %v2822 = vld [vmem:[#allocation3 + $0x18] sm:$0xff]
        %v2823 = vld [vmem:[#allocation3 + $0x20] sm:$0xff]
        %v2824 = vld [vmem:[#allocation3 + $0x28] sm:$0xff]
        %v2825 = vld [vmem:[#allocation3 + $0x30] sm:$0xff]
        %v2826 = vld [vmem:[#allocation3 + $0x38] sm:$0xff]
        %v2827 = vld [vmem:[#allocation3 + $0x40] sm:$0xff]
        %v2828 = vld [vmem:[#allocation3 + $0x48] sm:$0xff]
        %v2829 = vld [vmem:[#allocation3 + $0x50] sm:$0xff]
        %v2830 = vld [vmem:[#allocation3 + $0x58] sm:$0xff]
        %v2831 = vld [vmem:[#allocation3 + $0x60] sm:$0xff]
        %v2832 = vld [vmem:[#allocation3 + $0x68] sm:$0xff]
        %v2833 = vld [vmem:[#allocation3 + $0x70] sm:$0xff]
        %v2834 = vld [vmem:[#allocation3 + $0x78] sm:$0xff]
        %v2835 = vld [vmem:[#allocation3 + $0x80] sm:$0xff]
        %v2836 = vld [vmem:[#allocation3 + $0x88] sm:$0xff]
        %v2837 = vld [vmem:[#allocation3 + $0x90] sm:$0xff]
        %v2838 = vld [vmem:[#allocation3 + $0x98] sm:$0xff]
        %v2839 = vld [vmem:[#allocation3 + $0xa0] sm:$0xff]
        %v2840 = vld [vmem:[#allocation3 + $0xa8] sm:$0xff]
        %v2841 = vld [vmem:[#allocation3 + $0xb0] sm:$0xff]
        %v2842 = vld [vmem:[#allocation3 + $0xb8] sm:$0xff]
        %v2843 = vld [vmem:[#allocation3 + $0xc0] sm:$0xff]
        %v2844 = vld [vmem:[#allocation3 + $0xc8] sm:$0xff]
        %v2845 = vld [vmem:[#allocation3 + $0xd0] sm:$0xff]
        %v2846 = vld [vmem:[#allocation3 + $0xd8] sm:$0xff]
        %v2847 = vld [vmem:[#allocation3 + $0xe0] sm:$0xff]
        %v2848 = vld [vmem:[#allocation3 + $0xe8] sm:$0xff]
        %v2849 = vld [vmem:[#allocation3 + $0xf0] sm:$0xff]
        %v2850 = vld [vmem:[#allocation3 + $0xf8] sm:$0xff]
        %v2851 = vadd.f32 %v2819, %v2820
        %v2852 = vadd.f32 %v2851, %v2821
        %v2853 = vadd.f32 %v2852, %v2822
        %v2854 = vadd.f32 %v2853, %v2823
        %v2855 = vadd.f32 %v2854, %v2824
        %v2856 = vadd.f32 %v2855, %v2825
        %v2857 = vadd.f32 %v2856, %v2826
        %v2858 = vadd.f32 %v2857, %v2827
        %v2859 = vadd.f32 %v2858, %v2828
        %v2860 = vadd.f32 %v2859, %v2829
        %v2861 = vadd.f32 %v2860, %v2830
        %v2862 = vadd.f32 %v2861, %v2831
        %v2863 = vadd.f32 %v2862, %v2832
        %v2864 = vadd.f32 %v2863, %v2833
        %v2865 = vadd.f32 %v2864, %v2834
        %v2866 = vadd.f32 %v2865, %v2835
        %v2867 = vadd.f32 %v2866, %v2836
        %v2868 = vadd.f32 %v2867, %v2837
        %v2869 = vadd.f32 %v2868, %v2838
        %v2870 = vadd.f32 %v2869, %v2839
        %v2871 = vadd.f32 %v2870, %v2840
        %v2872 = vadd.f32 %v2871, %v2841
        %v2873 = vadd.f32 %v2872, %v2842
        %v2874 = vadd.f32 %v2873, %v2843
        %v2875 = vadd.f32 %v2874, %v2844
        %v2876 = vadd.f32 %v2875, %v2845
        %v2877 = vadd.f32 %v2876, %v2846
        %v2878 = vadd.f32 %v2877, %v2847
        %v2879 = vadd.f32 %v2878, %v2848
        %v2880 = vadd.f32 %v2879, %v2849
        %v2881 = vadd.f32 %v2880, %v2850
        %v2882 = vrot.slane %v2881, 4
        %v2883 = vadd.f32 %v2881, %v2882
        %v2884 = vrot.slane %v2883, 2
        %v2885 = vadd.f32 %v2883, %v2884
        %v2886 = vrot.slane %v2885, 1
        %v2887 = vadd.f32 %v2885, %v2886
        %v2888 = vmul.f32 %v2887, 0.00390625
        %v2889 = vsub.f32 %v2819, %v2888
        %v2890 = vsub.f32 %v2820, %v2888
        %v2891 = vsub.f32 %v2821, %v2888
        %v2892 = vsub.f32 %v2822, %v2888
        %v2893 = vsub.f32 %v2823, %v2888
        %v2894 = vsub.f32 %v2824, %v2888
        %v2895 = vsub.f32 %v2825, %v2888
        %v2896 = vsub.f32 %v2826, %v2888
        %v2897 = vsub.f32 %v2827, %v2888
        %v2898 = vsub.f32 %v2828, %v2888
        %v2899 = vsub.f32 %v2829, %v2888
        %v2900 = vsub.f32 %v2830, %v2888
        %v2901 = vsub.f32 %v2831, %v2888
        %v2902 = vsub.f32 %v2832, %v2888
        %v2903 = vsub.f32 %v2833, %v2888
        %v2904 = vsub.f32 %v2834, %v2888
        %v2905 = vsub.f32 %v2835, %v2888
        %v2906 = vsub.f32 %v2836, %v2888
        %v2907 = vsub.f32 %v2837, %v2888
        %v2908 = vsub.f32 %v2838, %v2888
        %v2909 = vsub.f32 %v2839, %v2888
        %v2910 = vsub.f32 %v2840, %v2888
        %v2911 = vsub.f32 %v2841, %v2888
        %v2912 = vsub.f32 %v2842, %v2888
        %v2913 = vsub.f32 %v2843, %v2888
        %v2914 = vsub.f32 %v2844, %v2888
        %v2915 = vsub.f32 %v2845, %v2888
        %v2916 = vsub.f32 %v2846, %v2888
        %v2917 = vsub.f32 %v2847, %v2888
        %v2918 = vsub.f32 %v2848, %v2888
        %v2919 = vsub.f32 %v2849, %v2888
        %v2920 = vsub.f32 %v2850, %v2888
        %v2921 = vmul.f32 %v2889, %v2889
        %v2922 = vmul.f32 %v2890, %v2890
        %v2923 = vmul.f32 %v2891, %v2891
        %v2924 = vmul.f32 %v2892, %v2892
        %v2925 = vmul.f32 %v2893, %v2893
        %v2926 = vmul.f32 %v2894, %v2894
        %v2927 = vmul.f32 %v2895, %v2895
        %v2928 = vmul.f32 %v2896, %v2896
        %v2929 = vmul.f32 %v2897, %v2897
        %v2930 = vmul.f32 %v2898, %v2898
        %v2931 = vmul.f32 %v2899, %v2899
        %v2932 = vmul.f32 %v2900, %v2900
        %v2933 = vmul.f32 %v2901, %v2901
        %v2934 = vmul.f32 %v2902, %v2902
        %v2935 = vmul.f32 %v2903, %v2903
        %v2936 = vmul.f32 %v2904, %v2904
        %v2937 = vmul.f32 %v2905, %v2905
        %v2938 = vmul.f32 %v2906, %v2906
        %v2939 = vmul.f32 %v2907, %v2907
        %v2940 = vmul.f32 %v2908, %v2908
        %v2941 = vmul.f32 %v2909, %v2909
        %v2942 = vmul.f32 %v2910, %v2910
        %v2943 = vmul.f32 %v2911, %v2911
        %v2944 = vmul.f32 %v2912, %v2912
        %v2945 = vmul.f32 %v2913, %v2913
        %v2946 = vmul.f32 %v2914, %v2914
        %v2947 = vmul.f32 %v2915, %v2915
        %v2948 = vmul.f32 %v2916, %v2916
        %v2949 = vmul.f32 %v2917, %v2917
        %v2950 = vmul.f32 %v2918, %v2918
        %v2951 = vmul.f32 %v2919, %v2919
        %v2952 = vmul.f32 %v2920, %v2920
        %v2953 = vadd.f32 %v2921, %v2922
        %v2954 = vadd.f32 %v2953, %v2923
        %v2955 = vadd.f32 %v2954, %v2924
        %v2956 = vadd.f32 %v2955, %v2925
        %v2957 = vadd.f32 %v2956, %v2926
        %v2958 = vadd.f32 %v2957, %v2927
        %v2959 = vadd.f32 %v2958, %v2928
        %v2960 = vadd.f32 %v2959, %v2929
        %v2961 = vadd.f32 %v2960, %v2930
        %v2962 = vadd.f32 %v2961, %v2931
        %v2963 = vadd.f32 %v2962, %v2932
        %v2964 = vadd.f32 %v2963, %v2933
        %v2965 = vadd.f32 %v2964, %v2934
        %v2966 = vadd.f32 %v2965, %v2935
        %v2967 = vadd.f32 %v2966, %v2936
        %v2968 = vadd.f32 %v2967, %v2937
        %v2969 = vadd.f32 %v2968, %v2938
        %v2970 = vadd.f32 %v2969, %v2939
        %v2971 = vadd.f32 %v2970, %v2940
        %v2972 = vadd.f32 %v2971, %v2941
        %v2973 = vadd.f32 %v2972, %v2942
        %v2974 = vadd.f32 %v2973, %v2943
        %v2975 = vadd.f32 %v2974, %v2944
        %v2976 = vadd.f32 %v2975, %v2945
        %v2977 = vadd.f32 %v2976, %v2946
        %v2978 = vadd.f32 %v2977, %v2947
        %v2979 = vadd.f32 %v2978, %v2948
        %v2980 = vadd.f32 %v2979, %v2949
        %v2981 = vadd.f32 %v2980, %v2950
        %v2982 = vadd.f32 %v2981, %v2951
        %v2983 = vadd.f32 %v2982, %v2952
        %v2984 = vrot.slane %v2983, 4
        %v2985 = vadd.f32 %v2983, %v2984
        %v2986 = vrot.slane %v2985, 2
        %v2987 = vadd.f32 %v2985, %v2986
        %v2988 = vrot.slane %v2987, 1
        %v2989 = vadd.f32 %v2987, %v2988
        %v2990 = vmul.f32 %v2989, 0.00390625
        %v2991 = vadd.f32 %v2990, 1e-05
        %v2992 = vrsqrt.pop %v2991
        %v2993 = vmul.f32 %v2992, %v2991
        %v2994 = vmul.f32 %v2993, %v2992
        %v2995 = vmul.f32 0.5, %v2994
        %v2996 = vsub.f32 1.5, %v2995
        %v2997 = vmul.f32 %v2992, %v2996
        %vm2998 = vweird.f32 %v2991
        %vm2999 = vweird.f32 %v2992
        %vm3000 = vmor %vm2998, %vm2999
        %v3001 = vsel %vm3000, %v2992, %v2997
        %v3002 = vmul.f32 %v2889, %v3001
        %v3003 = vmul.f32 %v2890, %v3001
        %v3004 = vmul.f32 %v2891, %v3001
        %v3005 = vmul.f32 %v2892, %v3001
        %v3006 = vmul.f32 %v2893, %v3001
        %v3007 = vmul.f32 %v2894, %v3001
        %v3008 = vmul.f32 %v2895, %v3001
        %v3009 = vmul.f32 %v2896, %v3001
        %v3010 = vmul.f32 %v2897, %v3001
        %v3011 = vmul.f32 %v2898, %v3001
        %v3012 = vmul.f32 %v2899, %v3001
        %v3013 = vmul.f32 %v2900, %v3001
        %v3014 = vmul.f32 %v2901, %v3001
        %v3015 = vmul.f32 %v2902, %v3001
        %v3016 = vmul.f32 %v2903, %v3001
        %v3017 = vmul.f32 %v2904, %v3001
        %v3018 = vmul.f32 %v2905, %v3001
        %v3019 = vmul.f32 %v2906, %v3001
        %v3020 = vmul.f32 %v2907, %v3001
        %v3021 = vmul.f32 %v2908, %v3001
        %v3022 = vmul.f32 %v2909, %v3001
        %v3023 = vmul.f32 %v2910, %v3001
        %v3024 = vmul.f32 %v2911, %v3001
        %v3025 = vmul.f32 %v2912, %v3001
        %v3026 = vmul.f32 %v2913, %v3001
        %v3027 = vmul.f32 %v2914, %v3001
        %v3028 = vmul.f32 %v2915, %v3001
        %v3029 = vmul.f32 %v2916, %v3001
        %v3030 = vmul.f32 %v2917, %v3001
        %v3031 = vmul.f32 %v2918, %v3001
        %v3032 = vmul.f32 %v2919, %v3001
        %v3033 = vmul.f32 %v2920, %v3001
        %v3034 = vmax.f32 %v3002, 0.0
        %v3035 = vmax.f32 %v3003, 0.0
        %v3036 = vmax.f32 %v3004, 0.0
        %v3037 = vmax.f32 %v3005, 0.0
        %v3038 = vmax.f32 %v3006, 0.0
        %v3039 = vmax.f32 %v3007, 0.0
        %v3040 = vmax.f32 %v3008, 0.0
        %v3041 = vmax.f32 %v3009, 0.0
        %v3042 = vmax.f32 %v3010, 0.0
        %v3043 = vmax.f32 %v3011, 0.0
        %v3044 = vmax.f32 %v3012, 0.0
        %v3045 = vmax.f32 %v3013, 0.0
        %v3046 = vmax.f32 %v3014, 0.0
        %v3047 = vmax.f32 %v3015, 0.0
        %v3048 = vmax.f32 %v3016, 0.0
        %v3049 = vmax.f32 %v3017, 0.0
        %v3050 = vmax.f32 %v3018, 0.0
        %v3051 = vmax.f32 %v3019, 0.0
        %v3052 = vmax.f32 %v3020, 0.0
        %v3053 = vmax.f32 %v3021, 0.0
        %v3054 = vmax.f32 %v3022, 0.0
        %v3055 = vmax.f32 %v3023, 0.0
        %v3056 = vmax.f32 %v3024, 0.0
        %v3057 = vmax.f32 %v3025, 0.0
        %v3058 = vmax.f32 %v3026, 0.0
        %v3059 = vmax.f32 %v3027, 0.0
        %v3060 = vmax.f32 %v3028, 0.0
        %v3061 = vmax.f32 %v3029, 0.0
        %v3062 = vmax.f32 %v3030, 0.0
        %v3063 = vmax.f32 %v3031, 0.0
        %v3064 = vmax.f32 %v3032, 0.0
        %v3065 = vmax.f32 %v3033, 0.0
        %3066 = vst [vmem:[%s345 + $0x1] sm:$0xff] %v3034
        %3067 = vst [vmem:[%s345 + $0x9] sm:$0xff] %v3035
        %3068 = vst [vmem:[%s345 + $0x19] sm:$0xff] %v3036
        %3069 = vst [vmem:[%s345 + $0x21] sm:$0xff] %v3037
        %3070 = vst [vmem:[%s345 + $0x31] sm:$0xff] %v3038
        %3071 = vst [vmem:[%s345 + $0x39] sm:$0xff] %v3039
        %3072 = vst [vmem:[%s345 + $0x49] sm:$0xff] %v3040
        %3073 = vst [vmem:[%s345 + $0x51] sm:$0xff] %v3041
        %3074 = vst [vmem:[%s345 + $0x61] sm:$0xff] %v3042
        %3075 = vst [vmem:[%s345 + $0x69] sm:$0xff] %v3043
        %3076 = vst [vmem:[%s345 + $0x79] sm:$0xff] %v3044
        %3077 = vst [vmem:[%s345 + $0x81] sm:$0xff] %v3045
        %3078 = vst [vmem:[%s345 + $0x91] sm:$0xff] %v3046
        %3079 = vst [vmem:[%s345 + $0x99] sm:$0xff] %v3047
        %3080 = vst [vmem:[%s345 + $0xa9] sm:$0xff] %v3048
        %3081 = vst [vmem:[%s345 + $0xb1] sm:$0xff] %v3049
        %3082 = vst [vmem:[%s345 + $0xc1] sm:$0xff] %v3050
        %3083 = vst [vmem:[%s345 + $0xc9] sm:$0xff] %v3051
        %3084 = vst [vmem:[%s345 + $0xd9] sm:$0xff] %v3052
        %3085 = vst [vmem:[%s345 + $0xe1] sm:$0xff] %v3053
        %3086 = vst [vmem:[%s345 + $0xf1] sm:$0xff] %v3054
        %3087 = vst [vmem:[%s345 + $0xf9] sm:$0xff] %v3055
        %3088 = vst [vmem:[%s345 + $0x109] sm:$0xff] %v3056
        %3089 = vst [vmem:[%s345 + $0x111] sm:$0xff] %v3057
        %3090 = vst [vmem:[%s345 + $0x121] sm:$0xff] %v3058
        %3091 = vst [vmem:[%s345 + $0x129] sm:$0xff] %v3059
        %3092 = vst [vmem:[%s345 + $0x139] sm:$0xff] %v3060
        %3093 = vst [vmem:[%s345 + $0x141] sm:$0xff] %v3061
        %3094 = vst [vmem:[%s345 + $0x151] sm:$0xff] %v3062
        %3095 = vst [vmem:[%s345 + $0x159] sm:$0xff] %v3063
        %3096 = vst [vmem:[%s345 + $0x169] sm:$0xff] %v3064
        %3097 = vst [vmem:[%s345 + $0x171] sm:$0xff] %v3065
        %v3098 = vld [vmem:[%s379 + $0x1] sm:$0xff]
        %v3099 = vld [vmem:[%s379 + $0x9] sm:$0xff]
        %3100 = vst [vmem:[#allocation2 + $0x1] sm:$0xff] %v3098
        %3101 = vst [vmem:[#allocation2 + $0x9] sm:$0xff] %v3099
        %v3102 = vld [vmem:[%s384 + $0x1] sm:$0xff]
        %v3103 = vld [vmem:[%s384 + $0x9] sm:$0xff]
        %3104 = vst [vmem:[%s387 + $0x1] sm:$0xff] %v3102
        %3105 = vst [vmem:[%s387 + $0x9] sm:$0xff] %v3103
        %v3106 = vld [vmem:[#allocation2 + $0x2] sm:$0x1]
        %v3107 = vld [vmem:[#allocation2 + $0x1a] sm:$0x1]
        %v3108 = vld [vmem:[#allocation2 + $0x32] sm:$0x1]
        %v3109 = vld [vmem:[#allocation2 + $0x4a] sm:$0x1]
        %v3110 = vld [vmem:[#allocation2 + $0x62] sm:$0x1]
        %v3111 = vld [vmem:[#allocation2 + $0x7a] sm:$0x1]
        %v3112 = vld [vmem:[#allocation2 + $0x92] sm:$0x1]
        %v3113 = vld [vmem:[#allocation2 + $0xaa] sm:$0x1]
        %v3114 = vld [vmem:[#allocation2 + $0xc2] sm:$0x1]
        %v3115 = vld [vmem:[#allocation2 + $0xda] sm:$0x1]
        %v3116 = vld [vmem:[#allocation2 + $0xf2] sm:$0x1]
        %v3117 = vld [vmem:[#allocation2 + $0x10a] sm:$0x1]
        %v3118 = vld [vmem:[#allocation2 + $0x122] sm:$0x1]
        %v3119 = vld [vmem:[#allocation2 + $0x13a] sm:$0x1]
        %v3120 = vld [vmem:[#allocation2 + $0x152] sm:$0x1]
        %v3121 = vld [vmem:[#allocation2 + $0x16a] sm:$0x1]
        %v3122 = vld [vmem:[#allocation2 + $0x182] sm:$0x1]
        %v3123 = vld [vmem:[#allocation2 + $0x19a] sm:$0x1]
        %3124 = vst [vmem:[#allocation2] sm:$0x1] %v3106
        %3125 = vst [vmem:[#allocation2 + $0x18] sm:$0x1] %v3107
        %3126 = vst [vmem:[#allocation2 + $0x30] sm:$0x1] %v3108
        %3127 = vst [vmem:[#allocation2 + $0x48] sm:$0x1] %v3109
        %3128 = vst [vmem:[#allocation2 + $0x60] sm:$0x1] %v3110
        %3129 = vst [vmem:[#allocation2 + $0x78] sm:$0x1] %v3111
        %3130 = vst [vmem:[#allocation2 + $0x90] sm:$0x1] %v3112
        %3131 = vst [vmem:[#allocation2 + $0xa8] sm:$0x1] %v3113
        %3132 = vst [vmem:[#allocation2 + $0xc0] sm:$0x1] %v3114
        %3133 = vst [vmem:[#allocation2 + $0xd8] sm:$0x1] %v3115
        %3134 = vst [vmem:[#allocation2 + $0xf0] sm:$0x1] %v3116
        %3135 = vst [vmem:[#allocation2 + $0x108] sm:$0x1] %v3117
        %3136 = vst [vmem:[#allocation2 + $0x120] sm:$0x1] %v3118
        %3137 = vst [vmem:[#allocation2 + $0x138] sm:$0x1] %v3119
        %3138 = vst [vmem:[#allocation2 + $0x150] sm:$0x1] %v3120
        %3139 = vst [vmem:[#allocation2 + $0x168] sm:$0x1] %v3121
        %3140 = vst [vmem:[#allocation2 + $0x180] sm:$0x1] %v3122
        %3141 = vst [vmem:[#allocation2 + $0x198] sm:$0x1] %v3123
        %v3142 = vld [vmem:[#allocation2 + $0xf] sm:$0x1]
        %v3143 = vld [vmem:[#allocation2 + $0x27] sm:$0x1]
        %v3144 = vld [vmem:[#allocation2 + $0x3f] sm:$0x1]
        %v3145 = vld [vmem:[#allocation2 + $0x57] sm:$0x1]
        %v3146 = vld [vmem:[#allocation2 + $0x6f] sm:$0x1]
        %v3147 = vld [vmem:[#allocation2 + $0x87] sm:$0x1]
        %v3148 = vld [vmem:[#allocation2 + $0x9f] sm:$0x1]
        %v3149 = vld [vmem:[#allocation2 + $0xb7] sm:$0x1]
        %v3150 = vld [vmem:[#allocation2 + $0xcf] sm:$0x1]
        %v3151 = vld [vmem:[#allocation2 + $0xe7] sm:$0x1]
        %v3152 = vld [vmem:[#allocation2 + $0xff] sm:$0x1]
        %v3153 = vld [vmem:[#allocation2 + $0x117] sm:$0x1]
        %v3154 = vld [vmem:[#allocation2 + $0x12f] sm:$0x1]
        %v3155 = vld [vmem:[#allocation2 + $0x147] sm:$0x1]
        %v3156 = vld [vmem:[#allocation2 + $0x15f] sm:$0x1]
        %v3157 = vld [vmem:[#allocation2 + $0x177] sm:$0x1]
        %v3158 = vld [vmem:[#allocation2 + $0x18f] sm:$0x1]
        %v3159 = vld [vmem:[#allocation2 + $0x1a7] sm:$0x1]
        %3160 = vst [vmem:[#allocation2 + $0x11] sm:$0x1] %v3142
        %3161 = vst [vmem:[#allocation2 + $0x29] sm:$0x1] %v3143
        %3162 = vst [vmem:[#allocation2 + $0x41] sm:$0x1] %v3144
        %3163 = vst [vmem:[#allocation2 + $0x59] sm:$0x1] %v3145
        %3164 = vst [vmem:[#allocation2 + $0x71] sm:$0x1] %v3146
        %3165 = vst [vmem:[#allocation2 + $0x89] sm:$0x1] %v3147
        %3166 = vst [vmem:[#allocation2 + $0xa1] sm:$0x1] %v3148
        %3167 = vst [vmem:[#allocation2 + $0xb9] sm:$0x1] %v3149
        %3168 = vst [vmem:[#allocation2 + $0xd1] sm:$0x1] %v3150
        %3169 = vst [vmem:[#allocation2 + $0xe9] sm:$0x1] %v3151
        %3170 = vst [vmem:[#allocation2 + $0x101] sm:$0x1] %v3152
        %3171 = vst [vmem:[#allocation2 + $0x119] sm:$0x1] %v3153
        %3172 = vst [vmem:[#allocation2 + $0x131] sm:$0x1] %v3154
        %3173 = vst [vmem:[#allocation2 + $0x149] sm:$0x1] %v3155
        %3174 = vst [vmem:[#allocation2 + $0x161] sm:$0x1] %v3156
        %3175 = vst [vmem:[#allocation2 + $0x179] sm:$0x1] %v3157
        %3176 = vst [vmem:[#allocation2 + $0x191] sm:$0x1] %v3158
        %3177 = vst [vmem:[#allocation2 + $0x1a9] sm:$0x1] %v3159
        %v3178 = vld [vmem:[%s4] sm:$0x1]
        %v3180 = vperm.slane %v3178, 0
        %3182 = vst [vmem:[#allocation3] sm:$0xff] %v3180
        %3183 = vst [vmem:[#allocation3 + $0x8] sm:$0xff] %v3180
        %3184 = vst [vmem:[#allocation3 + $0x10] sm:$0xff] %v3180
        %3185 = vst [vmem:[#allocation3 + $0x18] sm:$0xff] %v3180
        %3186 = vst [vmem:[#allocation3 + $0x20] sm:$0xff] %v3180
        %3187 = vst [vmem:[#allocation3 + $0x28] sm:$0xff] %v3180
        %3188 = vst [vmem:[#allocation3 + $0x30] sm:$0xff] %v3180
        %3189 = vst [vmem:[#allocation3 + $0x38] sm:$0xff] %v3180
        %3190 = vst [vmem:[#allocation3 + $0x40] sm:$0xff] %v3180
        %3191 = vst [vmem:[#allocation3 + $0x48] sm:$0xff] %v3180
        %3192 = vst [vmem:[#allocation3 + $0x50] sm:$0xff] %v3180
        %3193 = vst [vmem:[#allocation3 + $0x58] sm:$0xff] %v3180
        %3194 = vst [vmem:[#allocation3 + $0x60] sm:$0xff] %v3180
        %3195 = vst [vmem:[#allocation3 + $0x68] sm:$0xff] %v3180
        %3196 = vst [vmem:[#allocation3 + $0x70] sm:$0xff] %v3180
        %3197 = vst [vmem:[#allocation3 + $0x78] sm:$0xff] %v3180
        %3198 = vst [vmem:[#allocation3 + $0x80] sm:$0xff] %v3180
        %3199 = vst [vmem:[#allocation3 + $0x88] sm:$0xff] %v3180
        %3200 = vst [vmem:[#allocation3 + $0x90] sm:$0xff] %v3180
        %3201 = vst [vmem:[#allocation3 + $0x98] sm:$0xff] %v3180
        %3202 = vst [vmem:[#allocation3 + $0xa0] sm:$0xff] %v3180
        %3203 = vst [vmem:[#allocation3 + $0xa8] sm:$0xff] %v3180
        %3204 = vst [vmem:[#allocation3 + $0xb0] sm:$0xff] %v3180
        %3205 = vst [vmem:[#allocation3 + $0xb8] sm:$0xff] %v3180
        %3206 = vst [vmem:[#allocation3 + $0xc0] sm:$0xff] %v3180
        %3207 = vst [vmem:[#allocation3 + $0xc8] sm:$0xff] %v3180
        %3208 = vst [vmem:[#allocation3 + $0xd0] sm:$0xff] %v3180
        %3209 = vst [vmem:[#allocation3 + $0xd8] sm:$0xff] %v3180
        %3210 = vst [vmem:[#allocation3 + $0xe0] sm:$0xff] %v3180
        %3211 = vst [vmem:[#allocation3 + $0xe8] sm:$0xff] %v3180
        %3212 = vst [vmem:[#allocation3 + $0xf0] sm:$0xff] %v3180
        %3213 = vst [vmem:[#allocation3 + $0xf8] sm:$0xff] %v3180
        %v3214 = vld [vmem:[#allocation2] sm:$0xff]
        %v3215 = vld [vmem:[#allocation2 + $0x8] sm:$0xff]
        %v3216 = vld [vmem:[#allocation2 + $0x18] sm:$0xff]
        %v3217 = vld [vmem:[#allocation2 + $0x20] sm:$0xff]
        %v3218 = vld [vmem:[#allocation2 + $0x30] sm:$0xff]
        %v3219 = vld [vmem:[#allocation2 + $0x38] sm:$0xff]
        %v3220 = vld [vmem:[#allocation2 + $0x48] sm:$0xff]
        %v3221 = vld [vmem:[#allocation2 + $0x50] sm:$0xff]
        %v3222 = vld [vmem:[#allocation2 + $0x60] sm:$0xff]
        %v3223 = vld [vmem:[#allocation2 + $0x68] sm:$0xff]
        %v3224 = vld [vmem:[#allocation2 + $0x78] sm:$0xff]
        %v3225 = vld [vmem:[#allocation2 + $0x80] sm:$0xff]
        %v3226 = vld [vmem:[#allocation2 + $0x90] sm:$0xff]
        %v3227 = vld [vmem:[#allocation2 + $0x98] sm:$0xff]
        %v3228 = vld [vmem:[#allocation2 + $0xa8] sm:$0xff]
        %v3229 = vld [vmem:[#allocation2 + $0xb0] sm:$0xff]
        %v3230 = vld [vmem:[#allocation2 + $0xc0] sm:$0xff]
        %v3231 = vld [vmem:[#allocation2 + $0xc8] sm:$0xff]
        %v3232 = vld [vmem:[#allocation2 + $0xd8] sm:$0xff]
        %v3233 = vld [vmem:[#allocation2 + $0xe0] sm:$0xff]
        %v3234 = vld [vmem:[#allocation2 + $0xf0] sm:$0xff]
        %v3235 = vld [vmem:[#allocation2 + $0xf8] sm:$0xff]
        %v3236 = vld [vmem:[#allocation2 + $0x108] sm:$0xff]
        %v3237 = vld [vmem:[#allocation2 + $0x110] sm:$0xff]
        %v3238 = vld [vmem:[#allocation2 + $0x120] sm:$0xff]
        %v3239 = vld [vmem:[#allocation2 + $0x128] sm:$0xff]
        %v3240 = vld [vmem:[#allocation2 + $0x138] sm:$0xff]
        %v3241 = vld [vmem:[#allocation2 + $0x140] sm:$0xff]
        %v3242 = vld [vmem:[#allocation2 + $0x150] sm:$0xff]
        %v3243 = vld [vmem:[#allocation2 + $0x158] sm:$0xff]
        %v3244 = vld [vmem:[#allocation2 + $0x168] sm:$0xff]
        %v3245 = vld [vmem:[#allocation2 + $0x170] sm:$0xff]
        %v3246 = vld [vmem:[#allocation3] sm:$0xff]
        %v3247 = vld [vmem:[#allocation3 + $0x8] sm:$0xff]
        %v3248 = vld [vmem:[#allocation3 + $0x10] sm:$0xff]
        %v3249 = vld [vmem:[#allocation3 + $0x18] sm:$0xff]
        %v3250 = vld [vmem:[#allocation3 + $0x20] sm:$0xff]
        %v3251 = vld [vmem:[#allocation3 + $0x28] sm:$0xff]
        %v3252 = vld [vmem:[#allocation3 + $0x30] sm:$0xff]
        %v3253 = vld [vmem:[#allocation3 + $0x38] sm:$0xff]
        %v3254 = vld [vmem:[#allocation3 + $0x40] sm:$0xff]
        %v3255 = vld [vmem:[#allocation3 + $0x48] sm:$0xff]
        %v3256 = vld [vmem:[#allocation3 + $0x50] sm:$0xff]
        %v3257 = vld [vmem:[#allocation3 + $0x58] sm:$0xff]
        %v3258 = vld [vmem:[#allocation3 + $0x60] sm:$0xff]
        %v3259 = vld [vmem:[#allocation3 + $0x68] sm:$0xff]
        %v3260 = vld [vmem:[#allocation3 + $0x70] sm:$0xff]
        %v3261 = vld [vmem:[#allocation3 + $0x78] sm:$0xff]
        %v3262 = vld [vmem:[#allocation3 + $0x80] sm:$0xff]
        %v3263 = vld [vmem:[#allocation3 + $0x88] sm:$0xff]
        %v3264 = vld [vmem:[#allocation3 + $0x90] sm:$0xff]
        %v3265 = vld [vmem:[#allocation3 + $0x98] sm:$0xff]
        %v3266 = vld [vmem:[#allocation3 + $0xa0] sm:$0xff]
        %v3267 = vld [vmem:[#allocation3 + $0xa8] sm:$0xff]
        %v3268 = vld [vmem:[#allocation3 + $0xb0] sm:$0xff]
        %v3269 = vld [vmem:[#allocation3 + $0xb8] sm:$0xff]
        %v3270 = vld [vmem:[#allocation3 + $0xc0] sm:$0xff]
        %v3271 = vld [vmem:[#allocation3 + $0xc8] sm:$0xff]
        %v3272 = vld [vmem:[#allocation3 + $0xd0] sm:$0xff]
        %v3273 = vld [vmem:[#allocation3 + $0xd8] sm:$0xff]
        %v3274 = vld [vmem:[#allocation3 + $0xe0] sm:$0xff]
        %v3275 = vld [vmem:[#allocation3 + $0xe8] sm:$0xff]
        %v3276 = vld [vmem:[#allocation3 + $0xf0] sm:$0xff]
        %v3277 = vld [vmem:[#allocation3 + $0xf8] sm:$0xff]
        %v3278 = vld [vmem:[#allocation6] sm:$0xff]
        %v3279 = vld [vmem:[#allocation6 + $0x8] sm:$0xff]
        %v3280 = vld [vmem:[#allocation6 + $0x10] sm:$0xff]
        %v3281 = vld [vmem:[#allocation6 + $0x18] sm:$0xff]
        %v3282 = vld [vmem:[#allocation6 + $0x20] sm:$0xff]
        %v3283 = vld [vmem:[#allocation6 + $0x28] sm:$0xff]
        %v3284 = vld [vmem:[#allocation6 + $0x30] sm:$0xff]
        %v3285 = vld [vmem:[#allocation6 + $0x38] sm:$0xff]
        %v3286 = vld [vmem:[#allocation6 + $0x40] sm:$0xff]
        %v3287 = vld [vmem:[#allocation6 + $0x48] sm:$0xff]
        %v3288 = vld [vmem:[#allocation6 + $0x50] sm:$0xff]
        %v3289 = vld [vmem:[#allocation6 + $0x58] sm:$0xff]
        %v3290 = vld [vmem:[#allocation6 + $0x60] sm:$0xff]
        %v3291 = vld [vmem:[#allocation6 + $0x68] sm:$0xff]
        %v3292 = vld [vmem:[#allocation6 + $0x70] sm:$0xff]
        %v3293 = vld [vmem:[#allocation6 + $0x78] sm:$0xff]
        %3294 = vmatpush.msra.mxu0 %v3293
        %3295 = vmatpush.msra.mxu0 %v3292
        %3296 = vmatpush.msra.mxu0 %v3291
        %3297 = vmatpush.msra.mxu0 %v3290
        %3298 = vmatpush.msra.mxu0 %v3289
        %3299 = vmatpush.msra.mxu0 %v3288
        %3300 = vmatpush.msra.mxu0 %v3287
        %3301 = vmatpush.msra.mxu0 %v3286
        %3302 = vmatpush.msra.mxu0 %v3285
        %3303 = vmatpush.msra.mxu0 %v3284
        %3304 = vmatpush.msra.mxu0 %v3283
        %3305 = vmatpush.msra.mxu0 %v3282
        %3306 = vmatpush.msra.mxu0 %v3281
        %3307 = vmatpush.msra.mxu0 %v3280
        %3308 = vmatpush.msra.mxu0 %v3279
        %3309 = vmatpush.msra.mxu0 %v3278
        %3310 = vmatmul.f32.gmra.mxu0 %v3214
        %v3311 = vpop.f32.mrf.mxu0
        %v3312 = vadd.f32 0.0, %v3311
        %3313 = vmatmul.f32.gmra.mxu0 %v3215
        %v3314 = vpop.f32.mrf.mxu0
        %v3315 = vadd.f32 0.0, %v3314
        %3316 = vmatmul.f32.gmra.mxu0 %v3216
        %v3317 = vpop.f32.mrf.mxu0
        %v3318 = vadd.f32 0.0, %v3317
        %3319 = vmatmul.f32.gmra.mxu0 %v3217
        %v3320 = vpop.f32.mrf.mxu0
        %v3321 = vadd.f32 0.0, %v3320
        %3322 = vmatmul.f32.gmra.mxu0 %v3218
        %v3323 = vpop.f32.mrf.mxu0
        %v3324 = vadd.f32 0.0, %v3323
        %3325 = vmatmul.f32.gmra.mxu0 %v3219
        %v3326 = vpop.f32.mrf.mxu0
        %v3327 = vadd.f32 0.0, %v3326
        %3328 = vmatmul.f32.gmra.mxu0 %v3220
        %v3329 = vpop.f32.mrf.mxu0
        %v3330 = vadd.f32 0.0, %v3329
        %3331 = vmatmul.f32.gmra.mxu0 %v3221
        %v3332 = vpop.f32.mrf.mxu0
        %v3333 = vadd.f32 0.0, %v3332
        %3334 = vmatmul.f32.gmra.mxu0 %v3222
        %v3335 = vpop.f32.mrf.mxu0
        %v3336 = vadd.f32 0.0, %v3335
        %3337 = vmatmul.f32.gmra.mxu0 %v3223
        %v3338 = vpop.f32.mrf.mxu0
        %v3339 = vadd.f32 0.0, %v3338
        %3340 = vmatmul.f32.gmra.mxu0 %v3224
        %v3341 = vpop.f32.mrf.mxu0
        %v3342 = vadd.f32 0.0, %v3341
        %3343 = vmatmul.f32.gmra.mxu0 %v3225
        %v3344 = vpop.f32.mrf.mxu0
        %v3345 = vadd.f32 0.0, %v3344
        %3346 = vmatmul.f32.gmra.mxu0 %v3226
        %v3347 = vpop.f32.mrf.mxu0
        %v3348 = vadd.f32 0.0, %v3347
        %3349 = vmatmul.f32.gmra.mxu0 %v3227
        %v3350 = vpop.f32.mrf.mxu0
        %v3351 = vadd.f32 0.0, %v3350
        %3352 = vmatmul.f32.gmra.mxu0 %v3228
        %v3353 = vpop.f32.mrf.mxu0
        %v3354 = vadd.f32 0.0, %v3353
        %3355 = vmatmul.f32.gmra.mxu0 %v3229
        %v3356 = vpop.f32.mrf.mxu0
        %v3357 = vadd.f32 0.0, %v3356
        %3358 = vmatmul.f32.gmra.mxu0 %v3230
        %v3359 = vpop.f32.mrf.mxu0
        %v3360 = vadd.f32 0.0, %v3359
        %3361 = vmatmul.f32.gmra.mxu0 %v3231
        %v3362 = vpop.f32.mrf.mxu0
        %v3363 = vadd.f32 0.0, %v3362
        %3364 = vmatmul.f32.gmra.mxu0 %v3232
        %v3365 = vpop.f32.mrf.mxu0
        %v3366 = vadd.f32 0.0, %v3365
        %3367 = vmatmul.f32.gmra.mxu0 %v3233
        %v3368 = vpop.f32.mrf.mxu0
        %v3369 = vadd.f32 0.0, %v3368
        %3370 = vmatmul.f32.gmra.mxu0 %v3234
        %v3371 = vpop.f32.mrf.mxu0
        %v3372 = vadd.f32 0.0, %v3371
        %3373 = vmatmul.f32.gmra.mxu0 %v3235
        %v3374 = vpop.f32.mrf.mxu0
        %v3375 = vadd.f32 0.0, %v3374
        %3376 = vmatmul.f32.gmra.mxu0 %v3236
        %v3377 = vpop.f32.mrf.mxu0
        %v3378 = vadd.f32 0.0, %v3377
        %3379 = vmatmul.f32.gmra.mxu0 %v3237
        %v3380 = vpop.f32.mrf.mxu0
        %v3381 = vadd.f32 0.0, %v3380
        %3382 = vmatmul.f32.gmra.mxu0 %v3238
        %v3383 = vpop.f32.mrf.mxu0
        %v3384 = vadd.f32 0.0, %v3383
        %3385 = vmatmul.f32.gmra.mxu0 %v3239
        %v3386 = vpop.f32.mrf.mxu0
        %v3387 = vadd.f32 0.0, %v3386
        %3388 = vmatmul.f32.gmra.mxu0 %v3240
        %v3389 = vpop.f32.mrf.mxu0
        %v3390 = vadd.f32 0.0, %v3389
        %3391 = vmatmul.f32.gmra.mxu0 %v3241
        %v3392 = vpop.f32.mrf.mxu0
        %v3393 = vadd.f32 0.0, %v3392
        %3394 = vmatmul.f32.gmra.mxu0 %v3242
        %v3395 = vpop.f32.mrf.mxu0
        %v3396 = vadd.f32 0.0, %v3395
        %3397 = vmatmul.f32.gmra.mxu0 %v3243
        %v3398 = vpop.f32.mrf.mxu0
        %v3399 = vadd.f32 0.0, %v3398
        %3400 = vmatmul.f32.gmra.mxu0 %v3244
        %v3401 = vpop.f32.mrf.mxu0
        %v3402 = vadd.f32 0.0, %v3401
        %3403 = vmatmul.f32.gmra.mxu0 %v3245
        %v3404 = vpop.f32.mrf.mxu0
        %v3405 = vadd.f32 0.0, %v3404
        %3406 = vdwg.mxu0
        %v3407 = vadd.f32 %v3246, %v3312
        %v3408 = vadd.f32 %v3247, %v3315
        %v3409 = vadd.f32 %v3248, %v3318
        %v3410 = vadd.f32 %v3249, %v3321
        %v3411 = vadd.f32 %v3250, %v3324
        %v3412 = vadd.f32 %v3251, %v3327
        %v3413 = vadd.f32 %v3252, %v3330
        %v3414 = vadd.f32 %v3253, %v3333
        %v3415 = vadd.f32 %v3254, %v3336
        %v3416 = vadd.f32 %v3255, %v3339
        %v3417 = vadd.f32 %v3256, %v3342
        %v3418 = vadd.f32 %v3257, %v3345
        %v3419 = vadd.f32 %v3258, %v3348
        %v3420 = vadd.f32 %v3259, %v3351
        %v3421 = vadd.f32 %v3260, %v3354
        %v3422 = vadd.f32 %v3261, %v3357
        %v3423 = vadd.f32 %v3262, %v3360
        %v3424 = vadd.f32 %v3263, %v3363
        %v3425 = vadd.f32 %v3264, %v3366
        %v3426 = vadd.f32 %v3265, %v3369
        %v3427 = vadd.f32 %v3266, %v3372
        %v3428 = vadd.f32 %v3267, %v3375
        %v3429 = vadd.f32 %v3268, %v3378
        %v3430 = vadd.f32 %v3269, %v3381
        %v3431 = vadd.f32 %v3270, %v3384
        %v3432 = vadd.f32 %v3271, %v3387
        %v3433 = vadd.f32 %v3272, %v3390
        %v3434 = vadd.f32 %v3273, %v3393
        %v3435 = vadd.f32 %v3274, %v3396
        %v3436 = vadd.f32 %v3275, %v3399
        %v3437 = vadd.f32 %v3276, %v3402
        %v3438 = vadd.f32 %v3277, %v3405
        %3439 = vst [vmem:[#allocation3] sm:$0xff] %v3407
        %3440 = vst [vmem:[#allocation3 + $0x8] sm:$0xff] %v3408
        %3441 = vst [vmem:[#allocation3 + $0x10] sm:$0xff] %v3409
        %3442 = vst [vmem:[#allocation3 + $0x18] sm:$0xff] %v3410
        %3443 = vst [vmem:[#allocation3 + $0x20] sm:$0xff] %v3411
        %3444 = vst [vmem:[#allocation3 + $0x28] sm:$0xff] %v3412
        %3445 = vst [vmem:[#allocation3 + $0x30] sm:$0xff] %v3413
        %3446 = vst [vmem:[#allocation3 + $0x38] sm:$0xff] %v3414
        %3447 = vst [vmem:[#allocation3 + $0x40] sm:$0xff] %v3415
        %3448 = vst [vmem:[#allocation3 + $0x48] sm:$0xff] %v3416
        %3449 = vst [vmem:[#allocation3 + $0x50] sm:$0xff] %v3417
        %3450 = vst [vmem:[#allocation3 + $0x58] sm:$0xff] %v3418
        %3451 = vst [vmem:[#allocation3 + $0x60] sm:$0xff] %v3419
        %3452 = vst [vmem:[#allocation3 + $0x68] sm:$0xff] %v3420
        %3453 = vst [vmem:[#allocation3 + $0x70] sm:$0xff] %v3421
        %3454 = vst [vmem:[#allocation3 + $0x78] sm:$0xff] %v3422
        %3455 = vst [vmem:[#allocation3 + $0x80] sm:$0xff] %v3423
        %3456 = vst [vmem:[#allocation3 + $0x88] sm:$0xff] %v3424
        %3457 = vst [vmem:[#allocation3 + $0x90] sm:$0xff] %v3425
        %3458 = vst [vmem:[#allocation3 + $0x98] sm:$0xff] %v3426
        %3459 = vst [vmem:[#allocation3 + $0xa0] sm:$0xff] %v3427
        %3460 = vst [vmem:[#allocation3 + $0xa8] sm:$0xff] %v3428
        %3461 = vst [vmem:[#allocation3 + $0xb0] sm:$0xff] %v3429
        %3462 = vst [vmem:[#allocation3 + $0xb8] sm:$0xff] %v3430
        %3463 = vst [vmem:[#allocation3 + $0xc0] sm:$0xff] %v3431
        %3464 = vst [vmem:[#allocation3 + $0xc8] sm:$0xff] %v3432
        %3465 = vst [vmem:[#allocation3 + $0xd0] sm:$0xff] %v3433
        %3466 = vst [vmem:[#allocation3 + $0xd8] sm:$0xff] %v3434
        %3467 = vst [vmem:[#allocation3 + $0xe0] sm:$0xff] %v3435
        %3468 = vst [vmem:[#allocation3 + $0xe8] sm:$0xff] %v3436
        %3469 = vst [vmem:[#allocation3 + $0xf0] sm:$0xff] %v3437
        %3470 = vst [vmem:[#allocation3 + $0xf8] sm:$0xff] %v3438
        %v3471 = vld [vmem:[#allocation2 + $0x1] sm:$0xff]
        %v3472 = vld [vmem:[#allocation2 + $0x9] sm:$0xff]
        %v3473 = vld [vmem:[#allocation2 + $0x19] sm:$0xff]
        %v3474 = vld [vmem:[#allocation2 + $0x21] sm:$0xff]
        %v3475 = vld [vmem:[#allocation2 + $0x31] sm:$0xff]
        %v3476 = vld [vmem:[#allocation2 + $0x39] sm:$0xff]
        %v3477 = vld [vmem:[#allocation2 + $0x49] sm:$0xff]
        %v3478 = vld [vmem:[#allocation2 + $0x51] sm:$0xff]
        %v3479 = vld [vmem:[#allocation2 + $0x61] sm:$0xff]
        %v3480 = vld [vmem:[#allocation2 + $0x69] sm:$0xff]
        %v3481 = vld [vmem:[#allocation2 + $0x79] sm:$0xff]
        %v3482 = vld [vmem:[#allocation2 + $0x81] sm:$0xff]
        %v3483 = vld [vmem:[#allocation2 + $0x91] sm:$0xff]
        %v3484 = vld [vmem:[#allocation2 + $0x99] sm:$0xff]
        %v3485 = vld [vmem:[#allocation2 + $0xa9] sm:$0xff]
        %v3486 = vld [vmem:[#allocation2 + $0xb1] sm:$0xff]
        %v3487 = vld [vmem:[#allocation2 + $0xc1] sm:$0xff]
        %v3488 = vld [vmem:[#allocation2 + $0xc9] sm:$0xff]
        %v3489 = vld [vmem:[#allocation2 + $0xd9] sm:$0xff]
        %v3490 = vld [vmem:[#allocation2 + $0xe1] sm:$0xff]
        %v3491 = vld [vmem:[#allocation2 + $0xf1] sm:$0xff]
        %v3492 = vld [vmem:[#allocation2 + $0xf9] sm:$0xff]
        %v3493 = vld [vmem:[#allocation2 + $0x109] sm:$0xff]
        %v3494 = vld [vmem:[#allocation2 + $0x111] sm:$0xff]
        %v3495 = vld [vmem:[#allocation2 + $0x121] sm:$0xff]
        %v3496 = vld [vmem:[#allocation2 + $0x129] sm:$0xff]
        %v3497 = vld [vmem:[#allocation2 + $0x139] sm:$0xff]
        %v3498 = vld [vmem:[#allocation2 + $0x141] sm:$0xff]
        %v3499 = vld [vmem:[#allocation2 + $0x151] sm:$0xff]
        %v3500 = vld [vmem:[#allocation2 + $0x159] sm:$0xff]
        %v3501 = vld [vmem:[#allocation2 + $0x169] sm:$0xff]
        %v3502 = vld [vmem:[#allocation2 + $0x171] sm:$0xff]
        %v3503 = vld [vmem:[#allocation3] sm:$0xff]
        %v3504 = vld [vmem:[#allocation3 + $0x8] sm:$0xff]
        %v3505 = vld [vmem:[#allocation3 + $0x10] sm:$0xff]
        %v3506 = vld [vmem:[#allocation3 + $0x18] sm:$0xff]
        %v3507 = vld [vmem:[#allocation3 + $0x20] sm:$0xff]
        %v3508 = vld [vmem:[#allocation3 + $0x28] sm:$0xff]
        %v3509 = vld [vmem:[#allocation3 + $0x30] sm:$0xff]
        %v3510 = vld [vmem:[#allocation3 + $0x38] sm:$0xff]
        %v3511 = vld [vmem:[#allocation3 + $0x40] sm:$0xff]
        %v3512 = vld [vmem:[#allocation3 + $0x48] sm:$0xff]
        %v3513 = vld [vmem:[#allocation3 + $0x50] sm:$0xff]
        %v3514 = vld [vmem:[#allocation3 + $0x58] sm:$0xff]
        %v3515 = vld [vmem:[#allocation3 + $0x60] sm:$0xff]
        %v3516 = vld [vmem:[#allocation3 + $0x68] sm:$0xff]
        %v3517 = vld [vmem:[#allocation3 + $0x70] sm:$0xff]
        %v3518 = vld [vmem:[#allocation3 + $0x78] sm:$0xff]
        %v3519 = vld [vmem:[#allocation3 + $0x80] sm:$0xff]
        %v3520 = vld [vmem:[#allocation3 + $0x88] sm:$0xff]
        %v3521 = vld [vmem:[#allocation3 + $0x90] sm:$0xff]
        %v3522 = vld [vmem:[#allocation3 + $0x98] sm:$0xff]
        %v3523 = vld [vmem:[#allocation3 + $0xa0] sm:$0xff]
        %v3524 = vld [vmem:[#allocation3 + $0xa8] sm:$0xff]
        %v3525 = vld [vmem:[#allocation3 + $0xb0] sm:$0xff]
        %v3526 = vld [vmem:[#allocation3 + $0xb8] sm:$0xff]
        %v3527 = vld [vmem:[#allocation3 + $0xc0] sm:$0xff]
        %v3528 = vld [vmem:[#allocation3 + $0xc8] sm:$0xff]
        %v3529 = vld [vmem:[#allocation3 + $0xd0] sm:$0xff]
        %v3530 = vld [vmem:[#allocation3 + $0xd8] sm:$0xff]
        %v3531 = vld [vmem:[#allocation3 + $0xe0] sm:$0xff]
        %v3532 = vld [vmem:[#allocation3 + $0xe8] sm:$0xff]
        %v3533 = vld [vmem:[#allocation3 + $0xf0] sm:$0xff]
        %v3534 = vld [vmem:[#allocation3 + $0xf8] sm:$0xff]
        %s3535 = scalar_lea.vmem [#allocation6], 128
        %v3536 = vld [vmem:[%s3535] sm:$0xff]
        %v3537 = vld [vmem:[%s3535 + $0x8] sm:$0xff]
        %v3538 = vld [vmem:[%s3535 + $0x10] sm:$0xff]
        %v3539 = vld [vmem:[%s3535 + $0x18] sm:$0xff]
        %v3540 = vld [vmem:[%s3535 + $0x20] sm:$0xff]
        %v3541 = vld [vmem:[%s3535 + $0x28] sm:$0xff]
        %v3542 = vld [vmem:[%s3535 + $0x30] sm:$0xff]
        %v3543 = vld [vmem:[%s3535 + $0x38] sm:$0xff]
        %v3544 = vld [vmem:[%s3535 + $0x40] sm:$0xff]
        %v3545 = vld [vmem:[%s3535 + $0x48] sm:$0xff]
        %v3546 = vld [vmem:[%s3535 + $0x50] sm:$0xff]
        %v3547 = vld [vmem:[%s3535 + $0x58] sm:$0xff]
        %v3548 = vld [vmem:[%s3535 + $0x60] sm:$0xff]
        %v3549 = vld [vmem:[%s3535 + $0x68] sm:$0xff]
        %v3550 = vld [vmem:[%s3535 + $0x70] sm:$0xff]
        %v3551 = vld [vmem:[%s3535 + $0x78] sm:$0xff]
        %3552 = vmatpush.msra.mxu0 %v3551
        %3553 = vmatpush.msra.mxu0 %v3550
        %3554 = vmatpush.msra.mxu0 %v3549
        %3555 = vmatpush.msra.mxu0 %v3548
        %3556 = vmatpush.msra.mxu0 %v3547
        %3557 = vmatpush.msra.mxu0 %v3546
        %3558 = vmatpush.msra.mxu0 %v3545
        %3559 = vmatpush.msra.mxu0 %v3544
        %3560 = vmatpush.msra.mxu0 %v3543
        %3561 = vmatpush.msra.mxu0 %v3542
        %3562 = vmatpush.msra.mxu0 %v3541
        %3563 = vmatpush.msra.mxu0 %v3540
        %3564 = vmatpush.msra.mxu0 %v3539
        %3565 = vmatpush.msra.mxu0 %v3538
        %3566 = vmatpush.msra.mxu0 %v3537
        %3567 = vmatpush.msra.mxu0 %v3536
        %3568 = vmatmul.f32.gmra.mxu0 %v3471
        %v3569 = vpop.f32.mrf.mxu0
        %v3570 = vadd.f32 0.0, %v3569
        %3571 = vmatmul.f32.gmra.mxu0 %v3472
        %v3572 = vpop.f32.mrf.mxu0
        %v3573 = vadd.f32 0.0, %v3572
        %3574 = vmatmul.f32.gmra.mxu0 %v3473
        %v3575 = vpop.f32.mrf.mxu0
        %v3576 = vadd.f32 0.0, %v3575
        %3577 = vmatmul.f32.gmra.mxu0 %v3474
        %v3578 = vpop.f32.mrf.mxu0
        %v3579 = vadd.f32 0.0, %v3578
        %3580 = vmatmul.f32.gmra.mxu0 %v3475
        %v3581 = vpop.f32.mrf.mxu0
        %v3582 = vadd.f32 0.0, %v3581
        %3583 = vmatmul.f32.gmra.mxu0 %v3476
        %v3584 = vpop.f32.mrf.mxu0
        %v3585 = vadd.f32 0.0, %v3584
        %3586 = vmatmul.f32.gmra.mxu0 %v3477
        %v3587 = vpop.f32.mrf.mxu0
        %v3588 = vadd.f32 0.0, %v3587
        %3589 = vmatmul.f32.gmra.mxu0 %v3478
        %v3590 = vpop.f32.mrf.mxu0
        %v3591 = vadd.f32 0.0, %v3590
        %3592 = vmatmul.f32.gmra.mxu0 %v3479
        %v3593 = vpop.f32.mrf.mxu0
        %v3594 = vadd.f32 0.0, %v3593
        %3595 = vmatmul.f32.gmra.mxu0 %v3480
        %v3596 = vpop.f32.mrf.mxu0
        %v3597 = vadd.f32 0.0, %v3596
        %3598 = vmatmul.f32.gmra.mxu0 %v3481
        %v3599 = vpop.f32.mrf.mxu0
        %v3600 = vadd.f32 0.0, %v3599
        %3601 = vmatmul.f32.gmra.mxu0 %v3482
        %v3602 = vpop.f32.mrf.mxu0
        %v3603 = vadd.f32 0.0, %v3602
        %3604 = vmatmul.f32.gmra.mxu0 %v3483
        %v3605 = vpop.f32.mrf.mxu0
        %v3606 = vadd.f32 0.0, %v3605
        %3607 = vmatmul.f32.gmra.mxu0 %v3484
        %v3608 = vpop.f32.mrf.mxu0
        %v3609 = vadd.f32 0.0, %v3608
        %3610 = vmatmul.f32.gmra.mxu0 %v3485
        %v3611 = vpop.f32.mrf.mxu0
        %v3612 = vadd.f32 0.0, %v3611
        %3613 = vmatmul.f32.gmra.mxu0 %v3486
        %v3614 = vpop.f32.mrf.mxu0
        %v3615 = vadd.f32 0.0, %v3614
        %3616 = vmatmul.f32.gmra.mxu0 %v3487
        %v3617 = vpop.f32.mrf.mxu0
        %v3618 = vadd.f32 0.0, %v3617
        %3619 = vmatmul.f32.gmra.mxu0 %v3488
        %v3620 = vpop.f32.mrf.mxu0
        %v3621 = vadd.f32 0.0, %v3620
        %3622 = vmatmul.f32.gmra.mxu0 %v3489
        %v3623 = vpop.f32.mrf.mxu0
        %v3624 = vadd.f32 0.0, %v3623
        %3625 = vmatmul.f32.gmra.mxu0 %v3490
        %v3626 = vpop.f32.mrf.mxu0
        %v3627 = vadd.f32 0.0, %v3626
        %3628 = vmatmul.f32.gmra.mxu0 %v3491
        %v3629 = vpop.f32.mrf.mxu0
        %v3630 = vadd.f32 0.0, %v3629
        %3631 = vmatmul.f32.gmra.mxu0 %v3492
        %v3632 = vpop.f32.mrf.mxu0
        %v3633 = vadd.f32 0.0, %v3632
        %3634 = vmatmul.f32.gmra.mxu0 %v3493
        %v3635 = vpop.f32.mrf.mxu0
        %v3636 = vadd.f32 0.0, %v3635
        %3637 = vmatmul.f32.gmra.mxu0 %v3494
        %v3638 = vpop.f32.mrf.mxu0
        %v3639 = vadd.f32 0.0, %v3638
        %3640 = vmatmul.f32.gmra.mxu0 %v3495
        %v3641 = vpop.f32.mrf.mxu0
        %v3642 = vadd.f32 0.0, %v3641
        %3643 = vmatmul.f32.gmra.mxu0 %v3496
        %v3644 = vpop.f32.mrf.mxu0
        %v3645 = vadd.f32 0.0, %v3644
        %3646 = vmatmul.f32.gmra.mxu0 %v3497
        %v3647 = vpop.f32.mrf.mxu0
        %v3648 = vadd.f32 0.0, %v3647
        %3649 = vmatmul.f32.gmra.mxu0 %v3498
        %v3650 = vpop.f32.mrf.mxu0
        %v3651 = vadd.f32 0.0, %v3650
        %3652 = vmatmul.f32.gmra.mxu0 %v3499
        %v3653 = vpop.f32.mrf.mxu0
        %v3654 = vadd.f32 0.0, %v3653
        %3655 = vmatmul.f32.gmra.mxu0 %v3500
        %v3656 = vpop.f32.mrf.mxu0
        %v3657 = vadd.f32 0.0, %v3656
        %3658 = vmatmul.f32.gmra.mxu0 %v3501
        %v3659 = vpop.f32.mrf.mxu0
        %v3660 = vadd.f32 0.0, %v3659
        %3661 = vmatmul.f32.gmra.mxu0 %v3502
        %v3662 = vpop.f32.mrf.mxu0
        %v3663 = vadd.f32 0.0, %v3662
        %3664 = vdwg.mxu0
        %v3665 = vadd.f32 %v3503, %v3570
        %v3666 = vadd.f32 %v3504, %v3573
        %v3667 = vadd.f32 %v3505, %v3576
        %v3668 = vadd.f32 %v3506, %v3579
        %v3669 = vadd.f32 %v3507, %v3582
        %v3670 = vadd.f32 %v3508, %v3585
        %v3671 = vadd.f32 %v3509, %v3588
        %v3672 = vadd.f32 %v3510, %v3591
        %v3673 = vadd.f32 %v3511, %v3594
        %v3674 = vadd.f32 %v3512, %v3597
        %v3675 = vadd.f32 %v3513, %v3600
        %v3676 = vadd.f32 %v3514, %v3603
        %v3677 = vadd.f32 %v3515, %v3606
        %v3678 = vadd.f32 %v3516, %v3609
        %v3679 = vadd.f32 %v3517, %v3612
        %v3680 = vadd.f32 %v3518, %v3615
        %v3681 = vadd.f32 %v3519, %v3618
        %v3682 = vadd.f32 %v3520, %v3621
        %v3683 = vadd.f32 %v3521, %v3624
        %v3684 = vadd.f32 %v3522, %v3627
        %v3685 = vadd.f32 %v3523, %v3630
        %v3686 = vadd.f32 %v3524, %v3633
        %v3687 = vadd.f32 %v3525, %v3636
        %v3688 = vadd.f32 %v3526, %v3639
        %v3689 = vadd.f32 %v3527, %v3642
        %v3690 = vadd.f32 %v3528, %v3645
        %v3691 = vadd.f32 %v3529, %v3648
        %v3692 = vadd.f32 %v3530, %v3651
        %v3693 = vadd.f32 %v3531, %v3654
        %v3694 = vadd.f32 %v3532, %v3657
        %v3695 = vadd.f32 %v3533, %v3660
        %v3696 = vadd.f32 %v3534, %v3663
        %3697 = vst [vmem:[#allocation3] sm:$0xff] %v3665
        %3698 = vst [vmem:[#allocation3 + $0x8] sm:$0xff] %v3666
        %3699 = vst [vmem:[#allocation3 + $0x10] sm:$0xff] %v3667
        %3700 = vst [vmem:[#allocation3 + $0x18] sm:$0xff] %v3668
        %3701 = vst [vmem:[#allocation3 + $0x20] sm:$0xff] %v3669
        %3702 = vst [vmem:[#allocation3 + $0x28] sm:$0xff] %v3670
        %3703 = vst [vmem:[#allocation3 + $0x30] sm:$0xff] %v3671
        %3704 = vst [vmem:[#allocation3 + $0x38] sm:$0xff] %v3672
        %3705 = vst [vmem:[#allocation3 + $0x40] sm:$0xff] %v3673
        %3706 = vst [vmem:[#allocation3 + $0x48] sm:$0xff] %v3674
        %3707 = vst [vmem:[#allocation3 + $0x50] sm:$0xff] %v3675
        %3708 = vst [vmem:[#allocation3 + $0x58] sm:$0xff] %v3676
        %3709 = vst [vmem:[#allocation3 + $0x60] sm:$0xff] %v3677
        %3710 = vst [vmem:[#allocation3 + $0x68] sm:$0xff] %v3678
        %3711 = vst [vmem:[#allocation3 + $0x70] sm:$0xff] %v3679
        %3712 = vst [vmem:[#allocation3 + $0x78] sm:$0xff] %v3680
        %3713 = vst [vmem:[#allocation3 + $0x80] sm:$0xff] %v3681
        %3714 = vst [vmem:[#allocation3 + $0x88] sm:$0xff] %v3682
        %3715 = vst [vmem:[#allocation3 + $0x90] sm:$0xff] %v3683
        %3716 = vst [vmem:[#allocation3 + $0x98] sm:$0xff] %v3684
        %3717 = vst [vmem:[#allocation3 + $0xa0] sm:$0xff] %v3685
        %3718 = vst [vmem:[#allocation3 + $0xa8] sm:$0xff] %v3686
        %3719 = vst [vmem:[#allocation3 + $0xb0] sm:$0xff] %v3687
        %3720 = vst [vmem:[#allocation3 + $0xb8] sm:$0xff] %v3688
        %3721 = vst [vmem:[#allocation3 + $0xc0] sm:$0xff] %v3689
        %3722 = vst [vmem:[#allocation3 + $0xc8] sm:$0xff] %v3690
        %3723 = vst [vmem:[#allocation3 + $0xd0] sm:$0xff] %v3691
        %3724 = vst [vmem:[#allocation3 + $0xd8] sm:$0xff] %v3692
        %3725 = vst [vmem:[#allocation3 + $0xe0] sm:$0xff] %v3693
        %3726 = vst [vmem:[#allocation3 + $0xe8] sm:$0xff] %v3694
        %3727 = vst [vmem:[#allocation3 + $0xf0] sm:$0xff] %v3695
        %3728 = vst [vmem:[#allocation3 + $0xf8] sm:$0xff] %v3696
        %v3729 = vld [vmem:[#allocation2 + $0x2] sm:$0xff]
        %v3730 = vld [vmem:[#allocation2 + $0xa] sm:$0xff]
        %v3731 = vld [vmem:[#allocation2 + $0x1a] sm:$0xff]
        %v3732 = vld [vmem:[#allocation2 + $0x22] sm:$0xff]
        %v3733 = vld [vmem:[#allocation2 + $0x32] sm:$0xff]
        %v3734 = vld [vmem:[#allocation2 + $0x3a] sm:$0xff]
        %v3735 = vld [vmem:[#allocation2 + $0x4a] sm:$0xff]
        %v3736 = vld [vmem:[#allocation2 + $0x52] sm:$0xff]
        %v3737 = vld [vmem:[#allocation2 + $0x62] sm:$0xff]
        %v3738 = vld [vmem:[#allocation2 + $0x6a] sm:$0xff]
        %v3739 = vld [vmem:[#allocation2 + $0x7a] sm:$0xff]
        %v3740 = vld [vmem:[#allocation2 + $0x82] sm:$0xff]
        %v3741 = vld [vmem:[#allocation2 + $0x92] sm:$0xff]
        %v3742 = vld [vmem:[#allocation2 + $0x9a] sm:$0xff]
        %v3743 = vld [vmem:[#allocation2 + $0xaa] sm:$0xff]
        %v3744 = vld [vmem:[#allocation2 + $0xb2] sm:$0xff]
        %v3745 = vld [vmem:[#allocation2 + $0xc2] sm:$0xff]
        %v3746 = vld [vmem:[#allocation2 + $0xca] sm:$0xff]
        %v3747 = vld [vmem:[#allocation2 + $0xda] sm:$0xff]
        %v3748 = vld [vmem:[#allocation2 + $0xe2] sm:$0xff]
        %v3749 = vld [vmem:[#allocation2 + $0xf2] sm:$0xff]
        %v3750 = vld [vmem:[#allocation2 + $0xfa] sm:$0xff]
        %v3751 = vld [vmem:[#allocation2 + $0x10a] sm:$0xff]
        %v3752 = vld [vmem:[#allocation2 + $0x112] sm:$0xff]
        %v3753 = vld [vmem:[#allocation2 + $0x122] sm:$0xff]
        %v3754 = vld [vmem:[#allocation2 + $0x12a] sm:$0xff]
        %v3755 = vld [vmem:[#allocation2 + $0x13a] sm:$0xff]
        %v3756 = vld [vmem:[#allocation2 + $0x142] sm:$0xff]
        %v3757 = vld [vmem:[#allocation2 + $0x152] sm:$0xff]
        %v3758 = vld [vmem:[#allocation2 + $0x15a] sm:$0xff]
        %v3759 = vld [vmem:[#allocation2 + $0x16a] sm:$0xff]
        %v3760 = vld [vmem:[#allocation2 + $0x172] sm:$0xff]
        %v3761 = vld [vmem:[#allocation3] sm:$0xff]
        %v3762 = vld [vmem:[#allocation3 + $0x8] sm:$0xff]
        %v3763 = vld [vmem:[#allocation3 + $0x10] sm:$0xff]
        %v3764 = vld [vmem:[#allocation3 + $0x18] sm:$0xff]
        %v3765 = vld [vmem:[#allocation3 + $0x20] sm:$0xff]
        %v3766 = vld [vmem:[#allocation3 + $0x28] sm:$0xff]
        %v3767 = vld [vmem:[#allocation3 + $0x30] sm:$0xff]
        %v3768 = vld [vmem:[#allocation3 + $0x38] sm:$0xff]
        %v3769 = vld [vmem:[#allocation3 + $0x40] sm:$0xff]
        %v3770 = vld [vmem:[#allocation3 + $0x48] sm:$0xff]
        %v3771 = vld [vmem:[#allocation3 + $0x50] sm:$0xff]
        %v3772 = vld [vmem:[#allocation3 + $0x58] sm:$0xff]
        %v3773 = vld [vmem:[#allocation3 + $0x60] sm:$0xff]
        %v3774 = vld [vmem:[#allocation3 + $0x68] sm:$0xff]
        %v3775 = vld [vmem:[#allocation3 + $0x70] sm:$0xff]
        %v3776 = vld [vmem:[#allocation3 + $0x78] sm:$0xff]
        %v3777 = vld [vmem:[#allocation3 + $0x80] sm:$0xff]
        %v3778 = vld [vmem:[#allocation3 + $0x88] sm:$0xff]
        %v3779 = vld [vmem:[#allocation3 + $0x90] sm:$0xff]
        %v3780 = vld [vmem:[#allocation3 + $0x98] sm:$0xff]
        %v3781 = vld [vmem:[#allocation3 + $0xa0] sm:$0xff]
        %v3782 = vld [vmem:[#allocation3 + $0xa8] sm:$0xff]
        %v3783 = vld [vmem:[#allocation3 + $0xb0] sm:$0xff]
        %v3784 = vld [vmem:[#allocation3 + $0xb8] sm:$0xff]
        %v3785 = vld [vmem:[#allocation3 + $0xc0] sm:$0xff]
        %v3786 = vld [vmem:[#allocation3 + $0xc8] sm:$0xff]
        %v3787 = vld [vmem:[#allocation3 + $0xd0] sm:$0xff]
        %v3788 = vld [vmem:[#allocation3 + $0xd8] sm:$0xff]
        %v3789 = vld [vmem:[#allocation3 + $0xe0] sm:$0xff]
        %v3790 = vld [vmem:[#allocation3 + $0xe8] sm:$0xff]
        %v3791 = vld [vmem:[#allocation3 + $0xf0] sm:$0xff]
        %v3792 = vld [vmem:[#allocation3 + $0xf8] sm:$0xff]
        %s3793 = scalar_lea.vmem [#allocation6], 256
        %v3794 = vld [vmem:[%s3793] sm:$0xff]
        %v3795 = vld [vmem:[%s3793 + $0x8] sm:$0xff]
        %v3796 = vld [vmem:[%s3793 + $0x10] sm:$0xff]
        %v3797 = vld [vmem:[%s3793 + $0x18] sm:$0xff]
        %v3798 = vld [vmem:[%s3793 + $0x20] sm:$0xff]
        %v3799 = vld [vmem:[%s3793 + $0x28] sm:$0xff]
        %v3800 = vld [vmem:[%s3793 + $0x30] sm:$0xff]
        %v3801 = vld [vmem:[%s3793 + $0x38] sm:$0xff]
        %v3802 = vld [vmem:[%s3793 + $0x40] sm:$0xff]
        %v3803 = vld [vmem:[%s3793 + $0x48] sm:$0xff]
        %v3804 = vld [vmem:[%s3793 + $0x50] sm:$0xff]
        %v3805 = vld [vmem:[%s3793 + $0x58] sm:$0xff]
        %v3806 = vld [vmem:[%s3793 + $0x60] sm:$0xff]
        %v3807 = vld [vmem:[%s3793 + $0x68] sm:$0xff]
        %v3808 = vld [vmem:[%s3793 + $0x70] sm:$0xff]
        %v3809 = vld [vmem:[%s3793 + $0x78] sm:$0xff]
        %3810 = vmatpush.msra.mxu0 %v3809
        %3811 = vmatpush.msra.mxu0 %v3808
        %3812 = vmatpush.msra.mxu0 %v3807
        %3813 = vmatpush.msra.mxu0 %v3806
        %3814 = vmatpush.msra.mxu0 %v3805
        %3815 = vmatpush.msra.mxu0 %v3804
        %3816 = vmatpush.msra.mxu0 %v3803
        %3817 = vmatpush.msra.mxu0 %v3802
        %3818 = vmatpush.msra.mxu0 %v3801
        %3819 = vmatpush.msra.mxu0 %v3800
        %3820 = vmatpush.msra.mxu0 %v3799
        %3821 = vmatpush.msra.mxu0 %v3798
        %3822 = vmatpush.msra.mxu0 %v3797
        %3823 = vmatpush.msra.mxu0 %v3796
        %3824 = vmatpush.msra.mxu0 %v3795
        %3825 = vmatpush.msra.mxu0 %v3794
        %3826 = vmatmul.f32.gmra.mxu0 %v3729
        %v3827 = vpop.f32.mrf.mxu0
        %v3828 = vadd.f32 0.0, %v3827
        %3829 = vmatmul.f32.gmra.mxu0 %v3730
        %v3830 = vpop.f32.mrf.mxu0
        %v3831 = vadd.f32 0.0, %v3830
        %3832 = vmatmul.f32.gmra.mxu0 %v3731
        %v3833 = vpop.f32.mrf.mxu0
        %v3834 = vadd.f32 0.0, %v3833
        %3835 = vmatmul.f32.gmra.mxu0 %v3732
        %v3836 = vpop.f32.mrf.mxu0
        %v3837 = vadd.f32 0.0, %v3836
        %3838 = vmatmul.f32.gmra.mxu0 %v3733
        %v3839 = vpop.f32.mrf.mxu0
        %v3840 = vadd.f32 0.0, %v3839
        %3841 = vmatmul.f32.gmra.mxu0 %v3734
        %v3842 = vpop.f32.mrf.mxu0
        %v3843 = vadd.f32 0.0, %v3842
        %3844 = vmatmul.f32.gmra.mxu0 %v3735
        %v3845 = vpop.f32.mrf.mxu0
        %v3846 = vadd.f32 0.0, %v3845
        %3847 = vmatmul.f32.gmra.mxu0 %v3736
        %v3848 = vpop.f32.mrf.mxu0
        %v3849 = vadd.f32 0.0, %v3848
        %3850 = vmatmul.f32.gmra.mxu0 %v3737
        %v3851 = vpop.f32.mrf.mxu0
        %v3852 = vadd.f32 0.0, %v3851
        %3853 = vmatmul.f32.gmra.mxu0 %v3738
        %v3854 = vpop.f32.mrf.mxu0
        %v3855 = vadd.f32 0.0, %v3854
        %3856 = vmatmul.f32.gmra.mxu0 %v3739
        %v3857 = vpop.f32.mrf.mxu0
        %v3858 = vadd.f32 0.0, %v3857
        %3859 = vmatmul.f32.gmra.mxu0 %v3740
        %v3860 = vpop.f32.mrf.mxu0
        %v3861 = vadd.f32 0.0, %v3860
        %3862 = vmatmul.f32.gmra.mxu0 %v3741
        %v3863 = vpop.f32.mrf.mxu0
        %v3864 = vadd.f32 0.0, %v3863
        %3865 = vmatmul.f32.gmra.mxu0 %v3742
        %v3866 = vpop.f32.mrf.mxu0
        %v3867 = vadd.f32 0.0, %v3866
        %3868 = vmatmul.f32.gmra.mxu0 %v3743
        %v3869 = vpop.f32.mrf.mxu0
        %v3870 = vadd.f32 0.0, %v3869
        %3871 = vmatmul.f32.gmra.mxu0 %v3744
        %v3872 = vpop.f32.mrf.mxu0
        %v3873 = vadd.f32 0.0, %v3872
        %3874 = vmatmul.f32.gmra.mxu0 %v3745
        %v3875 = vpop.f32.mrf.mxu0
        %v3876 = vadd.f32 0.0, %v3875
        %3877 = vmatmul.f32.gmra.mxu0 %v3746
        %v3878 = vpop.f32.mrf.mxu0
        %v3879 = vadd.f32 0.0, %v3878
        %3880 = vmatmul.f32.gmra.mxu0 %v3747
        %v3881 = vpop.f32.mrf.mxu0
        %v3882 = vadd.f32 0.0, %v3881
        %3883 = vmatmul.f32.gmra.mxu0 %v3748
        %v3884 = vpop.f32.mrf.mxu0
        %v3885 = vadd.f32 0.0, %v3884
        %3886 = vmatmul.f32.gmra.mxu0 %v3749
        %v3887 = vpop.f32.mrf.mxu0
        %v3888 = vadd.f32 0.0, %v3887
        %3889 = vmatmul.f32.gmra.mxu0 %v3750
        %v3890 = vpop.f32.mrf.mxu0
        %v3891 = vadd.f32 0.0, %v3890
        %3892 = vmatmul.f32.gmra.mxu0 %v3751
        %v3893 = vpop.f32.mrf.mxu0
        %v3894 = vadd.f32 0.0, %v3893
        %3895 = vmatmul.f32.gmra.mxu0 %v3752
        %v3896 = vpop.f32.mrf.mxu0
        %v3897 = vadd.f32 0.0, %v3896
        %3898 = vmatmul.f32.gmra.mxu0 %v3753
        %v3899 = vpop.f32.mrf.mxu0
        %v3900 = vadd.f32 0.0, %v3899
        %3901 = vmatmul.f32.gmra.mxu0 %v3754
        %v3902 = vpop.f32.mrf.mxu0
        %v3903 = vadd.f32 0.0, %v3902
        %3904 = vmatmul.f32.gmra.mxu0 %v3755
        %v3905 = vpop.f32.mrf.mxu0
        %v3906 = vadd.f32 0.0, %v3905
        %3907 = vmatmul.f32.gmra.mxu0 %v3756
        %v3908 = vpop.f32.mrf.mxu0
        %v3909 = vadd.f32 0.0, %v3908
        %3910 = vmatmul.f32.gmra.mxu0 %v3757
        %v3911 = vpop.f32.mrf.mxu0
        %v3912 = vadd.f32 0.0, %v3911
        %3913 = vmatmul.f32.gmra.mxu0 %v3758
        %v3914 = vpop.f32.mrf.mxu0
        %v3915 = vadd.f32 0.0, %v3914
        %3916 = vmatmul.f32.gmra.mxu0 %v3759
        %v3917 = vpop.f32.mrf.mxu0
        %v3918 = vadd.f32 0.0, %v3917
        %3919 = vmatmul.f32.gmra.mxu0 %v3760
        %v3920 = vpop.f32.mrf.mxu0
        %v3921 = vadd.f32 0.0, %v3920
        %3922 = vdwg.mxu0
        %v3923 = vadd.f32 %v3761, %v3828
        %v3924 = vadd.f32 %v3762, %v3831
        %v3925 = vadd.f32 %v3763, %v3834
        %v3926 = vadd.f32 %v3764, %v3837
        %v3927 = vadd.f32 %v3765, %v3840
        %v3928 = vadd.f32 %v3766, %v3843
        %v3929 = vadd.f32 %v3767, %v3846
        %v3930 = vadd.f32 %v3768, %v3849
        %v3931 = vadd.f32 %v3769, %v3852
        %v3932 = vadd.f32 %v3770, %v3855
        %v3933 = vadd.f32 %v3771, %v3858
        %v3934 = vadd.f32 %v3772, %v3861
        %v3935 = vadd.f32 %v3773, %v3864
        %v3936 = vadd.f32 %v3774, %v3867
        %v3937 = vadd.f32 %v3775, %v3870
        %v3938 = vadd.f32 %v3776, %v3873
        %v3939 = vadd.f32 %v3777, %v3876
        %v3940 = vadd.f32 %v3778, %v3879
        %v3941 = vadd.f32 %v3779, %v3882
        %v3942 = vadd.f32 %v3780, %v3885
        %v3943 = vadd.f32 %v3781, %v3888
        %v3944 = vadd.f32 %v3782, %v3891
        %v3945 = vadd.f32 %v3783, %v3894
        %v3946 = vadd.f32 %v3784, %v3897
        %v3947 = vadd.f32 %v3785, %v3900
        %v3948 = vadd.f32 %v3786, %v3903
        %v3949 = vadd.f32 %v3787, %v3906
        %v3950 = vadd.f32 %v3788, %v3909
        %v3951 = vadd.f32 %v3789, %v3912
        %v3952 = vadd.f32 %v3790, %v3915
        %v3953 = vadd.f32 %v3791, %v3918
        %v3954 = vadd.f32 %v3792, %v3921
        %3955 = vst [vmem:[#allocation3] sm:$0xff] %v3923
        %3956 = vst [vmem:[#allocation3 + $0x8] sm:$0xff] %v3924
        %3957 = vst [vmem:[#allocation3 + $0x10] sm:$0xff] %v3925
        %3958 = vst [vmem:[#allocation3 + $0x18] sm:$0xff] %v3926
        %3959 = vst [vmem:[#allocation3 + $0x20] sm:$0xff] %v3927
        %3960 = vst [vmem:[#allocation3 + $0x28] sm:$0xff] %v3928
        %3961 = vst [vmem:[#allocation3 + $0x30] sm:$0xff] %v3929
        %3962 = vst [vmem:[#allocation3 + $0x38] sm:$0xff] %v3930
        %3963 = vst [vmem:[#allocation3 + $0x40] sm:$0xff] %v3931
        %3964 = vst [vmem:[#allocation3 + $0x48] sm:$0xff] %v3932
        %3965 = vst [vmem:[#allocation3 + $0x50] sm:$0xff] %v3933
        %3966 = vst [vmem:[#allocation3 + $0x58] sm:$0xff] %v3934
        %3967 = vst [vmem:[#allocation3 + $0x60] sm:$0xff] %v3935
        %3968 = vst [vmem:[#allocation3 + $0x68] sm:$0xff] %v3936
        %3969 = vst [vmem:[#allocation3 + $0x70] sm:$0xff] %v3937
        %3970 = vst [vmem:[#allocation3 + $0x78] sm:$0xff] %v3938
        %3971 = vst [vmem:[#allocation3 + $0x80] sm:$0xff] %v3939
        %3972 = vst [vmem:[#allocation3 + $0x88] sm:$0xff] %v3940
        %3973 = vst [vmem:[#allocation3 + $0x90] sm:$0xff] %v3941
        %3974 = vst [vmem:[#allocation3 + $0x98] sm:$0xff] %v3942
        %3975 = vst [vmem:[#allocation3 + $0xa0] sm:$0xff] %v3943
        %3976 = vst [vmem:[#allocation3 + $0xa8] sm:$0xff] %v3944
        %3977 = vst [vmem:[#allocation3 + $0xb0] sm:$0xff] %v3945
        %3978 = vst [vmem:[#allocation3 + $0xb8] sm:$0xff] %v3946
        %3979 = vst [vmem:[#allocation3 + $0xc0] sm:$0xff] %v3947
        %3980 = vst [vmem:[#allocation3 + $0xc8] sm:$0xff] %v3948
        %3981 = vst [vmem:[#allocation3 + $0xd0] sm:$0xff] %v3949
        %3982 = vst [vmem:[#allocation3 + $0xd8] sm:$0xff] %v3950
        %3983 = vst [vmem:[#allocation3 + $0xe0] sm:$0xff] %v3951
        %3984 = vst [vmem:[#allocation3 + $0xe8] sm:$0xff] %v3952
        %3985 = vst [vmem:[#allocation3 + $0xf0] sm:$0xff] %v3953
        %3986 = vst [vmem:[#allocation3 + $0xf8] sm:$0xff] %v3954
        %v3987 = vld [vmem:[%s345] sm:$0xff]
        %v3988 = vld [vmem:[%s345 + $0x8] sm:$0xff]
        %v3989 = vld [vmem:[%s345 + $0x18] sm:$0xff]
        %v3990 = vld [vmem:[%s345 + $0x20] sm:$0xff]
        %v3991 = vld [vmem:[%s345 + $0x30] sm:$0xff]
        %v3992 = vld [vmem:[%s345 + $0x38] sm:$0xff]
        %v3993 = vld [vmem:[%s345 + $0x48] sm:$0xff]
        %v3994 = vld [vmem:[%s345 + $0x50] sm:$0xff]
        %v3995 = vld [vmem:[%s345 + $0x60] sm:$0xff]
        %v3996 = vld [vmem:[%s345 + $0x68] sm:$0xff]
        %v3997 = vld [vmem:[%s345 + $0x78] sm:$0xff]
        %v3998 = vld [vmem:[%s345 + $0x80] sm:$0xff]
        %v3999 = vld [vmem:[%s345 + $0x90] sm:$0xff]
        %v4000 = vld [vmem:[%s345 + $0x98] sm:$0xff]
        %v4001 = vld [vmem:[%s345 + $0xa8] sm:$0xff]
        %v4002 = vld [vmem:[%s345 + $0xb0] sm:$0xff]
        %v4003 = vld [vmem:[%s345 + $0xc0] sm:$0xff]
        %v4004 = vld [vmem:[%s345 + $0xc8] sm:$0xff]
        %v4005 = vld [vmem:[%s345 + $0xd8] sm:$0xff]
        %v4006 = vld [vmem:[%s345 + $0xe0] sm:$0xff]
        %v4007 = vld [vmem:[%s345 + $0xf0] sm:$0xff]
        %v4008 = vld [vmem:[%s345 + $0xf8] sm:$0xff]
        %v4009 = vld [vmem:[%s345 + $0x108] sm:$0xff]
        %v4010 = vld [vmem:[%s345 + $0x110] sm:$0xff]
        %v4011 = vld [vmem:[%s345 + $0x120] sm:$0xff]
        %v4012 = vld [vmem:[%s345 + $0x128] sm:$0xff]
        %v4013 = vld [vmem:[%s345 + $0x138] sm:$0xff]
        %v4014 = vld [vmem:[%s345 + $0x140] sm:$0xff]
        %v4015 = vld [vmem:[%s345 + $0x150] sm:$0xff]
        %v4016 = vld [vmem:[%s345 + $0x158] sm:$0xff]
        %v4017 = vld [vmem:[%s345 + $0x168] sm:$0xff]
        %v4018 = vld [vmem:[%s345 + $0x170] sm:$0xff]
        %v4019 = vld [vmem:[#allocation3] sm:$0xff]
        %v4020 = vld [vmem:[#allocation3 + $0x8] sm:$0xff]
        %v4021 = vld [vmem:[#allocation3 + $0x10] sm:$0xff]
        %v4022 = vld [vmem:[#allocation3 + $0x18] sm:$0xff]
        %v4023 = vld [vmem:[#allocation3 + $0x20] sm:$0xff]
        %v4024 = vld [vmem:[#allocation3 + $0x28] sm:$0xff]
        %v4025 = vld [vmem:[#allocation3 + $0x30] sm:$0xff]
        %v4026 = vld [vmem:[#allocation3 + $0x38] sm:$0xff]
        %v4027 = vld [vmem:[#allocation3 + $0x40] sm:$0xff]
        %v4028 = vld [vmem:[#allocation3 + $0x48] sm:$0xff]
        %v4029 = vld [vmem:[#allocation3 + $0x50] sm:$0xff]
        %v4030 = vld [vmem:[#allocation3 + $0x58] sm:$0xff]
        %v4031 = vld [vmem:[#allocation3 + $0x60] sm:$0xff]
        %v4032 = vld [vmem:[#allocation3 + $0x68] sm:$0xff]
        %v4033 = vld [vmem:[#allocation3 + $0x70] sm:$0xff]
        %v4034 = vld [vmem:[#allocation3 + $0x78] sm:$0xff]
        %v4035 = vld [vmem:[#allocation3 + $0x80] sm:$0xff]
        %v4036 = vld [vmem:[#allocation3 + $0x88] sm:$0xff]
        %v4037 = vld [vmem:[#allocation3 + $0x90] sm:$0xff]
        %v4038 = vld [vmem:[#allocation3 + $0x98] sm:$0xff]
        %v4039 = vld [vmem:[#allocation3 + $0xa0] sm:$0xff]
        %v4040 = vld [vmem:[#allocation3 + $0xa8] sm:$0xff]
        %v4041 = vld [vmem:[#allocation3 + $0xb0] sm:$0xff]
        %v4042 = vld [vmem:[#allocation3 + $0xb8] sm:$0xff]
        %v4043 = vld [vmem:[#allocation3 + $0xc0] sm:$0xff]
        %v4044 = vld [vmem:[#allocation3 + $0xc8] sm:$0xff]
        %v4045 = vld [vmem:[#allocation3 + $0xd0] sm:$0xff]
        %v4046 = vld [vmem:[#allocation3 + $0xd8] sm:$0xff]
        %v4047 = vld [vmem:[#allocation3 + $0xe0] sm:$0xff]
        %v4048 = vld [vmem:[#allocation3 + $0xe8] sm:$0xff]
        %v4049 = vld [vmem:[#allocation3 + $0xf0] sm:$0xff]
        %v4050 = vld [vmem:[#allocation3 + $0xf8] sm:$0xff]
        %s4051 = scalar_lea.vmem [#allocation6], 384
        %v4052 = vld [vmem:[%s4051] sm:$0xff]
        %v4053 = vld [vmem:[%s4051 + $0x8] sm:$0xff]
        %v4054 = vld [vmem:[%s4051 + $0x10] sm:$0xff]
        %v4055 = vld [vmem:[%s4051 + $0x18] sm:$0xff]
        %v4056 = vld [vmem:[%s4051 + $0x20] sm:$0xff]
        %v4057 = vld [vmem:[%s4051 + $0x28] sm:$0xff]
        %v4058 = vld [vmem:[%s4051 + $0x30] sm:$0xff]
        %v4059 = vld [vmem:[%s4051 + $0x38] sm:$0xff]
        %v4060 = vld [vmem:[%s4051 + $0x40] sm:$0xff]
        %v4061 = vld [vmem:[%s4051 + $0x48] sm:$0xff]
        %v4062 = vld [vmem:[%s4051 + $0x50] sm:$0xff]
        %v4063 = vld [vmem:[%s4051 + $0x58] sm:$0xff]
        %v4064 = vld [vmem:[%s4051 + $0x60] sm:$0xff]
        %v4065 = vld [vmem:[%s4051 + $0x68] sm:$0xff]
        %v4066 = vld [vmem:[%s4051 + $0x70] sm:$0xff]
        %v4067 = vld [vmem:[%s4051 + $0x78] sm:$0xff]
        %4068 = vmatpush.msra.mxu0 %v4067
        %4069 = vmatpush.msra.mxu0 %v4066
        %4070 = vmatpush.msra.mxu0 %v4065
        %4071 = vmatpush.msra.mxu0 %v4064
        %4072 = vmatpush.msra.mxu0 %v4063
        %4073 = vmatpush.msra.mxu0 %v4062
        %4074 = vmatpush.msra.mxu0 %v4061
        %4075 = vmatpush.msra.mxu0 %v4060
        %4076 = vmatpush.msra.mxu0 %v4059
        %4077 = vmatpush.msra.mxu0 %v4058
        %4078 = vmatpush.msra.mxu0 %v4057
        %4079 = vmatpush.msra.mxu0 %v4056
        %4080 = vmatpush.msra.mxu0 %v4055
        %4081 = vmatpush.msra.mxu0 %v4054
        %4082 = vmatpush.msra.mxu0 %v4053
        %4083 = vmatpush.msra.mxu0 %v4052
        %4084 = vmatmul.f32.gmra.mxu0 %v3987
        %v4085 = vpop.f32.mrf.mxu0
        %v4086 = vadd.f32 0.0, %v4085
        %4087 = vmatmul.f32.gmra.mxu0 %v3988
        %v4088 = vpop.f32.mrf.mxu0
        %v4089 = vadd.f32 0.0, %v4088
        %4090 = vmatmul.f32.gmra.mxu0 %v3989
        %v4091 = vpop.f32.mrf.mxu0
        %v4092 = vadd.f32 0.0, %v4091
        %4093 = vmatmul.f32.gmra.mxu0 %v3990
        %v4094 = vpop.f32.mrf.mxu0
        %v4095 = vadd.f32 0.0, %v4094
        %4096 = vmatmul.f32.gmra.mxu0 %v3991
        %v4097 = vpop.f32.mrf.mxu0
        %v4098 = vadd.f32 0.0, %v4097
        %4099 = vmatmul.f32.gmra.mxu0 %v3992
        %v4100 = vpop.f32.mrf.mxu0
        %v4101 = vadd.f32 0.0, %v4100
        %4102 = vmatmul.f32.gmra.mxu0 %v3993
        %v4103 = vpop.f32.mrf.mxu0
        %v4104 = vadd.f32 0.0, %v4103
        %4105 = vmatmul.f32.gmra.mxu0 %v3994
        %v4106 = vpop.f32.mrf.mxu0
        %v4107 = vadd.f32 0.0, %v4106
        %4108 = vmatmul.f32.gmra.mxu0 %v3995
        %v4109 = vpop.f32.mrf.mxu0
        %v4110 = vadd.f32 0.0, %v4109
        %4111 = vmatmul.f32.gmra.mxu0 %v3996
        %v4112 = vpop.f32.mrf.mxu0
        %v4113 = vadd.f32 0.0, %v4112
        %4114 = vmatmul.f32.gmra.mxu0 %v3997
        %v4115 = vpop.f32.mrf.mxu0
        %v4116 = vadd.f32 0.0, %v4115
        %4117 = vmatmul.f32.gmra.mxu0 %v3998
        %v4118 = vpop.f32.mrf.mxu0
        %v4119 = vadd.f32 0.0, %v4118
        %4120 = vmatmul.f32.gmra.mxu0 %v3999
        %v4121 = vpop.f32.mrf.mxu0
        %v4122 = vadd.f32 0.0, %v4121
        %4123 = vmatmul.f32.gmra.mxu0 %v4000
        %v4124 = vpop.f32.mrf.mxu0
        %v4125 = vadd.f32 0.0, %v4124
        %4126 = vmatmul.f32.gmra.mxu0 %v4001
        %v4127 = vpop.f32.mrf.mxu0
        %v4128 = vadd.f32 0.0, %v4127
        %4129 = vmatmul.f32.gmra.mxu0 %v4002
        %v4130 = vpop.f32.mrf.mxu0
        %v4131 = vadd.f32 0.0, %v4130
        %4132 = vmatmul.f32.gmra.mxu0 %v4003
        %v4133 = vpop.f32.mrf.mxu0
        %v4134 = vadd.f32 0.0, %v4133
        %4135 = vmatmul.f32.gmra.mxu0 %v4004
        %v4136 = vpop.f32.mrf.mxu0
        %v4137 = vadd.f32 0.0, %v4136
        %4138 = vmatmul.f32.gmra.mxu0 %v4005
        %v4139 = vpop.f32.mrf.mxu0
        %v4140 = vadd.f32 0.0, %v4139
        %4141 = vmatmul.f32.gmra.mxu0 %v4006
        %v4142 = vpop.f32.mrf.mxu0
        %v4143 = vadd.f32 0.0, %v4142
        %4144 = vmatmul.f32.gmra.mxu0 %v4007
        %v4145 = vpop.f32.mrf.mxu0
        %v4146 = vadd.f32 0.0, %v4145
        %4147 = vmatmul.f32.gmra.mxu0 %v4008
        %v4148 = vpop.f32.mrf.mxu0
        %v4149 = vadd.f32 0.0, %v4148
        %4150 = vmatmul.f32.gmra.mxu0 %v4009
        %v4151 = vpop.f32.mrf.mxu0
        %v4152 = vadd.f32 0.0, %v4151
        %4153 = vmatmul.f32.gmra.mxu0 %v4010
        %v4154 = vpop.f32.mrf.mxu0
        %v4155 = vadd.f32 0.0, %v4154
        %4156 = vmatmul.f32.gmra.mxu0 %v4011
        %v4157 = vpop.f32.mrf.mxu0
        %v4158 = vadd.f32 0.0, %v4157
        %4159 = vmatmul.f32.gmra.mxu0 %v4012
        %v4160 = vpop.f32.mrf.mxu0
        %v4161 = vadd.f32 0.0, %v4160
        %4162 = vmatmul.f32.gmra.mxu0 %v4013
        %v4163 = vpop.f32.mrf.mxu0
        %v4164 = vadd.f32 0.0, %v4163
        %4165 = vmatmul.f32.gmra.mxu0 %v4014
        %v4166 = vpop.f32.mrf.mxu0
        %v4167 = vadd.f32 0.0, %v4166
        %4168 = vmatmul.f32.gmra.mxu0 %v4015
        %v4169 = vpop.f32.mrf.mxu0
        %v4170 = vadd.f32 0.0, %v4169
        %4171 = vmatmul.f32.gmra.mxu0 %v4016
        %v4172 = vpop.f32.mrf.mxu0
        %v4173 = vadd.f32 0.0, %v4172
        %4174 = vmatmul.f32.gmra.mxu0 %v4017
        %v4175 = vpop.f32.mrf.mxu0
        %v4176 = vadd.f32 0.0, %v4175
        %4177 = vmatmul.f32.gmra.mxu0 %v4018
        %v4178 = vpop.f32.mrf.mxu0
        %v4179 = vadd.f32 0.0, %v4178
        %4180 = vdwg.mxu0
        %v4181 = vadd.f32 %v4019, %v4086
        %v4182 = vadd.f32 %v4020, %v4089
        %v4183 = vadd.f32 %v4021, %v4092
        %v4184 = vadd.f32 %v4022, %v4095
        %v4185 = vadd.f32 %v4023, %v4098
        %v4186 = vadd.f32 %v4024, %v4101
        %v4187 = vadd.f32 %v4025, %v4104
        %v4188 = vadd.f32 %v4026, %v4107
        %v4189 = vadd.f32 %v4027, %v4110
        %v4190 = vadd.f32 %v4028, %v4113
        %v4191 = vadd.f32 %v4029, %v4116
        %v4192 = vadd.f32 %v4030, %v4119
        %v4193 = vadd.f32 %v4031, %v4122
        %v4194 = vadd.f32 %v4032, %v4125
        %v4195 = vadd.f32 %v4033, %v4128
        %v4196 = vadd.f32 %v4034, %v4131
        %v4197 = vadd.f32 %v4035, %v4134
        %v4198 = vadd.f32 %v4036, %v4137
        %v4199 = vadd.f32 %v4037, %v4140
        %v4200 = vadd.f32 %v4038, %v4143
        %v4201 = vadd.f32 %v4039, %v4146
        %v4202 = vadd.f32 %v4040, %v4149
        %v4203 = vadd.f32 %v4041, %v4152
        %v4204 = vadd.f32 %v4042, %v4155
        %v4205 = vadd.f32 %v4043, %v4158
        %v4206 = vadd.f32 %v4044, %v4161
        %v4207 = vadd.f32 %v4045, %v4164
        %v4208 = vadd.f32 %v4046, %v4167
        %v4209 = vadd.f32 %v4047, %v4170
        %v4210 = vadd.f32 %v4048, %v4173
        %v4211 = vadd.f32 %v4049, %v4176
        %v4212 = vadd.f32 %v4050, %v4179
        %4213 = vst [vmem:[#allocation3] sm:$0xff] %v4181
        %4214 = vst [vmem:[#allocation3 + $0x8] sm:$0xff] %v4182
        %4215 = vst [vmem:[#allocation3 + $0x10] sm:$0xff] %v4183
        %4216 = vst [vmem:[#allocation3 + $0x18] sm:$0xff] %v4184
        %4217 = vst [vmem:[#allocation3 + $0x20] sm:$0xff] %v4185
        %4218 = vst [vmem:[#allocation3 + $0x28] sm:$0xff] %v4186
        %4219 = vst [vmem:[#allocation3 + $0x30] sm:$0xff] %v4187
        %4220 = vst [vmem:[#allocation3 + $0x38] sm:$0xff] %v4188
        %4221 = vst [vmem:[#allocation3 + $0x40] sm:$0xff] %v4189
        %4222 = vst [vmem:[#allocation3 + $0x48] sm:$0xff] %v4190
        %4223 = vst [vmem:[#allocation3 + $0x50] sm:$0xff] %v4191
        %4224 = vst [vmem:[#allocation3 + $0x58] sm:$0xff] %v4192
        %4225 = vst [vmem:[#allocation3 + $0x60] sm:$0xff] %v4193
        %4226 = vst [vmem:[#allocation3 + $0x68] sm:$0xff] %v4194
        %4227 = vst [vmem:[#allocation3 + $0x70] sm:$0xff] %v4195
        %4228 = vst [vmem:[#allocation3 + $0x78] sm:$0xff] %v4196
        %4229 = vst [vmem:[#allocation3 + $0x80] sm:$0xff] %v4197
        %4230 = vst [vmem:[#allocation3 + $0x88] sm:$0xff] %v4198
        %4231 = vst [vmem:[#allocation3 + $0x90] sm:$0xff] %v4199
        %4232 = vst [vmem:[#allocation3 + $0x98] sm:$0xff] %v4200
        %4233 = vst [vmem:[#allocation3 + $0xa0] sm:$0xff] %v4201
        %4234 = vst [vmem:[#allocation3 + $0xa8] sm:$0xff] %v4202
        %4235 = vst [vmem:[#allocation3 + $0xb0] sm:$0xff] %v4203
        %4236 = vst [vmem:[#allocation3 + $0xb8] sm:$0xff] %v4204
        %4237 = vst [vmem:[#allocation3 + $0xc0] sm:$0xff] %v4205
        %4238 = vst [vmem:[#allocation3 + $0xc8] sm:$0xff] %v4206
        %4239 = vst [vmem:[#allocation3 + $0xd0] sm:$0xff] %v4207
        %4240 = vst [vmem:[#allocation3 + $0xd8] sm:$0xff] %v4208
        %4241 = vst [vmem:[#allocation3 + $0xe0] sm:$0xff] %v4209
        %4242 = vst [vmem:[#allocation3 + $0xe8] sm:$0xff] %v4210
        %4243 = vst [vmem:[#allocation3 + $0xf0] sm:$0xff] %v4211
        %4244 = vst [vmem:[#allocation3 + $0xf8] sm:$0xff] %v4212
        %v4245 = vld [vmem:[%s345 + $0x1] sm:$0xff]
        %v4246 = vld [vmem:[%s345 + $0x9] sm:$0xff]
        %v4247 = vld [vmem:[%s345 + $0x19] sm:$0xff]
        %v4248 = vld [vmem:[%s345 + $0x21] sm:$0xff]
        %v4249 = vld [vmem:[%s345 + $0x31] sm:$0xff]
        %v4250 = vld [vmem:[%s345 + $0x39] sm:$0xff]
        %v4251 = vld [vmem:[%s345 + $0x49] sm:$0xff]
        %v4252 = vld [vmem:[%s345 + $0x51] sm:$0xff]
        %v4253 = vld [vmem:[%s345 + $0x61] sm:$0xff]
        %v4254 = vld [vmem:[%s345 + $0x69] sm:$0xff]
        %v4255 = vld [vmem:[%s345 + $0x79] sm:$0xff]
        %v4256 = vld [vmem:[%s345 + $0x81] sm:$0xff]
        %v4257 = vld [vmem:[%s345 + $0x91] sm:$0xff]
        %v4258 = vld [vmem:[%s345 + $0x99] sm:$0xff]
        %v4259 = vld [vmem:[%s345 + $0xa9] sm:$0xff]
        %v4260 = vld [vmem:[%s345 + $0xb1] sm:$0xff]
        %v4261 = vld [vmem:[%s345 + $0xc1] sm:$0xff]
        %v4262 = vld [vmem:[%s345 + $0xc9] sm:$0xff]
        %v4263 = vld [vmem:[%s345 + $0xd9] sm:$0xff]
        %v4264 = vld [vmem:[%s345 + $0xe1] sm:$0xff]
        %v4265 = vld [vmem:[%s345 + $0xf1] sm:$0xff]
        %v4266 = vld [vmem:[%s345 + $0xf9] sm:$0xff]
        %v4267 = vld [vmem:[%s345 + $0x109] sm:$0xff]
        %v4268 = vld [vmem:[%s345 + $0x111] sm:$0xff]
        %v4269 = vld [vmem:[%s345 + $0x121] sm:$0xff]
        %v4270 = vld [vmem:[%s345 + $0x129] sm:$0xff]
        %v4271 = vld [vmem:[%s345 + $0x139] sm:$0xff]
        %v4272 = vld [vmem:[%s345 + $0x141] sm:$0xff]
        %v4273 = vld [vmem:[%s345 + $0x151] sm:$0xff]
        %v4274 = vld [vmem:[%s345 + $0x159] sm:$0xff]
        %v4275 = vld [vmem:[%s345 + $0x169] sm:$0xff]
        %v4276 = vld [vmem:[%s345 + $0x171] sm:$0xff]
        %v4277 = vld [vmem:[#allocation3] sm:$0xff]
        %v4278 = vld [vmem:[#allocation3 + $0x8] sm:$0xff]
        %v4279 = vld [vmem:[#allocation3 + $0x10] sm:$0xff]
        %v4280 = vld [vmem:[#allocation3 + $0x18] sm:$0xff]
        %v4281 = vld [vmem:[#allocation3 + $0x20] sm:$0xff]
        %v4282 = vld [vmem:[#allocation3 + $0x28] sm:$0xff]
        %v4283 = vld [vmem:[#allocation3 + $0x30] sm:$0xff]
        %v4284 = vld [vmem:[#allocation3 + $0x38] sm:$0xff]
        %v4285 = vld [vmem:[#allocation3 + $0x40] sm:$0xff]
        %v4286 = vld [vmem:[#allocation3 + $0x48] sm:$0xff]
        %v4287 = vld [vmem:[#allocation3 + $0x50] sm:$0xff]
        %v4288 = vld [vmem:[#allocation3 + $0x58] sm:$0xff]
        %v4289 = vld [vmem:[#allocation3 + $0x60] sm:$0xff]
        %v4290 = vld [vmem:[#allocation3 + $0x68] sm:$0xff]
        %v4291 = vld [vmem:[#allocation3 + $0x70] sm:$0xff]
        %v4292 = vld [vmem:[#allocation3 + $0x78] sm:$0xff]
        %v4293 = vld [vmem:[#allocation3 + $0x80] sm:$0xff]
        %v4294 = vld [vmem:[#allocation3 + $0x88] sm:$0xff]
        %v4295 = vld [vmem:[#allocation3 + $0x90] sm:$0xff]
        %v4296 = vld [vmem:[#allocation3 + $0x98] sm:$0xff]
        %v4297 = vld [vmem:[#allocation3 + $0xa0] sm:$0xff]
        %v4298 = vld [vmem:[#allocation3 + $0xa8] sm:$0xff]
        %v4299 = vld [vmem:[#allocation3 + $0xb0] sm:$0xff]
        %v4300 = vld [vmem:[#allocation3 + $0xb8] sm:$0xff]
        %v4301 = vld [vmem:[#allocation3 + $0xc0] sm:$0xff]
        %v4302 = vld [vmem:[#allocation3 + $0xc8] sm:$0xff]
        %v4303 = vld [vmem:[#allocation3 + $0xd0] sm:$0xff]
        %v4304 = vld [vmem:[#allocation3 + $0xd8] sm:$0xff]
        %v4305 = vld [vmem:[#allocation3 + $0xe0] sm:$0xff]
        %v4306 = vld [vmem:[#allocation3 + $0xe8] sm:$0xff]
        %v4307 = vld [vmem:[#allocation3 + $0xf0] sm:$0xff]
        %v4308 = vld [vmem:[#allocation3 + $0xf8] sm:$0xff]
        %s4309 = scalar_lea.vmem [#allocation6], 512
        %v4310 = vld [vmem:[%s4309] sm:$0xff]
        %v4311 = vld [vmem:[%s4309 + $0x8] sm:$0xff]
        %v4312 = vld [vmem:[%s4309 + $0x10] sm:$0xff]
        %v4313 = vld [vmem:[%s4309 + $0x18] sm:$0xff]
        %v4314 = vld [vmem:[%s4309 + $0x20] sm:$0xff]
        %v4315 = vld [vmem:[%s4309 + $0x28] sm:$0xff]
        %v4316 = vld [vmem:[%s4309 + $0x30] sm:$0xff]
        %v4317 = vld [vmem:[%s4309 + $0x38] sm:$0xff]
        %v4318 = vld [vmem:[%s4309 + $0x40] sm:$0xff]
        %v4319 = vld [vmem:[%s4309 + $0x48] sm:$0xff]
        %v4320 = vld [vmem:[%s4309 + $0x50] sm:$0xff]
        %v4321 = vld [vmem:[%s4309 + $0x58] sm:$0xff]
        %v4322 = vld [vmem:[%s4309 + $0x60] sm:$0xff]
        %v4323 = vld [vmem:[%s4309 + $0x68] sm:$0xff]
        %v4324 = vld [vmem:[%s4309 + $0x70] sm:$0xff]
        %v4325 = vld [vmem:[%s4309 + $0x78] sm:$0xff]
        %4326 = vmatpush.msra.mxu0 %v4325
        %4327 = vmatpush.msra.mxu0 %v4324
        %4328 = vmatpush.msra.mxu0 %v4323
        %4329 = vmatpush.msra.mxu0 %v4322
        %4330 = vmatpush.msra.mxu0 %v4321
        %4331 = vmatpush.msra.mxu0 %v4320
        %4332 = vmatpush.msra.mxu0 %v4319
        %4333 = vmatpush.msra.mxu0 %v4318
        %4334 = vmatpush.msra.mxu0 %v4317
        %4335 = vmatpush.msra.mxu0 %v4316
        %4336 = vmatpush.msra.mxu0 %v4315
        %4337 = vmatpush.msra.mxu0 %v4314
        %4338 = vmatpush.msra.mxu0 %v4313
        %4339 = vmatpush.msra.mxu0 %v4312
        %4340 = vmatpush.msra.mxu0 %v4311
        %4341 = vmatpush.msra.mxu0 %v4310
        %4342 = vmatmul.f32.gmra.mxu0 %v4245
        %v4343 = vpop.f32.mrf.mxu0
        %v4344 = vadd.f32 0.0, %v4343
        %4345 = vmatmul.f32.gmra.mxu0 %v4246
        %v4346 = vpop.f32.mrf.mxu0
        %v4347 = vadd.f32 0.0, %v4346
        %4348 = vmatmul.f32.gmra.mxu0 %v4247
        %v4349 = vpop.f32.mrf.mxu0
        %v4350 = vadd.f32 0.0, %v4349
        %4351 = vmatmul.f32.gmra.mxu0 %v4248
        %v4352 = vpop.f32.mrf.mxu0
        %v4353 = vadd.f32 0.0, %v4352
        %4354 = vmatmul.f32.gmra.mxu0 %v4249
        %v4355 = vpop.f32.mrf.mxu0
        %v4356 = vadd.f32 0.0, %v4355
        %4357 = vmatmul.f32.gmra.mxu0 %v4250
        %v4358 = vpop.f32.mrf.mxu0
        %v4359 = vadd.f32 0.0, %v4358
        %4360 = vmatmul.f32.gmra.mxu0 %v4251
        %v4361 = vpop.f32.mrf.mxu0
        %v4362 = vadd.f32 0.0, %v4361
        %4363 = vmatmul.f32.gmra.mxu0 %v4252
        %v4364 = vpop.f32.mrf.mxu0
        %v4365 = vadd.f32 0.0, %v4364
        %4366 = vmatmul.f32.gmra.mxu0 %v4253
        %v4367 = vpop.f32.mrf.mxu0
        %v4368 = vadd.f32 0.0, %v4367
        %4369 = vmatmul.f32.gmra.mxu0 %v4254
        %v4370 = vpop.f32.mrf.mxu0
        %v4371 = vadd.f32 0.0, %v4370
        %4372 = vmatmul.f32.gmra.mxu0 %v4255
        %v4373 = vpop.f32.mrf.mxu0
        %v4374 = vadd.f32 0.0, %v4373
        %4375 = vmatmul.f32.gmra.mxu0 %v4256
        %v4376 = vpop.f32.mrf.mxu0
        %v4377 = vadd.f32 0.0, %v4376
        %4378 = vmatmul.f32.gmra.mxu0 %v4257
        %v4379 = vpop.f32.mrf.mxu0
        %v4380 = vadd.f32 0.0, %v4379
        %4381 = vmatmul.f32.gmra.mxu0 %v4258
        %v4382 = vpop.f32.mrf.mxu0
        %v4383 = vadd.f32 0.0, %v4382
        %4384 = vmatmul.f32.gmra.mxu0 %v4259
        %v4385 = vpop.f32.mrf.mxu0
        %v4386 = vadd.f32 0.0, %v4385
        %4387 = vmatmul.f32.gmra.mxu0 %v4260
        %v4388 = vpop.f32.mrf.mxu0
        %v4389 = vadd.f32 0.0, %v4388
        %4390 = vmatmul.f32.gmra.mxu0 %v4261
        %v4391 = vpop.f32.mrf.mxu0
        %v4392 = vadd.f32 0.0, %v4391
        %4393 = vmatmul.f32.gmra.mxu0 %v4262
        %v4394 = vpop.f32.mrf.mxu0
        %v4395 = vadd.f32 0.0, %v4394
        %4396 = vmatmul.f32.gmra.mxu0 %v4263
        %v4397 = vpop.f32.mrf.mxu0
        %v4398 = vadd.f32 0.0, %v4397
        %4399 = vmatmul.f32.gmra.mxu0 %v4264
        %v4400 = vpop.f32.mrf.mxu0
        %v4401 = vadd.f32 0.0, %v4400
        %4402 = vmatmul.f32.gmra.mxu0 %v4265
        %v4403 = vpop.f32.mrf.mxu0
        %v4404 = vadd.f32 0.0, %v4403
        %4405 = vmatmul.f32.gmra.mxu0 %v4266
        %v4406 = vpop.f32.mrf.mxu0
        %v4407 = vadd.f32 0.0, %v4406
        %4408 = vmatmul.f32.gmra.mxu0 %v4267
        %v4409 = vpop.f32.mrf.mxu0
        %v4410 = vadd.f32 0.0, %v4409
        %4411 = vmatmul.f32.gmra.mxu0 %v4268
        %v4412 = vpop.f32.mrf.mxu0
        %v4413 = vadd.f32 0.0, %v4412
        %4414 = vmatmul.f32.gmra.mxu0 %v4269
        %v4415 = vpop.f32.mrf.mxu0
        %v4416 = vadd.f32 0.0, %v4415
        %4417 = vmatmul.f32.gmra.mxu0 %v4270
        %v4418 = vpop.f32.mrf.mxu0
        %v4419 = vadd.f32 0.0, %v4418
        %4420 = vmatmul.f32.gmra.mxu0 %v4271
        %v4421 = vpop.f32.mrf.mxu0
        %v4422 = vadd.f32 0.0, %v4421
        %4423 = vmatmul.f32.gmra.mxu0 %v4272
        %v4424 = vpop.f32.mrf.mxu0
        %v4425 = vadd.f32 0.0, %v4424
        %4426 = vmatmul.f32.gmra.mxu0 %v4273
        %v4427 = vpop.f32.mrf.mxu0
        %v4428 = vadd.f32 0.0, %v4427
        %4429 = vmatmul.f32.gmra.mxu0 %v4274
        %v4430 = vpop.f32.mrf.mxu0
        %v4431 = vadd.f32 0.0, %v4430
        %4432 = vmatmul.f32.gmra.mxu0 %v4275
        %v4433 = vpop.f32.mrf.mxu0
        %v4434 = vadd.f32 0.0, %v4433
        %4435 = vmatmul.f32.gmra.mxu0 %v4276
        %v4436 = vpop.f32.mrf.mxu0
        %v4437 = vadd.f32 0.0, %v4436
        %4438 = vdwg.mxu0
        %v4439 = vadd.f32 %v4277, %v4344
        %v4440 = vadd.f32 %v4278, %v4347
        %v4441 = vadd.f32 %v4279, %v4350
        %v4442 = vadd.f32 %v4280, %v4353
        %v4443 = vadd.f32 %v4281, %v4356
        %v4444 = vadd.f32 %v4282, %v4359
        %v4445 = vadd.f32 %v4283, %v4362
        %v4446 = vadd.f32 %v4284, %v4365
        %v4447 = vadd.f32 %v4285, %v4368
        %v4448 = vadd.f32 %v4286, %v4371
        %v4449 = vadd.f32 %v4287, %v4374
        %v4450 = vadd.f32 %v4288, %v4377
        %v4451 = vadd.f32 %v4289, %v4380
        %v4452 = vadd.f32 %v4290, %v4383
        %v4453 = vadd.f32 %v4291, %v4386
        %v4454 = vadd.f32 %v4292, %v4389
        %v4455 = vadd.f32 %v4293, %v4392
        %v4456 = vadd.f32 %v4294, %v4395
        %v4457 = vadd.f32 %v4295, %v4398
        %v4458 = vadd.f32 %v4296, %v4401
        %v4459 = vadd.f32 %v4297, %v4404
        %v4460 = vadd.f32 %v4298, %v4407
        %v4461 = vadd.f32 %v4299, %v4410
        %v4462 = vadd.f32 %v4300, %v4413
        %v4463 = vadd.f32 %v4301, %v4416
        %v4464 = vadd.f32 %v4302, %v4419
        %v4465 = vadd.f32 %v4303, %v4422
        %v4466 = vadd.f32 %v4304, %v4425
        %v4467 = vadd.f32 %v4305, %v4428
        %v4468 = vadd.f32 %v4306, %v4431
        %v4469 = vadd.f32 %v4307, %v4434
        %v4470 = vadd.f32 %v4308, %v4437
        %4471 = vst [vmem:[#allocation3] sm:$0xff] %v4439
        %4472 = vst [vmem:[#allocation3 + $0x8] sm:$0xff] %v4440
        %4473 = vst [vmem:[#allocation3 + $0x10] sm:$0xff] %v4441
        %4474 = vst [vmem:[#allocation3 + $0x18] sm:$0xff] %v4442
        %4475 = vst [vmem:[#allocation3 + $0x20] sm:$0xff] %v4443
        %4476 = vst [vmem:[#allocation3 + $0x28] sm:$0xff] %v4444
        %4477 = vst [vmem:[#allocation3 + $0x30] sm:$0xff] %v4445
        %4478 = vst [vmem:[#allocation3 + $0x38] sm:$0xff] %v4446
        %4479 = vst [vmem:[#allocation3 + $0x40] sm:$0xff] %v4447
        %4480 = vst [vmem:[#allocation3 + $0x48] sm:$0xff] %v4448
        %4481 = vst [vmem:[#allocation3 + $0x50] sm:$0xff] %v4449
        %4482 = vst [vmem:[#allocation3 + $0x58] sm:$0xff] %v4450
        %4483 = vst [vmem:[#allocation3 + $0x60] sm:$0xff] %v4451
        %4484 = vst [vmem:[#allocation3 + $0x68] sm:$0xff] %v4452
        %4485 = vst [vmem:[#allocation3 + $0x70] sm:$0xff] %v4453
        %4486 = vst [vmem:[#allocation3 + $0x78] sm:$0xff] %v4454
        %4487 = vst [vmem:[#allocation3 + $0x80] sm:$0xff] %v4455
        %4488 = vst [vmem:[#allocation3 + $0x88] sm:$0xff] %v4456
        %4489 = vst [vmem:[#allocation3 + $0x90] sm:$0xff] %v4457
        %4490 = vst [vmem:[#allocation3 + $0x98] sm:$0xff] %v4458
        %4491 = vst [vmem:[#allocation3 + $0xa0] sm:$0xff] %v4459
        %4492 = vst [vmem:[#allocation3 + $0xa8] sm:$0xff] %v4460
        %4493 = vst [vmem:[#allocation3 + $0xb0] sm:$0xff] %v4461
        %4494 = vst [vmem:[#allocation3 + $0xb8] sm:$0xff] %v4462
        %4495 = vst [vmem:[#allocation3 + $0xc0] sm:$0xff] %v4463
        %4496 = vst [vmem:[#allocation3 + $0xc8] sm:$0xff] %v4464
        %4497 = vst [vmem:[#allocation3 + $0xd0] sm:$0xff] %v4465
        %4498 = vst [vmem:[#allocation3 + $0xd8] sm:$0xff] %v4466
        %4499 = vst [vmem:[#allocation3 + $0xe0] sm:$0xff] %v4467
        %4500 = vst [vmem:[#allocation3 + $0xe8] sm:$0xff] %v4468
        %4501 = vst [vmem:[#allocation3 + $0xf0] sm:$0xff] %v4469
        %4502 = vst [vmem:[#allocation3 + $0xf8] sm:$0xff] %v4470
        %v4503 = vld [vmem:[%s345 + $0x2] sm:$0xff]
        %v4504 = vld [vmem:[%s345 + $0xa] sm:$0xff]
        %v4505 = vld [vmem:[%s345 + $0x1a] sm:$0xff]
        %v4506 = vld [vmem:[%s345 + $0x22] sm:$0xff]
        %v4507 = vld [vmem:[%s345 + $0x32] sm:$0xff]
        %v4508 = vld [vmem:[%s345 + $0x3a] sm:$0xff]
        %v4509 = vld [vmem:[%s345 + $0x4a] sm:$0xff]
        %v4510 = vld [vmem:[%s345 + $0x52] sm:$0xff]
        %v4511 = vld [vmem:[%s345 + $0x62] sm:$0xff]
        %v4512 = vld [vmem:[%s345 + $0x6a] sm:$0xff]
        %v4513 = vld [vmem:[%s345 + $0x7a] sm:$0xff]
        %v4514 = vld [vmem:[%s345 + $0x82] sm:$0xff]
        %v4515 = vld [vmem:[%s345 + $0x92] sm:$0xff]
        %v4516 = vld [vmem:[%s345 + $0x9a] sm:$0xff]
        %v4517 = vld [vmem:[%s345 + $0xaa] sm:$0xff]
        %v4518 = vld [vmem:[%s345 + $0xb2] sm:$0xff]
        %v4519 = vld [vmem:[%s345 + $0xc2] sm:$0xff]
        %v4520 = vld [vmem:[%s345 + $0xca] sm:$0xff]
        %v4521 = vld [vmem:[%s345 + $0xda] sm:$0xff]
        %v4522 = vld [vmem:[%s345 + $0xe2] sm:$0xff]
        %v4523 = vld [vmem:[%s345 + $0xf2] sm:$0xff]
        %v4524 = vld [vmem:[%s345 + $0xfa] sm:$0xff]
        %v4525 = vld [vmem:[%s345 + $0x10a] sm:$0xff]
        %v4526 = vld [vmem:[%s345 + $0x112] sm:$0xff]
        %v4527 = vld [vmem:[%s345 + $0x122] sm:$0xff]
        %v4528 = vld [vmem:[%s345 + $0x12a] sm:$0xff]
        %v4529 = vld [vmem:[%s345 + $0x13a] sm:$0xff]
        %v4530 = vld [vmem:[%s345 + $0x142] sm:$0xff]
        %v4531 = vld [vmem:[%s345 + $0x152] sm:$0xff]
        %v4532 = vld [vmem:[%s345 + $0x15a] sm:$0xff]
        %v4533 = vld [vmem:[%s345 + $0x16a] sm:$0xff]
        %v4534 = vld [vmem:[%s345 + $0x172] sm:$0xff]
        %v4535 = vld [vmem:[#allocation3] sm:$0xff]
        %v4536 = vld [vmem:[#allocation3 + $0x8] sm:$0xff]
        %v4537 = vld [vmem:[#allocation3 + $0x10] sm:$0xff]
        %v4538 = vld [vmem:[#allocation3 + $0x18] sm:$0xff]
        %v4539 = vld [vmem:[#allocation3 + $0x20] sm:$0xff]
        %v4540 = vld [vmem:[#allocation3 + $0x28] sm:$0xff]
        %v4541 = vld [vmem:[#allocation3 + $0x30] sm:$0xff]
        %v4542 = vld [vmem:[#allocation3 + $0x38] sm:$0xff]
        %v4543 = vld [vmem:[#allocation3 + $0x40] sm:$0xff]
        %v4544 = vld [vmem:[#allocation3 + $0x48] sm:$0xff]
        %v4545 = vld [vmem:[#allocation3 + $0x50] sm:$0xff]
        %v4546 = vld [vmem:[#allocation3 + $0x58] sm:$0xff]
        %v4547 = vld [vmem:[#allocation3 + $0x60] sm:$0xff]
        %v4548 = vld [vmem:[#allocation3 + $0x68] sm:$0xff]
        %v4549 = vld [vmem:[#allocation3 + $0x70] sm:$0xff]
        %v4550 = vld [vmem:[#allocation3 + $0x78] sm:$0xff]
        %v4551 = vld [vmem:[#allocation3 + $0x80] sm:$0xff]
        %v4552 = vld [vmem:[#allocation3 + $0x88] sm:$0xff]
        %v4553 = vld [vmem:[#allocation3 + $0x90] sm:$0xff]
        %v4554 = vld [vmem:[#allocation3 + $0x98] sm:$0xff]
        %v4555 = vld [vmem:[#allocation3 + $0xa0] sm:$0xff]
        %v4556 = vld [vmem:[#allocation3 + $0xa8] sm:$0xff]
        %v4557 = vld [vmem:[#allocation3 + $0xb0] sm:$0xff]
        %v4558 = vld [vmem:[#allocation3 + $0xb8] sm:$0xff]
        %v4559 = vld [vmem:[#allocation3 + $0xc0] sm:$0xff]
        %v4560 = vld [vmem:[#allocation3 + $0xc8] sm:$0xff]
        %v4561 = vld [vmem:[#allocation3 + $0xd0] sm:$0xff]
        %v4562 = vld [vmem:[#allocation3 + $0xd8] sm:$0xff]
        %v4563 = vld [vmem:[#allocation3 + $0xe0] sm:$0xff]
        %v4564 = vld [vmem:[#allocation3 + $0xe8] sm:$0xff]
        %v4565 = vld [vmem:[#allocation3 + $0xf0] sm:$0xff]
        %v4566 = vld [vmem:[#allocation3 + $0xf8] sm:$0xff]
        %s4567 = scalar_lea.vmem [#allocation6], 640
        %v4568 = vld [vmem:[%s4567] sm:$0xff]
        %v4569 = vld [vmem:[%s4567 + $0x8] sm:$0xff]
        %v4570 = vld [vmem:[%s4567 + $0x10] sm:$0xff]
        %v4571 = vld [vmem:[%s4567 + $0x18] sm:$0xff]
        %v4572 = vld [vmem:[%s4567 + $0x20] sm:$0xff]
        %v4573 = vld [vmem:[%s4567 + $0x28] sm:$0xff]
        %v4574 = vld [vmem:[%s4567 + $0x30] sm:$0xff]
        %v4575 = vld [vmem:[%s4567 + $0x38] sm:$0xff]
        %v4576 = vld [vmem:[%s4567 + $0x40] sm:$0xff]
        %v4577 = vld [vmem:[%s4567 + $0x48] sm:$0xff]
        %v4578 = vld [vmem:[%s4567 + $0x50] sm:$0xff]
        %v4579 = vld [vmem:[%s4567 + $0x58] sm:$0xff]
        %v4580 = vld [vmem:[%s4567 + $0x60] sm:$0xff]
        %v4581 = vld [vmem:[%s4567 + $0x68] sm:$0xff]
        %v4582 = vld [vmem:[%s4567 + $0x70] sm:$0xff]
        %v4583 = vld [vmem:[%s4567 + $0x78] sm:$0xff]
        %4584 = vmatpush.msra.mxu0 %v4583
        %4585 = vmatpush.msra.mxu0 %v4582
        %4586 = vmatpush.msra.mxu0 %v4581
        %4587 = vmatpush.msra.mxu0 %v4580
        %4588 = vmatpush.msra.mxu0 %v4579
        %4589 = vmatpush.msra.mxu0 %v4578
        %4590 = vmatpush.msra.mxu0 %v4577
        %4591 = vmatpush.msra.mxu0 %v4576
        %4592 = vmatpush.msra.mxu0 %v4575
        %4593 = vmatpush.msra.mxu0 %v4574
        %4594 = vmatpush.msra.mxu0 %v4573
        %4595 = vmatpush.msra.mxu0 %v4572
        %4596 = vmatpush.msra.mxu0 %v4571
        %4597 = vmatpush.msra.mxu0 %v4570
        %4598 = vmatpush.msra.mxu0 %v4569
        %4599 = vmatpush.msra.mxu0 %v4568
        %4600 = vmatmul.f32.gmra.mxu0 %v4503
        %v4601 = vpop.f32.mrf.mxu0
        %v4602 = vadd.f32 0.0, %v4601
        %4603 = vmatmul.f32.gmra.mxu0 %v4504
        %v4604 = vpop.f32.mrf.mxu0
        %v4605 = vadd.f32 0.0, %v4604
        %4606 = vmatmul.f32.gmra.mxu0 %v4505
        %v4607 = vpop.f32.mrf.mxu0
        %v4608 = vadd.f32 0.0, %v4607
        %4609 = vmatmul.f32.gmra.mxu0 %v4506
        %v4610 = vpop.f32.mrf.mxu0
        %v4611 = vadd.f32 0.0, %v4610
        %4612 = vmatmul.f32.gmra.mxu0 %v4507
        %v4613 = vpop.f32.mrf.mxu0
        %v4614 = vadd.f32 0.0, %v4613
        %4615 = vmatmul.f32.gmra.mxu0 %v4508
        %v4616 = vpop.f32.mrf.mxu0
        %v4617 = vadd.f32 0.0, %v4616
        %4618 = vmatmul.f32.gmra.mxu0 %v4509
        %v4619 = vpop.f32.mrf.mxu0
        %v4620 = vadd.f32 0.0, %v4619
        %4621 = vmatmul.f32.gmra.mxu0 %v4510
        %v4622 = vpop.f32.mrf.mxu0
        %v4623 = vadd.f32 0.0, %v4622
        %4624 = vmatmul.f32.gmra.mxu0 %v4511
        %v4625 = vpop.f32.mrf.mxu0
        %v4626 = vadd.f32 0.0, %v4625
        %4627 = vmatmul.f32.gmra.mxu0 %v4512
        %v4628 = vpop.f32.mrf.mxu0
        %v4629 = vadd.f32 0.0, %v4628
        %4630 = vmatmul.f32.gmra.mxu0 %v4513
        %v4631 = vpop.f32.mrf.mxu0
        %v4632 = vadd.f32 0.0, %v4631
        %4633 = vmatmul.f32.gmra.mxu0 %v4514
        %v4634 = vpop.f32.mrf.mxu0
        %v4635 = vadd.f32 0.0, %v4634
        %4636 = vmatmul.f32.gmra.mxu0 %v4515
        %v4637 = vpop.f32.mrf.mxu0
        %v4638 = vadd.f32 0.0, %v4637
        %4639 = vmatmul.f32.gmra.mxu0 %v4516
        %v4640 = vpop.f32.mrf.mxu0
        %v4641 = vadd.f32 0.0, %v4640
        %4642 = vmatmul.f32.gmra.mxu0 %v4517
        %v4643 = vpop.f32.mrf.mxu0
        %v4644 = vadd.f32 0.0, %v4643
        %4645 = vmatmul.f32.gmra.mxu0 %v4518
        %v4646 = vpop.f32.mrf.mxu0
        %v4647 = vadd.f32 0.0, %v4646
        %4648 = vmatmul.f32.gmra.mxu0 %v4519
        %v4649 = vpop.f32.mrf.mxu0
        %v4650 = vadd.f32 0.0, %v4649
        %4651 = vmatmul.f32.gmra.mxu0 %v4520
        %v4652 = vpop.f32.mrf.mxu0
        %v4653 = vadd.f32 0.0, %v4652
        %4654 = vmatmul.f32.gmra.mxu0 %v4521
        %v4655 = vpop.f32.mrf.mxu0
        %v4656 = vadd.f32 0.0, %v4655
        %4657 = vmatmul.f32.gmra.mxu0 %v4522
        %v4658 = vpop.f32.mrf.mxu0
        %v4659 = vadd.f32 0.0, %v4658
        %4660 = vmatmul.f32.gmra.mxu0 %v4523
        %v4661 = vpop.f32.mrf.mxu0
        %v4662 = vadd.f32 0.0, %v4661
        %4663 = vmatmul.f32.gmra.mxu0 %v4524
        %v4664 = vpop.f32.mrf.mxu0
        %v4665 = vadd.f32 0.0, %v4664
        %4666 = vmatmul.f32.gmra.mxu0 %v4525
        %v4667 = vpop.f32.mrf.mxu0
        %v4668 = vadd.f32 0.0, %v4667
        %4669 = vmatmul.f32.gmra.mxu0 %v4526
        %v4670 = vpop.f32.mrf.mxu0
        %v4671 = vadd.f32 0.0, %v4670
        %4672 = vmatmul.f32.gmra.mxu0 %v4527
        %v4673 = vpop.f32.mrf.mxu0
        %v4674 = vadd.f32 0.0, %v4673
        %4675 = vmatmul.f32.gmra.mxu0 %v4528
        %v4676 = vpop.f32.mrf.mxu0
        %v4677 = vadd.f32 0.0, %v4676
        %4678 = vmatmul.f32.gmra.mxu0 %v4529
        %v4679 = vpop.f32.mrf.mxu0
        %v4680 = vadd.f32 0.0, %v4679
        %4681 = vmatmul.f32.gmra.mxu0 %v4530
        %v4682 = vpop.f32.mrf.mxu0
        %v4683 = vadd.f32 0.0, %v4682
        %4684 = vmatmul.f32.gmra.mxu0 %v4531
        %v4685 = vpop.f32.mrf.mxu0
        %v4686 = vadd.f32 0.0, %v4685
        %4687 = vmatmul.f32.gmra.mxu0 %v4532
        %v4688 = vpop.f32.mrf.mxu0
        %v4689 = vadd.f32 0.0, %v4688
        %4690 = vmatmul.f32.gmra.mxu0 %v4533
        %v4691 = vpop.f32.mrf.mxu0
        %v4692 = vadd.f32 0.0, %v4691
        %4693 = vmatmul.f32.gmra.mxu0 %v4534
        %v4694 = vpop.f32.mrf.mxu0
        %v4695 = vadd.f32 0.0, %v4694
        %4696 = vdwg.mxu0
        %v4697 = vadd.f32 %v4535, %v4602
        %v4698 = vadd.f32 %v4536, %v4605
        %v4699 = vadd.f32 %v4537, %v4608
        %v4700 = vadd.f32 %v4538, %v4611
        %v4701 = vadd.f32 %v4539, %v4614
        %v4702 = vadd.f32 %v4540, %v4617
        %v4703 = vadd.f32 %v4541, %v4620
        %v4704 = vadd.f32 %v4542, %v4623
        %v4705 = vadd.f32 %v4543, %v4626
        %v4706 = vadd.f32 %v4544, %v4629
        %v4707 = vadd.f32 %v4545, %v4632
        %v4708 = vadd.f32 %v4546, %v4635
        %v4709 = vadd.f32 %v4547, %v4638
        %v4710 = vadd.f32 %v4548, %v4641
        %v4711 = vadd.f32 %v4549, %v4644
        %v4712 = vadd.f32 %v4550, %v4647
        %v4713 = vadd.f32 %v4551, %v4650
        %v4714 = vadd.f32 %v4552, %v4653
        %v4715 = vadd.f32 %v4553, %v4656
        %v4716 = vadd.f32 %v4554, %v4659
        %v4717 = vadd.f32 %v4555, %v4662
        %v4718 = vadd.f32 %v4556, %v4665
        %v4719 = vadd.f32 %v4557, %v4668
        %v4720 = vadd.f32 %v4558, %v4671
        %v4721 = vadd.f32 %v4559, %v4674
        %v4722 = vadd.f32 %v4560, %v4677
        %v4723 = vadd.f32 %v4561, %v4680
        %v4724 = vadd.f32 %v4562, %v4683
        %v4725 = vadd.f32 %v4563, %v4686
        %v4726 = vadd.f32 %v4564, %v4689
        %v4727 = vadd.f32 %v4565, %v4692
        %v4728 = vadd.f32 %v4566, %v4695
        %4729 = vst [vmem:[#allocation3] sm:$0xff] %v4697
        %4730 = vst [vmem:[#allocation3 + $0x8] sm:$0xff] %v4698
        %4731 = vst [vmem:[#allocation3 + $0x10] sm:$0xff] %v4699
        %4732 = vst [vmem:[#allocation3 + $0x18] sm:$0xff] %v4700
        %4733 = vst [vmem:[#allocation3 + $0x20] sm:$0xff] %v4701
        %4734 = vst [vmem:[#allocation3 + $0x28] sm:$0xff] %v4702
        %4735 = vst [vmem:[#allocation3 + $0x30] sm:$0xff] %v4703
        %4736 = vst [vmem:[#allocation3 + $0x38] sm:$0xff] %v4704
        %4737 = vst [vmem:[#allocation3 + $0x40] sm:$0xff] %v4705
        %4738 = vst [vmem:[#allocation3 + $0x48] sm:$0xff] %v4706
        %4739 = vst [vmem:[#allocation3 + $0x50] sm:$0xff] %v4707
        %4740 = vst [vmem:[#allocation3 + $0x58] sm:$0xff] %v4708
        %4741 = vst [vmem:[#allocation3 + $0x60] sm:$0xff] %v4709
        %4742 = vst [vmem:[#allocation3 + $0x68] sm:$0xff] %v4710
        %4743 = vst [vmem:[#allocation3 + $0x70] sm:$0xff] %v4711
        %4744 = vst [vmem:[#allocation3 + $0x78] sm:$0xff] %v4712
        %4745 = vst [vmem:[#allocation3 + $0x80] sm:$0xff] %v4713
        %4746 = vst [vmem:[#allocation3 + $0x88] sm:$0xff] %v4714
        %4747 = vst [vmem:[#allocation3 + $0x90] sm:$0xff] %v4715
        %4748 = vst [vmem:[#allocation3 + $0x98] sm:$0xff] %v4716
        %4749 = vst [vmem:[#allocation3 + $0xa0] sm:$0xff] %v4717
        %4750 = vst [vmem:[#allocation3 + $0xa8] sm:$0xff] %v4718
        %4751 = vst [vmem:[#allocation3 + $0xb0] sm:$0xff] %v4719
        %4752 = vst [vmem:[#allocation3 + $0xb8] sm:$0xff] %v4720
        %4753 = vst [vmem:[#allocation3 + $0xc0] sm:$0xff] %v4721
        %4754 = vst [vmem:[#allocation3 + $0xc8] sm:$0xff] %v4722
        %4755 = vst [vmem:[#allocation3 + $0xd0] sm:$0xff] %v4723
        %4756 = vst [vmem:[#allocation3 + $0xd8] sm:$0xff] %v4724
        %4757 = vst [vmem:[#allocation3 + $0xe0] sm:$0xff] %v4725
        %4758 = vst [vmem:[#allocation3 + $0xe8] sm:$0xff] %v4726
        %4759 = vst [vmem:[#allocation3 + $0xf0] sm:$0xff] %v4727
        %4760 = vst [vmem:[#allocation3 + $0xf8] sm:$0xff] %v4728
        %v4761 = vld [vmem:[%s379] sm:$0xff]
        %v4762 = vld [vmem:[%s379 + $0x8] sm:$0xff]
        %v4763 = vld [vmem:[%s379 + $0x18] sm:$0xff]
        %v4764 = vld [vmem:[%s379 + $0x20] sm:$0xff]
        %v4765 = vld [vmem:[%s379 + $0x30] sm:$0xff]
        %v4766 = vld [vmem:[%s379 + $0x38] sm:$0xff]
        %v4767 = vld [vmem:[%s379 + $0x48] sm:$0xff]
        %v4768 = vld [vmem:[%s379 + $0x50] sm:$0xff]
        %v4769 = vld [vmem:[%s379 + $0x60] sm:$0xff]
        %v4770 = vld [vmem:[%s379 + $0x68] sm:$0xff]
        %v4771 = vld [vmem:[%s379 + $0x78] sm:$0xff]
        %v4772 = vld [vmem:[%s379 + $0x80] sm:$0xff]
        %v4773 = vld [vmem:[%s379 + $0x90] sm:$0xff]
        %v4774 = vld [vmem:[%s379 + $0x98] sm:$0xff]
        %v4775 = vld [vmem:[%s379 + $0xa8] sm:$0xff]
        %v4776 = vld [vmem:[%s379 + $0xb0] sm:$0xff]
        %v4777 = vld [vmem:[%s379 + $0xc0] sm:$0xff]
        %v4778 = vld [vmem:[%s379 + $0xc8] sm:$0xff]
        %v4779 = vld [vmem:[%s379 + $0xd8] sm:$0xff]
        %v4780 = vld [vmem:[%s379 + $0xe0] sm:$0xff]
        %v4781 = vld [vmem:[%s379 + $0xf0] sm:$0xff]
        %v4782 = vld [vmem:[%s379 + $0xf8] sm:$0xff]
        %v4783 = vld [vmem:[%s379 + $0x108] sm:$0xff]
        %v4784 = vld [vmem:[%s379 + $0x110] sm:$0xff]
        %v4785 = vld [vmem:[%s379 + $0x120] sm:$0xff]
        %v4786 = vld [vmem:[%s379 + $0x128] sm:$0xff]
        %v4787 = vld [vmem:[%s379 + $0x138] sm:$0xff]
        %v4788 = vld [vmem:[%s379 + $0x140] sm:$0xff]
        %v4789 = vld [vmem:[%s379 + $0x150] sm:$0xff]
        %v4790 = vld [vmem:[%s379 + $0x158] sm:$0xff]
        %v4791 = vld [vmem:[%s379 + $0x168] sm:$0xff]
        %v4792 = vld [vmem:[%s379 + $0x170] sm:$0xff]
        %v4793 = vld [vmem:[#allocation3] sm:$0xff]
        %v4794 = vld [vmem:[#allocation3 + $0x8] sm:$0xff]
        %v4795 = vld [vmem:[#allocation3 + $0x10] sm:$0xff]
        %v4796 = vld [vmem:[#allocation3 + $0x18] sm:$0xff]
        %v4797 = vld [vmem:[#allocation3 + $0x20] sm:$0xff]
        %v4798 = vld [vmem:[#allocation3 + $0x28] sm:$0xff]
        %v4799 = vld [vmem:[#allocation3 + $0x30] sm:$0xff]
        %v4800 = vld [vmem:[#allocation3 + $0x38] sm:$0xff]
        %v4801 = vld [vmem:[#allocation3 + $0x40] sm:$0xff]
        %v4802 = vld [vmem:[#allocation3 + $0x48] sm:$0xff]
        %v4803 = vld [vmem:[#allocation3 + $0x50] sm:$0xff]
        %v4804 = vld [vmem:[#allocation3 + $0x58] sm:$0xff]
        %v4805 = vld [vmem:[#allocation3 + $0x60] sm:$0xff]
        %v4806 = vld [vmem:[#allocation3 + $0x68] sm:$0xff]
        %v4807 = vld [vmem:[#allocation3 + $0x70] sm:$0xff]
        %v4808 = vld [vmem:[#allocation3 + $0x78] sm:$0xff]
        %v4809 = vld [vmem:[#allocation3 + $0x80] sm:$0xff]
        %v4810 = vld [vmem:[#allocation3 + $0x88] sm:$0xff]
        %v4811 = vld [vmem:[#allocation3 + $0x90] sm:$0xff]
        %v4812 = vld [vmem:[#allocation3 + $0x98] sm:$0xff]
        %v4813 = vld [vmem:[#allocation3 + $0xa0] sm:$0xff]
        %v4814 = vld [vmem:[#allocation3 + $0xa8] sm:$0xff]
        %v4815 = vld [vmem:[#allocation3 + $0xb0] sm:$0xff]
        %v4816 = vld [vmem:[#allocation3 + $0xb8] sm:$0xff]
        %v4817 = vld [vmem:[#allocation3 + $0xc0] sm:$0xff]
        %v4818 = vld [vmem:[#allocation3 + $0xc8] sm:$0xff]
        %v4819 = vld [vmem:[#allocation3 + $0xd0] sm:$0xff]
        %v4820 = vld [vmem:[#allocation3 + $0xd8] sm:$0xff]
        %v4821 = vld [vmem:[#allocation3 + $0xe0] sm:$0xff]
        %v4822 = vld [vmem:[#allocation3 + $0xe8] sm:$0xff]
        %v4823 = vld [vmem:[#allocation3 + $0xf0] sm:$0xff]
        %v4824 = vld [vmem:[#allocation3 + $0xf8] sm:$0xff]
        %s4825 = scalar_lea.vmem [#allocation6], 768
        %v4826 = vld [vmem:[%s4825] sm:$0xff]
        %v4827 = vld [vmem:[%s4825 + $0x8] sm:$0xff]
        %v4828 = vld [vmem:[%s4825 + $0x10] sm:$0xff]
        %v4829 = vld [vmem:[%s4825 + $0x18] sm:$0xff]
        %v4830 = vld [vmem:[%s4825 + $0x20] sm:$0xff]
        %v4831 = vld [vmem:[%s4825 + $0x28] sm:$0xff]
        %v4832 = vld [vmem:[%s4825 + $0x30] sm:$0xff]
        %v4833 = vld [vmem:[%s4825 + $0x38] sm:$0xff]
        %v4834 = vld [vmem:[%s4825 + $0x40] sm:$0xff]
        %v4835 = vld [vmem:[%s4825 + $0x48] sm:$0xff]
        %v4836 = vld [vmem:[%s4825 + $0x50] sm:$0xff]
        %v4837 = vld [vmem:[%s4825 + $0x58] sm:$0xff]
        %v4838 = vld [vmem:[%s4825 + $0x60] sm:$0xff]
        %v4839 = vld [vmem:[%s4825 + $0x68] sm:$0xff]
        %v4840 = vld [vmem:[%s4825 + $0x70] sm:$0xff]
        %v4841 = vld [vmem:[%s4825 + $0x78] sm:$0xff]
        %4842 = vmatpush.msra.mxu0 %v4841
        %4843 = vmatpush.msra.mxu0 %v4840
        %4844 = vmatpush.msra.mxu0 %v4839
        %4845 = vmatpush.msra.mxu0 %v4838
        %4846 = vmatpush.msra.mxu0 %v4837
        %4847 = vmatpush.msra.mxu0 %v4836
        %4848 = vmatpush.msra.mxu0 %v4835
        %4849 = vmatpush.msra.mxu0 %v4834
        %4850 = vmatpush.msra.mxu0 %v4833
        %4851 = vmatpush.msra.mxu0 %v4832
        %4852 = vmatpush.msra.mxu0 %v4831
        %4853 = vmatpush.msra.mxu0 %v4830
        %4854 = vmatpush.msra.mxu0 %v4829
        %4855 = vmatpush.msra.mxu0 %v4828
        %4856 = vmatpush.msra.mxu0 %v4827
        %4857 = vmatpush.msra.mxu0 %v4826
        %4858 = vmatmul.f32.gmra.mxu0 %v4761
        %v4859 = vpop.f32.mrf.mxu0
        %v4860 = vadd.f32 0.0, %v4859
        %4861 = vmatmul.f32.gmra.mxu0 %v4762
        %v4862 = vpop.f32.mrf.mxu0
        %v4863 = vadd.f32 0.0, %v4862
        %4864 = vmatmul.f32.gmra.mxu0 %v4763
        %v4865 = vpop.f32.mrf.mxu0
        %v4866 = vadd.f32 0.0, %v4865
        %4867 = vmatmul.f32.gmra.mxu0 %v4764
        %v4868 = vpop.f32.mrf.mxu0
        %v4869 = vadd.f32 0.0, %v4868
        %4870 = vmatmul.f32.gmra.mxu0 %v4765
        %v4871 = vpop.f32.mrf.mxu0
        %v4872 = vadd.f32 0.0, %v4871
        %4873 = vmatmul.f32.gmra.mxu0 %v4766
        %v4874 = vpop.f32.mrf.mxu0
        %v4875 = vadd.f32 0.0, %v4874
        %4876 = vmatmul.f32.gmra.mxu0 %v4767
        %v4877 = vpop.f32.mrf.mxu0
        %v4878 = vadd.f32 0.0, %v4877
        %4879 = vmatmul.f32.gmra.mxu0 %v4768
        %v4880 = vpop.f32.mrf.mxu0
        %v4881 = vadd.f32 0.0, %v4880
        %4882 = vmatmul.f32.gmra.mxu0 %v4769
        %v4883 = vpop.f32.mrf.mxu0
        %v4884 = vadd.f32 0.0, %v4883
        %4885 = vmatmul.f32.gmra.mxu0 %v4770
        %v4886 = vpop.f32.mrf.mxu0
        %v4887 = vadd.f32 0.0, %v4886
        %4888 = vmatmul.f32.gmra.mxu0 %v4771
        %v4889 = vpop.f32.mrf.mxu0
        %v4890 = vadd.f32 0.0, %v4889
        %4891 = vmatmul.f32.gmra.mxu0 %v4772
        %v4892 = vpop.f32.mrf.mxu0
        %v4893 = vadd.f32 0.0, %v4892
        %4894 = vmatmul.f32.gmra.mxu0 %v4773
        %v4895 = vpop.f32.mrf.mxu0
        %v4896 = vadd.f32 0.0, %v4895
        %4897 = vmatmul.f32.gmra.mxu0 %v4774
        %v4898 = vpop.f32.mrf.mxu0
        %v4899 = vadd.f32 0.0, %v4898
        %4900 = vmatmul.f32.gmra.mxu0 %v4775
        %v4901 = vpop.f32.mrf.mxu0
        %v4902 = vadd.f32 0.0, %v4901
        %4903 = vmatmul.f32.gmra.mxu0 %v4776
        %v4904 = vpop.f32.mrf.mxu0
        %v4905 = vadd.f32 0.0, %v4904
        %4906 = vmatmul.f32.gmra.mxu0 %v4777
        %v4907 = vpop.f32.mrf.mxu0
        %v4908 = vadd.f32 0.0, %v4907
        %4909 = vmatmul.f32.gmra.mxu0 %v4778
        %v4910 = vpop.f32.mrf.mxu0
        %v4911 = vadd.f32 0.0, %v4910
        %4912 = vmatmul.f32.gmra.mxu0 %v4779
        %v4913 = vpop.f32.mrf.mxu0
        %v4914 = vadd.f32 0.0, %v4913
        %4915 = vmatmul.f32.gmra.mxu0 %v4780
        %v4916 = vpop.f32.mrf.mxu0
        %v4917 = vadd.f32 0.0, %v4916
        %4918 = vmatmul.f32.gmra.mxu0 %v4781
        %v4919 = vpop.f32.mrf.mxu0
        %v4920 = vadd.f32 0.0, %v4919
        %4921 = vmatmul.f32.gmra.mxu0 %v4782
        %v4922 = vpop.f32.mrf.mxu0
        %v4923 = vadd.f32 0.0, %v4922
        %4924 = vmatmul.f32.gmra.mxu0 %v4783
        %v4925 = vpop.f32.mrf.mxu0
        %v4926 = vadd.f32 0.0, %v4925
        %4927 = vmatmul.f32.gmra.mxu0 %v4784
        %v4928 = vpop.f32.mrf.mxu0
        %v4929 = vadd.f32 0.0, %v4928
        %4930 = vmatmul.f32.gmra.mxu0 %v4785
        %v4931 = vpop.f32.mrf.mxu0
        %v4932 = vadd.f32 0.0, %v4931
        %4933 = vmatmul.f32.gmra.mxu0 %v4786
        %v4934 = vpop.f32.mrf.mxu0
        %v4935 = vadd.f32 0.0, %v4934
        %4936 = vmatmul.f32.gmra.mxu0 %v4787
        %v4937 = vpop.f32.mrf.mxu0
        %v4938 = vadd.f32 0.0, %v4937
        %4939 = vmatmul.f32.gmra.mxu0 %v4788
        %v4940 = vpop.f32.mrf.mxu0
        %v4941 = vadd.f32 0.0, %v4940
        %4942 = vmatmul.f32.gmra.mxu0 %v4789
        %v4943 = vpop.f32.mrf.mxu0
        %v4944 = vadd.f32 0.0, %v4943
        %4945 = vmatmul.f32.gmra.mxu0 %v4790
        %v4946 = vpop.f32.mrf.mxu0
        %v4947 = vadd.f32 0.0, %v4946
        %4948 = vmatmul.f32.gmra.mxu0 %v4791
        %v4949 = vpop.f32.mrf.mxu0
        %v4950 = vadd.f32 0.0, %v4949
        %4951 = vmatmul.f32.gmra.mxu0 %v4792
        %v4952 = vpop.f32.mrf.mxu0
        %v4953 = vadd.f32 0.0, %v4952
        %4954 = vdwg.mxu0
        %v4955 = vadd.f32 %v4793, %v4860
        %v4956 = vadd.f32 %v4794, %v4863
        %v4957 = vadd.f32 %v4795, %v4866
        %v4958 = vadd.f32 %v4796, %v4869
        %v4959 = vadd.f32 %v4797, %v4872
        %v4960 = vadd.f32 %v4798, %v4875
        %v4961 = vadd.f32 %v4799, %v4878
        %v4962 = vadd.f32 %v4800, %v4881
        %v4963 = vadd.f32 %v4801, %v4884
        %v4964 = vadd.f32 %v4802, %v4887
        %v4965 = vadd.f32 %v4803, %v4890
        %v4966 = vadd.f32 %v4804, %v4893
        %v4967 = vadd.f32 %v4805, %v4896
        %v4968 = vadd.f32 %v4806, %v4899
        %v4969 = vadd.f32 %v4807, %v4902
        %v4970 = vadd.f32 %v4808, %v4905
        %v4971 = vadd.f32 %v4809, %v4908
        %v4972 = vadd.f32 %v4810, %v4911
        %v4973 = vadd.f32 %v4811, %v4914
        %v4974 = vadd.f32 %v4812, %v4917
        %v4975 = vadd.f32 %v4813, %v4920
        %v4976 = vadd.f32 %v4814, %v4923
        %v4977 = vadd.f32 %v4815, %v4926
        %v4978 = vadd.f32 %v4816, %v4929
        %v4979 = vadd.f32 %v4817, %v4932
        %v4980 = vadd.f32 %v4818, %v4935
        %v4981 = vadd.f32 %v4819, %v4938
        %v4982 = vadd.f32 %v4820, %v4941
        %v4983 = vadd.f32 %v4821, %v4944
        %v4984 = vadd.f32 %v4822, %v4947
        %v4985 = vadd.f32 %v4823, %v4950
        %v4986 = vadd.f32 %v4824, %v4953
        %4987 = vst [vmem:[#allocation3] sm:$0xff] %v4955
        %4988 = vst [vmem:[#allocation3 + $0x8] sm:$0xff] %v4956
        %4989 = vst [vmem:[#allocation3 + $0x10] sm:$0xff] %v4957
        %4990 = vst [vmem:[#allocation3 + $0x18] sm:$0xff] %v4958
        %4991 = vst [vmem:[#allocation3 + $0x20] sm:$0xff] %v4959
        %4992 = vst [vmem:[#allocation3 + $0x28] sm:$0xff] %v4960
        %4993 = vst [vmem:[#allocation3 + $0x30] sm:$0xff] %v4961
        %4994 = vst [vmem:[#allocation3 + $0x38] sm:$0xff] %v4962
        %4995 = vst [vmem:[#allocation3 + $0x40] sm:$0xff] %v4963
        %4996 = vst [vmem:[#allocation3 + $0x48] sm:$0xff] %v4964
        %4997 = vst [vmem:[#allocation3 + $0x50] sm:$0xff] %v4965
        %4998 = vst [vmem:[#allocation3 + $0x58] sm:$0xff] %v4966
        %4999 = vst [vmem:[#allocation3 + $0x60] sm:$0xff] %v4967
        %5000 = vst [vmem:[#allocation3 + $0x68] sm:$0xff] %v4968
        %5001 = vst [vmem:[#allocation3 + $0x70] sm:$0xff] %v4969
        %5002 = vst [vmem:[#allocation3 + $0x78] sm:$0xff] %v4970
        %5003 = vst [vmem:[#allocation3 + $0x80] sm:$0xff] %v4971
        %5004 = vst [vmem:[#allocation3 + $0x88] sm:$0xff] %v4972
        %5005 = vst [vmem:[#allocation3 + $0x90] sm:$0xff] %v4973
        %5006 = vst [vmem:[#allocation3 + $0x98] sm:$0xff] %v4974
        %5007 = vst [vmem:[#allocation3 + $0xa0] sm:$0xff] %v4975
        %5008 = vst [vmem:[#allocation3 + $0xa8] sm:$0xff] %v4976
        %5009 = vst [vmem:[#allocation3 + $0xb0] sm:$0xff] %v4977
        %5010 = vst [vmem:[#allocation3 + $0xb8] sm:$0xff] %v4978
        %5011 = vst [vmem:[#allocation3 + $0xc0] sm:$0xff] %v4979
        %5012 = vst [vmem:[#allocation3 + $0xc8] sm:$0xff] %v4980
        %5013 = vst [vmem:[#allocation3 + $0xd0] sm:$0xff] %v4981
        %5014 = vst [vmem:[#allocation3 + $0xd8] sm:$0xff] %v4982
        %5015 = vst [vmem:[#allocation3 + $0xe0] sm:$0xff] %v4983
        %5016 = vst [vmem:[#allocation3 + $0xe8] sm:$0xff] %v4984
        %5017 = vst [vmem:[#allocation3 + $0xf0] sm:$0xff] %v4985
        %5018 = vst [vmem:[#allocation3 + $0xf8] sm:$0xff] %v4986
        %v5019 = vld [vmem:[%s379 + $0x1] sm:$0xff]
        %v5020 = vld [vmem:[%s379 + $0x9] sm:$0xff]
        %v5021 = vld [vmem:[%s379 + $0x19] sm:$0xff]
        %v5022 = vld [vmem:[%s379 + $0x21] sm:$0xff]
        %v5023 = vld [vmem:[%s379 + $0x31] sm:$0xff]
        %v5024 = vld [vmem:[%s379 + $0x39] sm:$0xff]
        %v5025 = vld [vmem:[%s379 + $0x49] sm:$0xff]
        %v5026 = vld [vmem:[%s379 + $0x51] sm:$0xff]
        %v5027 = vld [vmem:[%s379 + $0x61] sm:$0xff]
        %v5028 = vld [vmem:[%s379 + $0x69] sm:$0xff]
        %v5029 = vld [vmem:[%s379 + $0x79] sm:$0xff]
        %v5030 = vld [vmem:[%s379 + $0x81] sm:$0xff]
        %v5031 = vld [vmem:[%s379 + $0x91] sm:$0xff]
        %v5032 = vld [vmem:[%s379 + $0x99] sm:$0xff]
        %v5033 = vld [vmem:[%s379 + $0xa9] sm:$0xff]
        %v5034 = vld [vmem:[%s379 + $0xb1] sm:$0xff]
        %v5035 = vld [vmem:[%s379 + $0xc1] sm:$0xff]
        %v5036 = vld [vmem:[%s379 + $0xc9] sm:$0xff]
        %v5037 = vld [vmem:[%s379 + $0xd9] sm:$0xff]
        %v5038 = vld [vmem:[%s379 + $0xe1] sm:$0xff]
        %v5039 = vld [vmem:[%s379 + $0xf1] sm:$0xff]
        %v5040 = vld [vmem:[%s379 + $0xf9] sm:$0xff]
        %v5041 = vld [vmem:[%s379 + $0x109] sm:$0xff]
        %v5042 = vld [vmem:[%s379 + $0x111] sm:$0xff]
        %v5043 = vld [vmem:[%s379 + $0x121] sm:$0xff]
        %v5044 = vld [vmem:[%s379 + $0x129] sm:$0xff]
        %v5045 = vld [vmem:[%s379 + $0x139] sm:$0xff]
        %v5046 = vld [vmem:[%s379 + $0x141] sm:$0xff]
        %v5047 = vld [vmem:[%s379 + $0x151] sm:$0xff]
        %v5048 = vld [vmem:[%s379 + $0x159] sm:$0xff]
        %v5049 = vld [vmem:[%s379 + $0x169] sm:$0xff]
        %v5050 = vld [vmem:[%s379 + $0x171] sm:$0xff]
        %v5051 = vld [vmem:[#allocation3] sm:$0xff]
        %v5052 = vld [vmem:[#allocation3 + $0x8] sm:$0xff]
        %v5053 = vld [vmem:[#allocation3 + $0x10] sm:$0xff]
        %v5054 = vld [vmem:[#allocation3 + $0x18] sm:$0xff]
        %v5055 = vld [vmem:[#allocation3 + $0x20] sm:$0xff]
        %v5056 = vld [vmem:[#allocation3 + $0x28] sm:$0xff]
        %v5057 = vld [vmem:[#allocation3 + $0x30] sm:$0xff]
        %v5058 = vld [vmem:[#allocation3 + $0x38] sm:$0xff]
        %v5059 = vld [vmem:[#allocation3 + $0x40] sm:$0xff]
        %v5060 = vld [vmem:[#allocation3 + $0x48] sm:$0xff]
        %v5061 = vld [vmem:[#allocation3 + $0x50] sm:$0xff]
        %v5062 = vld [vmem:[#allocation3 + $0x58] sm:$0xff]
        %v5063 = vld [vmem:[#allocation3 + $0x60] sm:$0xff]
        %v5064 = vld [vmem:[#allocation3 + $0x68] sm:$0xff]
        %v5065 = vld [vmem:[#allocation3 + $0x70] sm:$0xff]
        %v5066 = vld [vmem:[#allocation3 + $0x78] sm:$0xff]
        %v5067 = vld [vmem:[#allocation3 + $0x80] sm:$0xff]
        %v5068 = vld [vmem:[#allocation3 + $0x88] sm:$0xff]
        %v5069 = vld [vmem:[#allocation3 + $0x90] sm:$0xff]
        %v5070 = vld [vmem:[#allocation3 + $0x98] sm:$0xff]
        %v5071 = vld [vmem:[#allocation3 + $0xa0] sm:$0xff]
        %v5072 = vld [vmem:[#allocation3 + $0xa8] sm:$0xff]
        %v5073 = vld [vmem:[#allocation3 + $0xb0] sm:$0xff]
        %v5074 = vld [vmem:[#allocation3 + $0xb8] sm:$0xff]
        %v5075 = vld [vmem:[#allocation3 + $0xc0] sm:$0xff]
        %v5076 = vld [vmem:[#allocation3 + $0xc8] sm:$0xff]
        %v5077 = vld [vmem:[#allocation3 + $0xd0] sm:$0xff]
        %v5078 = vld [vmem:[#allocation3 + $0xd8] sm:$0xff]
        %v5079 = vld [vmem:[#allocation3 + $0xe0] sm:$0xff]
        %v5080 = vld [vmem:[#allocation3 + $0xe8] sm:$0xff]
        %v5081 = vld [vmem:[#allocation3 + $0xf0] sm:$0xff]
        %v5082 = vld [vmem:[#allocation3 + $0xf8] sm:$0xff]
        %s5083 = scalar_lea.vmem [#allocation6], 896
        %v5084 = vld [vmem:[%s5083] sm:$0xff]
        %v5085 = vld [vmem:[%s5083 + $0x8] sm:$0xff]
        %v5086 = vld [vmem:[%s5083 + $0x10] sm:$0xff]
        %v5087 = vld [vmem:[%s5083 + $0x18] sm:$0xff]
        %v5088 = vld [vmem:[%s5083 + $0x20] sm:$0xff]
        %v5089 = vld [vmem:[%s5083 + $0x28] sm:$0xff]
        %v5090 = vld [vmem:[%s5083 + $0x30] sm:$0xff]
        %v5091 = vld [vmem:[%s5083 + $0x38] sm:$0xff]
        %v5092 = vld [vmem:[%s5083 + $0x40] sm:$0xff]
        %v5093 = vld [vmem:[%s5083 + $0x48] sm:$0xff]
        %v5094 = vld [vmem:[%s5083 + $0x50] sm:$0xff]
        %v5095 = vld [vmem:[%s5083 + $0x58] sm:$0xff]
        %v5096 = vld [vmem:[%s5083 + $0x60] sm:$0xff]
        %v5097 = vld [vmem:[%s5083 + $0x68] sm:$0xff]
        %v5098 = vld [vmem:[%s5083 + $0x70] sm:$0xff]
        %v5099 = vld [vmem:[%s5083 + $0x78] sm:$0xff]
        %5100 = vmatpush.msra.mxu0 %v5099
        %5101 = vmatpush.msra.mxu0 %v5098
        %5102 = vmatpush.msra.mxu0 %v5097
        %5103 = vmatpush.msra.mxu0 %v5096
        %5104 = vmatpush.msra.mxu0 %v5095
        %5105 = vmatpush.msra.mxu0 %v5094
        %5106 = vmatpush.msra.mxu0 %v5093
        %5107 = vmatpush.msra.mxu0 %v5092
        %5108 = vmatpush.msra.mxu0 %v5091
        %5109 = vmatpush.msra.mxu0 %v5090
        %5110 = vmatpush.msra.mxu0 %v5089
        %5111 = vmatpush.msra.mxu0 %v5088
        %5112 = vmatpush.msra.mxu0 %v5087
        %5113 = vmatpush.msra.mxu0 %v5086
        %5114 = vmatpush.msra.mxu0 %v5085
        %5115 = vmatpush.msra.mxu0 %v5084
        %5116 = vmatmul.f32.gmra.mxu0 %v5019
        %v5117 = vpop.f32.mrf.mxu0
        %v5118 = vadd.f32 0.0, %v5117
        %5119 = vmatmul.f32.gmra.mxu0 %v5020
        %v5120 = vpop.f32.mrf.mxu0
        %v5121 = vadd.f32 0.0, %v5120
        %5122 = vmatmul.f32.gmra.mxu0 %v5021
        %v5123 = vpop.f32.mrf.mxu0
        %v5124 = vadd.f32 0.0, %v5123
        %5125 = vmatmul.f32.gmra.mxu0 %v5022
        %v5126 = vpop.f32.mrf.mxu0
        %v5127 = vadd.f32 0.0, %v5126
        %5128 = vmatmul.f32.gmra.mxu0 %v5023
        %v5129 = vpop.f32.mrf.mxu0
        %v5130 = vadd.f32 0.0, %v5129
        %5131 = vmatmul.f32.gmra.mxu0 %v5024
        %v5132 = vpop.f32.mrf.mxu0
        %v5133 = vadd.f32 0.0, %v5132
        %5134 = vmatmul.f32.gmra.mxu0 %v5025
        %v5135 = vpop.f32.mrf.mxu0
        %v5136 = vadd.f32 0.0, %v5135
        %5137 = vmatmul.f32.gmra.mxu0 %v5026
        %v5138 = vpop.f32.mrf.mxu0
        %v5139 = vadd.f32 0.0, %v5138
        %5140 = vmatmul.f32.gmra.mxu0 %v5027
        %v5141 = vpop.f32.mrf.mxu0
        %v5142 = vadd.f32 0.0, %v5141
        %5143 = vmatmul.f32.gmra.mxu0 %v5028
        %v5144 = vpop.f32.mrf.mxu0
        %v5145 = vadd.f32 0.0, %v5144
        %5146 = vmatmul.f32.gmra.mxu0 %v5029
        %v5147 = vpop.f32.mrf.mxu0
        %v5148 = vadd.f32 0.0, %v5147
        %5149 = vmatmul.f32.gmra.mxu0 %v5030
        %v5150 = vpop.f32.mrf.mxu0
        %v5151 = vadd.f32 0.0, %v5150
        %5152 = vmatmul.f32.gmra.mxu0 %v5031
        %v5153 = vpop.f32.mrf.mxu0
        %v5154 = vadd.f32 0.0, %v5153
        %5155 = vmatmul.f32.gmra.mxu0 %v5032
        %v5156 = vpop.f32.mrf.mxu0
        %v5157 = vadd.f32 0.0, %v5156
        %5158 = vmatmul.f32.gmra.mxu0 %v5033
        %v5159 = vpop.f32.mrf.mxu0
        %v5160 = vadd.f32 0.0, %v5159
        %5161 = vmatmul.f32.gmra.mxu0 %v5034
        %v5162 = vpop.f32.mrf.mxu0
        %v5163 = vadd.f32 0.0, %v5162
        %5164 = vmatmul.f32.gmra.mxu0 %v5035
        %v5165 = vpop.f32.mrf.mxu0
        %v5166 = vadd.f32 0.0, %v5165
        %5167 = vmatmul.f32.gmra.mxu0 %v5036
        %v5168 = vpop.f32.mrf.mxu0
        %v5169 = vadd.f32 0.0, %v5168
        %5170 = vmatmul.f32.gmra.mxu0 %v5037
        %v5171 = vpop.f32.mrf.mxu0
        %v5172 = vadd.f32 0.0, %v5171
        %5173 = vmatmul.f32.gmra.mxu0 %v5038
        %v5174 = vpop.f32.mrf.mxu0
        %v5175 = vadd.f32 0.0, %v5174
        %5176 = vmatmul.f32.gmra.mxu0 %v5039
        %v5177 = vpop.f32.mrf.mxu0
        %v5178 = vadd.f32 0.0, %v5177
        %5179 = vmatmul.f32.gmra.mxu0 %v5040
        %v5180 = vpop.f32.mrf.mxu0
        %v5181 = vadd.f32 0.0, %v5180
        %5182 = vmatmul.f32.gmra.mxu0 %v5041
        %v5183 = vpop.f32.mrf.mxu0
        %v5184 = vadd.f32 0.0, %v5183
        %5185 = vmatmul.f32.gmra.mxu0 %v5042
        %v5186 = vpop.f32.mrf.mxu0
        %v5187 = vadd.f32 0.0, %v5186
        %5188 = vmatmul.f32.gmra.mxu0 %v5043
        %v5189 = vpop.f32.mrf.mxu0
        %v5190 = vadd.f32 0.0, %v5189
        %5191 = vmatmul.f32.gmra.mxu0 %v5044
        %v5192 = vpop.f32.mrf.mxu0
        %v5193 = vadd.f32 0.0, %v5192
        %5194 = vmatmul.f32.gmra.mxu0 %v5045
        %v5195 = vpop.f32.mrf.mxu0
        %v5196 = vadd.f32 0.0, %v5195
        %5197 = vmatmul.f32.gmra.mxu0 %v5046
        %v5198 = vpop.f32.mrf.mxu0
        %v5199 = vadd.f32 0.0, %v5198
        %5200 = vmatmul.f32.gmra.mxu0 %v5047
        %v5201 = vpop.f32.mrf.mxu0
        %v5202 = vadd.f32 0.0, %v5201
        %5203 = vmatmul.f32.gmra.mxu0 %v5048
        %v5204 = vpop.f32.mrf.mxu0
        %v5205 = vadd.f32 0.0, %v5204
        %5206 = vmatmul.f32.gmra.mxu0 %v5049
        %v5207 = vpop.f32.mrf.mxu0
        %v5208 = vadd.f32 0.0, %v5207
        %5209 = vmatmul.f32.gmra.mxu0 %v5050
        %v5210 = vpop.f32.mrf.mxu0
        %v5211 = vadd.f32 0.0, %v5210
        %5212 = vdwg.mxu0
        %v5213 = vadd.f32 %v5051, %v5118
        %v5214 = vadd.f32 %v5052, %v5121
        %v5215 = vadd.f32 %v5053, %v5124
        %v5216 = vadd.f32 %v5054, %v5127
        %v5217 = vadd.f32 %v5055, %v5130
        %v5218 = vadd.f32 %v5056, %v5133
        %v5219 = vadd.f32 %v5057, %v5136
        %v5220 = vadd.f32 %v5058, %v5139
        %v5221 = vadd.f32 %v5059, %v5142
        %v5222 = vadd.f32 %v5060, %v5145
        %v5223 = vadd.f32 %v5061, %v5148
        %v5224 = vadd.f32 %v5062, %v5151
        %v5225 = vadd.f32 %v5063, %v5154
        %v5226 = vadd.f32 %v5064, %v5157
        %v5227 = vadd.f32 %v5065, %v5160
        %v5228 = vadd.f32 %v5066, %v5163
        %v5229 = vadd.f32 %v5067, %v5166
        %v5230 = vadd.f32 %v5068, %v5169
        %v5231 = vadd.f32 %v5069, %v5172
        %v5232 = vadd.f32 %v5070, %v5175
        %v5233 = vadd.f32 %v5071, %v5178
        %v5234 = vadd.f32 %v5072, %v5181
        %v5235 = vadd.f32 %v5073, %v5184
        %v5236 = vadd.f32 %v5074, %v5187
        %v5237 = vadd.f32 %v5075, %v5190
        %v5238 = vadd.f32 %v5076, %v5193
        %v5239 = vadd.f32 %v5077, %v5196
        %v5240 = vadd.f32 %v5078, %v5199
        %v5241 = vadd.f32 %v5079, %v5202
        %v5242 = vadd.f32 %v5080, %v5205
        %v5243 = vadd.f32 %v5081, %v5208
        %v5244 = vadd.f32 %v5082, %v5211
        %5245 = vst [vmem:[#allocation3] sm:$0xff] %v5213
        %5246 = vst [vmem:[#allocation3 + $0x8] sm:$0xff] %v5214
        %5247 = vst [vmem:[#allocation3 + $0x10] sm:$0xff] %v5215
        %5248 = vst [vmem:[#allocation3 + $0x18] sm:$0xff] %v5216
        %5249 = vst [vmem:[#allocation3 + $0x20] sm:$0xff] %v5217
        %5250 = vst [vmem:[#allocation3 + $0x28] sm:$0xff] %v5218
        %5251 = vst [vmem:[#allocation3 + $0x30] sm:$0xff] %v5219
        %5252 = vst [vmem:[#allocation3 + $0x38] sm:$0xff] %v5220
        %5253 = vst [vmem:[#allocation3 + $0x40] sm:$0xff] %v5221
        %5254 = vst [vmem:[#allocation3 + $0x48] sm:$0xff] %v5222
        %5255 = vst [vmem:[#allocation3 + $0x50] sm:$0xff] %v5223
        %5256 = vst [vmem:[#allocation3 + $0x58] sm:$0xff] %v5224
        %5257 = vst [vmem:[#allocation3 + $0x60] sm:$0xff] %v5225
        %5258 = vst [vmem:[#allocation3 + $0x68] sm:$0xff] %v5226
        %5259 = vst [vmem:[#allocation3 + $0x70] sm:$0xff] %v5227
        %5260 = vst [vmem:[#allocation3 + $0x78] sm:$0xff] %v5228
        %5261 = vst [vmem:[#allocation3 + $0x80] sm:$0xff] %v5229
        %5262 = vst [vmem:[#allocation3 + $0x88] sm:$0xff] %v5230
        %5263 = vst [vmem:[#allocation3 + $0x90] sm:$0xff] %v5231
        %5264 = vst [vmem:[#allocation3 + $0x98] sm:$0xff] %v5232
        %5265 = vst [vmem:[#allocation3 + $0xa0] sm:$0xff] %v5233
        %5266 = vst [vmem:[#allocation3 + $0xa8] sm:$0xff] %v5234
        %5267 = vst [vmem:[#allocation3 + $0xb0] sm:$0xff] %v5235
        %5268 = vst [vmem:[#allocation3 + $0xb8] sm:$0xff] %v5236
        %5269 = vst [vmem:[#allocation3 + $0xc0] sm:$0xff] %v5237
        %5270 = vst [vmem:[#allocation3 + $0xc8] sm:$0xff] %v5238
        %5271 = vst [vmem:[#allocation3 + $0xd0] sm:$0xff] %v5239
        %5272 = vst [vmem:[#allocation3 + $0xd8] sm:$0xff] %v5240
        %5273 = vst [vmem:[#allocation3 + $0xe0] sm:$0xff] %v5241
        %5274 = vst [vmem:[#allocation3 + $0xe8] sm:$0xff] %v5242
        %5275 = vst [vmem:[#allocation3 + $0xf0] sm:$0xff] %v5243
        %5276 = vst [vmem:[#allocation3 + $0xf8] sm:$0xff] %v5244
        %v5277 = vld [vmem:[%s379 + $0x2] sm:$0xff]
        %v5278 = vld [vmem:[%s379 + $0xa] sm:$0xff]
        %v5279 = vld [vmem:[%s379 + $0x1a] sm:$0xff]
        %v5280 = vld [vmem:[%s379 + $0x22] sm:$0xff]
        %v5281 = vld [vmem:[%s379 + $0x32] sm:$0xff]
        %v5282 = vld [vmem:[%s379 + $0x3a] sm:$0xff]
        %v5283 = vld [vmem:[%s379 + $0x4a] sm:$0xff]
        %v5284 = vld [vmem:[%s379 + $0x52] sm:$0xff]
        %v5285 = vld [vmem:[%s379 + $0x62] sm:$0xff]
        %v5286 = vld [vmem:[%s379 + $0x6a] sm:$0xff]
        %v5287 = vld [vmem:[%s379 + $0x7a] sm:$0xff]
        %v5288 = vld [vmem:[%s379 + $0x82] sm:$0xff]
        %v5289 = vld [vmem:[%s379 + $0x92] sm:$0xff]
        %v5290 = vld [vmem:[%s379 + $0x9a] sm:$0xff]
        %v5291 = vld [vmem:[%s379 + $0xaa] sm:$0xff]
        %v5292 = vld [vmem:[%s379 + $0xb2] sm:$0xff]
        %v5293 = vld [vmem:[%s379 + $0xc2] sm:$0xff]
        %v5294 = vld [vmem:[%s379 + $0xca] sm:$0xff]
        %v5295 = vld [vmem:[%s379 + $0xda] sm:$0xff]
        %v5296 = vld [vmem:[%s379 + $0xe2] sm:$0xff]
        %v5297 = vld [vmem:[%s379 + $0xf2] sm:$0xff]
        %v5298 = vld [vmem:[%s379 + $0xfa] sm:$0xff]
        %v5299 = vld [vmem:[%s379 + $0x10a] sm:$0xff]
        %v5300 = vld [vmem:[%s379 + $0x112] sm:$0xff]
        %v5301 = vld [vmem:[%s379 + $0x122] sm:$0xff]
        %v5302 = vld [vmem:[%s379 + $0x12a] sm:$0xff]
        %v5303 = vld [vmem:[%s379 + $0x13a] sm:$0xff]
        %v5304 = vld [vmem:[%s379 + $0x142] sm:$0xff]
        %v5305 = vld [vmem:[%s379 + $0x152] sm:$0xff]
        %v5306 = vld [vmem:[%s379 + $0x15a] sm:$0xff]
        %v5307 = vld [vmem:[%s379 + $0x16a] sm:$0xff]
        %v5308 = vld [vmem:[%s379 + $0x172] sm:$0xff]
        %v5309 = vld [vmem:[#allocation3] sm:$0xff]
        %v5310 = vld [vmem:[#allocation3 + $0x8] sm:$0xff]
        %v5311 = vld [vmem:[#allocation3 + $0x10] sm:$0xff]
        %v5312 = vld [vmem:[#allocation3 + $0x18] sm:$0xff]
        %v5313 = vld [vmem:[#allocation3 + $0x20] sm:$0xff]
        %v5314 = vld [vmem:[#allocation3 + $0x28] sm:$0xff]
        %v5315 = vld [vmem:[#allocation3 + $0x30] sm:$0xff]
        %v5316 = vld [vmem:[#allocation3 + $0x38] sm:$0xff]
        %v5317 = vld [vmem:[#allocation3 + $0x40] sm:$0xff]
        %v5318 = vld [vmem:[#allocation3 + $0x48] sm:$0xff]
        %v5319 = vld [vmem:[#allocation3 + $0x50] sm:$0xff]
        %v5320 = vld [vmem:[#allocation3 + $0x58] sm:$0xff]
        %v5321 = vld [vmem:[#allocation3 + $0x60] sm:$0xff]
        %v5322 = vld [vmem:[#allocation3 + $0x68] sm:$0xff]
        %v5323 = vld [vmem:[#allocation3 + $0x70] sm:$0xff]
        %v5324 = vld [vmem:[#allocation3 + $0x78] sm:$0xff]
        %v5325 = vld [vmem:[#allocation3 + $0x80] sm:$0xff]
        %v5326 = vld [vmem:[#allocation3 + $0x88] sm:$0xff]
        %v5327 = vld [vmem:[#allocation3 + $0x90] sm:$0xff]
        %v5328 = vld [vmem:[#allocation3 + $0x98] sm:$0xff]
        %v5329 = vld [vmem:[#allocation3 + $0xa0] sm:$0xff]
        %v5330 = vld [vmem:[#allocation3 + $0xa8] sm:$0xff]
        %v5331 = vld [vmem:[#allocation3 + $0xb0] sm:$0xff]
        %v5332 = vld [vmem:[#allocation3 + $0xb8] sm:$0xff]
        %v5333 = vld [vmem:[#allocation3 + $0xc0] sm:$0xff]
        %v5334 = vld [vmem:[#allocation3 + $0xc8] sm:$0xff]
        %v5335 = vld [vmem:[#allocation3 + $0xd0] sm:$0xff]
        %v5336 = vld [vmem:[#allocation3 + $0xd8] sm:$0xff]
        %v5337 = vld [vmem:[#allocation3 + $0xe0] sm:$0xff]
        %v5338 = vld [vmem:[#allocation3 + $0xe8] sm:$0xff]
        %v5339 = vld [vmem:[#allocation3 + $0xf0] sm:$0xff]
        %v5340 = vld [vmem:[#allocation3 + $0xf8] sm:$0xff]
        %s5341 = scalar_lea.vmem [#allocation6], 1024
        %v5342 = vld [vmem:[%s5341] sm:$0xff]
        %v5343 = vld [vmem:[%s5341 + $0x8] sm:$0xff]
        %v5344 = vld [vmem:[%s5341 + $0x10] sm:$0xff]
        %v5345 = vld [vmem:[%s5341 + $0x18] sm:$0xff]
        %v5346 = vld [vmem:[%s5341 + $0x20] sm:$0xff]
        %v5347 = vld [vmem:[%s5341 + $0x28] sm:$0xff]
        %v5348 = vld [vmem:[%s5341 + $0x30] sm:$0xff]
        %v5349 = vld [vmem:[%s5341 + $0x38] sm:$0xff]
        %v5350 = vld [vmem:[%s5341 + $0x40] sm:$0xff]
        %v5351 = vld [vmem:[%s5341 + $0x48] sm:$0xff]
        %v5352 = vld [vmem:[%s5341 + $0x50] sm:$0xff]
        %v5353 = vld [vmem:[%s5341 + $0x58] sm:$0xff]
        %v5354 = vld [vmem:[%s5341 + $0x60] sm:$0xff]
        %v5355 = vld [vmem:[%s5341 + $0x68] sm:$0xff]
        %v5356 = vld [vmem:[%s5341 + $0x70] sm:$0xff]
        %v5357 = vld [vmem:[%s5341 + $0x78] sm:$0xff]
        %5358 = vmatpush.msra.mxu0 %v5357
        %5359 = vmatpush.msra.mxu0 %v5356
        %5360 = vmatpush.msra.mxu0 %v5355
        %5361 = vmatpush.msra.mxu0 %v5354
        %5362 = vmatpush.msra.mxu0 %v5353
        %5363 = vmatpush.msra.mxu0 %v5352
        %5364 = vmatpush.msra.mxu0 %v5351
        %5365 = vmatpush.msra.mxu0 %v5350
        %5366 = vmatpush.msra.mxu0 %v5349
        %5367 = vmatpush.msra.mxu0 %v5348
        %5368 = vmatpush.msra.mxu0 %v5347
        %5369 = vmatpush.msra.mxu0 %v5346
        %5370 = vmatpush.msra.mxu0 %v5345
        %5371 = vmatpush.msra.mxu0 %v5344
        %5372 = vmatpush.msra.mxu0 %v5343
        %5373 = vmatpush.msra.mxu0 %v5342
        %5374 = vmatmul.f32.gmra.mxu0 %v5277
        %v5375 = vpop.f32.mrf.mxu0
        %v5376 = vadd.f32 0.0, %v5375
        %5377 = vmatmul.f32.gmra.mxu0 %v5278
        %v5378 = vpop.f32.mrf.mxu0
        %v5379 = vadd.f32 0.0, %v5378
        %5380 = vmatmul.f32.gmra.mxu0 %v5279
        %v5381 = vpop.f32.mrf.mxu0
        %v5382 = vadd.f32 0.0, %v5381
        %5383 = vmatmul.f32.gmra.mxu0 %v5280
        %v5384 = vpop.f32.mrf.mxu0
        %v5385 = vadd.f32 0.0, %v5384
        %5386 = vmatmul.f32.gmra.mxu0 %v5281
        %v5387 = vpop.f32.mrf.mxu0
        %v5388 = vadd.f32 0.0, %v5387
        %5389 = vmatmul.f32.gmra.mxu0 %v5282
        %v5390 = vpop.f32.mrf.mxu0
        %v5391 = vadd.f32 0.0, %v5390
        %5392 = vmatmul.f32.gmra.mxu0 %v5283
        %v5393 = vpop.f32.mrf.mxu0
        %v5394 = vadd.f32 0.0, %v5393
        %5395 = vmatmul.f32.gmra.mxu0 %v5284
        %v5396 = vpop.f32.mrf.mxu0
        %v5397 = vadd.f32 0.0, %v5396
        %5398 = vmatmul.f32.gmra.mxu0 %v5285
        %v5399 = vpop.f32.mrf.mxu0
        %v5400 = vadd.f32 0.0, %v5399
        %5401 = vmatmul.f32.gmra.mxu0 %v5286
        %v5402 = vpop.f32.mrf.mxu0
        %v5403 = vadd.f32 0.0, %v5402
        %5404 = vmatmul.f32.gmra.mxu0 %v5287
        %v5405 = vpop.f32.mrf.mxu0
        %v5406 = vadd.f32 0.0, %v5405
        %5407 = vmatmul.f32.gmra.mxu0 %v5288
        %v5408 = vpop.f32.mrf.mxu0
        %v5409 = vadd.f32 0.0, %v5408
        %5410 = vmatmul.f32.gmra.mxu0 %v5289
        %v5411 = vpop.f32.mrf.mxu0
        %v5412 = vadd.f32 0.0, %v5411
        %5413 = vmatmul.f32.gmra.mxu0 %v5290
        %v5414 = vpop.f32.mrf.mxu0
        %v5415 = vadd.f32 0.0, %v5414
        %5416 = vmatmul.f32.gmra.mxu0 %v5291
        %v5417 = vpop.f32.mrf.mxu0
        %v5418 = vadd.f32 0.0, %v5417
        %5419 = vmatmul.f32.gmra.mxu0 %v5292
        %v5420 = vpop.f32.mrf.mxu0
        %v5421 = vadd.f32 0.0, %v5420
        %5422 = vmatmul.f32.gmra.mxu0 %v5293
        %v5423 = vpop.f32.mrf.mxu0
        %v5424 = vadd.f32 0.0, %v5423
        %5425 = vmatmul.f32.gmra.mxu0 %v5294
        %v5426 = vpop.f32.mrf.mxu0
        %v5427 = vadd.f32 0.0, %v5426
        %5428 = vmatmul.f32.gmra.mxu0 %v5295
        %v5429 = vpop.f32.mrf.mxu0
        %v5430 = vadd.f32 0.0, %v5429
        %5431 = vmatmul.f32.gmra.mxu0 %v5296
        %v5432 = vpop.f32.mrf.mxu0
        %v5433 = vadd.f32 0.0, %v5432
        %5434 = vmatmul.f32.gmra.mxu0 %v5297
        %v5435 = vpop.f32.mrf.mxu0
        %v5436 = vadd.f32 0.0, %v5435
        %5437 = vmatmul.f32.gmra.mxu0 %v5298
        %v5438 = vpop.f32.mrf.mxu0
        %v5439 = vadd.f32 0.0, %v5438
        %5440 = vmatmul.f32.gmra.mxu0 %v5299
        %v5441 = vpop.f32.mrf.mxu0
        %v5442 = vadd.f32 0.0, %v5441
        %5443 = vmatmul.f32.gmra.mxu0 %v5300
        %v5444 = vpop.f32.mrf.mxu0
        %v5445 = vadd.f32 0.0, %v5444
        %5446 = vmatmul.f32.gmra.mxu0 %v5301
        %v5447 = vpop.f32.mrf.mxu0
        %v5448 = vadd.f32 0.0, %v5447
        %5449 = vmatmul.f32.gmra.mxu0 %v5302
        %v5450 = vpop.f32.mrf.mxu0
        %v5451 = vadd.f32 0.0, %v5450
        %5452 = vmatmul.f32.gmra.mxu0 %v5303
        %v5453 = vpop.f32.mrf.mxu0
        %v5454 = vadd.f32 0.0, %v5453
        %5455 = vmatmul.f32.gmra.mxu0 %v5304
        %v5456 = vpop.f32.mrf.mxu0
        %v5457 = vadd.f32 0.0, %v5456
        %5458 = vmatmul.f32.gmra.mxu0 %v5305
        %v5459 = vpop.f32.mrf.mxu0
        %v5460 = vadd.f32 0.0, %v5459
        %5461 = vmatmul.f32.gmra.mxu0 %v5306
        %v5462 = vpop.f32.mrf.mxu0
        %v5463 = vadd.f32 0.0, %v5462
        %5464 = vmatmul.f32.gmra.mxu0 %v5307
        %v5465 = vpop.f32.mrf.mxu0
        %v5466 = vadd.f32 0.0, %v5465
        %5467 = vmatmul.f32.gmra.mxu0 %v5308
        %v5468 = vpop.f32.mrf.mxu0
        %v5469 = vadd.f32 0.0, %v5468
        %5470 = vdwg.mxu0
        %v5471 = vadd.f32 %v5309, %v5376
        %v5472 = vadd.f32 %v5310, %v5379
        %v5473 = vadd.f32 %v5311, %v5382
        %v5474 = vadd.f32 %v5312, %v5385
        %v5475 = vadd.f32 %v5313, %v5388
        %v5476 = vadd.f32 %v5314, %v5391
        %v5477 = vadd.f32 %v5315, %v5394
        %v5478 = vadd.f32 %v5316, %v5397
        %v5479 = vadd.f32 %v5317, %v5400
        %v5480 = vadd.f32 %v5318, %v5403
        %v5481 = vadd.f32 %v5319, %v5406
        %v5482 = vadd.f32 %v5320, %v5409
        %v5483 = vadd.f32 %v5321, %v5412
        %v5484 = vadd.f32 %v5322, %v5415
        %v5485 = vadd.f32 %v5323, %v5418
        %v5486 = vadd.f32 %v5324, %v5421
        %v5487 = vadd.f32 %v5325, %v5424
        %v5488 = vadd.f32 %v5326, %v5427
        %v5489 = vadd.f32 %v5327, %v5430
        %v5490 = vadd.f32 %v5328, %v5433
        %v5491 = vadd.f32 %v5329, %v5436
        %v5492 = vadd.f32 %v5330, %v5439
        %v5493 = vadd.f32 %v5331, %v5442
        %v5494 = vadd.f32 %v5332, %v5445
        %v5495 = vadd.f32 %v5333, %v5448
        %v5496 = vadd.f32 %v5334, %v5451
        %v5497 = vadd.f32 %v5335, %v5454
        %v5498 = vadd.f32 %v5336, %v5457
        %v5499 = vadd.f32 %v5337, %v5460
        %v5500 = vadd.f32 %v5338, %v5463
        %v5501 = vadd.f32 %v5339, %v5466
        %v5502 = vadd.f32 %v5340, %v5469
        %5503 = vst [vmem:[#allocation3] sm:$0xff] %v5471
        %5504 = vst [vmem:[#allocation3 + $0x8] sm:$0xff] %v5472
        %5505 = vst [vmem:[#allocation3 + $0x10] sm:$0xff] %v5473
        %5506 = vst [vmem:[#allocation3 + $0x18] sm:$0xff] %v5474
        %5507 = vst [vmem:[#allocation3 + $0x20] sm:$0xff] %v5475
        %5508 = vst [vmem:[#allocation3 + $0x28] sm:$0xff] %v5476
        %5509 = vst [vmem:[#allocation3 + $0x30] sm:$0xff] %v5477
        %5510 = vst [vmem:[#allocation3 + $0x38] sm:$0xff] %v5478
        %5511 = vst [vmem:[#allocation3 + $0x40] sm:$0xff] %v5479
        %5512 = vst [vmem:[#allocation3 + $0x48] sm:$0xff] %v5480
        %5513 = vst [vmem:[#allocation3 + $0x50] sm:$0xff] %v5481
        %5514 = vst [vmem:[#allocation3 + $0x58] sm:$0xff] %v5482
        %5515 = vst [vmem:[#allocation3 + $0x60] sm:$0xff] %v5483
        %5516 = vst [vmem:[#allocation3 + $0x68] sm:$0xff] %v5484
        %5517 = vst [vmem:[#allocation3 + $0x70] sm:$0xff] %v5485
        %5518 = vst [vmem:[#allocation3 + $0x78] sm:$0xff] %v5486
        %5519 = vst [vmem:[#allocation3 + $0x80] sm:$0xff] %v5487
        %5520 = vst [vmem:[#allocation3 + $0x88] sm:$0xff] %v5488
        %5521 = vst [vmem:[#allocation3 + $0x90] sm:$0xff] %v5489
        %5522 = vst [vmem:[#allocation3 + $0x98] sm:$0xff] %v5490
        %5523 = vst [vmem:[#allocation3 + $0xa0] sm:$0xff] %v5491
        %5524 = vst [vmem:[#allocation3 + $0xa8] sm:$0xff] %v5492
        %5525 = vst [vmem:[#allocation3 + $0xb0] sm:$0xff] %v5493
        %5526 = vst [vmem:[#allocation3 + $0xb8] sm:$0xff] %v5494
        %5527 = vst [vmem:[#allocation3 + $0xc0] sm:$0xff] %v5495
        %5528 = vst [vmem:[#allocation3 + $0xc8] sm:$0xff] %v5496
        %5529 = vst [vmem:[#allocation3 + $0xd0] sm:$0xff] %v5497
        %5530 = vst [vmem:[#allocation3 + $0xd8] sm:$0xff] %v5498
        %5531 = vst [vmem:[#allocation3 + $0xe0] sm:$0xff] %v5499
        %5532 = vst [vmem:[#allocation3 + $0xe8] sm:$0xff] %v5500
        %5533 = vst [vmem:[#allocation3 + $0xf0] sm:$0xff] %v5501
        %5534 = vst [vmem:[#allocation3 + $0xf8] sm:$0xff] %v5502
        %v5535 = vld [vmem:[#allocation3] sm:$0xff]
        %v5536 = vld [vmem:[#allocation3 + $0x8] sm:$0xff]
        %v5537 = vld [vmem:[#allocation3 + $0x10] sm:$0xff]
        %v5538 = vld [vmem:[#allocation3 + $0x18] sm:$0xff]
        %v5539 = vld [vmem:[#allocation3 + $0x20] sm:$0xff]
        %v5540 = vld [vmem:[#allocation3 + $0x28] sm:$0xff]
        %v5541 = vld [vmem:[#allocation3 + $0x30] sm:$0xff]
        %v5542 = vld [vmem:[#allocation3 + $0x38] sm:$0xff]
        %v5543 = vld [vmem:[#allocation3 + $0x40] sm:$0xff]
        %v5544 = vld [vmem:[#allocation3 + $0x48] sm:$0xff]
        %v5545 = vld [vmem:[#allocation3 + $0x50] sm:$0xff]
        %v5546 = vld [vmem:[#allocation3 + $0x58] sm:$0xff]
        %v5547 = vld [vmem:[#allocation3 + $0x60] sm:$0xff]
        %v5548 = vld [vmem:[#allocation3 + $0x68] sm:$0xff]
        %v5549 = vld [vmem:[#allocation3 + $0x70] sm:$0xff]
        %v5550 = vld [vmem:[#allocation3 + $0x78] sm:$0xff]
        %v5551 = vld [vmem:[#allocation3 + $0x80] sm:$0xff]
        %v5552 = vld [vmem:[#allocation3 + $0x88] sm:$0xff]
        %v5553 = vld [vmem:[#allocation3 + $0x90] sm:$0xff]
        %v5554 = vld [vmem:[#allocation3 + $0x98] sm:$0xff]
        %v5555 = vld [vmem:[#allocation3 + $0xa0] sm:$0xff]
        %v5556 = vld [vmem:[#allocation3 + $0xa8] sm:$0xff]
        %v5557 = vld [vmem:[#allocation3 + $0xb0] sm:$0xff]
        %v5558 = vld [vmem:[#allocation3 + $0xb8] sm:$0xff]
        %v5559 = vld [vmem:[#allocation3 + $0xc0] sm:$0xff]
        %v5560 = vld [vmem:[#allocation3 + $0xc8] sm:$0xff]
        %v5561 = vld [vmem:[#allocation3 + $0xd0] sm:$0xff]
        %v5562 = vld [vmem:[#allocation3 + $0xd8] sm:$0xff]
        %v5563 = vld [vmem:[#allocation3 + $0xe0] sm:$0xff]
        %v5564 = vld [vmem:[#allocation3 + $0xe8] sm:$0xff]
        %v5565 = vld [vmem:[#allocation3 + $0xf0] sm:$0xff]
        %v5566 = vld [vmem:[#allocation3 + $0xf8] sm:$0xff]
        %v5567 = vadd.f32 %v5535, %v5536
        %v5568 = vadd.f32 %v5567, %v5537
        %v5569 = vadd.f32 %v5568, %v5538
        %v5570 = vadd.f32 %v5569, %v5539
        %v5571 = vadd.f32 %v5570, %v5540
        %v5572 = vadd.f32 %v5571, %v5541
        %v5573 = vadd.f32 %v5572, %v5542
        %v5574 = vadd.f32 %v5573, %v5543
        %v5575 = vadd.f32 %v5574, %v5544
        %v5576 = vadd.f32 %v5575, %v5545
        %v5577 = vadd.f32 %v5576, %v5546
        %v5578 = vadd.f32 %v5577, %v5547
        %v5579 = vadd.f32 %v5578, %v5548
        %v5580 = vadd.f32 %v5579, %v5549
        %v5581 = vadd.f32 %v5580, %v5550
        %v5582 = vadd.f32 %v5581, %v5551
        %v5583 = vadd.f32 %v5582, %v5552
        %v5584 = vadd.f32 %v5583, %v5553
        %v5585 = vadd.f32 %v5584, %v5554
        %v5586 = vadd.f32 %v5585, %v5555
        %v5587 = vadd.f32 %v5586, %v5556
        %v5588 = vadd.f32 %v5587, %v5557
        %v5589 = vadd.f32 %v5588, %v5558
        %v5590 = vadd.f32 %v5589, %v5559
        %v5591 = vadd.f32 %v5590, %v5560
        %v5592 = vadd.f32 %v5591, %v5561
        %v5593 = vadd.f32 %v5592, %v5562
        %v5594 = vadd.f32 %v5593, %v5563
        %v5595 = vadd.f32 %v5594, %v5564
        %v5596 = vadd.f32 %v5595, %v5565
        %v5597 = vadd.f32 %v5596, %v5566
        %v5598 = vrot.slane %v5597, 4
        %v5599 = vadd.f32 %v5597, %v5598
        %v5600 = vrot.slane %v5599, 2
        %v5601 = vadd.f32 %v5599, %v5600
        %v5602 = vrot.slane %v5601, 1
        %v5603 = vadd.f32 %v5601, %v5602
        %v5604 = vmul.f32 %v5603, 0.00390625
        %v5605 = vsub.f32 %v5535, %v5604
        %v5606 = vsub.f32 %v5536, %v5604
        %v5607 = vsub.f32 %v5537, %v5604
        %v5608 = vsub.f32 %v5538, %v5604
        %v5609 = vsub.f32 %v5539, %v5604
        %v5610 = vsub.f32 %v5540, %v5604
        %v5611 = vsub.f32 %v5541, %v5604
        %v5612 = vsub.f32 %v5542, %v5604
        %v5613 = vsub.f32 %v5543, %v5604
        %v5614 = vsub.f32 %v5544, %v5604
        %v5615 = vsub.f32 %v5545, %v5604
        %v5616 = vsub.f32 %v5546, %v5604
        %v5617 = vsub.f32 %v5547, %v5604
        %v5618 = vsub.f32 %v5548, %v5604
        %v5619 = vsub.f32 %v5549, %v5604
        %v5620 = vsub.f32 %v5550, %v5604
        %v5621 = vsub.f32 %v5551, %v5604
        %v5622 = vsub.f32 %v5552, %v5604
        %v5623 = vsub.f32 %v5553, %v5604
        %v5624 = vsub.f32 %v5554, %v5604
        %v5625 = vsub.f32 %v5555, %v5604
        %v5626 = vsub.f32 %v5556, %v5604
        %v5627 = vsub.f32 %v5557, %v5604
        %v5628 = vsub.f32 %v5558, %v5604
        %v5629 = vsub.f32 %v5559, %v5604
        %v5630 = vsub.f32 %v5560, %v5604
        %v5631 = vsub.f32 %v5561, %v5604
        %v5632 = vsub.f32 %v5562, %v5604
        %v5633 = vsub.f32 %v5563, %v5604
        %v5634 = vsub.f32 %v5564, %v5604
        %v5635 = vsub.f32 %v5565, %v5604
        %v5636 = vsub.f32 %v5566, %v5604
        %v5637 = vmul.f32 %v5605, %v5605
        %v5638 = vmul.f32 %v5606, %v5606
        %v5639 = vmul.f32 %v5607, %v5607
        %v5640 = vmul.f32 %v5608, %v5608
        %v5641 = vmul.f32 %v5609, %v5609
        %v5642 = vmul.f32 %v5610, %v5610
        %v5643 = vmul.f32 %v5611, %v5611
        %v5644 = vmul.f32 %v5612, %v5612
        %v5645 = vmul.f32 %v5613, %v5613
        %v5646 = vmul.f32 %v5614, %v5614
        %v5647 = vmul.f32 %v5615, %v5615
        %v5648 = vmul.f32 %v5616, %v5616
        %v5649 = vmul.f32 %v5617, %v5617
        %v5650 = vmul.f32 %v5618, %v5618
        %v5651 = vmul.f32 %v5619, %v5619
        %v5652 = vmul.f32 %v5620, %v5620
        %v5653 = vmul.f32 %v5621, %v5621
        %v5654 = vmul.f32 %v5622, %v5622
        %v5655 = vmul.f32 %v5623, %v5623
        %v5656 = vmul.f32 %v5624, %v5624
        %v5657 = vmul.f32 %v5625, %v5625
        %v5658 = vmul.f32 %v5626, %v5626
        %v5659 = vmul.f32 %v5627, %v5627
        %v5660 = vmul.f32 %v5628, %v5628
        %v5661 = vmul.f32 %v5629, %v5629
        %v5662 = vmul.f32 %v5630, %v5630
        %v5663 = vmul.f32 %v5631, %v5631
        %v5664 = vmul.f32 %v5632, %v5632
        %v5665 = vmul.f32 %v5633, %v5633
        %v5666 = vmul.f32 %v5634, %v5634
        %v5667 = vmul.f32 %v5635, %v5635
        %v5668 = vmul.f32 %v5636, %v5636
        %v5669 = vadd.f32 %v5637, %v5638
        %v5670 = vadd.f32 %v5669, %v5639
        %v5671 = vadd.f32 %v5670, %v5640
        %v5672 = vadd.f32 %v5671, %v5641
        %v5673 = vadd.f32 %v5672, %v5642
        %v5674 = vadd.f32 %v5673, %v5643
        %v5675 = vadd.f32 %v5674, %v5644
        %v5676 = vadd.f32 %v5675, %v5645
        %v5677 = vadd.f32 %v5676, %v5646
        %v5678 = vadd.f32 %v5677, %v5647
        %v5679 = vadd.f32 %v5678, %v5648
        %v5680 = vadd.f32 %v5679, %v5649
        %v5681 = vadd.f32 %v5680, %v5650
        %v5682 = vadd.f32 %v5681, %v5651
        %v5683 = vadd.f32 %v5682, %v5652
        %v5684 = vadd.f32 %v5683, %v5653
        %v5685 = vadd.f32 %v5684, %v5654
        %v5686 = vadd.f32 %v5685, %v5655
        %v5687 = vadd.f32 %v5686, %v5656
        %v5688 = vadd.f32 %v5687, %v5657
        %v5689 = vadd.f32 %v5688, %v5658
        %v5690 = vadd.f32 %v5689, %v5659
        %v5691 = vadd.f32 %v5690, %v5660
        %v5692 = vadd.f32 %v5691, %v5661
        %v5693 = vadd.f32 %v5692, %v5662
        %v5694 = vadd.f32 %v5693, %v5663
        %v5695 = vadd.f32 %v5694, %v5664
        %v5696 = vadd.f32 %v5695, %v5665
        %v5697 = vadd.f32 %v5696, %v5666
        %v5698 = vadd.f32 %v5697, %v5667
        %v5699 = vadd.f32 %v5698, %v5668
        %v5700 = vrot.slane %v5699, 4
        %v5701 = vadd.f32 %v5699, %v5700
        %v5702 = vrot.slane %v5701, 2
        %v5703 = vadd.f32 %v5701, %v5702
        %v5704 = vrot.slane %v5703, 1
        %v5705 = vadd.f32 %v5703, %v5704
        %v5706 = vmul.f32 %v5705, 0.00390625
        %v5707 = vadd.f32 %v5706, 1e-05
        %v5708 = vrsqrt.pop %v5707
        %v5709 = vmul.f32 %v5708, %v5707
        %v5710 = vmul.f32 %v5709, %v5708
        %v5711 = vmul.f32 0.5, %v5710
        %v5712 = vsub.f32 1.5, %v5711
        %v5713 = vmul.f32 %v5708, %v5712
        %vm5714 = vweird.f32 %v5707
        %vm5715 = vweird.f32 %v5708
        %vm5716 = vmor %vm5714, %vm5715
        %v5717 = vsel %vm5716, %v5708, %v5713
        %v5718 = vmul.f32 %v5605, %v5717
        %v5719 = vmul.f32 %v5606, %v5717
        %v5720 = vmul.f32 %v5607, %v5717
        %v5721 = vmul.f32 %v5608, %v5717
        %v5722 = vmul.f32 %v5609, %v5717
        %v5723 = vmul.f32 %v5610, %v5717
        %v5724 = vmul.f32 %v5611, %v5717
        %v5725 = vmul.f32 %v5612, %v5717
        %v5726 = vmul.f32 %v5613, %v5717
        %v5727 = vmul.f32 %v5614, %v5717
        %v5728 = vmul.f32 %v5615, %v5717
        %v5729 = vmul.f32 %v5616, %v5717
        %v5730 = vmul.f32 %v5617, %v5717
        %v5731 = vmul.f32 %v5618, %v5717
        %v5732 = vmul.f32 %v5619, %v5717
        %v5733 = vmul.f32 %v5620, %v5717
        %v5734 = vmul.f32 %v5621, %v5717
        %v5735 = vmul.f32 %v5622, %v5717
        %v5736 = vmul.f32 %v5623, %v5717
        %v5737 = vmul.f32 %v5624, %v5717
        %v5738 = vmul.f32 %v5625, %v5717
        %v5739 = vmul.f32 %v5626, %v5717
        %v5740 = vmul.f32 %v5627, %v5717
        %v5741 = vmul.f32 %v5628, %v5717
        %v5742 = vmul.f32 %v5629, %v5717
        %v5743 = vmul.f32 %v5630, %v5717
        %v5744 = vmul.f32 %v5631, %v5717
        %v5745 = vmul.f32 %v5632, %v5717
        %v5746 = vmul.f32 %v5633, %v5717
        %v5747 = vmul.f32 %v5634, %v5717
        %v5748 = vmul.f32 %v5635, %v5717
        %v5749 = vmul.f32 %v5636, %v5717
        %v5750 = vld [vmem:[%s253] sm:$0xff]
        %v5751 = vld [vmem:[%s253 + $0x8] sm:$0xff]
        %v5752 = vld [vmem:[%s253 + $0x10] sm:$0xff]
        %v5753 = vld [vmem:[%s253 + $0x18] sm:$0xff]
        %v5754 = vld [vmem:[%s253 + $0x20] sm:$0xff]
        %v5755 = vld [vmem:[%s253 + $0x28] sm:$0xff]
        %v5756 = vld [vmem:[%s253 + $0x30] sm:$0xff]
        %v5757 = vld [vmem:[%s253 + $0x38] sm:$0xff]
        %v5758 = vld [vmem:[%s253 + $0x40] sm:$0xff]
        %v5759 = vld [vmem:[%s253 + $0x48] sm:$0xff]
        %v5760 = vld [vmem:[%s253 + $0x50] sm:$0xff]
        %v5761 = vld [vmem:[%s253 + $0x58] sm:$0xff]
        %v5762 = vld [vmem:[%s253 + $0x60] sm:$0xff]
        %v5763 = vld [vmem:[%s253 + $0x68] sm:$0xff]
        %v5764 = vld [vmem:[%s253 + $0x70] sm:$0xff]
        %v5765 = vld [vmem:[%s253 + $0x78] sm:$0xff]
        %v5766 = vld [vmem:[%s253 + $0x80] sm:$0xff]
        %v5767 = vld [vmem:[%s253 + $0x88] sm:$0xff]
        %v5768 = vld [vmem:[%s253 + $0x90] sm:$0xff]
        %v5769 = vld [vmem:[%s253 + $0x98] sm:$0xff]
        %v5770 = vld [vmem:[%s253 + $0xa0] sm:$0xff]
        %v5771 = vld [vmem:[%s253 + $0xa8] sm:$0xff]
        %v5772 = vld [vmem:[%s253 + $0xb0] sm:$0xff]
        %v5773 = vld [vmem:[%s253 + $0xb8] sm:$0xff]
        %v5774 = vld [vmem:[%s253 + $0xc0] sm:$0xff]
        %v5775 = vld [vmem:[%s253 + $0xc8] sm:$0xff]
        %v5776 = vld [vmem:[%s253 + $0xd0] sm:$0xff]
        %v5777 = vld [vmem:[%s253 + $0xd8] sm:$0xff]
        %v5778 = vld [vmem:[%s253 + $0xe0] sm:$0xff]
        %v5779 = vld [vmem:[%s253 + $0xe8] sm:$0xff]
        %v5780 = vld [vmem:[%s253 + $0xf0] sm:$0xff]
        %v5781 = vld [vmem:[%s253 + $0xf8] sm:$0xff]
        %v5782 = vadd.f32 %v5750, %v5718
        %v5783 = vadd.f32 %v5751, %v5719
        %v5784 = vadd.f32 %v5752, %v5720
        %v5785 = vadd.f32 %v5753, %v5721
        %v5786 = vadd.f32 %v5754, %v5722
        %v5787 = vadd.f32 %v5755, %v5723
        %v5788 = vadd.f32 %v5756, %v5724
        %v5789 = vadd.f32 %v5757, %v5725
        %v5790 = vadd.f32 %v5758, %v5726
        %v5791 = vadd.f32 %v5759, %v5727
        %v5792 = vadd.f32 %v5760, %v5728
        %v5793 = vadd.f32 %v5761, %v5729
        %v5794 = vadd.f32 %v5762, %v5730
        %v5795 = vadd.f32 %v5763, %v5731
        %v5796 = vadd.f32 %v5764, %v5732
        %v5797 = vadd.f32 %v5765, %v5733
        %v5798 = vadd.f32 %v5766, %v5734
        %v5799 = vadd.f32 %v5767, %v5735
        %v5800 = vadd.f32 %v5768, %v5736
        %v5801 = vadd.f32 %v5769, %v5737
        %v5802 = vadd.f32 %v5770, %v5738
        %v5803 = vadd.f32 %v5771, %v5739
        %v5804 = vadd.f32 %v5772, %v5740
        %v5805 = vadd.f32 %v5773, %v5741
        %v5806 = vadd.f32 %v5774, %v5742
        %v5807 = vadd.f32 %v5775, %v5743
        %v5808 = vadd.f32 %v5776, %v5744
        %v5809 = vadd.f32 %v5777, %v5745
        %v5810 = vadd.f32 %v5778, %v5746
        %v5811 = vadd.f32 %v5779, %v5747
        %v5812 = vadd.f32 %v5780, %v5748
        %v5813 = vadd.f32 %v5781, %v5749
        %5814 = vst.msk [vmem:[%s258] sm:$0xff] %vm346, %v5782
        %5815 = vst.msk [vmem:[%s258 + $0x8] sm:$0xff] %vm346, %v5783
        %5816 = vst.msk [vmem:[%s258 + $0x10] sm:$0xff] %vm346, %v5784
        %5817 = vst.msk [vmem:[%s258 + $0x18] sm:$0xff] %vm346, %v5785
        %5818 = vst.msk [vmem:[%s258 + $0x20] sm:$0xff] %vm346, %v5786
        %5819 = vst.msk [vmem:[%s258 + $0x28] sm:$0xff] %vm346, %v5787
        %5820 = vst.msk [vmem:[%s258 + $0x30] sm:$0xff] %vm346, %v5788
        %5821 = vst.msk [vmem:[%s258 + $0x38] sm:$0xff] %vm346, %v5789
        %5822 = vst.msk [vmem:[%s258 + $0x40] sm:$0xff] %vm346, %v5790
        %5823 = vst.msk [vmem:[%s258 + $0x48] sm:$0xff] %vm346, %v5791
        %5824 = vst.msk [vmem:[%s258 + $0x50] sm:$0xff] %vm346, %v5792
        %5825 = vst.msk [vmem:[%s258 + $0x58] sm:$0xff] %vm346, %v5793
        %5826 = vst.msk [vmem:[%s258 + $0x60] sm:$0xff] %vm346, %v5794
        %5827 = vst.msk [vmem:[%s258 + $0x68] sm:$0xff] %vm346, %v5795
        %5828 = vst.msk [vmem:[%s258 + $0x70] sm:$0xff] %vm346, %v5796
        %5829 = vst.msk [vmem:[%s258 + $0x78] sm:$0xff] %vm346, %v5797
        %5830 = vst.msk [vmem:[%s258 + $0x80] sm:$0xff] %vm346, %v5798
        %5831 = vst.msk [vmem:[%s258 + $0x88] sm:$0xff] %vm346, %v5799
        %5832 = vst.msk [vmem:[%s258 + $0x90] sm:$0xff] %vm346, %v5800
        %5833 = vst.msk [vmem:[%s258 + $0x98] sm:$0xff] %vm346, %v5801
        %5834 = vst.msk [vmem:[%s258 + $0xa0] sm:$0xff] %vm346, %v5802
        %5835 = vst.msk [vmem:[%s258 + $0xa8] sm:$0xff] %vm346, %v5803
        %5836 = vst.msk [vmem:[%s258 + $0xb0] sm:$0xff] %vm346, %v5804
        %5837 = vst.msk [vmem:[%s258 + $0xb8] sm:$0xff] %vm346, %v5805
        %5838 = vst.msk [vmem:[%s258 + $0xc0] sm:$0xff] %vm346, %v5806
        %5839 = vst.msk [vmem:[%s258 + $0xc8] sm:$0xff] %vm346, %v5807
        %5840 = vst.msk [vmem:[%s258 + $0xd0] sm:$0xff] %vm346, %v5808
        %5841 = vst.msk [vmem:[%s258 + $0xd8] sm:$0xff] %vm346, %v5809
        %5842 = vst.msk [vmem:[%s258 + $0xe0] sm:$0xff] %vm346, %v5810
        %5843 = vst.msk [vmem:[%s258 + $0xe8] sm:$0xff] %vm346, %v5811
        %5844 = vst.msk [vmem:[%s258 + $0xf0] sm:$0xff] %vm346, %v5812
        %5845 = vst.msk [vmem:[%s258 + $0xf8] sm:$0xff] %vm346, %v5813
        %p5846 = scmp.lt.s32.totalorder %s18, 1
        %s5847 = scalar_select %p5846, %s18, 1
        %s5848 = smul.addr %s5847, 32
        %s5849 = smul.addr %s5848, 8
        %s5850 = scalar_lea.vmem %s5, %s5849
        // Predicated region
        $region49: #{tpu_custom_call.1} parent=39 // pred_check
          %p5851 = pneg %p146
        $region50: #{tpu_custom_call.1} parent=39 // pred_check_branch
          %5853 = sbr.rel (%p5851) target = $region52
        $region51: #{tpu_custom_call.1} parent=39 // pred_region
          _
        $region52: #{tpu_custom_call.1} parent=39 // pred_fallthru
          _
      $region40: #{tpu_custom_call.1} parent=5 // pred_fallthru
        _
      %p5854 = scmp.le.s32.totalorder 2, %s13
      // Predicated region
      $region53: #{tpu_custom_call.1} parent=5 // pred_check
        %p5855 = pneg %p5854
      $region54: #{tpu_custom_call.1} parent=5 // pred_check_branch
        %5857 = sbr.rel (%p5855) target = $region56
      $region55: #{tpu_custom_call.1} parent=5 // pred_region
        %s5858 = ssub.s32 %s13, 2
        // Predicated region
        $region57: #{tpu_custom_call.1} parent=55 // pred_check
          %p5859 = pneg %p152
        $region58: #{tpu_custom_call.1} parent=55 // pred_check_branch
          %5861 = sbr.rel (%p5859) target = $region60
        $region59: #{tpu_custom_call.1} parent=55 // pred_region
          %p5862 = scmp.lt.s32.totalorder %s19, 1
          %s5863 = scalar_select %p5862, %s19, 1
          %s5864 = smul.addr %s5863, 32
          %s5865 = smul.addr %s5864, 8
          %s5866 = scalar_lea.vmem %s5, %s5865
        $region60: #{tpu_custom_call.1} parent=55 // pred_fallthru
          _
      $region56: #{tpu_custom_call.1} parent=5 // pred_fallthru
        _
    $region6: #{tpu_custom_call.1} parent=1 // loop_footer
      %s17 = sadd.s32 1, %s13
    $region7: #{tpu_custom_call.1} parent=1 // loop_footer_branch
      %12 = sbr.rel target = $region3
    $region8: #{tpu_custom_call.1} parent=1 // loop_exit
      _
    %5867 = vsyncpa [#allocation5], 1
    %s5868 = scalar_lea.sflag [#allocation5], 1
    %5869 = vsyncpa %s5868, 1
    %5870 = vsyncpa [#allocation7], 1

</llo_original>
